<compile_context>
chip_gen: v5e
topology: v5e:2x2
jax: 0.10.0
libtpu: 0.0.40
codegen_flags: <defaults>
</compile_context>

<pallas_src>
import functools

import jax
import jax.numpy as jnp
from jax import lax
from jax.experimental import pallas as pl
from jax.experimental.pallas import tpu as pltpu

LANE = 128                       # lane width  -> feature-dim padding target
BATCH_TILE = 8                   # batch elements (sublanes) per grid step
VMEM_LIMIT = 32 * 1024 * 1024    # safe on v5e/v6e (128 MiB) and v7x (64 MiB)

# Set to jnp.bfloat16 on v6e/v7x for ~2x MXU rate + half the VMEM footprint.
# Kept f32 by default for numerical parity with the fp32 PyTorch reference.
MATMUL_DTYPE = jnp.float32


def _round_up(x, m):
    return (x + m - 1) // m * m


def _mm(a, b):
    return jnp.dot(a.astype(MATMUL_DTYPE), b.astype(MATMUL_DTYPE),
                   preferred_element_type=jnp.float32)


def _bmm(a, b, dims):
    return lax.dot_general(a.astype(MATMUL_DTYPE), b.astype(MATMUL_DTYPE),
                           dimension_numbers=dims,
                           preferred_element_type=jnp.float32)


# ----------------------------------------------------------------------------
# Kernel 1: length-masked GRU recurrence (packed-sequence RNN hot path)
# Reused for encoder-forward, encoder-backward (reversed input) and decoder.
# ----------------------------------------------------------------------------
def _gru_kernel(x_ref, len_ref, h0_ref, wih_ref, whh_ref, bih_ref, bhh_ref,
                out_ref, hn_ref, gi_ref):
    # x_ref:  (T, TB, Ep) time-major embedded inputs       len_ref: (TB, 1) int32
    # h0_ref: (TB, Hp)    wih_ref: (Ep, 3Hp)  whh_ref: (Hp, 3Hp)  bih/bhh: (1, 3Hp)
    # out_ref:(T, TB, Hp) hn_ref:  (TB, Hp)   gi_ref (VMEM scratch): (T, TB, 3Hp)
    T, TB, Ep = x_ref.shape
    Hp = whh_ref.shape[0]

    # Hoisted input projection: all timesteps in one MXU matmul, input bias
    # folded in, so the serial recurrence only does h @ W_hh per step.
    gi_all = _mm(x_ref[...].reshape(T * TB, Ep), wih_ref[...]) + bih_ref[...]
    gi_ref[...] = gi_all.reshape(T, TB, 3 * Hp)

    whh = whh_ref[...]
    bhh = jnp.broadcast_to(bhh_ref[...], (TB, 3 * Hp))   # hoisted broadcast
    lens = len_ref[...]                                  # (TB, 1) int32

    def step(t, h):
        gi = gi_ref[t]                                   # (TB, 3Hp) lane-aligned gates
        gh = _mm(h, whh) + bhh
        r = jax.nn.sigmoid(gi[:, :Hp] + gh[:, :Hp])
        z = jax.nn.sigmoid(gi[:, Hp:2 * Hp] + gh[:, Hp:2 * Hp])
        n = jnp.tanh(gi[:, 2 * Hp:] + r * gh[:, 2 * Hp:])
        h_new = (1.0 - z) * n + z * h
        valid = t < lens                                 # (TB, 1) broadcasts over Hp
        # pad_packed_sequence semantics: padded steps emit zeros
        out_ref[t] = jnp.where(valid, h_new, 0.0)
        # final hidden = hidden at the last valid step of each sequence
        return jnp.where(valid, h_new, h)

    hn_ref[...] = lax.fori_loop(0, T, step, h0_ref[...], unroll=(T <= 16))


def gru_forward(x_tm, lens, h0, wih, whh, bih, bhh):
    T, Bp, Ep = x_tm.shape
    Hp = h0.shape[1]
    tb = BATCH_TILE
    out_tm, hn = pl.pallas_call(
        _gru_kernel,
        grid=(Bp // tb,),
        in_specs=[
            pl.BlockSpec((T, tb, Ep), lambda b: (0, b, 0)),
            pl.BlockSpec((tb, 1), lambda b: (b, 0)),
            pl.BlockSpec((tb, Hp), lambda b: (b, 0)),
            pl.BlockSpec((Ep, 3 * Hp), lambda b: (0, 0)),
            pl.BlockSpec((Hp, 3 * Hp), lambda b: (0, 0)),
            pl.BlockSpec((1, 3 * Hp), lambda b: (0, 0)),
            pl.BlockSpec((1, 3 * Hp), lambda b: (0, 0)),
        ],
        out_specs=[
            pl.BlockSpec((T, tb, Hp), lambda b: (0, b, 0)),
            pl.BlockSpec((tb, Hp), lambda b: (b, 0)),
        ],
        out_shape=[
            jax.ShapeDtypeStruct((T, Bp, Hp), jnp.float32),
            jax.ShapeDtypeStruct((Bp, Hp), jnp.float32),
        ],
        scratch_shapes=[pltpu.VMEM((T, tb, 3 * Hp), jnp.float32)],
        compiler_params=pltpu.CompilerParams(
            dimension_semantics=("parallel",),
            vmem_limit_bytes=VMEM_LIMIT),
    )(x_tm, lens, h0, wih, whh, bih, bhh)
    return out_tm, hn


# ----------------------------------------------------------------------------
# Kernel 2: encoder hidden projection  h0_dec = tanh([h_fwd, h_bwd] @ W_fc + b)
# (fc weight split into fwd/bwd blocks so no in-kernel concat is needed)
# ----------------------------------------------------------------------------
def _enc_hid_kernel(hf_ref, hb_ref, wf_ref, wb_ref, b_ref, h_ref):
    h_ref[...] = jnp.tanh(_mm(hf_ref[...], wf_ref[...])
                          + _mm(hb_ref[...], wb_ref[...]) + b_ref[...])


def enc_hid_forward(hf, hb, wf, wb, b):
    Bp, Hp = hf.shape
    tb = BATCH_TILE
    return pl.pallas_call(
        _enc_hid_kernel,
        grid=(Bp // tb,),
        in_specs=[
            pl.BlockSpec((tb, Hp), lambda i: (i, 0)),
            pl.BlockSpec((tb, Hp), lambda i: (i, 0)),
            pl.BlockSpec((Hp, Hp), lambda i: (0, 0)),
            pl.BlockSpec((Hp, Hp), lambda i: (0, 0)),
            pl.BlockSpec((1, Hp), lambda i: (0, 0)),
        ],
        out_specs=pl.BlockSpec((tb, Hp), lambda i: (i, 0)),
        out_shape=jax.ShapeDtypeStruct((Bp, Hp), jnp.float32),
        compiler_params=pltpu.CompilerParams(
            dimension_semantics=("parallel",),
            vmem_limit_bytes=VMEM_LIMIT),
    )(hf, hb, wf, wb, b)


# ----------------------------------------------------------------------------
# Kernel 3: Luong attention + output projection + log_softmax (batch-tiled)
# ----------------------------------------------------------------------------
def _attn_out_kernel(ctx_ref, dec_ref, w_in_ref, w_oc_ref, w_oo_ref, b_o_ref,
                     w_v_ref, b_v_ref, logp_ref, attn_ref, *, tx, v):
    # ctx_ref: (TB, Txp, C2p)   dec_ref: (TB, Ty, Hp)
    # logp_ref:(TB, Ty, Vp)     attn_ref:(TB, Ty, Txp)
    TB, Txp, C2p = ctx_ref.shape
    Ty, Hp = dec_ref.shape[1], dec_ref.shape[2]
    Vp = w_v_ref.shape[1]

    ctx = ctx_ref[...]
    dec = dec_ref[...]

    # linear_in over all (batch, src-pos) rows as one MXU matmul
    ctx_in = _mm(ctx.reshape(TB * Txp, C2p), w_in_ref[...]).reshape(TB, Txp, Hp)

    # scores: contract the shared hidden axis directly (no XLU transpose)
    scores = _bmm(dec, ctx_in, (((2,), (2,)), ((0,), (0,))))     # (TB, Ty, Txp)

    # Mask only the lane-padding columns.  The reference masked_fill is an
    # out-of-place op whose result is discarded -> no length mask applied.
    col = lax.broadcasted_iota(jnp.int32, (1, 1, Txp), 2)
    scores = jnp.where(col < tx, scores, -1e30)

    m = jnp.max(scores, axis=-1, keepdims=True)
    e = jnp.exp(scores - m)
    p = e * pl.reciprocal(jnp.sum(e, axis=-1, keepdims=True), approx=True)
    attn_ref[...] = p

    # context vectors: batched (Ty, Txp) x (Txp, C2p)
    cvec = _bmm(p, ctx, (((2,), (1,)), ((0,), (0,))))            # (TB, Ty, C2p)

    # linear_out(cat([context, output], -1)) split into two lane-aligned matmuls
    h = jnp.tanh(_mm(cvec.reshape(TB * Ty, C2p), w_oc_ref[...])
                 + _mm(dec.reshape(TB * Ty, Hp), w_oo_ref[...])
                 + b_o_ref[...])                                 # (TB*Ty, Hp)

    # vocab projection + log_softmax (padded vocab lanes masked out).
    # TODO(synk): for large vocabularies add a V-tile grid axis with a
    # streaming logsumexp instead of holding the full (Hp, Vp) weight in VMEM.
    logits = _mm(h, w_v_ref[...]) + b_v_ref[...]                 # (TB*Ty, Vp)
    vcol = lax.broadcasted_iota(jnp.int32, (1, Vp), 1)
    logits = jnp.where(vcol < v, logits, -1e30)
    lmax = jnp.max(logits, axis=-1, keepdims=True)
    lse = jnp.log(jnp.sum(jnp.exp(logits - lmax), axis=-1, keepdims=True))
    logp_ref[...] = (logits - lmax - lse).reshape(TB, Ty, Vp)


def attn_out_forward(ctx_p, dec_bm, w_in, w_oc, w_oo, b_o, w_v, b_v, tx, v):
    Bp, Txp, C2p = ctx_p.shape
    Ty, Hp = dec_bm.shape[1], dec_bm.shape[2]
    Vp = w_v.shape[1]
    tb = BATCH_TILE
    kernel = functools.partial(_attn_out_kernel, tx=tx, v=v)
    return pl.pallas_call(
        kernel,
        grid=(Bp // tb,),
        in_specs=[
            pl.BlockSpec((tb, Txp, C2p), lambda b: (b, 0, 0)),
            pl.BlockSpec((tb, Ty, Hp), lambda b: (b, 0, 0)),
            pl.BlockSpec((C2p, Hp), lambda b: (0, 0)),
            pl.BlockSpec((C2p, Hp), lambda b: (0, 0)),
            pl.BlockSpec((Hp, Hp), lambda b: (0, 0)),
            pl.BlockSpec((1, Hp), lambda b: (0, 0)),
            pl.BlockSpec((Hp, Vp), lambda b: (0, 0)),
            pl.BlockSpec((1, Vp), lambda b: (0, 0)),
        ],
        out_specs=[
            pl.BlockSpec((tb, Ty, Vp), lambda b: (b, 0, 0)),
            pl.BlockSpec((tb, Ty, Txp), lambda b: (b, 0, 0)),
        ],
        out_shape=[
            jax.ShapeDtypeStruct((Bp, Ty, Vp), jnp.float32),
            jax.ShapeDtypeStruct((Bp, Ty, Txp), jnp.float32),
        ],
        compiler_params=pltpu.CompilerParams(
            dimension_semantics=("parallel",),
            vmem_limit_bytes=VMEM_LIMIT),
    )(ctx_p, dec_bm, w_in, w_oc, w_oo, b_o, w_v, b_v)


# ----------------------------------------------------------------------------
# Padding helpers (zero padding keeps padded channels exactly zero end-to-end)
# ----------------------------------------------------------------------------
def _pad2(x, rows, cols):
    return jnp.pad(x, ((0, rows - x.shape[0]), (0, cols - x.shape[1])))


def _pad_gru_mat(w, in_p, h, h_p):
    # (in, 3h) with contiguous (r,z,n) gate blocks -> (in_p, 3*h_p); each gate
    # block is padded to h_p columns so in-kernel gate slices are lane-aligned.
    gates = [_pad2(w[:, i * h:(i + 1) * h], in_p, h_p) for i in range(3)]
    return jnp.concatenate(gates, axis=1)


def _pad_gru_bias(b, h, h_p):
    gates = [_pad2(b[:, i * h:(i + 1) * h], 1, h_p) for i in range(3)]
    return jnp.concatenate(gates, axis=1)


def _pad_ctx_weight(w, h, h_p):
    # (2h, out) weight acting on [fwd | bwd] features -> (2*h_p, out_p) blocks
    # matching the [fwd_pad | bwd_pad] padded context layout.
    return _pad2(w[:h], h_p, h_p), _pad2(w[h:], h_p, h_p)


# ----------------------------------------------------------------------------
# Seq2Seq forward (glue: padding + embedding gathers + kernel calls)
# ----------------------------------------------------------------------------
@jax.jit
def seq2seq_forward(params, x, x_lengths, y, y_lengths):
    B, Tx = x.shape
    Ty = y.shape[1]
    E = params["enc_embed"].shape[1]
    H = params["dec_whh_t"].shape[0]
    V = params["out_b"].shape[-1]

    Hp, Ep = _round_up(H, LANE), _round_up(E, LANE)
    Vp, Txp = _round_up(V, LANE), _round_up(Tx, LANE)
    Bp = _round_up(B, BATCH_TILE)
    C2p = 2 * Hp   # padded bidirectional context width: [fwd_pad | bwd_pad]

    # ---- zero-pad parameters to lane/sublane-aligned shapes
    enc_embed_p = _pad2(params["enc_embed"], params["enc_embed"].shape[0], Ep)
    dec_embed_p = _pad2(params["dec_embed"], params["dec_embed"].shape[0], Ep)

    e_wih_f = _pad_gru_mat(params["enc_wih_f_t"], Ep, H, Hp)
    e_whh_f = _pad_gru_mat(params["enc_whh_f_t"], Hp, H, Hp)
    e_bih_f = _pad_gru_bias(params["enc_bih_f"], H, Hp)
    e_bhh_f = _pad_gru_bias(params["enc_bhh_f"], H, Hp)
    e_wih_b = _pad_gru_mat(params["enc_wih_b_t"], Ep, H, Hp)
    e_whh_b = _pad_gru_mat(params["enc_whh_b_t"], Hp, H, Hp)
    e_bih_b = _pad_gru_bias(params["enc_bih_b"], H, Hp)
    e_bhh_b = _pad_gru_bias(params["enc_bhh_b"], H, Hp)

    fc_wf, fc_wb = _pad_ctx_weight(params["enc_fc_w_t"], H, Hp)
    fc_b = _pad2(params["enc_fc_b"], 1, Hp)

    d_wih = _pad_gru_mat(params["dec_wih_t"], Ep, H, Hp)
    d_whh = _pad_gru_mat(params["dec_whh_t"], Hp, H, Hp)
    d_bih = _pad_gru_bias(params["dec_bih"], H, Hp)
    d_bhh = _pad_gru_bias(params["dec_bhh"], H, Hp)

    w_in_p = jnp.concatenate(_pad_ctx_weight(params["attn_in_t"], H, Hp), axis=0)
    w_oc_p = jnp.concatenate(_pad_ctx_weight(params["attn_out_ctx"], H, Hp), axis=0)
    w_oo_p = _pad2(params["attn_out_dec"], Hp, Hp)
    b_o_p = _pad2(params["attn_out_b"], 1, Hp)
    w_v_p = _pad2(params["out_w_t"], Hp, Vp)
    b_v_p = _pad2(params["out_b"], 1, Vp)

    # ================= Encoder =================
    x_p = jnp.pad(x, ((0, Bp - B), (0, 0)))
    xlen_p = jnp.pad(x_lengths.astype(jnp.int32), (0, Bp - B))
    xlen_col = xlen_p.reshape(Bp, 1)
    h0_zero = jnp.zeros((Bp, Hp), jnp.float32)

    # TODO(synk): fold the embedding gathers / per-sequence time reversal into
    # a scalar-prefetch Pallas gather kernel to drop these XLA gather passes.
    emb_x_tm = jnp.take(enc_embed_p, x_p.T, axis=0)          # (Tx, Bp, Ep)
    out_f_tm, hn_f = gru_forward(emb_x_tm, xlen_col, h0_zero,
                                 e_wih_f, e_whh_f, e_bih_f, e_bhh_f)

    # backward direction: run the same masked GRU on per-sequence reversed input
    t_idx = jnp.arange(Tx, dtype=jnp.int32)[None, :]          # (1, Tx)
    rev_idx = jnp.clip(xlen_p[:, None] - 1 - t_idx, 0, Tx - 1)  # (Bp, Tx)
    x_rev = jnp.take_along_axis(x_p, rev_idx, axis=1)
    emb_xr_tm = jnp.take(enc_embed_p, x_rev.T, axis=0)
    out_b_rev_tm, hn_b = gru_forward(emb_xr_tm, xlen_col, h0_zero,
                                     e_wih_b, e_whh_b, e_bih_b, e_bhh_b)

    # un-reverse backward outputs back to original time order; padded steps = 0
    out_f_bm = jnp.transpose(out_f_tm, (1, 0, 2))             # (Bp, Tx, Hp)
    out_b_bm = jnp.take_along_axis(jnp.transpose(out_b_rev_tm, (1, 0, 2)),
                                   rev_idx[:, :, None], axis=1)
    valid_t = (t_idx < xlen_p[:, None])[:, :, None]
    out_b_bm = jnp.where(valid_t, out_b_bm, 0.0)

    # bidirectional context in padded [fwd_pad | bwd_pad] layout, time-padded
    ctx_p = jnp.pad(jnp.concatenate([out_f_bm, out_b_bm], axis=-1),
                    ((0, 0), (0, Txp - Tx), (0, 0)))          # (Bp, Txp, 2Hp)

    # encoder final hidden -> decoder initial hidden: tanh(fc([h_fwd, h_bwd]))
    h_dec0 = enc_hid_forward(hn_f, hn_b, fc_wf, fc_wb, fc_b)  # (Bp, Hp)

    # ================= Decoder =================
    y_p = jnp.pad(y, ((0, Bp - B), (0, 0)))
    ylen_col = jnp.pad(y_lengths.astype(jnp.int32), (0, Bp - B)).reshape(Bp, 1)
    emb_y_tm = jnp.take(dec_embed_p, y_p.T, axis=0)           # (Ty, Bp, Ep)
    dec_tm, _hn_dec = gru_forward(emb_y_tm, ylen_col, h_dec0,
                                  d_wih, d_whh, d_bih, d_bhh)

    # Small (Bp, Ty, Hp) relayout so the attention kernel's loads/stores stay
    # batch-major and lane-dense (negligible vs the (B,Ty,V) logits traffic).
    dec_bm = jnp.transpose(dec_tm, (1, 0, 2))

    logp_p, attn_p = attn_out_forward(ctx_p, dec_bm, w_in_p, w_oc_p, w_oo_p,
                                      b_o_p, w_v_p, b_v_p, Tx, V)
    # Seq2Seq.forward returns (log-probs, attention weights)
    return logp_p[:B, :, :V], attn_p[:B, :, :Tx]


# ----------------------------------------------------------------------------
# Deterministic parameter construction + smoke test
# ----------------------------------------------------------------------------
def make_params(key, src_vocab, tgt_vocab, embed_size, enc_hidden, dec_hidden):
    assert enc_hidden == dec_hidden  # required by the reference attention bmm
    H, E = enc_hidden, embed_size
    ks = iter(jax.random.split(key, 32))
    u = lambda shape, s: jax.random.uniform(next(ks), shape, jnp.float32, -s, s)
    sH = 1.0 / (H ** 0.5)
    s2H = 1.0 / ((2 * H) ** 0.5)
    s3H = 1.0 / ((3 * H) ** 0.5)
    return {
        # Encoder
        "enc_embed":    0.1 * jax.random.normal(next(ks), (src_vocab, E), jnp.float32),
        "enc_wih_f_t":  u((E, 3 * H), sH), "enc_whh_f_t": u((H, 3 * H), sH),
        "enc_bih_f":    u((1, 3 * H), sH), "enc_bhh_f":   u((1, 3 * H), sH),
        "enc_wih_b_t":  u((E, 3 * H), sH), "enc_whh_b_t": u((H, 3 * H), sH),
        "enc_bih_b":    u((1, 3 * H), sH), "enc_bhh_b":   u((1, 3 * H), sH),
        "enc_fc_w_t":   u((2 * H, H), s2H), "enc_fc_b":   u((1, H), s2H),
        # Decoder
        "dec_embed":    0.1 * jax.random.normal(next(ks), (tgt_vocab, E), jnp.float32),
        "dec_wih_t":    u((E, 3 * H), sH), "dec_whh_t":   u((H, 3 * H), sH),
        "dec_bih":      u((1, 3 * H), sH), "dec_bhh":     u((1, 3 * H), sH),
        # Attention.linear_in: (2H -> H), no bias; stored transposed
        "attn_in_t":    u((2 * H, H), s2H),
        # Attention.linear_out: (2H + H -> H), split into context/decoder parts
        "attn_out_ctx": u((2 * H, H), s3H),
        "attn_out_dec": u((H, H), s3H),
        "attn_out_b":   u((1, H), s3H),
        # self.out: (H -> V), stored transposed
        "out_w_t":      u((H, tgt_vocab), sH),
        "out_b":        u((1, tgt_vocab), sH),
    }


if __name__ == "__main__":
    B, Tx, Ty = 2, 10, 8
    Vx, Vy, E, H = 50, 64, 32, 32   # src/tgt vocab, embed, enc_hidden == dec_hidden

    key = jax.random.PRNGKey(0)
    kp, kx, ky = jax.random.split(key, 3)

    params = make_params(kp, Vx, Vy, E, H, H)

    x = jax.random.randint(kx, (B, Tx), 0, Vx, dtype=jnp.int32)  # source tokens
    x_lengths = jnp.array([Tx, 7], dtype=jnp.int32)
    y = jax.random.randint(ky, (B, Ty), 0, Vy, dtype=jnp.int32)  # target tokens
    y_lengths = jnp.array([Ty, 5], dtype=jnp.int32)

    logp, attn = seq2seq_forward(params, x, x_lengths, y, y_lengths)
    jax.block_until_ready((logp, attn))

    assert logp.shape == (B, Ty, Vy)
    assert attn.shape == (B, Ty, Tx)
    # log_softmax rows should sum to ~1 in prob space (exact logsumexp path)
    assert bool(jnp.all(jnp.abs(jnp.sum(jnp.exp(logp), -1) - 1.0) < 1e-4))
    # attention softmax uses the EUP approx reciprocal -> slightly looser check
    assert bool(jnp.all(jnp.abs(jnp.sum(attn, -1) - 1.0) < 1e-2))
    assert bool(jnp.all(jnp.isfinite(logp))) and bool(jnp.all(jnp.isfinite(attn)))

    print("KERNEL_OK")
</pallas_src>

<mosaic_0001>
module attributes {stable_mosaic.version = 11 : i64} {
  func.func @_gru_kernel(%arg0: i32, %arg1: memref<10x8x128xf32, #tpu.memory_space<vmem>>, %arg2: memref<8x1xi32, #tpu.memory_space<vmem>>, %arg3: memref<8x128xf32, #tpu.memory_space<vmem>>, %arg4: memref<128x384xf32, #tpu.memory_space<vmem>>, %arg5: memref<128x384xf32, #tpu.memory_space<vmem>>, %arg6: memref<1x384xf32, #tpu.memory_space<vmem>>, %arg7: memref<1x384xf32, #tpu.memory_space<vmem>>, %arg8: memref<10x8x128xf32, #tpu.memory_space<vmem>>, %arg9: memref<8x128xf32, #tpu.memory_space<vmem>>, %arg10: memref<10x8x384xf32, #tpu.memory_space<vmem>>) attributes {dimension_semantics = [#tpu.dimension_semantics<parallel>], iteration_bounds = array<i64: 1>, scalar_prefetch = 0 : i64, scratch_operands = 1 : i64, tpu.core_type = #tpu.core_type<tc>, window_params = [{transform_indices = @transform_0, window_bounds = array<i64: 10, 8, 128>}, {transform_indices = @transform_1, window_bounds = array<i64: 8, 1>}, {transform_indices = @transform_2, window_bounds = array<i64: 8, 128>}, {pipeline_mode = #tpu.pipeline_mode<synchronous>, transform_indices = @transform_3, window_bounds = array<i64: 128, 384>}, {pipeline_mode = #tpu.pipeline_mode<synchronous>, transform_indices = @transform_4, window_bounds = array<i64: 128, 384>}, {pipeline_mode = #tpu.pipeline_mode<synchronous>, transform_indices = @transform_5, window_bounds = array<i64: 1, 384>}, {pipeline_mode = #tpu.pipeline_mode<synchronous>, transform_indices = @transform_6, window_bounds = array<i64: 1, 384>}, {transform_indices = @transform_7, window_bounds = array<i64: 10, 8, 128>}, {transform_indices = @transform_8, window_bounds = array<i64: 8, 128>}]} {
    %c0 = arith.constant 0 : index
    %c0_0 = arith.constant 0 : index
    %c0_1 = arith.constant 0 : index
    %0 = vector.load %arg1[%c0, %c0_0, %c0_1] : memref<10x8x128xf32, #tpu.memory_space<vmem>>, vector<10x8x128xf32>
    %1 = vector.shape_cast %0 : vector<10x8x128xf32> to vector<80x128xf32>
    %c0_2 = arith.constant 0 : index
    %c0_3 = arith.constant 0 : index
    %2 = vector.load %arg4[%c0_2, %c0_3] : memref<128x384xf32, #tpu.memory_space<vmem>>, vector<128x384xf32>
    %cst = arith.constant dense<0.000000e+00> : vector<80x384xf32>
    %3 = tpu.matmul %1, %2, %cst {dimension_numbers = #tpu.dot_dimension_numbers<[1], [0], [0], [1], [0, 0, 1, 1], [], []>} : vector<80x128xf32>, vector<128x384xf32>, vector<80x384xf32> -> vector<80x384xf32>
    %c0_4 = arith.constant 0 : index
    %c0_5 = arith.constant 0 : index
    %4 = vector.load %arg6[%c0_4, %c0_5] : memref<1x384xf32, #tpu.memory_space<vmem>>, vector<1x384xf32>
    %5 = vector.broadcast %4 : vector<1x384xf32> to vector<80x384xf32>
    %6 = arith.addf %3, %5 : vector<80x384xf32>
    %7 = vector.shape_cast %6 : vector<80x384xf32> to vector<10x8x384xf32>
    %c0_6 = arith.constant 0 : index
    %c0_7 = arith.constant 0 : index
    %c0_8 = arith.constant 0 : index
    %8 = vector.load %arg10[%c0_6, %c0_7, %c0_8] : memref<10x8x384xf32, #tpu.memory_space<vmem>>, vector<10x8x384xf32>
    tpu.vector_store %arg10[%c0_6, %c0_7, %c0_8], %7 {strides = array<i32>} : memref<10x8x384xf32, #tpu.memory_space<vmem>>, vector<10x8x384xf32>,
    %c0_9 = arith.constant 0 : index
    %c0_10 = arith.constant 0 : index
    %9 = vector.load %arg5[%c0_9, %c0_10] : memref<128x384xf32, #tpu.memory_space<vmem>>, vector<128x384xf32>
    %c0_11 = arith.constant 0 : index
    %c0_12 = arith.constant 0 : index
    %10 = vector.load %arg7[%c0_11, %c0_12] : memref<1x384xf32, #tpu.memory_space<vmem>>, vector<1x384xf32>
    %11 = vector.shape_cast %10 : vector<1x384xf32> to vector<1x384xf32>
    %12 = vector.broadcast %11 : vector<1x384xf32> to vector<8x384xf32>
    %c0_13 = arith.constant 0 : index
    %c0_14 = arith.constant 0 : index
    %13 = vector.load %arg2[%c0_13, %c0_14] : memref<8x1xi32, #tpu.memory_space<vmem>>, vector<8x1xi32>
    %c0_15 = arith.constant 0 : index
    %c0_16 = arith.constant 0 : index
    %14 = vector.load %arg3[%c0_15, %c0_16] : memref<8x128xf32, #tpu.memory_space<vmem>>, vector<8x128xf32>
    %c0_i32 = arith.constant 0 : i32
    %15 = arith.index_cast %c0_i32 : i32 to index
    %c0_17 = arith.constant 0 : index
    %c0_18 = arith.constant 0 : index
    %16 = vector.load %arg10[%15, %c0_17, %c0_18] : memref<10x8x384xf32, #tpu.memory_space<vmem>>, vector<1x8x384xf32>
    %17 = vector.shape_cast %16 : vector<1x8x384xf32> to vector<8x384xf32>
    %cst_19 = arith.constant dense<0.000000e+00> : vector<8x384xf32>
    %18 = tpu.matmul %14, %9, %cst_19 {dimension_numbers = #tpu.dot_dimension_numbers<[1], [0], [0], [1], [0, 0, 1, 1], [], []>} : vector<8x128xf32>, vector<128x384xf32>, vector<8x384xf32> -> vector<8x384xf32>
    %19 = arith.addf %18, %12 : vector<8x384xf32>
    %20 = vector.extract_strided_slice %17 {offsets = [0, 0], sizes = [8, 128], strides = [1, 1]} : vector<8x384xf32> to vector<8x128xf32>
    %21 = vector.extract_strided_slice %19 {offsets = [0, 0], sizes = [8, 128], strides = [1, 1]} : vector<8x384xf32> to vector<8x128xf32>
    %22 = arith.addf %20, %21 : vector<8x128xf32>
    %23 = arith.negf %22 : vector<8x128xf32>
    %24 = math.exp %23 : vector<8x128xf32>
    %cst_20 = arith.constant 1.000000e+00 : f32
    %25 = vector.broadcast %cst_20 : f32 to vector<8x128xf32>
    %26 = arith.addf %25, %24 : vector<8x128xf32>
    %27 = arith.divf %25, %26 : vector<8x128xf32>
    %28 = vector.extract_strided_slice %17 {offsets = [0, 128], sizes = [8, 128], strides = [1, 1]} : vector<8x384xf32> to vector<8x128xf32>
    %29 = vector.extract_strided_slice %19 {offsets = [0, 128], sizes = [8, 128], strides = [1, 1]} : vector<8x384xf32> to vector<8x128xf32>
    %30 = arith.addf %28, %29 : vector<8x128xf32>
    %31 = arith.negf %30 : vector<8x128xf32>
    %32 = math.exp %31 : vector<8x128xf32>
    %cst_21 = arith.constant 1.000000e+00 : f32
    %33 = vector.broadcast %cst_21 : f32 to vector<8x128xf32>
    %34 = arith.addf %33, %32 : vector<8x128xf32>
    %35 = arith.divf %33, %34 : vector<8x128xf32>
    %36 = vector.extract_strided_slice %17 {offsets = [0, 256], sizes = [8, 128], strides = [1, 1]} : vector<8x384xf32> to vector<8x128xf32>
    %37 = vector.extract_strided_slice %19 {offsets = [0, 256], sizes = [8, 128], strides = [1, 1]} : vector<8x384xf32> to vector<8x128xf32>
    %38 = arith.mulf %27, %37 : vector<8x128xf32>
    %39 = arith.addf %36, %38 : vector<8x128xf32>
    %40 = math.tanh %39 : vector<8x128xf32>
    %cst_22 = arith.constant 1.000000e+00 : f32
    %41 = vector.broadcast %cst_22 : f32 to vector<8x128xf32>
    %42 = arith.subf %41, %35 : vector<8x128xf32>
    %43 = arith.mulf %42, %40 : vector<8x128xf32>
    %44 = arith.mulf %35, %14 : vector<8x128xf32>
    %45 = arith.addf %43, %44 : vector<8x128xf32>
    %46 = vector.broadcast %c0_i32 : i32 to vector<8x1xi32>
    %47 = arith.cmpi slt, %46, %13 : vector<8x1xi32>
    %cst_23 = arith.constant 0.000000e+00 : f32
    %48 = vector.shape_cast %47 : vector<8x1xi1> to vector<8x1xi1>
    %49 = vector.broadcast %48 : vector<8x1xi1> to vector<8x128xi1>
    %50 = vector.broadcast %cst_23 : f32 to vector<8x128xf32>
    %51 = arith.select %49, %45, %50 : vector<8x128xi1>, vector<8x128xf32>
    %52 = arith.index_cast %c0_i32 : i32 to index
    %c0_24 = arith.constant 0 : index
    %c0_25 = arith.constant 0 : index
    %53 = vector.load %arg8[%52, %c0_24, %c0_25] : memref<10x8x128xf32, #tpu.memory_space<vmem>>, vector<1x8x128xf32>
    %54 = vector.shape_cast %53 : vector<1x8x128xf32> to vector<8x128xf32>
    %55 = vector.shape_cast %51 : vector<8x128xf32> to vector<1x8x128xf32>
    tpu.vector_store %arg8[%52, %c0_24, %c0_25], %55 {strides = array<i32>} : memref<10x8x128xf32, #tpu.memory_space<vmem>>, vector<1x8x128xf32>,
    %56 = vector.shape_cast %47 : vector<8x1xi1> to vector<8x1xi1>
    %57 = vector.broadcast %56 : vector<8x1xi1> to vector<8x128xi1>
    %58 = arith.select %57, %45, %14 : vector<8x128xi1>, vector<8x128xf32>
    %c1_i32 = arith.constant 1 : i32
    %59 = arith.index_cast %c1_i32 : i32 to index
    %c0_26 = arith.constant 0 : index
    %c0_27 = arith.constant 0 : index
    %60 = vector.load %arg10[%59, %c0_26, %c0_27] : memref<10x8x384xf32, #tpu.memory_space<vmem>>, vector<1x8x384xf32>
    %61 = vector.shape_cast %60 : vector<1x8x384xf32> to vector<8x384xf32>
    %cst_28 = arith.constant dense<0.000000e+00> : vector<8x384xf32>
    %62 = tpu.matmul %58, %9, %cst_28 {dimension_numbers = #tpu.dot_dimension_numbers<[1], [0], [0], [1], [0, 0, 1, 1], [], []>} : vector<8x128xf32>, vector<128x384xf32>, vector<8x384xf32> -> vector<8x384xf32>
    %63 = arith.addf %62, %12 : vector<8x384xf32>
    %64 = vector.extract_strided_slice %61 {offsets = [0, 0], sizes = [8, 128], strides = [1, 1]} : vector<8x384xf32> to vector<8x128xf32>
    %65 = vector.extract_strided_slice %63 {offsets = [0, 0], sizes = [8, 128], strides = [1, 1]} : vector<8x384xf32> to vector<8x128xf32>
    %66 = arith.addf %64, %65 : vector<8x128xf32>
    %67 = arith.negf %66 : vector<8x128xf32>
    %68 = math.exp %67 : vector<8x128xf32>
    %cst_29 = arith.constant 1.000000e+00 : f32
    %69 = vector.broadcast %cst_29 : f32 to vector<8x128xf32>
    %70 = arith.addf %69, %68 : vector<8x128xf32>
    %71 = arith.divf %69, %70 : vector<8x128xf32>
    %72 = vector.extract_strided_slice %61 {offsets = [0, 128], sizes = [8, 128], strides = [1, 1]} : vector<8x384xf32> to vector<8x128xf32>
    %73 = vector.extract_strided_slice %63 {offsets = [0, 128], sizes = [8, 128], strides = [1, 1]} : vector<8x384xf32> to vector<8x128xf32>
    %74 = arith.addf %72, %73 : vector<8x128xf32>
    %75 = arith.negf %74 : vector<8x128xf32>
    %76 = math.exp %75 : vector<8x128xf32>
    %cst_30 = arith.constant 1.000000e+00 : f32
    %77 = vector.broadcast %cst_30 : f32 to vector<8x128xf32>
    %78 = arith.addf %77, %76 : vector<8x128xf32>
    %79 = arith.divf %77, %78 : vector<8x128xf32>
    %80 = vector.extract_strided_slice %61 {offsets = [0, 256], sizes = [8, 128], strides = [1, 1]} : vector<8x384xf32> to vector<8x128xf32>
    %81 = vector.extract_strided_slice %63 {offsets = [0, 256], sizes = [8, 128], strides = [1, 1]} : vector<8x384xf32> to vector<8x128xf32>
    %82 = arith.mulf %71, %81 : vector<8x128xf32>
    %83 = arith.addf %80, %82 : vector<8x128xf32>
    %84 = math.tanh %83 : vector<8x128xf32>
    %cst_31 = arith.constant 1.000000e+00 : f32
    %85 = vector.broadcast %cst_31 : f32 to vector<8x128xf32>
    %86 = arith.subf %85, %79 : vector<8x128xf32>
    %87 = arith.mulf %86, %84 : vector<8x128xf32>
    %88 = arith.mulf %79, %58 : vector<8x128xf32>
    %89 = arith.addf %87, %88 : vector<8x128xf32>
    %90 = vector.broadcast %c1_i32 : i32 to vector<8x1xi32>
    %91 = arith.cmpi slt, %90, %13 : vector<8x1xi32>
    %cst_32 = arith.constant 0.000000e+00 : f32
    %92 = vector.shape_cast %91 : vector<8x1xi1> to vector<8x1xi1>
    %93 = vector.broadcast %92 : vector<8x1xi1> to vector<8x128xi1>
    %94 = vector.broadcast %cst_32 : f32 to vector<8x128xf32>
    %95 = arith.select %93, %89, %94 : vector<8x128xi1>, vector<8x128xf32>
    %96 = arith.index_cast %c1_i32 : i32 to index
    %c0_33 = arith.constant 0 : index
    %c0_34 = arith.constant 0 : index
    %97 = vector.load %arg8[%96, %c0_33, %c0_34] : memref<10x8x128xf32, #tpu.memory_space<vmem>>, vector<1x8x128xf32>
    %98 = vector.shape_cast %97 : vector<1x8x128xf32> to vector<8x128xf32>
    %99 = vector.shape_cast %95 : vector<8x128xf32> to vector<1x8x128xf32>
    tpu.vector_store %arg8[%96, %c0_33, %c0_34], %99 {strides = array<i32>} : memref<10x8x128xf32, #tpu.memory_space<vmem>>, vector<1x8x128xf32>,
    %100 = vector.shape_cast %91 : vector<8x1xi1> to vector<8x1xi1>
    %101 = vector.broadcast %100 : vector<8x1xi1> to vector<8x128xi1>
    %102 = arith.select %101, %89, %58 : vector<8x128xi1>, vector<8x128xf32>
    %c2_i32 = arith.constant 2 : i32
    %103 = arith.index_cast %c2_i32 : i32 to index
    %c0_35 = arith.constant 0 : index
    %c0_36 = arith.constant 0 : index
    %104 = vector.load %arg10[%103, %c0_35, %c0_36] : memref<10x8x384xf32, #tpu.memory_space<vmem>>, vector<1x8x384xf32>
    %105 = vector.shape_cast %104 : vector<1x8x384xf32> to vector<8x384xf32>
    %cst_37 = arith.constant dense<0.000000e+00> : vector<8x384xf32>
    %106 = tpu.matmul %102, %9, %cst_37 {dimension_numbers = #tpu.dot_dimension_numbers<[1], [0], [0], [1], [0, 0, 1, 1], [], []>} : vector<8x128xf32>, vector<128x384xf32>, vector<8x384xf32> -> vector<8x384xf32>
    %107 = arith.addf %106, %12 : vector<8x384xf32>
    %108 = vector.extract_strided_slice %105 {offsets = [0, 0], sizes = [8, 128], strides = [1, 1]} : vector<8x384xf32> to vector<8x128xf32>
    %109 = vector.extract_strided_slice %107 {offsets = [0, 0], sizes = [8, 128], strides = [1, 1]} : vector<8x384xf32> to vector<8x128xf32>
    %110 = arith.addf %108, %109 : vector<8x128xf32>
    %111 = arith.negf %110 : vector<8x128xf32>
    %112 = math.exp %111 : vector<8x128xf32>
    %cst_38 = arith.constant 1.000000e+00 : f32
    %113 = vector.broadcast %cst_38 : f32 to vector<8x128xf32>
    %114 = arith.addf %113, %112 : vector<8x128xf32>
    %115 = arith.divf %113, %114 : vector<8x128xf32>
    %116 = vector.extract_strided_slice %105 {offsets = [0, 128], sizes = [8, 128], strides = [1, 1]} : vector<8x384xf32> to vector<8x128xf32>
    %117 = vector.extract_strided_slice %107 {offsets = [0, 128], sizes = [8, 128], strides = [1, 1]} : vector<8x384xf32> to vector<8x128xf32>
    %118 = arith.addf %116, %117 : vector<8x128xf32>
    %119 = arith.negf %118 : vector<8x128xf32>
    %120 = math.exp %119 : vector<8x128xf32>
    %cst_39 = arith.constant 1.000000e+00 : f32
    %121 = vector.broadcast %cst_39 : f32 to vector<8x128xf32>
    %122 = arith.addf %121, %120 : vector<8x128xf32>
    %123 = arith.divf %121, %122 : vector<8x128xf32>
    %124 = vector.extract_strided_slice %105 {offsets = [0, 256], sizes = [8, 128], strides = [1, 1]} : vector<8x384xf32> to vector<8x128xf32>
    %125 = vector.extract_strided_slice %107 {offsets = [0, 256], sizes = [8, 128], strides = [1, 1]} : vector<8x384xf32> to vector<8x128xf32>
    %126 = arith.mulf %115, %125 : vector<8x128xf32>
    %127 = arith.addf %124, %126 : vector<8x128xf32>
    %128 = math.tanh %127 : vector<8x128xf32>
    %cst_40 = arith.constant 1.000000e+00 : f32
    %129 = vector.broadcast %cst_40 : f32 to vector<8x128xf32>
    %130 = arith.subf %129, %123 : vector<8x128xf32>
    %131 = arith.mulf %130, %128 : vector<8x128xf32>
    %132 = arith.mulf %123, %102 : vector<8x128xf32>
    %133 = arith.addf %131, %132 : vector<8x128xf32>
    %134 = vector.broadcast %c2_i32 : i32 to vector<8x1xi32>
    %135 = arith.cmpi slt, %134, %13 : vector<8x1xi32>
    %cst_41 = arith.constant 0.000000e+00 : f32
    %136 = vector.shape_cast %135 : vector<8x1xi1> to vector<8x1xi1>
    %137 = vector.broadcast %136 : vector<8x1xi1> to vector<8x128xi1>
    %138 = vector.broadcast %cst_41 : f32 to vector<8x128xf32>
    %139 = arith.select %137, %133, %138 : vector<8x128xi1>, vector<8x128xf32>
    %140 = arith.index_cast %c2_i32 : i32 to index
    %c0_42 = arith.constant 0 : index
    %c0_43 = arith.constant 0 : index
    %141 = vector.load %arg8[%140, %c0_42, %c0_43] : memref<10x8x128xf32, #tpu.memory_space<vmem>>, vector<1x8x128xf32>
    %142 = vector.shape_cast %141 : vector<1x8x128xf32> to vector<8x128xf32>
    %143 = vector.shape_cast %139 : vector<8x128xf32> to vector<1x8x128xf32>
    tpu.vector_store %arg8[%140, %c0_42, %c0_43], %143 {strides = array<i32>} : memref<10x8x128xf32, #tpu.memory_space<vmem>>, vector<1x8x128xf32>,
    %144 = vector.shape_cast %135 : vector<8x1xi1> to vector<8x1xi1>
    %145 = vector.broadcast %144 : vector<8x1xi1> to vector<8x128xi1>
    %146 = arith.select %145, %133, %102 : vector<8x128xi1>, vector<8x128xf32>
    %c3_i32 = arith.constant 3 : i32
    %147 = arith.index_cast %c3_i32 : i32 to index
    %c0_44 = arith.constant 0 : index
    %c0_45 = arith.constant 0 : index
    %148 = vector.load %arg10[%147, %c0_44, %c0_45] : memref<10x8x384xf32, #tpu.memory_space<vmem>>, vector<1x8x384xf32>
    %149 = vector.shape_cast %148 : vector<1x8x384xf32> to vector<8x384xf32>
    %cst_46 = arith.constant dense<0.000000e+00> : vector<8x384xf32>
    %150 = tpu.matmul %146, %9, %cst_46 {dimension_numbers = #tpu.dot_dimension_numbers<[1], [0], [0], [1], [0, 0, 1, 1], [], []>} : vector<8x128xf32>, vector<128x384xf32>, vector<8x384xf32> -> vector<8x384xf32>
    %151 = arith.addf %150, %12 : vector<8x384xf32>
    %152 = vector.extract_strided_slice %149 {offsets = [0, 0], sizes = [8, 128], strides = [1, 1]} : vector<8x384xf32> to vector<8x128xf32>
    %153 = vector.extract_strided_slice %151 {offsets = [0, 0], sizes = [8, 128], strides = [1, 1]} : vector<8x384xf32> to vector<8x128xf32>
    %154 = arith.addf %152, %153 : vector<8x128xf32>
    %155 = arith.negf %154 : vector<8x128xf32>
    %156 = math.exp %155 : vector<8x128xf32>
    %cst_47 = arith.constant 1.000000e+00 : f32
    %157 = vector.broadcast %cst_47 : f32 to vector<8x128xf32>
    %158 = arith.addf %157, %156 : vector<8x128xf32>
    %159 = arith.divf %157, %158 : vector<8x128xf32>
    %160 = vector.extract_strided_slice %149 {offsets = [0, 128], sizes = [8, 128], strides = [1, 1]} : vector<8x384xf32> to vector<8x128xf32>
    %161 = vector.extract_strided_slice %151 {offsets = [0, 128], sizes = [8, 128], strides = [1, 1]} : vector<8x384xf32> to vector<8x128xf32>
    %162 = arith.addf %160, %161 : vector<8x128xf32>
    %163 = arith.negf %162 : vector<8x128xf32>
    %164 = math.exp %163 : vector<8x128xf32>
    %cst_48 = arith.constant 1.000000e+00 : f32
    %165 = vector.broadcast %cst_48 : f32 to vector<8x128xf32>
    %166 = arith.addf %165, %164 : vector<8x128xf32>
    %167 = arith.divf %165, %166 : vector<8x128xf32>
    %168 = vector.extract_strided_slice %149 {offsets = [0, 256], sizes = [8, 128], strides = [1, 1]} : vector<8x384xf32> to vector<8x128xf32>
    %169 = vector.extract_strided_slice %151 {offsets = [0, 256], sizes = [8, 128], strides = [1, 1]} : vector<8x384xf32> to vector<8x128xf32>
    %170 = arith.mulf %159, %169 : vector<8x128xf32>
    %171 = arith.addf %168, %170 : vector<8x128xf32>
    %172 = math.tanh %171 : vector<8x128xf32>
    %cst_49 = arith.constant 1.000000e+00 : f32
    %173 = vector.broadcast %cst_49 : f32 to vector<8x128xf32>
    %174 = arith.subf %173, %167 : vector<8x128xf32>
    %175 = arith.mulf %174, %172 : vector<8x128xf32>
    %176 = arith.mulf %167, %146 : vector<8x128xf32>
    %177 = arith.addf %175, %176 : vector<8x128xf32>
    %178 = vector.broadcast %c3_i32 : i32 to vector<8x1xi32>
    %179 = arith.cmpi slt, %178, %13 : vector<8x1xi32>
    %cst_50 = arith.constant 0.000000e+00 : f32
    %180 = vector.shape_cast %179 : vector<8x1xi1> to vector<8x1xi1>
    %181 = vector.broadcast %180 : vector<8x1xi1> to vector<8x128xi1>
    %182 = vector.broadcast %cst_50 : f32 to vector<8x128xf32>
    %183 = arith.select %181, %177, %182 : vector<8x128xi1>, vector<8x128xf32>
    %184 = arith.index_cast %c3_i32 : i32 to index
    %c0_51 = arith.constant 0 : index
    %c0_52 = arith.constant 0 : index
    %185 = vector.load %arg8[%184, %c0_51, %c0_52] : memref<10x8x128xf32, #tpu.memory_space<vmem>>, vector<1x8x128xf32>
    %186 = vector.shape_cast %185 : vector<1x8x128xf32> to vector<8x128xf32>
    %187 = vector.shape_cast %183 : vector<8x128xf32> to vector<1x8x128xf32>
    tpu.vector_store %arg8[%184, %c0_51, %c0_52], %187 {strides = array<i32>} : memref<10x8x128xf32, #tpu.memory_space<vmem>>, vector<1x8x128xf32>,
    %188 = vector.shape_cast %179 : vector<8x1xi1> to vector<8x1xi1>
    %189 = vector.broadcast %188 : vector<8x1xi1> to vector<8x128xi1>
    %190 = arith.select %189, %177, %146 : vector<8x128xi1>, vector<8x128xf32>
    %c4_i32 = arith.constant 4 : i32
    %191 = arith.index_cast %c4_i32 : i32 to index
    %c0_53 = arith.constant 0 : index
    %c0_54 = arith.constant 0 : index
    %192 = vector.load %arg10[%191, %c0_53, %c0_54] : memref<10x8x384xf32, #tpu.memory_space<vmem>>, vector<1x8x384xf32>
    %193 = vector.shape_cast %192 : vector<1x8x384xf32> to vector<8x384xf32>
    %cst_55 = arith.constant dense<0.000000e+00> : vector<8x384xf32>
    %194 = tpu.matmul %190, %9, %cst_55 {dimension_numbers = #tpu.dot_dimension_numbers<[1], [0], [0], [1], [0, 0, 1, 1], [], []>} : vector<8x128xf32>, vector<128x384xf32>, vector<8x384xf32> -> vector<8x384xf32>
    %195 = arith.addf %194, %12 : vector<8x384xf32>
    %196 = vector.extract_strided_slice %193 {offsets = [0, 0], sizes = [8, 128], strides = [1, 1]} : vector<8x384xf32> to vector<8x128xf32>
    %197 = vector.extract_strided_slice %195 {offsets = [0, 0], sizes = [8, 128], strides = [1, 1]} : vector<8x384xf32> to vector<8x128xf32>
    %198 = arith.addf %196, %197 : vector<8x128xf32>
    %199 = arith.negf %198 : vector<8x128xf32>
    %200 = math.exp %199 : vector<8x128xf32>
    %cst_56 = arith.constant 1.000000e+00 : f32
    %201 = vector.broadcast %cst_56 : f32 to vector<8x128xf32>
    %202 = arith.addf %201, %200 : vector<8x128xf32>
    %203 = arith.divf %201, %202 : vector<8x128xf32>
    %204 = vector.extract_strided_slice %193 {offsets = [0, 128], sizes = [8, 128], strides = [1, 1]} : vector<8x384xf32> to vector<8x128xf32>
    %205 = vector.extract_strided_slice %195 {offsets = [0, 128], sizes = [8, 128], strides = [1, 1]} : vector<8x384xf32> to vector<8x128xf32>
    %206 = arith.addf %204, %205 : vector<8x128xf32>
    %207 = arith.negf %206 : vector<8x128xf32>
    %208 = math.exp %207 : vector<8x128xf32>
    %cst_57 = arith.constant 1.000000e+00 : f32
    %209 = vector.broadcast %cst_57 : f32 to vector<8x128xf32>
    %210 = arith.addf %209, %208 : vector<8x128xf32>
    %211 = arith.divf %209, %210 : vector<8x128xf32>
    %212 = vector.extract_strided_slice %193 {offsets = [0, 256], sizes = [8, 128], strides = [1, 1]} : vector<8x384xf32> to vector<8x128xf32>
    %213 = vector.extract_strided_slice %195 {offsets = [0, 256], sizes = [8, 128], strides = [1, 1]} : vector<8x384xf32> to vector<8x128xf32>
    %214 = arith.mulf %203, %213 : vector<8x128xf32>
    %215 = arith.addf %212, %214 : vector<8x128xf32>
    %216 = math.tanh %215 : vector<8x128xf32>
    %cst_58 = arith.constant 1.000000e+00 : f32
    %217 = vector.broadcast %cst_58 : f32 to vector<8x128xf32>
    %218 = arith.subf %217, %211 : vector<8x128xf32>
    %219 = arith.mulf %218, %216 : vector<8x128xf32>
    %220 = arith.mulf %211, %190 : vector<8x128xf32>
    %221 = arith.addf %219, %220 : vector<8x128xf32>
    %222 = vector.broadcast %c4_i32 : i32 to vector<8x1xi32>
    %223 = arith.cmpi slt, %222, %13 : vector<8x1xi32>
    %cst_59 = arith.constant 0.000000e+00 : f32
    %224 = vector.shape_cast %223 : vector<8x1xi1> to vector<8x1xi1>
    %225 = vector.broadcast %224 : vector<8x1xi1> to vector<8x128xi1>
    %226 = vector.broadcast %cst_59 : f32 to vector<8x128xf32>
    %227 = arith.select %225, %221, %226 : vector<8x128xi1>, vector<8x128xf32>
    %228 = arith.index_cast %c4_i32 : i32 to index
    %c0_60 = arith.constant 0 : index
    %c0_61 = arith.constant 0 : index
    %229 = vector.load %arg8[%228, %c0_60, %c0_61] : memref<10x8x128xf32, #tpu.memory_space<vmem>>, vector<1x8x128xf32>
    %230 = vector.shape_cast %229 : vector<1x8x128xf32> to vector<8x128xf32>
    %231 = vector.shape_cast %227 : vector<8x128xf32> to vector<1x8x128xf32>
    tpu.vector_store %arg8[%228, %c0_60, %c0_61], %231 {strides = array<i32>} : memref<10x8x128xf32, #tpu.memory_space<vmem>>, vector<1x8x128xf32>,
    %232 = vector.shape_cast %223 : vector<8x1xi1> to vector<8x1xi1>
    %233 = vector.broadcast %232 : vector<8x1xi1> to vector<8x128xi1>
    %234 = arith.select %233, %221, %190 : vector<8x128xi1>, vector<8x128xf32>
    %c5_i32 = arith.constant 5 : i32
    %235 = arith.index_cast %c5_i32 : i32 to index
    %c0_62 = arith.constant 0 : index
    %c0_63 = arith.constant 0 : index
    %236 = vector.load %arg10[%235, %c0_62, %c0_63] : memref<10x8x384xf32, #tpu.memory_space<vmem>>, vector<1x8x384xf32>
    %237 = vector.shape_cast %236 : vector<1x8x384xf32> to vector<8x384xf32>
    %cst_64 = arith.constant dense<0.000000e+00> : vector<8x384xf32>
    %238 = tpu.matmul %234, %9, %cst_64 {dimension_numbers = #tpu.dot_dimension_numbers<[1], [0], [0], [1], [0, 0, 1, 1], [], []>} : vector<8x128xf32>, vector<128x384xf32>, vector<8x384xf32> -> vector<8x384xf32>
    %239 = arith.addf %238, %12 : vector<8x384xf32>
    %240 = vector.extract_strided_slice %237 {offsets = [0, 0], sizes = [8, 128], strides = [1, 1]} : vector<8x384xf32> to vector<8x128xf32>
    %241 = vector.extract_strided_slice %239 {offsets = [0, 0], sizes = [8, 128], strides = [1, 1]} : vector<8x384xf32> to vector<8x128xf32>
    %242 = arith.addf %240, %241 : vector<8x128xf32>
    %243 = arith.negf %242 : vector<8x128xf32>
    %244 = math.exp %243 : vector<8x128xf32>
    %cst_65 = arith.constant 1.000000e+00 : f32
    %245 = vector.broadcast %cst_65 : f32 to vector<8x128xf32>
    %246 = arith.addf %245, %244 : vector<8x128xf32>
    %247 = arith.divf %245, %246 : vector<8x128xf32>
    %248 = vector.extract_strided_slice %237 {offsets = [0, 128], sizes = [8, 128], strides = [1, 1]} : vector<8x384xf32> to vector<8x128xf32>
    %249 = vector.extract_strided_slice %239 {offsets = [0, 128], sizes = [8, 128], strides = [1, 1]} : vector<8x384xf32> to vector<8x128xf32>
    %250 = arith.addf %248, %249 : vector<8x128xf32>
    %251 = arith.negf %250 : vector<8x128xf32>
    %252 = math.exp %251 : vector<8x128xf32>
    %cst_66 = arith.constant 1.000000e+00 : f32
    %253 = vector.broadcast %cst_66 : f32 to vector<8x128xf32>
    %254 = arith.addf %253, %252 : vector<8x128xf32>
    %255 = arith.divf %253, %254 : vector<8x128xf32>
    %256 = vector.extract_strided_slice %237 {offsets = [0, 256], sizes = [8, 128], strides = [1, 1]} : vector<8x384xf32> to vector<8x128xf32>
    %257 = vector.extract_strided_slice %239 {offsets = [0, 256], sizes = [8, 128], strides = [1, 1]} : vector<8x384xf32> to vector<8x128xf32>
    %258 = arith.mulf %247, %257 : vector<8x128xf32>
    %259 = arith.addf %256, %258 : vector<8x128xf32>
    %260 = math.tanh %259 : vector<8x128xf32>
    %cst_67 = arith.constant 1.000000e+00 : f32
    %261 = vector.broadcast %cst_67 : f32 to vector<8x128xf32>
    %262 = arith.subf %261, %255 : vector<8x128xf32>
    %263 = arith.mulf %262, %260 : vector<8x128xf32>
    %264 = arith.mulf %255, %234 : vector<8x128xf32>
    %265 = arith.addf %263, %264 : vector<8x128xf32>
    %266 = vector.broadcast %c5_i32 : i32 to vector<8x1xi32>
    %267 = arith.cmpi slt, %266, %13 : vector<8x1xi32>
    %cst_68 = arith.constant 0.000000e+00 : f32
    %268 = vector.shape_cast %267 : vector<8x1xi1> to vector<8x1xi1>
    %269 = vector.broadcast %268 : vector<8x1xi1> to vector<8x128xi1>
    %270 = vector.broadcast %cst_68 : f32 to vector<8x128xf32>
    %271 = arith.select %269, %265, %270 : vector<8x128xi1>, vector<8x128xf32>
    %272 = arith.index_cast %c5_i32 : i32 to index
    %c0_69 = arith.constant 0 : index
    %c0_70 = arith.constant 0 : index
    %273 = vector.load %arg8[%272, %c0_69, %c0_70] : memref<10x8x128xf32, #tpu.memory_space<vmem>>, vector<1x8x128xf32>
    %274 = vector.shape_cast %273 : vector<1x8x128xf32> to vector<8x128xf32>
    %275 = vector.shape_cast %271 : vector<8x128xf32> to vector<1x8x128xf32>
    tpu.vector_store %arg8[%272, %c0_69, %c0_70], %275 {strides = array<i32>} : memref<10x8x128xf32, #tpu.memory_space<vmem>>, vector<1x8x128xf32>,
    %276 = vector.shape_cast %267 : vector<8x1xi1> to vector<8x1xi1>
    %277 = vector.broadcast %276 : vector<8x1xi1> to vector<8x128xi1>
    %278 = arith.select %277, %265, %234 : vector<8x128xi1>, vector<8x128xf32>
    %c6_i32 = arith.constant 6 : i32
    %279 = arith.index_cast %c6_i32 : i32 to index
    %c0_71 = arith.constant 0 : index
    %c0_72 = arith.constant 0 : index
    %280 = vector.load %arg10[%279, %c0_71, %c0_72] : memref<10x8x384xf32, #tpu.memory_space<vmem>>, vector<1x8x384xf32>
    %281 = vector.shape_cast %280 : vector<1x8x384xf32> to vector<8x384xf32>
    %cst_73 = arith.constant dense<0.000000e+00> : vector<8x384xf32>
    %282 = tpu.matmul %278, %9, %cst_73 {dimension_numbers = #tpu.dot_dimension_numbers<[1], [0], [0], [1], [0, 0, 1, 1], [], []>} : vector<8x128xf32>, vector<128x384xf32>, vector<8x384xf32> -> vector<8x384xf32>
    %283 = arith.addf %282, %12 : vector<8x384xf32>
    %284 = vector.extract_strided_slice %281 {offsets = [0, 0], sizes = [8, 128], strides = [1, 1]} : vector<8x384xf32> to vector<8x128xf32>
    %285 = vector.extract_strided_slice %283 {offsets = [0, 0], sizes = [8, 128], strides = [1, 1]} : vector<8x384xf32> to vector<8x128xf32>
    %286 = arith.addf %284, %285 : vector<8x128xf32>
    %287 = arith.negf %286 : vector<8x128xf32>
    %288 = math.exp %287 : vector<8x128xf32>
    %cst_74 = arith.constant 1.000000e+00 : f32
    %289 = vector.broadcast %cst_74 : f32 to vector<8x128xf32>
    %290 = arith.addf %289, %288 : vector<8x128xf32>
    %291 = arith.divf %289, %290 : vector<8x128xf32>
    %292 = vector.extract_strided_slice %281 {offsets = [0, 128], sizes = [8, 128], strides = [1, 1]} : vector<8x384xf32> to vector<8x128xf32>
    %293 = vector.extract_strided_slice %283 {offsets = [0, 128], sizes = [8, 128], strides = [1, 1]} : vector<8x384xf32> to vector<8x128xf32>
    %294 = arith.addf %292, %293 : vector<8x128xf32>
    %295 = arith.negf %294 : vector<8x128xf32>
    %296 = math.exp %295 : vector<8x128xf32>
    %cst_75 = arith.constant 1.000000e+00 : f32
    %297 = vector.broadcast %cst_75 : f32 to vector<8x128xf32>
    %298 = arith.addf %297, %296 : vector<8x128xf32>
    %299 = arith.divf %297, %298 : vector<8x128xf32>
    %300 = vector.extract_strided_slice %281 {offsets = [0, 256], sizes = [8, 128], strides = [1, 1]} : vector<8x384xf32> to vector<8x128xf32>
    %301 = vector.extract_strided_slice %283 {offsets = [0, 256], sizes = [8, 128], strides = [1, 1]} : vector<8x384xf32> to vector<8x128xf32>
    %302 = arith.mulf %291, %301 : vector<8x128xf32>
    %303 = arith.addf %300, %302 : vector<8x128xf32>
    %304 = math.tanh %303 : vector<8x128xf32>
    %cst_76 = arith.constant 1.000000e+00 : f32
    %305 = vector.broadcast %cst_76 : f32 to vector<8x128xf32>
    %306 = arith.subf %305, %299 : vector<8x128xf32>
    %307 = arith.mulf %306, %304 : vector<8x128xf32>
    %308 = arith.mulf %299, %278 : vector<8x128xf32>
    %309 = arith.addf %307, %308 : vector<8x128xf32>
    %310 = vector.broadcast %c6_i32 : i32 to vector<8x1xi32>
    %311 = arith.cmpi slt, %310, %13 : vector<8x1xi32>
    %cst_77 = arith.constant 0.000000e+00 : f32
    %312 = vector.shape_cast %311 : vector<8x1xi1> to vector<8x1xi1>
    %313 = vector.broadcast %312 : vector<8x1xi1> to vector<8x128xi1>
    %314 = vector.broadcast %cst_77 : f32 to vector<8x128xf32>
    %315 = arith.select %313, %309, %314 : vector<8x128xi1>, vector<8x128xf32>
    %316 = arith.index_cast %c6_i32 : i32 to index
    %c0_78 = arith.constant 0 : index
    %c0_79 = arith.constant 0 : index
    %317 = vector.load %arg8[%316, %c0_78, %c0_79] : memref<10x8x128xf32, #tpu.memory_space<vmem>>, vector<1x8x128xf32>
    %318 = vector.shape_cast %317 : vector<1x8x128xf32> to vector<8x128xf32>
    %319 = vector.shape_cast %315 : vector<8x128xf32> to vector<1x8x128xf32>
    tpu.vector_store %arg8[%316, %c0_78, %c0_79], %319 {strides = array<i32>} : memref<10x8x128xf32, #tpu.memory_space<vmem>>, vector<1x8x128xf32>,
    %320 = vector.shape_cast %311 : vector<8x1xi1> to vector<8x1xi1>
    %321 = vector.broadcast %320 : vector<8x1xi1> to vector<8x128xi1>
    %322 = arith.select %321, %309, %278 : vector<8x128xi1>, vector<8x128xf32>
    %c7_i32 = arith.constant 7 : i32
    %323 = arith.index_cast %c7_i32 : i32 to index
    %c0_80 = arith.constant 0 : index
    %c0_81 = arith.constant 0 : index
    %324 = vector.load %arg10[%323, %c0_80, %c0_81] : memref<10x8x384xf32, #tpu.memory_space<vmem>>, vector<1x8x384xf32>
    %325 = vector.shape_cast %324 : vector<1x8x384xf32> to vector<8x384xf32>
    %cst_82 = arith.constant dense<0.000000e+00> : vector<8x384xf32>
    %326 = tpu.matmul %322, %9, %cst_82 {dimension_numbers = #tpu.dot_dimension_numbers<[1], [0], [0], [1], [0, 0, 1, 1], [], []>} : vector<8x128xf32>, vector<128x384xf32>, vector<8x384xf32> -> vector<8x384xf32>
    %327 = arith.addf %326, %12 : vector<8x384xf32>
    %328 = vector.extract_strided_slice %325 {offsets = [0, 0], sizes = [8, 128], strides = [1, 1]} : vector<8x384xf32> to vector<8x128xf32>
    %329 = vector.extract_strided_slice %327 {offsets = [0, 0], sizes = [8, 128], strides = [1, 1]} : vector<8x384xf32> to vector<8x128xf32>
    %330 = arith.addf %328, %329 : vector<8x128xf32>
    %331 = arith.negf %330 : vector<8x128xf32>
    %332 = math.exp %331 : vector<8x128xf32>
    %cst_83 = arith.constant 1.000000e+00 : f32
    %333 = vector.broadcast %cst_83 : f32 to vector<8x128xf32>
    %334 = arith.addf %333, %332 : vector<8x128xf32>
    %335 = arith.divf %333, %334 : vector<8x128xf32>
    %336 = vector.extract_strided_slice %325 {offsets = [0, 128], sizes = [8, 128], strides = [1, 1]} : vector<8x384xf32> to vector<8x128xf32>
    %337 = vector.extract_strided_slice %327 {offsets = [0, 128], sizes = [8, 128], strides = [1, 1]} : vector<8x384xf32> to vector<8x128xf32>
    %338 = arith.addf %336, %337 : vector<8x128xf32>
    %339 = arith.negf %338 : vector<8x128xf32>
    %340 = math.exp %339 : vector<8x128xf32>
    %cst_84 = arith.constant 1.000000e+00 : f32
    %341 = vector.broadcast %cst_84 : f32 to vector<8x128xf32>
    %342 = arith.addf %341, %340 : vector<8x128xf32>
    %343 = arith.divf %341, %342 : vector<8x128xf32>
    %344 = vector.extract_strided_slice %325 {offsets = [0, 256], sizes = [8, 128], strides = [1, 1]} : vector<8x384xf32> to vector<8x128xf32>
    %345 = vector.extract_strided_slice %327 {offsets = [0, 256], sizes = [8, 128], strides = [1, 1]} : vector<8x384xf32> to vector<8x128xf32>
    %346 = arith.mulf %335, %345 : vector<8x128xf32>
    %347 = arith.addf %344, %346 : vector<8x128xf32>
    %348 = math.tanh %347 : vector<8x128xf32>
    %cst_85 = arith.constant 1.000000e+00 : f32
    %349 = vector.broadcast %cst_85 : f32 to vector<8x128xf32>
    %350 = arith.subf %349, %343 : vector<8x128xf32>
    %351 = arith.mulf %350, %348 : vector<8x128xf32>
    %352 = arith.mulf %343, %322 : vector<8x128xf32>
    %353 = arith.addf %351, %352 : vector<8x128xf32>
    %354 = vector.broadcast %c7_i32 : i32 to vector<8x1xi32>
    %355 = arith.cmpi slt, %354, %13 : vector<8x1xi32>
    %cst_86 = arith.constant 0.000000e+00 : f32
    %356 = vector.shape_cast %355 : vector<8x1xi1> to vector<8x1xi1>
    %357 = vector.broadcast %356 : vector<8x1xi1> to vector<8x128xi1>
    %358 = vector.broadcast %cst_86 : f32 to vector<8x128xf32>
    %359 = arith.select %357, %353, %358 : vector<8x128xi1>, vector<8x128xf32>
    %360 = arith.index_cast %c7_i32 : i32 to index
    %c0_87 = arith.constant 0 : index
    %c0_88 = arith.constant 0 : index
    %361 = vector.load %arg8[%360, %c0_87, %c0_88] : memref<10x8x128xf32, #tpu.memory_space<vmem>>, vector<1x8x128xf32>
    %362 = vector.shape_cast %361 : vector<1x8x128xf32> to vector<8x128xf32>
    %363 = vector.shape_cast %359 : vector<8x128xf32> to vector<1x8x128xf32>
    tpu.vector_store %arg8[%360, %c0_87, %c0_88], %363 {strides = array<i32>} : memref<10x8x128xf32, #tpu.memory_space<vmem>>, vector<1x8x128xf32>,
    %364 = vector.shape_cast %355 : vector<8x1xi1> to vector<8x1xi1>
    %365 = vector.broadcast %364 : vector<8x1xi1> to vector<8x128xi1>
    %366 = arith.select %365, %353, %322 : vector<8x128xi1>, vector<8x128xf32>
    %c8_i32 = arith.constant 8 : i32
    %367 = arith.index_cast %c8_i32 : i32 to index
    %c0_89 = arith.constant 0 : index
    %c0_90 = arith.constant 0 : index
    %368 = vector.load %arg10[%367, %c0_89, %c0_90] : memref<10x8x384xf32, #tpu.memory_space<vmem>>, vector<1x8x384xf32>
    %369 = vector.shape_cast %368 : vector<1x8x384xf32> to vector<8x384xf32>
    %cst_91 = arith.constant dense<0.000000e+00> : vector<8x384xf32>
    %370 = tpu.matmul %366, %9, %cst_91 {dimension_numbers = #tpu.dot_dimension_numbers<[1], [0], [0], [1], [0, 0, 1, 1], [], []>} : vector<8x128xf32>, vector<128x384xf32>, vector<8x384xf32> -> vector<8x384xf32>
    %371 = arith.addf %370, %12 : vector<8x384xf32>
    %372 = vector.extract_strided_slice %369 {offsets = [0, 0], sizes = [8, 128], strides = [1, 1]} : vector<8x384xf32> to vector<8x128xf32>
    %373 = vector.extract_strided_slice %371 {offsets = [0, 0], sizes = [8, 128], strides = [1, 1]} : vector<8x384xf32> to vector<8x128xf32>
    %374 = arith.addf %372, %373 : vector<8x128xf32>
    %375 = arith.negf %374 : vector<8x128xf32>
    %376 = math.exp %375 : vector<8x128xf32>
    %cst_92 = arith.constant 1.000000e+00 : f32
    %377 = vector.broadcast %cst_92 : f32 to vector<8x128xf32>
    %378 = arith.addf %377, %376 : vector<8x128xf32>
    %379 = arith.divf %377, %378 : vector<8x128xf32>
    %380 = vector.extract_strided_slice %369 {offsets = [0, 128], sizes = [8, 128], strides = [1, 1]} : vector<8x384xf32> to vector<8x128xf32>
    %381 = vector.extract_strided_slice %371 {offsets = [0, 128], sizes = [8, 128], strides = [1, 1]} : vector<8x384xf32> to vector<8x128xf32>
    %382 = arith.addf %380, %381 : vector<8x128xf32>
    %383 = arith.negf %382 : vector<8x128xf32>
    %384 = math.exp %383 : vector<8x128xf32>
    %cst_93 = arith.constant 1.000000e+00 : f32
    %385 = vector.broadcast %cst_93 : f32 to vector<8x128xf32>
    %386 = arith.addf %385, %384 : vector<8x128xf32>
    %387 = arith.divf %385, %386 : vector<8x128xf32>
    %388 = vector.extract_strided_slice %369 {offsets = [0, 256], sizes = [8, 128], strides = [1, 1]} : vector<8x384xf32> to vector<8x128xf32>
    %389 = vector.extract_strided_slice %371 {offsets = [0, 256], sizes = [8, 128], strides = [1, 1]} : vector<8x384xf32> to vector<8x128xf32>
    %390 = arith.mulf %379, %389 : vector<8x128xf32>
    %391 = arith.addf %388, %390 : vector<8x128xf32>
    %392 = math.tanh %391 : vector<8x128xf32>
    %cst_94 = arith.constant 1.000000e+00 : f32
    %393 = vector.broadcast %cst_94 : f32 to vector<8x128xf32>
    %394 = arith.subf %393, %387 : vector<8x128xf32>
    %395 = arith.mulf %394, %392 : vector<8x128xf32>
    %396 = arith.mulf %387, %366 : vector<8x128xf32>
    %397 = arith.addf %395, %396 : vector<8x128xf32>
    %398 = vector.broadcast %c8_i32 : i32 to vector<8x1xi32>
    %399 = arith.cmpi slt, %398, %13 : vector<8x1xi32>
    %cst_95 = arith.constant 0.000000e+00 : f32
    %400 = vector.shape_cast %399 : vector<8x1xi1> to vector<8x1xi1>
    %401 = vector.broadcast %400 : vector<8x1xi1> to vector<8x128xi1>
    %402 = vector.broadcast %cst_95 : f32 to vector<8x128xf32>
    %403 = arith.select %401, %397, %402 : vector<8x128xi1>, vector<8x128xf32>
    %404 = arith.index_cast %c8_i32 : i32 to index
    %c0_96 = arith.constant 0 : index
    %c0_97 = arith.constant 0 : index
    %405 = vector.load %arg8[%404, %c0_96, %c0_97] : memref<10x8x128xf32, #tpu.memory_space<vmem>>, vector<1x8x128xf32>
    %406 = vector.shape_cast %405 : vector<1x8x128xf32> to vector<8x128xf32>
    %407 = vector.shape_cast %403 : vector<8x128xf32> to vector<1x8x128xf32>
    tpu.vector_store %arg8[%404, %c0_96, %c0_97], %407 {strides = array<i32>} : memref<10x8x128xf32, #tpu.memory_space<vmem>>, vector<1x8x128xf32>,
    %408 = vector.shape_cast %399 : vector<8x1xi1> to vector<8x1xi1>
    %409 = vector.broadcast %408 : vector<8x1xi1> to vector<8x128xi1>
    %410 = arith.select %409, %397, %366 : vector<8x128xi1>, vector<8x128xf32>
    %c9_i32 = arith.constant 9 : i32
    %411 = arith.index_cast %c9_i32 : i32 to index
    %c0_98 = arith.constant 0 : index
    %c0_99 = arith.constant 0 : index
    %412 = vector.load %arg10[%411, %c0_98, %c0_99] : memref<10x8x384xf32, #tpu.memory_space<vmem>>, vector<1x8x384xf32>
    %413 = vector.shape_cast %412 : vector<1x8x384xf32> to vector<8x384xf32>
    %cst_100 = arith.constant dense<0.000000e+00> : vector<8x384xf32>
    %414 = tpu.matmul %410, %9, %cst_100 {dimension_numbers = #tpu.dot_dimension_numbers<[1], [0], [0], [1], [0, 0, 1, 1], [], []>} : vector<8x128xf32>, vector<128x384xf32>, vector<8x384xf32> -> vector<8x384xf32>
    %415 = arith.addf %414, %12 : vector<8x384xf32>
    %416 = vector.extract_strided_slice %413 {offsets = [0, 0], sizes = [8, 128], strides = [1, 1]} : vector<8x384xf32> to vector<8x128xf32>
    %417 = vector.extract_strided_slice %415 {offsets = [0, 0], sizes = [8, 128], strides = [1, 1]} : vector<8x384xf32> to vector<8x128xf32>
    %418 = arith.addf %416, %417 : vector<8x128xf32>
    %419 = arith.negf %418 : vector<8x128xf32>
    %420 = math.exp %419 : vector<8x128xf32>
    %cst_101 = arith.constant 1.000000e+00 : f32
    %421 = vector.broadcast %cst_101 : f32 to vector<8x128xf32>
    %422 = arith.addf %421, %420 : vector<8x128xf32>
    %423 = arith.divf %421, %422 : vector<8x128xf32>
    %424 = vector.extract_strided_slice %413 {offsets = [0, 128], sizes = [8, 128], strides = [1, 1]} : vector<8x384xf32> to vector<8x128xf32>
    %425 = vector.extract_strided_slice %415 {offsets = [0, 128], sizes = [8, 128], strides = [1, 1]} : vector<8x384xf32> to vector<8x128xf32>
    %426 = arith.addf %424, %425 : vector<8x128xf32>
    %427 = arith.negf %426 : vector<8x128xf32>
    %428 = math.exp %427 : vector<8x128xf32>
    %cst_102 = arith.constant 1.000000e+00 : f32
    %429 = vector.broadcast %cst_102 : f32 to vector<8x128xf32>
    %430 = arith.addf %429, %428 : vector<8x128xf32>
    %431 = arith.divf %429, %430 : vector<8x128xf32>
    %432 = vector.extract_strided_slice %413 {offsets = [0, 256], sizes = [8, 128], strides = [1, 1]} : vector<8x384xf32> to vector<8x128xf32>
    %433 = vector.extract_strided_slice %415 {offsets = [0, 256], sizes = [8, 128], strides = [1, 1]} : vector<8x384xf32> to vector<8x128xf32>
    %434 = arith.mulf %423, %433 : vector<8x128xf32>
    %435 = arith.addf %432, %434 : vector<8x128xf32>
    %436 = math.tanh %435 : vector<8x128xf32>
    %cst_103 = arith.constant 1.000000e+00 : f32
    %437 = vector.broadcast %cst_103 : f32 to vector<8x128xf32>
    %438 = arith.subf %437, %431 : vector<8x128xf32>
    %439 = arith.mulf %438, %436 : vector<8x128xf32>
    %440 = arith.mulf %431, %410 : vector<8x128xf32>
    %441 = arith.addf %439, %440 : vector<8x128xf32>
    %442 = vector.broadcast %c9_i32 : i32 to vector<8x1xi32>
    %443 = arith.cmpi slt, %442, %13 : vector<8x1xi32>
    %cst_104 = arith.constant 0.000000e+00 : f32
    %444 = vector.shape_cast %443 : vector<8x1xi1> to vector<8x1xi1>
    %445 = vector.broadcast %444 : vector<8x1xi1> to vector<8x128xi1>
    %446 = vector.broadcast %cst_104 : f32 to vector<8x128xf32>
    %447 = arith.select %445, %441, %446 : vector<8x128xi1>, vector<8x128xf32>
    %448 = arith.index_cast %c9_i32 : i32 to index
    %c0_105 = arith.constant 0 : index
    %c0_106 = arith.constant 0 : index
    %449 = vector.load %arg8[%448, %c0_105, %c0_106] : memref<10x8x128xf32, #tpu.memory_space<vmem>>, vector<1x8x128xf32>
    %450 = vector.shape_cast %449 : vector<1x8x128xf32> to vector<8x128xf32>
    %451 = vector.shape_cast %447 : vector<8x128xf32> to vector<1x8x128xf32>
    tpu.vector_store %arg8[%448, %c0_105, %c0_106], %451 {strides = array<i32>} : memref<10x8x128xf32, #tpu.memory_space<vmem>>, vector<1x8x128xf32>,
    %452 = vector.shape_cast %443 : vector<8x1xi1> to vector<8x1xi1>
    %453 = vector.broadcast %452 : vector<8x1xi1> to vector<8x128xi1>
    %454 = arith.select %453, %441, %410 : vector<8x128xi1>, vector<8x128xf32>
    %c10_i32 = arith.constant 10 : i32
    %c0_107 = arith.constant 0 : index
    %c0_108 = arith.constant 0 : index
    %455 = vector.load %arg9[%c0_107, %c0_108] : memref<8x128xf32, #tpu.memory_space<vmem>>, vector<8x128xf32>
    tpu.vector_store %arg9[%c0_107, %c0_108], %454 {strides = array<i32>} : memref<8x128xf32, #tpu.memory_space<vmem>>, vector<8x128xf32>,
    return
  }
  func.func @transform_0(%arg0: i32) -> (i32, i32, i32) {
    %c0_i32 = arith.constant 0 : i32
    %c0_i32_0 = arith.constant 0 : i32
    %c0_i32_1 = arith.constant 0 : i32
    return %c0_i32, %arg0, %c0_i32_0 : i32, i32, i32
  }
  func.func @transform_1(%arg0: i32) -> (i32, i32) {
    %c0_i32 = arith.constant 0 : i32
    %c0_i32_0 = arith.constant 0 : i32
    return %arg0, %c0_i32 : i32, i32
  }
  func.func @transform_2(%arg0: i32) -> (i32, i32) {
    %c0_i32 = arith.constant 0 : i32
    %c0_i32_0 = arith.constant 0 : i32
    return %arg0, %c0_i32 : i32, i32
  }
  func.func @transform_3(%arg0: i32) -> (i32, i32) {
    %c0_i32 = arith.constant 0 : i32
    %c0_i32_0 = arith.constant 0 : i32
    %c0_i32_1 = arith.constant 0 : i32
    return %c0_i32, %c0_i32_0 : i32, i32
  }
  func.func @transform_4(%arg0: i32) -> (i32, i32) {
    %c0_i32 = arith.constant 0 : i32
    %c0_i32_0 = arith.constant 0 : i32
    %c0_i32_1 = arith.constant 0 : i32
    return %c0_i32, %c0_i32_0 : i32, i32
  }
  func.func @transform_5(%arg0: i32) -> (i32, i32) {
    %c0_i32 = arith.constant 0 : i32
    %c0_i32_0 = arith.constant 0 : i32
    %c0_i32_1 = arith.constant 0 : i32
    return %c0_i32, %c0_i32_0 : i32, i32
  }
  func.func @transform_6(%arg0: i32) -> (i32, i32) {
    %c0_i32 = arith.constant 0 : i32
    %c0_i32_0 = arith.constant 0 : i32
    %c0_i32_1 = arith.constant 0 : i32
    return %c0_i32, %c0_i32_0 : i32, i32
  }
  func.func @transform_7(%arg0: i32) -> (i32, i32, i32) {
    %c0_i32 = arith.constant 0 : i32
    %c0_i32_0 = arith.constant 0 : i32
    %c0_i32_1 = arith.constant 0 : i32
    return %c0_i32, %arg0, %c0_i32_0 : i32, i32, i32
  }
  func.func @transform_8(%arg0: i32) -> (i32, i32) {
    %c0_i32 = arith.constant 0 : i32
    %c0_i32_0 = arith.constant 0 : i32
    return %arg0, %c0_i32 : i32, i32
  }
}

module attributes {stable_mosaic.version = 11 : i64} {
  func.func @_enc_hid_kernel(%arg0: i32, %arg1: memref<8x128xf32, #tpu.memory_space<vmem>>, %arg2: memref<8x128xf32, #tpu.memory_space<vmem>>, %arg3: memref<128x128xf32, #tpu.memory_space<vmem>>, %arg4: memref<128x128xf32, #tpu.memory_space<vmem>>, %arg5: memref<1x128xf32, #tpu.memory_space<vmem>>, %arg6: memref<8x128xf32, #tpu.memory_space<vmem>>) attributes {dimension_semantics = [#tpu.dimension_semantics<parallel>], iteration_bounds = array<i64: 1>, scalar_prefetch = 0 : i64, scratch_operands = 0 : i64, tpu.core_type = #tpu.core_type<tc>, window_params = [{transform_indices = @transform_0, window_bounds = array<i64: 8, 128>}, {transform_indices = @transform_1, window_bounds = array<i64: 8, 128>}, {pipeline_mode = #tpu.pipeline_mode<synchronous>, transform_indices = @transform_2, window_bounds = array<i64: 128, 128>}, {pipeline_mode = #tpu.pipeline_mode<synchronous>, transform_indices = @transform_3, window_bounds = array<i64: 128, 128>}, {pipeline_mode = #tpu.pipeline_mode<synchronous>, transform_indices = @transform_4, window_bounds = array<i64: 1, 128>}, {transform_indices = @transform_5, window_bounds = array<i64: 8, 128>}]} {
    %c0 = arith.constant 0 : index
    %c0_0 = arith.constant 0 : index
    %0 = vector.load %arg1[%c0, %c0_0] : memref<8x128xf32, #tpu.memory_space<vmem>>, vector<8x128xf32>
    %c0_1 = arith.constant 0 : index
    %c0_2 = arith.constant 0 : index
    %1 = vector.load %arg3[%c0_1, %c0_2] : memref<128x128xf32, #tpu.memory_space<vmem>>, vector<128x128xf32>
    %cst = arith.constant dense<0.000000e+00> : vector<8x128xf32>
    %2 = tpu.matmul %0, %1, %cst {dimension_numbers = #tpu.dot_dimension_numbers<[1], [0], [0], [1], [0, 0, 1, 1], [], []>} : vector<8x128xf32>, vector<128x128xf32>, vector<8x128xf32> -> vector<8x128xf32>
    %c0_3 = arith.constant 0 : index
    %c0_4 = arith.constant 0 : index
    %3 = vector.load %arg2[%c0_3, %c0_4] : memref<8x128xf32, #tpu.memory_space<vmem>>, vector<8x128xf32>
    %c0_5 = arith.constant 0 : index
    %c0_6 = arith.constant 0 : index
    %4 = vector.load %arg4[%c0_5, %c0_6] : memref<128x128xf32, #tpu.memory_space<vmem>>, vector<128x128xf32>
    %cst_7 = arith.constant dense<0.000000e+00> : vector<8x128xf32>
    %5 = tpu.matmul %3, %4, %cst_7 {dimension_numbers = #tpu.dot_dimension_numbers<[1], [0], [0], [1], [0, 0, 1, 1], [], []>} : vector<8x128xf32>, vector<128x128xf32>, vector<8x128xf32> -> vector<8x128xf32>
    %6 = arith.addf %2, %5 : vector<8x128xf32>
    %c0_8 = arith.constant 0 : index
    %c0_9 = arith.constant 0 : index
    %7 = vector.load %arg5[%c0_8, %c0_9] : memref<1x128xf32, #tpu.memory_space<vmem>>, vector<1x128xf32>
    %8 = vector.broadcast %7 : vector<1x128xf32> to vector<8x128xf32>
    %9 = arith.addf %6, %8 : vector<8x128xf32>
    %10 = math.tanh %9 : vector<8x128xf32>
    %c0_10 = arith.constant 0 : index
    %c0_11 = arith.constant 0 : index
    %11 = vector.load %arg6[%c0_10, %c0_11] : memref<8x128xf32, #tpu.memory_space<vmem>>, vector<8x128xf32>
    tpu.vector_store %arg6[%c0_10, %c0_11], %10 {strides = array<i32>} : memref<8x128xf32, #tpu.memory_space<vmem>>, vector<8x128xf32>,
    return
  }
  func.func @transform_0(%arg0: i32) -> (i32, i32) {
    %c0_i32 = arith.constant 0 : i32
    %c0_i32_0 = arith.constant 0 : i32
    return %arg0, %c0_i32 : i32, i32
  }
  func.func @transform_1(%arg0: i32) -> (i32, i32) {
    %c0_i32 = arith.constant 0 : i32
    %c0_i32_0 = arith.constant 0 : i32
    return %arg0, %c0_i32 : i32, i32
  }
  func.func @transform_2(%arg0: i32) -> (i32, i32) {
    %c0_i32 = arith.constant 0 : i32
    %c0_i32_0 = arith.constant 0 : i32
    %c0_i32_1 = arith.constant 0 : i32
    return %c0_i32, %c0_i32_0 : i32, i32
  }
  func.func @transform_3(%arg0: i32) -> (i32, i32) {
    %c0_i32 = arith.constant 0 : i32
    %c0_i32_0 = arith.constant 0 : i32
    %c0_i32_1 = arith.constant 0 : i32
    return %c0_i32, %c0_i32_0 : i32, i32
  }
  func.func @transform_4(%arg0: i32) -> (i32, i32) {
    %c0_i32 = arith.constant 0 : i32
    %c0_i32_0 = arith.constant 0 : i32
    %c0_i32_1 = arith.constant 0 : i32
    return %c0_i32, %c0_i32_0 : i32, i32
  }
  func.func @transform_5(%arg0: i32) -> (i32, i32) {
    %c0_i32 = arith.constant 0 : i32
    %c0_i32_0 = arith.constant 0 : i32
    return %arg0, %c0_i32 : i32, i32
  }
}

module attributes {stable_mosaic.version = 11 : i64} {
  func.func @_gru_kernel(%arg0: i32, %arg1: memref<8x8x128xf32, #tpu.memory_space<vmem>>, %arg2: memref<8x1xi32, #tpu.memory_space<vmem>>, %arg3: memref<8x128xf32, #tpu.memory_space<vmem>>, %arg4: memref<128x384xf32, #tpu.memory_space<vmem>>, %arg5: memref<128x384xf32, #tpu.memory_space<vmem>>, %arg6: memref<1x384xf32, #tpu.memory_space<vmem>>, %arg7: memref<1x384xf32, #tpu.memory_space<vmem>>, %arg8: memref<8x8x128xf32, #tpu.memory_space<vmem>>, %arg9: memref<8x128xf32, #tpu.memory_space<vmem>>, %arg10: memref<8x8x384xf32, #tpu.memory_space<vmem>>) attributes {dimension_semantics = [#tpu.dimension_semantics<parallel>], iteration_bounds = array<i64: 1>, scalar_prefetch = 0 : i64, scratch_operands = 1 : i64, tpu.core_type = #tpu.core_type<tc>, window_params = [{transform_indices = @transform_0, window_bounds = array<i64: 8, 8, 128>}, {transform_indices = @transform_1, window_bounds = array<i64: 8, 1>}, {transform_indices = @transform_2, window_bounds = array<i64: 8, 128>}, {pipeline_mode = #tpu.pipeline_mode<synchronous>, transform_indices = @transform_3, window_bounds = array<i64: 128, 384>}, {pipeline_mode = #tpu.pipeline_mode<synchronous>, transform_indices = @transform_4, window_bounds = array<i64: 128, 384>}, {pipeline_mode = #tpu.pipeline_mode<synchronous>, transform_indices = @transform_5, window_bounds = array<i64: 1, 384>}, {pipeline_mode = #tpu.pipeline_mode<synchronous>, transform_indices = @transform_6, window_bounds = array<i64: 1, 384>}, {transform_indices = @transform_7, window_bounds = array<i64: 8, 8, 128>}, {transform_indices = @transform_8, window_bounds = array<i64: 8, 128>}]} {
    %c0 = arith.constant 0 : index
    %c0_0 = arith.constant 0 : index
    %c0_1 = arith.constant 0 : index
    %0 = vector.load %arg1[%c0, %c0_0, %c0_1] : memref<8x8x128xf32, #tpu.memory_space<vmem>>, vector<8x8x128xf32>
    %1 = vector.shape_cast %0 : vector<8x8x128xf32> to vector<64x128xf32>
    %c0_2 = arith.constant 0 : index
    %c0_3 = arith.constant 0 : index
    %2 = vector.load %arg4[%c0_2, %c0_3] : memref<128x384xf32, #tpu.memory_space<vmem>>, vector<128x384xf32>
    %cst = arith.constant dense<0.000000e+00> : vector<64x384xf32>
    %3 = tpu.matmul %1, %2, %cst {dimension_numbers = #tpu.dot_dimension_numbers<[1], [0], [0], [1], [0, 0, 1, 1], [], []>} : vector<64x128xf32>, vector<128x384xf32>, vector<64x384xf32> -> vector<64x384xf32>
    %c0_4 = arith.constant 0 : index
    %c0_5 = arith.constant 0 : index
    %4 = vector.load %arg6[%c0_4, %c0_5] : memref<1x384xf32, #tpu.memory_space<vmem>>, vector<1x384xf32>
    %5 = vector.broadcast %4 : vector<1x384xf32> to vector<64x384xf32>
    %6 = arith.addf %3, %5 : vector<64x384xf32>
    %7 = vector.shape_cast %6 : vector<64x384xf32> to vector<8x8x384xf32>
    %c0_6 = arith.constant 0 : index
    %c0_7 = arith.constant 0 : index
    %c0_8 = arith.constant 0 : index
    %8 = vector.load %arg10[%c0_6, %c0_7, %c0_8] : memref<8x8x384xf32, #tpu.memory_space<vmem>>, vector<8x8x384xf32>
    tpu.vector_store %arg10[%c0_6, %c0_7, %c0_8], %7 {strides = array<i32>} : memref<8x8x384xf32, #tpu.memory_space<vmem>>, vector<8x8x384xf32>,
    %c0_9 = arith.constant 0 : index
    %c0_10 = arith.constant 0 : index
    %9 = vector.load %arg5[%c0_9, %c0_10] : memref<128x384xf32, #tpu.memory_space<vmem>>, vector<128x384xf32>
    %c0_11 = arith.constant 0 : index
    %c0_12 = arith.constant 0 : index
    %10 = vector.load %arg7[%c0_11, %c0_12] : memref<1x384xf32, #tpu.memory_space<vmem>>, vector<1x384xf32>
    %11 = vector.shape_cast %10 : vector<1x384xf32> to vector<1x384xf32>
    %12 = vector.broadcast %11 : vector<1x384xf32> to vector<8x384xf32>
    %c0_13 = arith.constant 0 : index
    %c0_14 = arith.constant 0 : index
    %13 = vector.load %arg2[%c0_13, %c0_14] : memref<8x1xi32, #tpu.memory_space<vmem>>, vector<8x1xi32>
    %c0_15 = arith.constant 0 : index
    %c0_16 = arith.constant 0 : index
    %14 = vector.load %arg3[%c0_15, %c0_16] : memref<8x128xf32, #tpu.memory_space<vmem>>, vector<8x128xf32>
    %c0_i32 = arith.constant 0 : i32
    %15 = arith.index_cast %c0_i32 : i32 to index
    %c0_17 = arith.constant 0 : index
    %c0_18 = arith.constant 0 : index
    %16 = vector.load %arg10[%15, %c0_17, %c0_18] : memref<8x8x384xf32, #tpu.memory_space<vmem>>, vector<1x8x384xf32>
    %17 = vector.shape_cast %16 : vector<1x8x384xf32> to vector<8x384xf32>
    %cst_19 = arith.constant dense<0.000000e+00> : vector<8x384xf32>
    %18 = tpu.matmul %14, %9, %cst_19 {dimension_numbers = #tpu.dot_dimension_numbers<[1], [0], [0], [1], [0, 0, 1, 1], [], []>} : vector<8x128xf32>, vector<128x384xf32>, vector<8x384xf32> -> vector<8x384xf32>
    %19 = arith.addf %18, %12 : vector<8x384xf32>
    %20 = vector.extract_strided_slice %17 {offsets = [0, 0], sizes = [8, 128], strides = [1, 1]} : vector<8x384xf32> to vector<8x128xf32>
    %21 = vector.extract_strided_slice %19 {offsets = [0, 0], sizes = [8, 128], strides = [1, 1]} : vector<8x384xf32> to vector<8x128xf32>
    %22 = arith.addf %20, %21 : vector<8x128xf32>
    %23 = arith.negf %22 : vector<8x128xf32>
    %24 = math.exp %23 : vector<8x128xf32>
    %cst_20 = arith.constant 1.000000e+00 : f32
    %25 = vector.broadcast %cst_20 : f32 to vector<8x128xf32>
    %26 = arith.addf %25, %24 : vector<8x128xf32>
    %27 = arith.divf %25, %26 : vector<8x128xf32>
    %28 = vector.extract_strided_slice %17 {offsets = [0, 128], sizes = [8, 128], strides = [1, 1]} : vector<8x384xf32> to vector<8x128xf32>
    %29 = vector.extract_strided_slice %19 {offsets = [0, 128], sizes = [8, 128], strides = [1, 1]} : vector<8x384xf32> to vector<8x128xf32>
    %30 = arith.addf %28, %29 : vector<8x128xf32>
    %31 = arith.negf %30 : vector<8x128xf32>
    %32 = math.exp %31 : vector<8x128xf32>
    %cst_21 = arith.constant 1.000000e+00 : f32
    %33 = vector.broadcast %cst_21 : f32 to vector<8x128xf32>
    %34 = arith.addf %33, %32 : vector<8x128xf32>
    %35 = arith.divf %33, %34 : vector<8x128xf32>
    %36 = vector.extract_strided_slice %17 {offsets = [0, 256], sizes = [8, 128], strides = [1, 1]} : vector<8x384xf32> to vector<8x128xf32>
    %37 = vector.extract_strided_slice %19 {offsets = [0, 256], sizes = [8, 128], strides = [1, 1]} : vector<8x384xf32> to vector<8x128xf32>
    %38 = arith.mulf %27, %37 : vector<8x128xf32>
    %39 = arith.addf %36, %38 : vector<8x128xf32>
    %40 = math.tanh %39 : vector<8x128xf32>
    %cst_22 = arith.constant 1.000000e+00 : f32
    %41 = vector.broadcast %cst_22 : f32 to vector<8x128xf32>
    %42 = arith.subf %41, %35 : vector<8x128xf32>
    %43 = arith.mulf %42, %40 : vector<8x128xf32>
    %44 = arith.mulf %35, %14 : vector<8x128xf32>
    %45 = arith.addf %43, %44 : vector<8x128xf32>
    %46 = vector.broadcast %c0_i32 : i32 to vector<8x1xi32>
    %47 = arith.cmpi slt, %46, %13 : vector<8x1xi32>
    %cst_23 = arith.constant 0.000000e+00 : f32
    %48 = vector.shape_cast %47 : vector<8x1xi1> to vector<8x1xi1>
    %49 = vector.broadcast %48 : vector<8x1xi1> to vector<8x128xi1>
    %50 = vector.broadcast %cst_23 : f32 to vector<8x128xf32>
    %51 = arith.select %49, %45, %50 : vector<8x128xi1>, vector<8x128xf32>
    %52 = arith.index_cast %c0_i32 : i32 to index
    %c0_24 = arith.constant 0 : index
    %c0_25 = arith.constant 0 : index
    %53 = vector.load %arg8[%52, %c0_24, %c0_25] : memref<8x8x128xf32, #tpu.memory_space<vmem>>, vector<1x8x128xf32>
    %54 = vector.shape_cast %53 : vector<1x8x128xf32> to vector<8x128xf32>
    %55 = vector.shape_cast %51 : vector<8x128xf32> to vector<1x8x128xf32>
    tpu.vector_store %arg8[%52, %c0_24, %c0_25], %55 {strides = array<i32>} : memref<8x8x128xf32, #tpu.memory_space<vmem>>, vector<1x8x128xf32>,
    %56 = vector.shape_cast %47 : vector<8x1xi1> to vector<8x1xi1>
    %57 = vector.broadcast %56 : vector<8x1xi1> to vector<8x128xi1>
    %58 = arith.select %57, %45, %14 : vector<8x128xi1>, vector<8x128xf32>
    %c1_i32 = arith.constant 1 : i32
    %59 = arith.index_cast %c1_i32 : i32 to index
    %c0_26 = arith.constant 0 : index
    %c0_27 = arith.constant 0 : index
    %60 = vector.load %arg10[%59, %c0_26, %c0_27] : memref<8x8x384xf32, #tpu.memory_space<vmem>>, vector<1x8x384xf32>
    %61 = vector.shape_cast %60 : vector<1x8x384xf32> to vector<8x384xf32>
    %cst_28 = arith.constant dense<0.000000e+00> : vector<8x384xf32>
    %62 = tpu.matmul %58, %9, %cst_28 {dimension_numbers = #tpu.dot_dimension_numbers<[1], [0], [0], [1], [0, 0, 1, 1], [], []>} : vector<8x128xf32>, vector<128x384xf32>, vector<8x384xf32> -> vector<8x384xf32>
    %63 = arith.addf %62, %12 : vector<8x384xf32>
    %64 = vector.extract_strided_slice %61 {offsets = [0, 0], sizes = [8, 128], strides = [1, 1]} : vector<8x384xf32> to vector<8x128xf32>
    %65 = vector.extract_strided_slice %63 {offsets = [0, 0], sizes = [8, 128], strides = [1, 1]} : vector<8x384xf32> to vector<8x128xf32>
    %66 = arith.addf %64, %65 : vector<8x128xf32>
    %67 = arith.negf %66 : vector<8x128xf32>
    %68 = math.exp %67 : vector<8x128xf32>
    %cst_29 = arith.constant 1.000000e+00 : f32
    %69 = vector.broadcast %cst_29 : f32 to vector<8x128xf32>
    %70 = arith.addf %69, %68 : vector<8x128xf32>
    %71 = arith.divf %69, %70 : vector<8x128xf32>
    %72 = vector.extract_strided_slice %61 {offsets = [0, 128], sizes = [8, 128], strides = [1, 1]} : vector<8x384xf32> to vector<8x128xf32>
    %73 = vector.extract_strided_slice %63 {offsets = [0, 128], sizes = [8, 128], strides = [1, 1]} : vector<8x384xf32> to vector<8x128xf32>
    %74 = arith.addf %72, %73 : vector<8x128xf32>
    %75 = arith.negf %74 : vector<8x128xf32>
    %76 = math.exp %75 : vector<8x128xf32>
    %cst_30 = arith.constant 1.000000e+00 : f32
    %77 = vector.broadcast %cst_30 : f32 to vector<8x128xf32>
    %78 = arith.addf %77, %76 : vector<8x128xf32>
    %79 = arith.divf %77, %78 : vector<8x128xf32>
    %80 = vector.extract_strided_slice %61 {offsets = [0, 256], sizes = [8, 128], strides = [1, 1]} : vector<8x384xf32> to vector<8x128xf32>
    %81 = vector.extract_strided_slice %63 {offsets = [0, 256], sizes = [8, 128], strides = [1, 1]} : vector<8x384xf32> to vector<8x128xf32>
    %82 = arith.mulf %71, %81 : vector<8x128xf32>
    %83 = arith.addf %80, %82 : vector<8x128xf32>
    %84 = math.tanh %83 : vector<8x128xf32>
    %cst_31 = arith.constant 1.000000e+00 : f32
    %85 = vector.broadcast %cst_31 : f32 to vector<8x128xf32>
    %86 = arith.subf %85, %79 : vector<8x128xf32>
    %87 = arith.mulf %86, %84 : vector<8x128xf32>
    %88 = arith.mulf %79, %58 : vector<8x128xf32>
    %89 = arith.addf %87, %88 : vector<8x128xf32>
    %90 = vector.broadcast %c1_i32 : i32 to vector<8x1xi32>
    %91 = arith.cmpi slt, %90, %13 : vector<8x1xi32>
    %cst_32 = arith.constant 0.000000e+00 : f32
    %92 = vector.shape_cast %91 : vector<8x1xi1> to vector<8x1xi1>
    %93 = vector.broadcast %92 : vector<8x1xi1> to vector<8x128xi1>
    %94 = vector.broadcast %cst_32 : f32 to vector<8x128xf32>
    %95 = arith.select %93, %89, %94 : vector<8x128xi1>, vector<8x128xf32>
    %96 = arith.index_cast %c1_i32 : i32 to index
    %c0_33 = arith.constant 0 : index
    %c0_34 = arith.constant 0 : index
    %97 = vector.load %arg8[%96, %c0_33, %c0_34] : memref<8x8x128xf32, #tpu.memory_space<vmem>>, vector<1x8x128xf32>
    %98 = vector.shape_cast %97 : vector<1x8x128xf32> to vector<8x128xf32>
    %99 = vector.shape_cast %95 : vector<8x128xf32> to vector<1x8x128xf32>
    tpu.vector_store %arg8[%96, %c0_33, %c0_34], %99 {strides = array<i32>} : memref<8x8x128xf32, #tpu.memory_space<vmem>>, vector<1x8x128xf32>,
    %100 = vector.shape_cast %91 : vector<8x1xi1> to vector<8x1xi1>
    %101 = vector.broadcast %100 : vector<8x1xi1> to vector<8x128xi1>
    %102 = arith.select %101, %89, %58 : vector<8x128xi1>, vector<8x128xf32>
    %c2_i32 = arith.constant 2 : i32
    %103 = arith.index_cast %c2_i32 : i32 to index
    %c0_35 = arith.constant 0 : index
    %c0_36 = arith.constant 0 : index
    %104 = vector.load %arg10[%103, %c0_35, %c0_36] : memref<8x8x384xf32, #tpu.memory_space<vmem>>, vector<1x8x384xf32>
    %105 = vector.shape_cast %104 : vector<1x8x384xf32> to vector<8x384xf32>
    %cst_37 = arith.constant dense<0.000000e+00> : vector<8x384xf32>
    %106 = tpu.matmul %102, %9, %cst_37 {dimension_numbers = #tpu.dot_dimension_numbers<[1], [0], [0], [1], [0, 0, 1, 1], [], []>} : vector<8x128xf32>, vector<128x384xf32>, vector<8x384xf32> -> vector<8x384xf32>
    %107 = arith.addf %106, %12 : vector<8x384xf32>
    %108 = vector.extract_strided_slice %105 {offsets = [0, 0], sizes = [8, 128], strides = [1, 1]} : vector<8x384xf32> to vector<8x128xf32>
    %109 = vector.extract_strided_slice %107 {offsets = [0, 0], sizes = [8, 128], strides = [1, 1]} : vector<8x384xf32> to vector<8x128xf32>
    %110 = arith.addf %108, %109 : vector<8x128xf32>
    %111 = arith.negf %110 : vector<8x128xf32>
    %112 = math.exp %111 : vector<8x128xf32>
    %cst_38 = arith.constant 1.000000e+00 : f32
    %113 = vector.broadcast %cst_38 : f32 to vector<8x128xf32>
    %114 = arith.addf %113, %112 : vector<8x128xf32>
    %115 = arith.divf %113, %114 : vector<8x128xf32>
    %116 = vector.extract_strided_slice %105 {offsets = [0, 128], sizes = [8, 128], strides = [1, 1]} : vector<8x384xf32> to vector<8x128xf32>
    %117 = vector.extract_strided_slice %107 {offsets = [0, 128], sizes = [8, 128], strides = [1, 1]} : vector<8x384xf32> to vector<8x128xf32>
    %118 = arith.addf %116, %117 : vector<8x128xf32>
    %119 = arith.negf %118 : vector<8x128xf32>
    %120 = math.exp %119 : vector<8x128xf32>
    %cst_39 = arith.constant 1.000000e+00 : f32
    %121 = vector.broadcast %cst_39 : f32 to vector<8x128xf32>
    %122 = arith.addf %121, %120 : vector<8x128xf32>
    %123 = arith.divf %121, %122 : vector<8x128xf32>
    %124 = vector.extract_strided_slice %105 {offsets = [0, 256], sizes = [8, 128], strides = [1, 1]} : vector<8x384xf32> to vector<8x128xf32>
    %125 = vector.extract_strided_slice %107 {offsets = [0, 256], sizes = [8, 128], strides = [1, 1]} : vector<8x384xf32> to vector<8x128xf32>
    %126 = arith.mulf %115, %125 : vector<8x128xf32>
    %127 = arith.addf %124, %126 : vector<8x128xf32>
    %128 = math.tanh %127 : vector<8x128xf32>
    %cst_40 = arith.constant 1.000000e+00 : f32
    %129 = vector.broadcast %cst_40 : f32 to vector<8x128xf32>
    %130 = arith.subf %129, %123 : vector<8x128xf32>
    %131 = arith.mulf %130, %128 : vector<8x128xf32>
    %132 = arith.mulf %123, %102 : vector<8x128xf32>
    %133 = arith.addf %131, %132 : vector<8x128xf32>
    %134 = vector.broadcast %c2_i32 : i32 to vector<8x1xi32>
    %135 = arith.cmpi slt, %134, %13 : vector<8x1xi32>
    %cst_41 = arith.constant 0.000000e+00 : f32
    %136 = vector.shape_cast %135 : vector<8x1xi1> to vector<8x1xi1>
    %137 = vector.broadcast %136 : vector<8x1xi1> to vector<8x128xi1>
    %138 = vector.broadcast %cst_41 : f32 to vector<8x128xf32>
    %139 = arith.select %137, %133, %138 : vector<8x128xi1>, vector<8x128xf32>
    %140 = arith.index_cast %c2_i32 : i32 to index
    %c0_42 = arith.constant 0 : index
    %c0_43 = arith.constant 0 : index
    %141 = vector.load %arg8[%140, %c0_42, %c0_43] : memref<8x8x128xf32, #tpu.memory_space<vmem>>, vector<1x8x128xf32>
    %142 = vector.shape_cast %141 : vector<1x8x128xf32> to vector<8x128xf32>
    %143 = vector.shape_cast %139 : vector<8x128xf32> to vector<1x8x128xf32>
    tpu.vector_store %arg8[%140, %c0_42, %c0_43], %143 {strides = array<i32>} : memref<8x8x128xf32, #tpu.memory_space<vmem>>, vector<1x8x128xf32>,
    %144 = vector.shape_cast %135 : vector<8x1xi1> to vector<8x1xi1>
    %145 = vector.broadcast %144 : vector<8x1xi1> to vector<8x128xi1>
    %146 = arith.select %145, %133, %102 : vector<8x128xi1>, vector<8x128xf32>
    %c3_i32 = arith.constant 3 : i32
    %147 = arith.index_cast %c3_i32 : i32 to index
    %c0_44 = arith.constant 0 : index
    %c0_45 = arith.constant 0 : index
    %148 = vector.load %arg10[%147, %c0_44, %c0_45] : memref<8x8x384xf32, #tpu.memory_space<vmem>>, vector<1x8x384xf32>
    %149 = vector.shape_cast %148 : vector<1x8x384xf32> to vector<8x384xf32>
    %cst_46 = arith.constant dense<0.000000e+00> : vector<8x384xf32>
    %150 = tpu.matmul %146, %9, %cst_46 {dimension_numbers = #tpu.dot_dimension_numbers<[1], [0], [0], [1], [0, 0, 1, 1], [], []>} : vector<8x128xf32>, vector<128x384xf32>, vector<8x384xf32> -> vector<8x384xf32>
    %151 = arith.addf %150, %12 : vector<8x384xf32>
    %152 = vector.extract_strided_slice %149 {offsets = [0, 0], sizes = [8, 128], strides = [1, 1]} : vector<8x384xf32> to vector<8x128xf32>
    %153 = vector.extract_strided_slice %151 {offsets = [0, 0], sizes = [8, 128], strides = [1, 1]} : vector<8x384xf32> to vector<8x128xf32>
    %154 = arith.addf %152, %153 : vector<8x128xf32>
    %155 = arith.negf %154 : vector<8x128xf32>
    %156 = math.exp %155 : vector<8x128xf32>
    %cst_47 = arith.constant 1.000000e+00 : f32
    %157 = vector.broadcast %cst_47 : f32 to vector<8x128xf32>
    %158 = arith.addf %157, %156 : vector<8x128xf32>
    %159 = arith.divf %157, %158 : vector<8x128xf32>
    %160 = vector.extract_strided_slice %149 {offsets = [0, 128], sizes = [8, 128], strides = [1, 1]} : vector<8x384xf32> to vector<8x128xf32>
    %161 = vector.extract_strided_slice %151 {offsets = [0, 128], sizes = [8, 128], strides = [1, 1]} : vector<8x384xf32> to vector<8x128xf32>
    %162 = arith.addf %160, %161 : vector<8x128xf32>
    %163 = arith.negf %162 : vector<8x128xf32>
    %164 = math.exp %163 : vector<8x128xf32>
    %cst_48 = arith.constant 1.000000e+00 : f32
    %165 = vector.broadcast %cst_48 : f32 to vector<8x128xf32>
    %166 = arith.addf %165, %164 : vector<8x128xf32>
    %167 = arith.divf %165, %166 : vector<8x128xf32>
    %168 = vector.extract_strided_slice %149 {offsets = [0, 256], sizes = [8, 128], strides = [1, 1]} : vector<8x384xf32> to vector<8x128xf32>
    %169 = vector.extract_strided_slice %151 {offsets = [0, 256], sizes = [8, 128], strides = [1, 1]} : vector<8x384xf32> to vector<8x128xf32>
    %170 = arith.mulf %159, %169 : vector<8x128xf32>
    %171 = arith.addf %168, %170 : vector<8x128xf32>
    %172 = math.tanh %171 : vector<8x128xf32>
    %cst_49 = arith.constant 1.000000e+00 : f32
    %173 = vector.broadcast %cst_49 : f32 to vector<8x128xf32>
    %174 = arith.subf %173, %167 : vector<8x128xf32>
    %175 = arith.mulf %174, %172 : vector<8x128xf32>
    %176 = arith.mulf %167, %146 : vector<8x128xf32>
    %177 = arith.addf %175, %176 : vector<8x128xf32>
    %178 = vector.broadcast %c3_i32 : i32 to vector<8x1xi32>
    %179 = arith.cmpi slt, %178, %13 : vector<8x1xi32>
    %cst_50 = arith.constant 0.000000e+00 : f32
    %180 = vector.shape_cast %179 : vector<8x1xi1> to vector<8x1xi1>
    %181 = vector.broadcast %180 : vector<8x1xi1> to vector<8x128xi1>
    %182 = vector.broadcast %cst_50 : f32 to vector<8x128xf32>
    %183 = arith.select %181, %177, %182 : vector<8x128xi1>, vector<8x128xf32>
    %184 = arith.index_cast %c3_i32 : i32 to index
    %c0_51 = arith.constant 0 : index
    %c0_52 = arith.constant 0 : index
    %185 = vector.load %arg8[%184, %c0_51, %c0_52] : memref<8x8x128xf32, #tpu.memory_space<vmem>>, vector<1x8x128xf32>
    %186 = vector.shape_cast %185 : vector<1x8x128xf32> to vector<8x128xf32>
    %187 = vector.shape_cast %183 : vector<8x128xf32> to vector<1x8x128xf32>
    tpu.vector_store %arg8[%184, %c0_51, %c0_52], %187 {strides = array<i32>} : memref<8x8x128xf32, #tpu.memory_space<vmem>>, vector<1x8x128xf32>,
    %188 = vector.shape_cast %179 : vector<8x1xi1> to vector<8x1xi1>
    %189 = vector.broadcast %188 : vector<8x1xi1> to vector<8x128xi1>
    %190 = arith.select %189, %177, %146 : vector<8x128xi1>, vector<8x128xf32>
    %c4_i32 = arith.constant 4 : i32
    %191 = arith.index_cast %c4_i32 : i32 to index
    %c0_53 = arith.constant 0 : index
    %c0_54 = arith.constant 0 : index
    %192 = vector.load %arg10[%191, %c0_53, %c0_54] : memref<8x8x384xf32, #tpu.memory_space<vmem>>, vector<1x8x384xf32>
    %193 = vector.shape_cast %192 : vector<1x8x384xf32> to vector<8x384xf32>
    %cst_55 = arith.constant dense<0.000000e+00> : vector<8x384xf32>
    %194 = tpu.matmul %190, %9, %cst_55 {dimension_numbers = #tpu.dot_dimension_numbers<[1], [0], [0], [1], [0, 0, 1, 1], [], []>} : vector<8x128xf32>, vector<128x384xf32>, vector<8x384xf32> -> vector<8x384xf32>
    %195 = arith.addf %194, %12 : vector<8x384xf32>
    %196 = vector.extract_strided_slice %193 {offsets = [0, 0], sizes = [8, 128], strides = [1, 1]} : vector<8x384xf32> to vector<8x128xf32>
    %197 = vector.extract_strided_slice %195 {offsets = [0, 0], sizes = [8, 128], strides = [1, 1]} : vector<8x384xf32> to vector<8x128xf32>
    %198 = arith.addf %196, %197 : vector<8x128xf32>
    %199 = arith.negf %198 : vector<8x128xf32>
    %200 = math.exp %199 : vector<8x128xf32>
    %cst_56 = arith.constant 1.000000e+00 : f32
    %201 = vector.broadcast %cst_56 : f32 to vector<8x128xf32>
    %202 = arith.addf %201, %200 : vector<8x128xf32>
    %203 = arith.divf %201, %202 : vector<8x128xf32>
    %204 = vector.extract_strided_slice %193 {offsets = [0, 128], sizes = [8, 128], strides = [1, 1]} : vector<8x384xf32> to vector<8x128xf32>
    %205 = vector.extract_strided_slice %195 {offsets = [0, 128], sizes = [8, 128], strides = [1, 1]} : vector<8x384xf32> to vector<8x128xf32>
    %206 = arith.addf %204, %205 : vector<8x128xf32>
    %207 = arith.negf %206 : vector<8x128xf32>
    %208 = math.exp %207 : vector<8x128xf32>
    %cst_57 = arith.constant 1.000000e+00 : f32
    %209 = vector.broadcast %cst_57 : f32 to vector<8x128xf32>
    %210 = arith.addf %209, %208 : vector<8x128xf32>
    %211 = arith.divf %209, %210 : vector<8x128xf32>
    %212 = vector.extract_strided_slice %193 {offsets = [0, 256], sizes = [8, 128], strides = [1, 1]} : vector<8x384xf32> to vector<8x128xf32>
    %213 = vector.extract_strided_slice %195 {offsets = [0, 256], sizes = [8, 128], strides = [1, 1]} : vector<8x384xf32> to vector<8x128xf32>
    %214 = arith.mulf %203, %213 : vector<8x128xf32>
    %215 = arith.addf %212, %214 : vector<8x128xf32>
    %216 = math.tanh %215 : vector<8x128xf32>
    %cst_58 = arith.constant 1.000000e+00 : f32
    %217 = vector.broadcast %cst_58 : f32 to vector<8x128xf32>
    %218 = arith.subf %217, %211 : vector<8x128xf32>
    %219 = arith.mulf %218, %216 : vector<8x128xf32>
    %220 = arith.mulf %211, %190 : vector<8x128xf32>
    %221 = arith.addf %219, %220 : vector<8x128xf32>
    %222 = vector.broadcast %c4_i32 : i32 to vector<8x1xi32>
    %223 = arith.cmpi slt, %222, %13 : vector<8x1xi32>
    %cst_59 = arith.constant 0.000000e+00 : f32
    %224 = vector.shape_cast %223 : vector<8x1xi1> to vector<8x1xi1>
    %225 = vector.broadcast %224 : vector<8x1xi1> to vector<8x128xi1>
    %226 = vector.broadcast %cst_59 : f32 to vector<8x128xf32>
    %227 = arith.select %225, %221, %226 : vector<8x128xi1>, vector<8x128xf32>
    %228 = arith.index_cast %c4_i32 : i32 to index
    %c0_60 = arith.constant 0 : index
    %c0_61 = arith.constant 0 : index
    %229 = vector.load %arg8[%228, %c0_60, %c0_61] : memref<8x8x128xf32, #tpu.memory_space<vmem>>, vector<1x8x128xf32>
    %230 = vector.shape_cast %229 : vector<1x8x128xf32> to vector<8x128xf32>
    %231 = vector.shape_cast %227 : vector<8x128xf32> to vector<1x8x128xf32>
    tpu.vector_store %arg8[%228, %c0_60, %c0_61], %231 {strides = array<i32>} : memref<8x8x128xf32, #tpu.memory_space<vmem>>, vector<1x8x128xf32>,
    %232 = vector.shape_cast %223 : vector<8x1xi1> to vector<8x1xi1>
    %233 = vector.broadcast %232 : vector<8x1xi1> to vector<8x128xi1>
    %234 = arith.select %233, %221, %190 : vector<8x128xi1>, vector<8x128xf32>
    %c5_i32 = arith.constant 5 : i32
    %235 = arith.index_cast %c5_i32 : i32 to index
    %c0_62 = arith.constant 0 : index
    %c0_63 = arith.constant 0 : index
    %236 = vector.load %arg10[%235, %c0_62, %c0_63] : memref<8x8x384xf32, #tpu.memory_space<vmem>>, vector<1x8x384xf32>
    %237 = vector.shape_cast %236 : vector<1x8x384xf32> to vector<8x384xf32>
    %cst_64 = arith.constant dense<0.000000e+00> : vector<8x384xf32>
    %238 = tpu.matmul %234, %9, %cst_64 {dimension_numbers = #tpu.dot_dimension_numbers<[1], [0], [0], [1], [0, 0, 1, 1], [], []>} : vector<8x128xf32>, vector<128x384xf32>, vector<8x384xf32> -> vector<8x384xf32>
    %239 = arith.addf %238, %12 : vector<8x384xf32>
    %240 = vector.extract_strided_slice %237 {offsets = [0, 0], sizes = [8, 128], strides = [1, 1]} : vector<8x384xf32> to vector<8x128xf32>
    %241 = vector.extract_strided_slice %239 {offsets = [0, 0], sizes = [8, 128], strides = [1, 1]} : vector<8x384xf32> to vector<8x128xf32>
    %242 = arith.addf %240, %241 : vector<8x128xf32>
    %243 = arith.negf %242 : vector<8x128xf32>
    %244 = math.exp %243 : vector<8x128xf32>
    %cst_65 = arith.constant 1.000000e+00 : f32
    %245 = vector.broadcast %cst_65 : f32 to vector<8x128xf32>
    %246 = arith.addf %245, %244 : vector<8x128xf32>
    %247 = arith.divf %245, %246 : vector<8x128xf32>
    %248 = vector.extract_strided_slice %237 {offsets = [0, 128], sizes = [8, 128], strides = [1, 1]} : vector<8x384xf32> to vector<8x128xf32>
    %249 = vector.extract_strided_slice %239 {offsets = [0, 128], sizes = [8, 128], strides = [1, 1]} : vector<8x384xf32> to vector<8x128xf32>
    %250 = arith.addf %248, %249 : vector<8x128xf32>
    %251 = arith.negf %250 : vector<8x128xf32>
    %252 = math.exp %251 : vector<8x128xf32>
    %cst_66 = arith.constant 1.000000e+00 : f32
    %253 = vector.broadcast %cst_66 : f32 to vector<8x128xf32>
    %254 = arith.addf %253, %252 : vector<8x128xf32>
    %255 = arith.divf %253, %254 : vector<8x128xf32>
    %256 = vector.extract_strided_slice %237 {offsets = [0, 256], sizes = [8, 128], strides = [1, 1]} : vector<8x384xf32> to vector<8x128xf32>
    %257 = vector.extract_strided_slice %239 {offsets = [0, 256], sizes = [8, 128], strides = [1, 1]} : vector<8x384xf32> to vector<8x128xf32>
    %258 = arith.mulf %247, %257 : vector<8x128xf32>
    %259 = arith.addf %256, %258 : vector<8x128xf32>
    %260 = math.tanh %259 : vector<8x128xf32>
    %cst_67 = arith.constant 1.000000e+00 : f32
    %261 = vector.broadcast %cst_67 : f32 to vector<8x128xf32>
    %262 = arith.subf %261, %255 : vector<8x128xf32>
    %263 = arith.mulf %262, %260 : vector<8x128xf32>
    %264 = arith.mulf %255, %234 : vector<8x128xf32>
    %265 = arith.addf %263, %264 : vector<8x128xf32>
    %266 = vector.broadcast %c5_i32 : i32 to vector<8x1xi32>
    %267 = arith.cmpi slt, %266, %13 : vector<8x1xi32>
    %cst_68 = arith.constant 0.000000e+00 : f32
    %268 = vector.shape_cast %267 : vector<8x1xi1> to vector<8x1xi1>
    %269 = vector.broadcast %268 : vector<8x1xi1> to vector<8x128xi1>
    %270 = vector.broadcast %cst_68 : f32 to vector<8x128xf32>
    %271 = arith.select %269, %265, %270 : vector<8x128xi1>, vector<8x128xf32>
    %272 = arith.index_cast %c5_i32 : i32 to index
    %c0_69 = arith.constant 0 : index
    %c0_70 = arith.constant 0 : index
    %273 = vector.load %arg8[%272, %c0_69, %c0_70] : memref<8x8x128xf32, #tpu.memory_space<vmem>>, vector<1x8x128xf32>
    %274 = vector.shape_cast %273 : vector<1x8x128xf32> to vector<8x128xf32>
    %275 = vector.shape_cast %271 : vector<8x128xf32> to vector<1x8x128xf32>
    tpu.vector_store %arg8[%272, %c0_69, %c0_70], %275 {strides = array<i32>} : memref<8x8x128xf32, #tpu.memory_space<vmem>>, vector<1x8x128xf32>,
    %276 = vector.shape_cast %267 : vector<8x1xi1> to vector<8x1xi1>
    %277 = vector.broadcast %276 : vector<8x1xi1> to vector<8x128xi1>
    %278 = arith.select %277, %265, %234 : vector<8x128xi1>, vector<8x128xf32>
    %c6_i32 = arith.constant 6 : i32
    %279 = arith.index_cast %c6_i32 : i32 to index
    %c0_71 = arith.constant 0 : index
    %c0_72 = arith.constant 0 : index
    %280 = vector.load %arg10[%279, %c0_71, %c0_72] : memref<8x8x384xf32, #tpu.memory_space<vmem>>, vector<1x8x384xf32>
    %281 = vector.shape_cast %280 : vector<1x8x384xf32> to vector<8x384xf32>
    %cst_73 = arith.constant dense<0.000000e+00> : vector<8x384xf32>
    %282 = tpu.matmul %278, %9, %cst_73 {dimension_numbers = #tpu.dot_dimension_numbers<[1], [0], [0], [1], [0, 0, 1, 1], [], []>} : vector<8x128xf32>, vector<128x384xf32>, vector<8x384xf32> -> vector<8x384xf32>
    %283 = arith.addf %282, %12 : vector<8x384xf32>
    %284 = vector.extract_strided_slice %281 {offsets = [0, 0], sizes = [8, 128], strides = [1, 1]} : vector<8x384xf32> to vector<8x128xf32>
    %285 = vector.extract_strided_slice %283 {offsets = [0, 0], sizes = [8, 128], strides = [1, 1]} : vector<8x384xf32> to vector<8x128xf32>
    %286 = arith.addf %284, %285 : vector<8x128xf32>
    %287 = arith.negf %286 : vector<8x128xf32>
    %288 = math.exp %287 : vector<8x128xf32>
    %cst_74 = arith.constant 1.000000e+00 : f32
    %289 = vector.broadcast %cst_74 : f32 to vector<8x128xf32>
    %290 = arith.addf %289, %288 : vector<8x128xf32>
    %291 = arith.divf %289, %290 : vector<8x128xf32>
    %292 = vector.extract_strided_slice %281 {offsets = [0, 128], sizes = [8, 128], strides = [1, 1]} : vector<8x384xf32> to vector<8x128xf32>
    %293 = vector.extract_strided_slice %283 {offsets = [0, 128], sizes = [8, 128], strides = [1, 1]} : vector<8x384xf32> to vector<8x128xf32>
    %294 = arith.addf %292, %293 : vector<8x128xf32>
    %295 = arith.negf %294 : vector<8x128xf32>
    %296 = math.exp %295 : vector<8x128xf32>
    %cst_75 = arith.constant 1.000000e+00 : f32
    %297 = vector.broadcast %cst_75 : f32 to vector<8x128xf32>
    %298 = arith.addf %297, %296 : vector<8x128xf32>
    %299 = arith.divf %297, %298 : vector<8x128xf32>
    %300 = vector.extract_strided_slice %281 {offsets = [0, 256], sizes = [8, 128], strides = [1, 1]} : vector<8x384xf32> to vector<8x128xf32>
    %301 = vector.extract_strided_slice %283 {offsets = [0, 256], sizes = [8, 128], strides = [1, 1]} : vector<8x384xf32> to vector<8x128xf32>
    %302 = arith.mulf %291, %301 : vector<8x128xf32>
    %303 = arith.addf %300, %302 : vector<8x128xf32>
    %304 = math.tanh %303 : vector<8x128xf32>
    %cst_76 = arith.constant 1.000000e+00 : f32
    %305 = vector.broadcast %cst_76 : f32 to vector<8x128xf32>
    %306 = arith.subf %305, %299 : vector<8x128xf32>
    %307 = arith.mulf %306, %304 : vector<8x128xf32>
    %308 = arith.mulf %299, %278 : vector<8x128xf32>
    %309 = arith.addf %307, %308 : vector<8x128xf32>
    %310 = vector.broadcast %c6_i32 : i32 to vector<8x1xi32>
    %311 = arith.cmpi slt, %310, %13 : vector<8x1xi32>
    %cst_77 = arith.constant 0.000000e+00 : f32
    %312 = vector.shape_cast %311 : vector<8x1xi1> to vector<8x1xi1>
    %313 = vector.broadcast %312 : vector<8x1xi1> to vector<8x128xi1>
    %314 = vector.broadcast %cst_77 : f32 to vector<8x128xf32>
    %315 = arith.select %313, %309, %314 : vector<8x128xi1>, vector<8x128xf32>
    %316 = arith.index_cast %c6_i32 : i32 to index
    %c0_78 = arith.constant 0 : index
    %c0_79 = arith.constant 0 : index
    %317 = vector.load %arg8[%316, %c0_78, %c0_79] : memref<8x8x128xf32, #tpu.memory_space<vmem>>, vector<1x8x128xf32>
    %318 = vector.shape_cast %317 : vector<1x8x128xf32> to vector<8x128xf32>
    %319 = vector.shape_cast %315 : vector<8x128xf32> to vector<1x8x128xf32>
    tpu.vector_store %arg8[%316, %c0_78, %c0_79], %319 {strides = array<i32>} : memref<8x8x128xf32, #tpu.memory_space<vmem>>, vector<1x8x128xf32>,
    %320 = vector.shape_cast %311 : vector<8x1xi1> to vector<8x1xi1>
    %321 = vector.broadcast %320 : vector<8x1xi1> to vector<8x128xi1>
    %322 = arith.select %321, %309, %278 : vector<8x128xi1>, vector<8x128xf32>
    %c7_i32 = arith.constant 7 : i32
    %323 = arith.index_cast %c7_i32 : i32 to index
    %c0_80 = arith.constant 0 : index
    %c0_81 = arith.constant 0 : index
    %324 = vector.load %arg10[%323, %c0_80, %c0_81] : memref<8x8x384xf32, #tpu.memory_space<vmem>>, vector<1x8x384xf32>
    %325 = vector.shape_cast %324 : vector<1x8x384xf32> to vector<8x384xf32>
    %cst_82 = arith.constant dense<0.000000e+00> : vector<8x384xf32>
    %326 = tpu.matmul %322, %9, %cst_82 {dimension_numbers = #tpu.dot_dimension_numbers<[1], [0], [0], [1], [0, 0, 1, 1], [], []>} : vector<8x128xf32>, vector<128x384xf32>, vector<8x384xf32> -> vector<8x384xf32>
    %327 = arith.addf %326, %12 : vector<8x384xf32>
    %328 = vector.extract_strided_slice %325 {offsets = [0, 0], sizes = [8, 128], strides = [1, 1]} : vector<8x384xf32> to vector<8x128xf32>
    %329 = vector.extract_strided_slice %327 {offsets = [0, 0], sizes = [8, 128], strides = [1, 1]} : vector<8x384xf32> to vector<8x128xf32>
    %330 = arith.addf %328, %329 : vector<8x128xf32>
    %331 = arith.negf %330 : vector<8x128xf32>
    %332 = math.exp %331 : vector<8x128xf32>
    %cst_83 = arith.constant 1.000000e+00 : f32
    %333 = vector.broadcast %cst_83 : f32 to vector<8x128xf32>
    %334 = arith.addf %333, %332 : vector<8x128xf32>
    %335 = arith.divf %333, %334 : vector<8x128xf32>
    %336 = vector.extract_strided_slice %325 {offsets = [0, 128], sizes = [8, 128], strides = [1, 1]} : vector<8x384xf32> to vector<8x128xf32>
    %337 = vector.extract_strided_slice %327 {offsets = [0, 128], sizes = [8, 128], strides = [1, 1]} : vector<8x384xf32> to vector<8x128xf32>
    %338 = arith.addf %336, %337 : vector<8x128xf32>
    %339 = arith.negf %338 : vector<8x128xf32>
    %340 = math.exp %339 : vector<8x128xf32>
    %cst_84 = arith.constant 1.000000e+00 : f32
    %341 = vector.broadcast %cst_84 : f32 to vector<8x128xf32>
    %342 = arith.addf %341, %340 : vector<8x128xf32>
    %343 = arith.divf %341, %342 : vector<8x128xf32>
    %344 = vector.extract_strided_slice %325 {offsets = [0, 256], sizes = [8, 128], strides = [1, 1]} : vector<8x384xf32> to vector<8x128xf32>
    %345 = vector.extract_strided_slice %327 {offsets = [0, 256], sizes = [8, 128], strides = [1, 1]} : vector<8x384xf32> to vector<8x128xf32>
    %346 = arith.mulf %335, %345 : vector<8x128xf32>
    %347 = arith.addf %344, %346 : vector<8x128xf32>
    %348 = math.tanh %347 : vector<8x128xf32>
    %cst_85 = arith.constant 1.000000e+00 : f32
    %349 = vector.broadcast %cst_85 : f32 to vector<8x128xf32>
    %350 = arith.subf %349, %343 : vector<8x128xf32>
    %351 = arith.mulf %350, %348 : vector<8x128xf32>
    %352 = arith.mulf %343, %322 : vector<8x128xf32>
    %353 = arith.addf %351, %352 : vector<8x128xf32>
    %354 = vector.broadcast %c7_i32 : i32 to vector<8x1xi32>
    %355 = arith.cmpi slt, %354, %13 : vector<8x1xi32>
    %cst_86 = arith.constant 0.000000e+00 : f32
    %356 = vector.shape_cast %355 : vector<8x1xi1> to vector<8x1xi1>
    %357 = vector.broadcast %356 : vector<8x1xi1> to vector<8x128xi1>
    %358 = vector.broadcast %cst_86 : f32 to vector<8x128xf32>
    %359 = arith.select %357, %353, %358 : vector<8x128xi1>, vector<8x128xf32>
    %360 = arith.index_cast %c7_i32 : i32 to index
    %c0_87 = arith.constant 0 : index
    %c0_88 = arith.constant 0 : index
    %361 = vector.load %arg8[%360, %c0_87, %c0_88] : memref<8x8x128xf32, #tpu.memory_space<vmem>>, vector<1x8x128xf32>
    %362 = vector.shape_cast %361 : vector<1x8x128xf32> to vector<8x128xf32>
    %363 = vector.shape_cast %359 : vector<8x128xf32> to vector<1x8x128xf32>
    tpu.vector_store %arg8[%360, %c0_87, %c0_88], %363 {strides = array<i32>} : memref<8x8x128xf32, #tpu.memory_space<vmem>>, vector<1x8x128xf32>,
    %364 = vector.shape_cast %355 : vector<8x1xi1> to vector<8x1xi1>
    %365 = vector.broadcast %364 : vector<8x1xi1> to vector<8x128xi1>
    %366 = arith.select %365, %353, %322 : vector<8x128xi1>, vector<8x128xf32>
    %c8_i32 = arith.constant 8 : i32
    %c0_89 = arith.constant 0 : index
    %c0_90 = arith.constant 0 : index
    %367 = vector.load %arg9[%c0_89, %c0_90] : memref<8x128xf32, #tpu.memory_space<vmem>>, vector<8x128xf32>
    tpu.vector_store %arg9[%c0_89, %c0_90], %366 {strides = array<i32>} : memref<8x128xf32, #tpu.memory_space<vmem>>, vector<8x128xf32>,
    return
  }
  func.func @transform_0(%arg0: i32) -> (i32, i32, i32) {
    %c0_i32 = arith.constant 0 : i32
    %c0_i32_0 = arith.constant 0 : i32
    %c0_i32_1 = arith.constant 0 : i32
    return %c0_i32, %arg0, %c0_i32_0 : i32, i32, i32
  }
  func.func @transform_1(%arg0: i32) -> (i32, i32) {
    %c0_i32 = arith.constant 0 : i32
    %c0_i32_0 = arith.constant 0 : i32
    return %arg0, %c0_i32 : i32, i32
  }
  func.func @transform_2(%arg0: i32) -> (i32, i32) {
    %c0_i32 = arith.constant 0 : i32
    %c0_i32_0 = arith.constant 0 : i32
    return %arg0, %c0_i32 : i32, i32
  }
  func.func @transform_3(%arg0: i32) -> (i32, i32) {
    %c0_i32 = arith.constant 0 : i32
    %c0_i32_0 = arith.constant 0 : i32
    %c0_i32_1 = arith.constant 0 : i32
    return %c0_i32, %c0_i32_0 : i32, i32
  }
  func.func @transform_4(%arg0: i32) -> (i32, i32) {
    %c0_i32 = arith.constant 0 : i32
    %c0_i32_0 = arith.constant 0 : i32
    %c0_i32_1 = arith.constant 0 : i32
    return %c0_i32, %c0_i32_0 : i32, i32
  }
  func.func @transform_5(%arg0: i32) -> (i32, i32) {
    %c0_i32 = arith.constant 0 : i32
    %c0_i32_0 = arith.constant 0 : i32
    %c0_i32_1 = arith.constant 0 : i32
    return %c0_i32, %c0_i32_0 : i32, i32
  }
  func.func @transform_6(%arg0: i32) -> (i32, i32) {
    %c0_i32 = arith.constant 0 : i32
    %c0_i32_0 = arith.constant 0 : i32
    %c0_i32_1 = arith.constant 0 : i32
    return %c0_i32, %c0_i32_0 : i32, i32
  }
  func.func @transform_7(%arg0: i32) -> (i32, i32, i32) {
    %c0_i32 = arith.constant 0 : i32
    %c0_i32_0 = arith.constant 0 : i32
    %c0_i32_1 = arith.constant 0 : i32
    return %c0_i32, %arg0, %c0_i32_0 : i32, i32, i32
  }
  func.func @transform_8(%arg0: i32) -> (i32, i32) {
    %c0_i32 = arith.constant 0 : i32
    %c0_i32_0 = arith.constant 0 : i32
    return %arg0, %c0_i32 : i32, i32
  }
}

module attributes {stable_mosaic.version = 11 : i64} {
  func.func @_attn_out_kernel(%arg0: i32, %arg1: memref<8x128x256xf32, #tpu.memory_space<vmem>>, %arg2: memref<8x8x128xf32, #tpu.memory_space<vmem>>, %arg3: memref<256x128xf32, #tpu.memory_space<vmem>>, %arg4: memref<256x128xf32, #tpu.memory_space<vmem>>, %arg5: memref<128x128xf32, #tpu.memory_space<vmem>>, %arg6: memref<1x128xf32, #tpu.memory_space<vmem>>, %arg7: memref<128x128xf32, #tpu.memory_space<vmem>>, %arg8: memref<1x128xf32, #tpu.memory_space<vmem>>, %arg9: memref<8x8x128xf32, #tpu.memory_space<vmem>>, %arg10: memref<8x8x128xf32, #tpu.memory_space<vmem>>) attributes {dimension_semantics = [#tpu.dimension_semantics<parallel>], iteration_bounds = array<i64: 1>, scalar_prefetch = 0 : i64, scratch_operands = 0 : i64, tpu.core_type = #tpu.core_type<tc>, window_params = [{transform_indices = @transform_0, window_bounds = array<i64: 8, 128, 256>}, {transform_indices = @transform_1, window_bounds = array<i64: 8, 8, 128>}, {pipeline_mode = #tpu.pipeline_mode<synchronous>, transform_indices = @transform_2, window_bounds = array<i64: 256, 128>}, {pipeline_mode = #tpu.pipeline_mode<synchronous>, transform_indices = @transform_3, window_bounds = array<i64: 256, 128>}, {pipeline_mode = #tpu.pipeline_mode<synchronous>, transform_indices = @transform_4, window_bounds = array<i64: 128, 128>}, {pipeline_mode = #tpu.pipeline_mode<synchronous>, transform_indices = @transform_5, window_bounds = array<i64: 1, 128>}, {pipeline_mode = #tpu.pipeline_mode<synchronous>, transform_indices = @transform_6, window_bounds = array<i64: 128, 128>}, {pipeline_mode = #tpu.pipeline_mode<synchronous>, transform_indices = @transform_7, window_bounds = array<i64: 1, 128>}, {transform_indices = @transform_8, window_bounds = array<i64: 8, 8, 128>}, {transform_indices = @transform_9, window_bounds = array<i64: 8, 8, 128>}]} {
    %c0 = arith.constant 0 : index
    %c0_0 = arith.constant 0 : index
    %c0_1 = arith.constant 0 : index
    %0 = vector.load %arg1[%c0, %c0_0, %c0_1] : memref<8x128x256xf32, #tpu.memory_space<vmem>>, vector<8x128x256xf32>
    %c0_2 = arith.constant 0 : index
    %c0_3 = arith.constant 0 : index
    %c0_4 = arith.constant 0 : index
    %1 = vector.load %arg2[%c0_2, %c0_3, %c0_4] : memref<8x8x128xf32, #tpu.memory_space<vmem>>, vector<8x8x128xf32>
    %2 = vector.shape_cast %0 : vector<8x128x256xf32> to vector<1024x256xf32>
    %c0_5 = arith.constant 0 : index
    %c0_6 = arith.constant 0 : index
    %3 = vector.load %arg3[%c0_5, %c0_6] : memref<256x128xf32, #tpu.memory_space<vmem>>, vector<256x128xf32>
    %cst = arith.constant dense<0.000000e+00> : vector<1024x128xf32>
    %4 = tpu.matmul %2, %3, %cst {dimension_numbers = #tpu.dot_dimension_numbers<[1], [0], [0], [1], [0, 0, 1, 1], [], []>} : vector<1024x256xf32>, vector<256x128xf32>, vector<1024x128xf32> -> vector<1024x128xf32>
    %5 = vector.shape_cast %4 : vector<1024x128xf32> to vector<8x128x128xf32>
    %cst_7 = arith.constant dense<0.000000e+00> : vector<8x8x128xf32>
    %6 = tpu.matmul %1, %5, %cst_7 {dimension_numbers = #tpu.dot_dimension_numbers<[2], [2], [1], [1], [0, 0, 0, 1, 1, 1], [0], [0]>} : vector<8x8x128xf32>, vector<8x128x128xf32>, vector<8x8x128xf32> -> vector<8x8x128xf32>
    %7 = tpu.iota {dimensions = array<i32: 2>} : vector<1x1x128xi32>
    %c10_i32 = arith.constant 10 : i32
    %8 = vector.broadcast %c10_i32 : i32 to vector<1x1x128xi32>
    %9 = arith.cmpi slt, %7, %8 : vector<1x1x128xi32>
    %cst_8 = arith.constant -1.000000e+30 : f32
    %10 = vector.shape_cast %9 : vector<1x1x128xi1> to vector<1x1x128xi1>
    %11 = vector.broadcast %10 : vector<1x1x128xi1> to vector<8x8x128xi1>
    %12 = vector.broadcast %cst_8 : f32 to vector<8x8x128xf32>
    %13 = arith.select %11, %6, %12 : vector<8x8x128xi1>, vector<8x8x128xf32>
    %cst_9 = arith.constant dense<0xFF800000> : vector<8x8xf32>
    %14 = vector.multi_reduction <maximumf>, %13, %cst_9 [2] : vector<8x8x128xf32> to vector<8x8xf32>
    %15 = vector.shape_cast %14 : vector<8x8xf32> to vector<8x8x1xf32>
    %16 = vector.broadcast %15 : vector<8x8x1xf32> to vector<8x8x128xf32>
    %17 = arith.subf %13, %16 : vector<8x8x128xf32>
    %18 = math.exp %17 : vector<8x8x128xf32>
    %cst_10 = arith.constant dense<0.000000e+00> : vector<8x8xf32>
    %19 = vector.multi_reduction <add>, %18, %cst_10 [2] : vector<8x8x128xf32> to vector<8x8xf32>
    %20 = vector.shape_cast %19 : vector<8x8xf32> to vector<8x8x1xf32>
    %21 = tpu.reciprocal %20 {approx = true} : vector<8x8x1xf32> -> vector<8x8x1xf32>
    %22 = vector.broadcast %21 : vector<8x8x1xf32> to vector<8x8x128xf32>
    %23 = arith.mulf %18, %22 : vector<8x8x128xf32>
    %c0_11 = arith.constant 0 : index
    %c0_12 = arith.constant 0 : index
    %c0_13 = arith.constant 0 : index
    %24 = vector.load %arg10[%c0_11, %c0_12, %c0_13] : memref<8x8x128xf32, #tpu.memory_space<vmem>>, vector<8x8x128xf32>
    tpu.vector_store %arg10[%c0_11, %c0_12, %c0_13], %23 {strides = array<i32>} : memref<8x8x128xf32, #tpu.memory_space<vmem>>, vector<8x8x128xf32>,
    %cst_14 = arith.constant dense<0.000000e+00> : vector<8x8x256xf32>
    %25 = tpu.matmul %23, %0, %cst_14 {dimension_numbers = #tpu.dot_dimension_numbers<[2], [1], [1], [2], [0, 0, 0, 1, 1, 2], [0], [0]>} : vector<8x8x128xf32>, vector<8x128x256xf32>, vector<8x8x256xf32> -> vector<8x8x256xf32>
    %26 = vector.shape_cast %25 : vector<8x8x256xf32> to vector<64x256xf32>
    %c0_15 = arith.constant 0 : index
    %c0_16 = arith.constant 0 : index
    %27 = vector.load %arg4[%c0_15, %c0_16] : memref<256x128xf32, #tpu.memory_space<vmem>>, vector<256x128xf32>
    %cst_17 = arith.constant dense<0.000000e+00> : vector<64x128xf32>
    %28 = tpu.matmul %26, %27, %cst_17 {dimension_numbers = #tpu.dot_dimension_numbers<[1], [0], [0], [1], [0, 0, 1, 1], [], []>} : vector<64x256xf32>, vector<256x128xf32>, vector<64x128xf32> -> vector<64x128xf32>
    %29 = vector.shape_cast %1 : vector<8x8x128xf32> to vector<64x128xf32>
    %c0_18 = arith.constant 0 : index
    %c0_19 = arith.constant 0 : index
    %30 = vector.load %arg5[%c0_18, %c0_19] : memref<128x128xf32, #tpu.memory_space<vmem>>, vector<128x128xf32>
    %cst_20 = arith.constant dense<0.000000e+00> : vector<64x128xf32>
    %31 = tpu.matmul %29, %30, %cst_20 {dimension_numbers = #tpu.dot_dimension_numbers<[1], [0], [0], [1], [0, 0, 1, 1], [], []>} : vector<64x128xf32>, vector<128x128xf32>, vector<64x128xf32> -> vector<64x128xf32>
    %32 = arith.addf %28, %31 : vector<64x128xf32>
    %c0_21 = arith.constant 0 : index
    %c0_22 = arith.constant 0 : index
    %33 = vector.load %arg6[%c0_21, %c0_22] : memref<1x128xf32, #tpu.memory_space<vmem>>, vector<1x128xf32>
    %34 = vector.broadcast %33 : vector<1x128xf32> to vector<64x128xf32>
    %35 = arith.addf %32, %34 : vector<64x128xf32>
    %36 = math.tanh %35 : vector<64x128xf32>
    %c0_23 = arith.constant 0 : index
    %c0_24 = arith.constant 0 : index
    %37 = vector.load %arg7[%c0_23, %c0_24] : memref<128x128xf32, #tpu.memory_space<vmem>>, vector<128x128xf32>
    %cst_25 = arith.constant dense<0.000000e+00> : vector<64x128xf32>
    %38 = tpu.matmul %36, %37, %cst_25 {dimension_numbers = #tpu.dot_dimension_numbers<[1], [0], [0], [1], [0, 0, 1, 1], [], []>} : vector<64x128xf32>, vector<128x128xf32>, vector<64x128xf32> -> vector<64x128xf32>
    %c0_26 = arith.constant 0 : index
    %c0_27 = arith.constant 0 : index
    %39 = vector.load %arg8[%c0_26, %c0_27] : memref<1x128xf32, #tpu.memory_space<vmem>>, vector<1x128xf32>
    %40 = vector.broadcast %39 : vector<1x128xf32> to vector<64x128xf32>
    %41 = arith.addf %38, %40 : vector<64x128xf32>
    %42 = tpu.iota {dimensions = array<i32: 1>} : vector<1x128xi32>
    %c64_i32 = arith.constant 64 : i32
    %43 = vector.broadcast %c64_i32 : i32 to vector<1x128xi32>
    %44 = arith.cmpi slt, %42, %43 : vector<1x128xi32>
    %cst_28 = arith.constant -1.000000e+30 : f32
    %45 = vector.shape_cast %44 : vector<1x128xi1> to vector<1x128xi1>
    %46 = vector.broadcast %45 : vector<1x128xi1> to vector<64x128xi1>
    %47 = vector.broadcast %cst_28 : f32 to vector<64x128xf32>
    %48 = arith.select %46, %41, %47 : vector<64x128xi1>, vector<64x128xf32>
    %cst_29 = arith.constant dense<0xFF800000> : vector<64xf32>
    %49 = vector.multi_reduction <maximumf>, %48, %cst_29 [1] : vector<64x128xf32> to vector<64xf32>
    %50 = vector.shape_cast %49 : vector<64xf32> to vector<64x1xf32>
    %51 = vector.broadcast %50 : vector<64x1xf32> to vector<64x128xf32>
    %52 = arith.subf %48, %51 : vector<64x128xf32>
    %53 = math.exp %52 : vector<64x128xf32>
    %cst_30 = arith.constant dense<0.000000e+00> : vector<64xf32>
    %54 = vector.multi_reduction <add>, %53, %cst_30 [1] : vector<64x128xf32> to vector<64xf32>
    %55 = vector.shape_cast %54 : vector<64xf32> to vector<64x1xf32>
    %56 = math.log %55 : vector<64x1xf32>
    %57 = vector.broadcast %50 : vector<64x1xf32> to vector<64x128xf32>
    %58 = arith.subf %48, %57 : vector<64x128xf32>
    %59 = vector.broadcast %56 : vector<64x1xf32> to vector<64x128xf32>
    %60 = arith.subf %58, %59 : vector<64x128xf32>
    %61 = vector.shape_cast %60 : vector<64x128xf32> to vector<8x8x128xf32>
    %c0_31 = arith.constant 0 : index
    %c0_32 = arith.constant 0 : index
    %c0_33 = arith.constant 0 : index
    %62 = vector.load %arg9[%c0_31, %c0_32, %c0_33] : memref<8x8x128xf32, #tpu.memory_space<vmem>>, vector<8x8x128xf32>
    tpu.vector_store %arg9[%c0_31, %c0_32, %c0_33], %61 {strides = array<i32>} : memref<8x8x128xf32, #tpu.memory_space<vmem>>, vector<8x8x128xf32>,
    return
  }
  func.func @transform_0(%arg0: i32) -> (i32, i32, i32) {
    %c0_i32 = arith.constant 0 : i32
    %c0_i32_0 = arith.constant 0 : i32
    %c0_i32_1 = arith.constant 0 : i32
    return %arg0, %c0_i32, %c0_i32_0 : i32, i32, i32
  }
  func.func @transform_1(%arg0: i32) -> (i32, i32, i32) {
    %c0_i32 = arith.constant 0 : i32
    %c0_i32_0 = arith.constant 0 : i32
    %c0_i32_1 = arith.constant 0 : i32
    return %arg0, %c0_i32, %c0_i32_0 : i32, i32, i32
  }
  func.func @transform_2(%arg0: i32) -> (i32, i32) {
    %c0_i32 = arith.constant 0 : i32
    %c0_i32_0 = arith.constant 0 : i32
    %c0_i32_1 = arith.constant 0 : i32
    return %c0_i32, %c0_i32_0 : i32, i32
  }
  func.func @transform_3(%arg0: i32) -> (i32, i32) {
    %c0_i32 = arith.constant 0 : i32
    %c0_i32_0 = arith.constant 0 : i32
    %c0_i32_1 = arith.constant 0 : i32
    return %c0_i32, %c0_i32_0 : i32, i32
  }
  func.func @transform_4(%arg0: i32) -> (i32, i32) {
    %c0_i32 = arith.constant 0 : i32
    %c0_i32_0 = arith.constant 0 : i32
    %c0_i32_1 = arith.constant 0 : i32
    return %c0_i32, %c0_i32_0 : i32, i32
  }
  func.func @transform_5(%arg0: i32) -> (i32, i32) {
    %c0_i32 = arith.constant 0 : i32
    %c0_i32_0 = arith.constant 0 : i32
    %c0_i32_1 = arith.constant 0 : i32
    return %c0_i32, %c0_i32_0 : i32, i32
  }
  func.func @transform_6(%arg0: i32) -> (i32, i32) {
    %c0_i32 = arith.constant 0 : i32
    %c0_i32_0 = arith.constant 0 : i32
    %c0_i32_1 = arith.constant 0 : i32
    return %c0_i32, %c0_i32_0 : i32, i32
  }
  func.func @transform_7(%arg0: i32) -> (i32, i32) {
    %c0_i32 = arith.constant 0 : i32
    %c0_i32_0 = arith.constant 0 : i32
    %c0_i32_1 = arith.constant 0 : i32
    return %c0_i32, %c0_i32_0 : i32, i32
  }
  func.func @transform_8(%arg0: i32) -> (i32, i32, i32) {
    %c0_i32 = arith.constant 0 : i32
    %c0_i32_0 = arith.constant 0 : i32
    %c0_i32_1 = arith.constant 0 : i32
    return %arg0, %c0_i32, %c0_i32_0 : i32, i32, i32
  }
  func.func @transform_9(%arg0: i32) -> (i32, i32, i32) {
    %c0_i32 = arith.constant 0 : i32
    %c0_i32_0 = arith.constant 0 : i32
    %c0_i32_1 = arith.constant 0 : i32
    return %arg0, %c0_i32, %c0_i32_0 : i32, i32, i32
  }
}

</mosaic_0001>

<llo_original>
// kernel: seq2seq_forward.7
$region0: #{seq2seq_forward.7}
  #allocation0 [shape = 'u32[]', space=smem, size = 0x4, offset = 0x4, fixed_abs, tag = 'smem constant byte address 0x4 - core index']
  #allocation1 [shape = 'u32[72,128]{1,0:T(1,128)}', space=vmem, size = 0x9000, scoped, tag = 'internal scratch']
  %s0 = inlined_call_operand.vmem [shape: f32[8,128], index: 0, kind: input, shape index: {}]
  %s1 = inlined_call_operand.vmem [shape: f32[8,128], index: 1, kind: input, shape index: {}]
  %s2 = inlined_call_operand.vmem [shape: f32[128,128], index: 2, kind: input, shape index: {}]
  %s3 = inlined_call_operand.vmem [shape: f32[128,128], index: 3, kind: input, shape index: {}]
  %s4 = inlined_call_operand.vmem [shape: f32[1,128], index: 4, kind: input, shape index: {}]
  %s5 = inlined_call_operand.vmem [shape: f32[8,128], index: 5, kind: output, shape index: {}]
  %s6 = sld [smem:[#allocation0]]
  $region30: #{seq2seq_forward.7} parent=0
    _
  %s8 = ssub.s32 1, %s6
  %s9 = scalar_select 0, %s8, %s6
  // Predicated region
  $region2: #{seq2seq_forward.7} parent=0 // pred_check
    _
  $region3: #{seq2seq_forward.7} parent=0 // pred_check_branch
    %11 = sbr.rel (0) target = $region5
  $region4: #{seq2seq_forward.7} parent=0 // pred_region
    _
  $region5: #{seq2seq_forward.7} parent=0 // pred_fallthru
    _
  // Predicated region
  $region6: #{seq2seq_forward.7} parent=0 // pred_check
    _
  $region7: #{seq2seq_forward.7} parent=0 // pred_check_branch
    %13 = sbr.rel (0) target = $region9
  $region8: #{seq2seq_forward.7} parent=0 // pred_region
    _
  $region9: #{seq2seq_forward.7} parent=0 // pred_fallthru
    _
  // Predicated region
  $region10: #{seq2seq_forward.7} parent=0 // pred_check
    _
  $region11: #{seq2seq_forward.7} parent=0 // pred_check_branch
    %15 = sbr.rel (0) target = $region13
  $region12: #{seq2seq_forward.7} parent=0 // pred_region
    _
  $region13: #{seq2seq_forward.7} parent=0 // pred_fallthru
    _
  // Predicated region
  $region14: #{seq2seq_forward.7} parent=0 // pred_check
    _
  $region15: #{seq2seq_forward.7} parent=0 // pred_check_branch
    %17 = sbr.rel (0) target = $region17
  $region16: #{seq2seq_forward.7} parent=0 // pred_region
    _
  $region17: #{seq2seq_forward.7} parent=0 // pred_fallthru
    _
  // Predicated region
  $region18: #{seq2seq_forward.7} parent=0 // pred_check
    _
  $region19: #{seq2seq_forward.7} parent=0 // pred_check_branch
    %19 = sbr.rel (0) target = $region21
  $region20: #{seq2seq_forward.7} parent=0 // pred_region
    _
  $region21: #{seq2seq_forward.7} parent=0 // pred_fallthru
    _
  %v20 = vld [vmem:[%s0] sm:$0xff]
  %v21 = vld [vmem:[%s2] sm:$0xff]
  %v22 = vld [vmem:[%s2 + $0x8] sm:$0xff]
  %v23 = vld [vmem:[%s2 + $0x10] sm:$0xff]
  %v24 = vld [vmem:[%s2 + $0x18] sm:$0xff]
  %v25 = vld [vmem:[%s2 + $0x20] sm:$0xff]
  %v26 = vld [vmem:[%s2 + $0x28] sm:$0xff]
  %v27 = vld [vmem:[%s2 + $0x30] sm:$0xff]
  %v28 = vld [vmem:[%s2 + $0x38] sm:$0xff]
  %v29 = vld [vmem:[%s2 + $0x40] sm:$0xff]
  %v30 = vld [vmem:[%s2 + $0x48] sm:$0xff]
  %v31 = vld [vmem:[%s2 + $0x50] sm:$0xff]
  %v32 = vld [vmem:[%s2 + $0x58] sm:$0xff]
  %v33 = vld [vmem:[%s2 + $0x60] sm:$0xff]
  %v34 = vld [vmem:[%s2 + $0x68] sm:$0xff]
  %v35 = vld [vmem:[%s2 + $0x70] sm:$0xff]
  %v36 = vld [vmem:[%s2 + $0x78] sm:$0xff]
  %v37 = vld [vmem:[%s1] sm:$0xff]
  %v38 = vld [vmem:[%s3] sm:$0xff]
  %v39 = vld [vmem:[%s3 + $0x8] sm:$0xff]
  %v40 = vld [vmem:[%s3 + $0x10] sm:$0xff]
  %v41 = vld [vmem:[%s3 + $0x18] sm:$0xff]
  %v42 = vld [vmem:[%s3 + $0x20] sm:$0xff]
  %v43 = vld [vmem:[%s3 + $0x28] sm:$0xff]
  %v44 = vld [vmem:[%s3 + $0x30] sm:$0xff]
  %v45 = vld [vmem:[%s3 + $0x38] sm:$0xff]
  %v46 = vld [vmem:[%s3 + $0x40] sm:$0xff]
  %v47 = vld [vmem:[%s3 + $0x48] sm:$0xff]
  %v48 = vld [vmem:[%s3 + $0x50] sm:$0xff]
  %v49 = vld [vmem:[%s3 + $0x58] sm:$0xff]
  %v50 = vld [vmem:[%s3 + $0x60] sm:$0xff]
  %v51 = vld [vmem:[%s3 + $0x68] sm:$0xff]
  %v52 = vld [vmem:[%s3 + $0x70] sm:$0xff]
  %v53 = vld [vmem:[%s3 + $0x78] sm:$0xff]
  %54 = vmatpush.msra.mxu0 %v53
  %55 = vmatpush.msra.mxu0 %v52
  %56 = vmatpush.msra.mxu0 %v51
  %57 = vmatpush.msra.mxu0 %v50
  %58 = vmatpush.msra.mxu0 %v49
  %59 = vmatpush.msra.mxu0 %v48
  %60 = vmatpush.msra.mxu0 %v47
  %61 = vmatpush.msra.mxu0 %v46
  %62 = vmatpush.msra.mxu0 %v45
  %63 = vmatpush.msra.mxu0 %v44
  %64 = vmatpush.msra.mxu0 %v43
  %65 = vmatpush.msra.mxu0 %v42
  %66 = vmatpush.msra.mxu0 %v41
  %67 = vmatpush.msra.mxu0 %v40
  %68 = vmatpush.msra.mxu0 %v39
  %69 = vmatpush.msra.mxu0 %v38
  %70 = vmatmul.f32.gmra.mxu0 %v37
  %v71 = vpop.f32.mrf.mxu0
  %v72 = vadd.f32 0.0, %v71
  %73 = vdwg.mxu0
  %74 = vmatpush.msra.mxu0 %v36
  %75 = vmatpush.msra.mxu0 %v35
  %76 = vmatpush.msra.mxu0 %v34
  %77 = vmatpush.msra.mxu0 %v33
  %78 = vmatpush.msra.mxu0 %v32
  %79 = vmatpush.msra.mxu0 %v31
  %80 = vmatpush.msra.mxu0 %v30
  %81 = vmatpush.msra.mxu0 %v29
  %82 = vmatpush.msra.mxu0 %v28
  %83 = vmatpush.msra.mxu0 %v27
  %84 = vmatpush.msra.mxu0 %v26
  %85 = vmatpush.msra.mxu0 %v25
  %86 = vmatpush.msra.mxu0 %v24
  %87 = vmatpush.msra.mxu0 %v23
  %88 = vmatpush.msra.mxu0 %v22
  %89 = vmatpush.msra.mxu0 %v21
  %90 = vmatmul.f32.gmra.mxu0 %v20
  %v91 = vpop.f32.mrf.mxu0
  %v92 = vadd.f32 %v72, %v91
  %93 = vdwg.mxu0
  %v94 = vld [vmem:[%s4] sm:$0x1]
  %v96 = vperm.slane %v94, 0
  %v98 = vadd.f32 %v92, %v96
  %v99 = vtanh.pop %v98
  %100 = vst [vmem:[%s5] sm:$0xff] %v99
  // Predicated region
  $region22: #{seq2seq_forward.7} parent=0 // pred_check
    _
  $region23: #{seq2seq_forward.7} parent=0 // pred_check_branch
    %102 = sbr.rel (0) target = $region25
  $region24: #{seq2seq_forward.7} parent=0 // pred_region
    _
  $region25: #{seq2seq_forward.7} parent=0 // pred_fallthru
    _
  // Predicated region
  $region26: #{seq2seq_forward.7} parent=0 // pred_check
    _
  $region27: #{seq2seq_forward.7} parent=0 // pred_check_branch
    %104 = sbr.rel (0) target = $region29
  $region28: #{seq2seq_forward.7} parent=0 // pred_region
    _
  $region29: #{seq2seq_forward.7} parent=0 // pred_fallthru
    _

// kernel: seq2seq_forward.8
$region0: #{seq2seq_forward.8}
  #allocation0 [shape = 'u32[]', space=smem, size = 0x4, offset = 0x4, fixed_abs, tag = 'smem constant byte address 0x4 - core index']
  #allocation1 [shape = 'u32[72,128]{1,0:T(1,128)}', space=vmem, size = 0x9000, scoped, tag = 'internal scratch']
  #allocation2 [shape = 'f32[8,8,384]{2,1,0:T(8,128)}', space=vmem, size = 0x18000, scoped, tag = 'scratch operand']
  %s0 = inlined_call_operand.vmem [shape: f32[8,8,128], index: 0, kind: input, shape index: {}]
  %s1 = inlined_call_operand.vmem [shape: s32[8,1], index: 1, kind: input, shape index: {}]
  %s2 = inlined_call_operand.vmem [shape: f32[8,128], index: 2, kind: input, shape index: {}]
  %s3 = inlined_call_operand.vmem [shape: f32[128,384], index: 3, kind: input, shape index: {}]
  %s4 = inlined_call_operand.vmem [shape: f32[128,384], index: 4, kind: input, shape index: {}]
  %s5 = inlined_call_operand.vmem [shape: f32[1,384], index: 5, kind: input, shape index: {}]
  %s6 = inlined_call_operand.vmem [shape: f32[1,384], index: 6, kind: input, shape index: {}]
  %s7 = inlined_call_operand.vmem [shape: f32[8,8,128], index: 7, kind: output, shape index: {0}]
  %s8 = inlined_call_operand.hbm [shape: f32[8,128], index: 8, kind: output, shape index: {1}]
  %9 = xla_tuple %s7, %s8
  %s10 = sld [smem:[#allocation0]]
  $region46: #{seq2seq_forward.8} parent=0
    _
  %s12 = ssub.s32 1, %s10
  %s13 = scalar_select 0, %s12, %s10
  $region1: #{seq2seq_forward.8} parent=0
    #allocation3 [shape = 'u8[4096]{0}', space=vmem, size = 0x1000, scoped, tag = 'output window, operand 1, single buffered']
    #allocation4 [shape = 's32[1]{0}', space=sflag, size = 0x4, scoped, tag = 'scoped memory for seq2seq_forward.8']
    %14 = vsyncpa [#allocation4], 0
    // Predicated region
    $region2: #{seq2seq_forward.8} parent=1 // pred_check
      _
    $region3: #{seq2seq_forward.8} parent=1 // pred_check_branch
      %16 = sbr.rel (0) target = $region5
    $region4: #{seq2seq_forward.8} parent=1 // pred_region
      _
    $region5: #{seq2seq_forward.8} parent=1 // pred_fallthru
      _
    // Predicated region
    $region6: #{seq2seq_forward.8} parent=1 // pred_check
      _
    $region7: #{seq2seq_forward.8} parent=1 // pred_check_branch
      %18 = sbr.rel (0) target = $region9
    $region8: #{seq2seq_forward.8} parent=1 // pred_region
      _
    $region9: #{seq2seq_forward.8} parent=1 // pred_fallthru
      _
    // Predicated region
    $region10: #{seq2seq_forward.8} parent=1 // pred_check
      _
    $region11: #{seq2seq_forward.8} parent=1 // pred_check_branch
      %20 = sbr.rel (0) target = $region13
    $region12: #{seq2seq_forward.8} parent=1 // pred_region
      _
    $region13: #{seq2seq_forward.8} parent=1 // pred_fallthru
      _
    // Predicated region
    $region14: #{seq2seq_forward.8} parent=1 // pred_check
      _
    $region15: #{seq2seq_forward.8} parent=1 // pred_check_branch
      %22 = sbr.rel (0) target = $region17
    $region16: #{seq2seq_forward.8} parent=1 // pred_region
      _
    $region17: #{seq2seq_forward.8} parent=1 // pred_fallthru
      _
    // Predicated region
    $region18: #{seq2seq_forward.8} parent=1 // pred_check
      _
    $region19: #{seq2seq_forward.8} parent=1 // pred_check_branch
      %24 = sbr.rel (0) target = $region21
    $region20: #{seq2seq_forward.8} parent=1 // pred_region
      _
    $region21: #{seq2seq_forward.8} parent=1 // pred_fallthru
      _
    // Predicated region
    $region22: #{seq2seq_forward.8} parent=1 // pred_check
      _
    $region23: #{seq2seq_forward.8} parent=1 // pred_check_branch
      %26 = sbr.rel (0) target = $region25
    $region24: #{seq2seq_forward.8} parent=1 // pred_region
      _
    $region25: #{seq2seq_forward.8} parent=1 // pred_fallthru
      _
    // Predicated region
    $region26: #{seq2seq_forward.8} parent=1 // pred_check
      _
    $region27: #{seq2seq_forward.8} parent=1 // pred_check_branch
      %28 = sbr.rel (0) target = $region29
    $region28: #{seq2seq_forward.8} parent=1 // pred_region
      _
    $region29: #{seq2seq_forward.8} parent=1 // pred_fallthru
      _
    %v29 = vld [vmem:[%s0] sm:$0xff]
    %v30 = vld [vmem:[%s0 + $0x8] sm:$0xff]
    %v31 = vld [vmem:[%s0 + $0x10] sm:$0xff]
    %v32 = vld [vmem:[%s0 + $0x18] sm:$0xff]
    %v33 = vld [vmem:[%s0 + $0x20] sm:$0xff]
    %v34 = vld [vmem:[%s0 + $0x28] sm:$0xff]
    %v35 = vld [vmem:[%s0 + $0x30] sm:$0xff]
    %v36 = vld [vmem:[%s0 + $0x38] sm:$0xff]
    %v37 = vld [vmem:[%s3] sm:$0xff]
    %v38 = vld [vmem:[%s3 + $0x8] sm:$0xff]
    %v39 = vld [vmem:[%s3 + $0x10] sm:$0xff]
    %v40 = vld [vmem:[%s3 + $0x18] sm:$0xff]
    %v41 = vld [vmem:[%s3 + $0x20] sm:$0xff]
    %v42 = vld [vmem:[%s3 + $0x28] sm:$0xff]
    %v43 = vld [vmem:[%s3 + $0x30] sm:$0xff]
    %v44 = vld [vmem:[%s3 + $0x38] sm:$0xff]
    %v45 = vld [vmem:[%s3 + $0x40] sm:$0xff]
    %v46 = vld [vmem:[%s3 + $0x48] sm:$0xff]
    %v47 = vld [vmem:[%s3 + $0x50] sm:$0xff]
    %v48 = vld [vmem:[%s3 + $0x58] sm:$0xff]
    %v49 = vld [vmem:[%s3 + $0x60] sm:$0xff]
    %v50 = vld [vmem:[%s3 + $0x68] sm:$0xff]
    %v51 = vld [vmem:[%s3 + $0x70] sm:$0xff]
    %v52 = vld [vmem:[%s3 + $0x78] sm:$0xff]
    %v53 = vld [vmem:[%s3 + $0x80] sm:$0xff]
    %v54 = vld [vmem:[%s3 + $0x88] sm:$0xff]
    %v55 = vld [vmem:[%s3 + $0x90] sm:$0xff]
    %v56 = vld [vmem:[%s3 + $0x98] sm:$0xff]
    %v57 = vld [vmem:[%s3 + $0xa0] sm:$0xff]
    %v58 = vld [vmem:[%s3 + $0xa8] sm:$0xff]
    %v59 = vld [vmem:[%s3 + $0xb0] sm:$0xff]
    %v60 = vld [vmem:[%s3 + $0xb8] sm:$0xff]
    %v61 = vld [vmem:[%s3 + $0xc0] sm:$0xff]
    %v62 = vld [vmem:[%s3 + $0xc8] sm:$0xff]
    %v63 = vld [vmem:[%s3 + $0xd0] sm:$0xff]
    %v64 = vld [vmem:[%s3 + $0xd8] sm:$0xff]
    %v65 = vld [vmem:[%s3 + $0xe0] sm:$0xff]
    %v66 = vld [vmem:[%s3 + $0xe8] sm:$0xff]
    %v67 = vld [vmem:[%s3 + $0xf0] sm:$0xff]
    %v68 = vld [vmem:[%s3 + $0xf8] sm:$0xff]
    %v69 = vld [vmem:[%s3 + $0x100] sm:$0xff]
    %v70 = vld [vmem:[%s3 + $0x108] sm:$0xff]
    %v71 = vld [vmem:[%s3 + $0x110] sm:$0xff]
    %v72 = vld [vmem:[%s3 + $0x118] sm:$0xff]
    %v73 = vld [vmem:[%s3 + $0x120] sm:$0xff]
    %v74 = vld [vmem:[%s3 + $0x128] sm:$0xff]
    %v75 = vld [vmem:[%s3 + $0x130] sm:$0xff]
    %v76 = vld [vmem:[%s3 + $0x138] sm:$0xff]
    %v77 = vld [vmem:[%s3 + $0x140] sm:$0xff]
    %v78 = vld [vmem:[%s3 + $0x148] sm:$0xff]
    %v79 = vld [vmem:[%s3 + $0x150] sm:$0xff]
    %v80 = vld [vmem:[%s3 + $0x158] sm:$0xff]
    %v81 = vld [vmem:[%s3 + $0x160] sm:$0xff]
    %v82 = vld [vmem:[%s3 + $0x168] sm:$0xff]
    %v83 = vld [vmem:[%s3 + $0x170] sm:$0xff]
    %v84 = vld [vmem:[%s3 + $0x178] sm:$0xff]
    %v85 = vld [vmem:[%s5] sm:$0x7]
    %v87 = vperm.slane %v85, 0
    %v88 = vperm.slane %v85, 1
    %v89 = vperm.slane %v85, 2
    %93 = vmatpush.msra.mxu0 %v82
    %94 = vmatpush.msra.mxu0 %v79
    %95 = vmatpush.msra.mxu0 %v76
    %96 = vmatpush.msra.mxu0 %v73
    %97 = vmatpush.msra.mxu0 %v70
    %98 = vmatpush.msra.mxu0 %v67
    %99 = vmatpush.msra.mxu0 %v64
    %100 = vmatpush.msra.mxu0 %v61
    %101 = vmatpush.msra.mxu0 %v58
    %102 = vmatpush.msra.mxu0 %v55
    %103 = vmatpush.msra.mxu0 %v52
    %104 = vmatpush.msra.mxu0 %v49
    %105 = vmatpush.msra.mxu0 %v46
    %106 = vmatpush.msra.mxu0 %v43
    %107 = vmatpush.msra.mxu0 %v40
    %108 = vmatpush.msra.mxu0 %v37
    %109 = vmatmul.f32.gmra.mxu0 %v29
    %v110 = vpop.f32.mrf.mxu0
    %v111 = vadd.f32 %v87, %v110
    %112 = vmatmul.f32.gmra.mxu0 %v30
    %v113 = vpop.f32.mrf.mxu0
    %v114 = vadd.f32 %v87, %v113
    %115 = vmatmul.f32.gmra.mxu0 %v31
    %v116 = vpop.f32.mrf.mxu0
    %v117 = vadd.f32 %v87, %v116
    %118 = vmatmul.f32.gmra.mxu0 %v32
    %v119 = vpop.f32.mrf.mxu0
    %v120 = vadd.f32 %v87, %v119
    %121 = vmatmul.f32.gmra.mxu0 %v33
    %v122 = vpop.f32.mrf.mxu0
    %v123 = vadd.f32 %v87, %v122
    %124 = vmatmul.f32.gmra.mxu0 %v34
    %v125 = vpop.f32.mrf.mxu0
    %v126 = vadd.f32 %v87, %v125
    %127 = vmatmul.f32.gmra.mxu0 %v35
    %v128 = vpop.f32.mrf.mxu0
    %v129 = vadd.f32 %v87, %v128
    %130 = vmatmul.f32.gmra.mxu0 %v36
    %v131 = vpop.f32.mrf.mxu0
    %v132 = vadd.f32 %v87, %v131
    %133 = vdwg.mxu0
    %134 = vmatpush.msra.mxu0 %v83
    %135 = vmatpush.msra.mxu0 %v80
    %136 = vmatpush.msra.mxu0 %v77
    %137 = vmatpush.msra.mxu0 %v74
    %138 = vmatpush.msra.mxu0 %v71
    %139 = vmatpush.msra.mxu0 %v68
    %140 = vmatpush.msra.mxu0 %v65
    %141 = vmatpush.msra.mxu0 %v62
    %142 = vmatpush.msra.mxu0 %v59
    %143 = vmatpush.msra.mxu0 %v56
    %144 = vmatpush.msra.mxu0 %v53
    %145 = vmatpush.msra.mxu0 %v50
    %146 = vmatpush.msra.mxu0 %v47
    %147 = vmatpush.msra.mxu0 %v44
    %148 = vmatpush.msra.mxu0 %v41
    %149 = vmatpush.msra.mxu0 %v38
    %150 = vmatmul.f32.gmra.mxu0 %v29
    %v151 = vpop.f32.mrf.mxu0
    %v152 = vadd.f32 %v88, %v151
    %153 = vmatmul.f32.gmra.mxu0 %v30
    %v154 = vpop.f32.mrf.mxu0
    %v155 = vadd.f32 %v88, %v154
    %156 = vmatmul.f32.gmra.mxu0 %v31
    %v157 = vpop.f32.mrf.mxu0
    %v158 = vadd.f32 %v88, %v157
    %159 = vmatmul.f32.gmra.mxu0 %v32
    %v160 = vpop.f32.mrf.mxu0
    %v161 = vadd.f32 %v88, %v160
    %162 = vmatmul.f32.gmra.mxu0 %v33
    %v163 = vpop.f32.mrf.mxu0
    %v164 = vadd.f32 %v88, %v163
    %165 = vmatmul.f32.gmra.mxu0 %v34
    %v166 = vpop.f32.mrf.mxu0
    %v167 = vadd.f32 %v88, %v166
    %168 = vmatmul.f32.gmra.mxu0 %v35
    %v169 = vpop.f32.mrf.mxu0
    %v170 = vadd.f32 %v88, %v169
    %171 = vmatmul.f32.gmra.mxu0 %v36
    %v172 = vpop.f32.mrf.mxu0
    %v173 = vadd.f32 %v88, %v172
    %174 = vdwg.mxu0
    %175 = vmatpush.msra.mxu0 %v84
    %176 = vmatpush.msra.mxu0 %v81
    %177 = vmatpush.msra.mxu0 %v78
    %178 = vmatpush.msra.mxu0 %v75
    %179 = vmatpush.msra.mxu0 %v72
    %180 = vmatpush.msra.mxu0 %v69
    %181 = vmatpush.msra.mxu0 %v66
    %182 = vmatpush.msra.mxu0 %v63
    %183 = vmatpush.msra.mxu0 %v60
    %184 = vmatpush.msra.mxu0 %v57
    %185 = vmatpush.msra.mxu0 %v54
    %186 = vmatpush.msra.mxu0 %v51
    %187 = vmatpush.msra.mxu0 %v48
    %188 = vmatpush.msra.mxu0 %v45
    %189 = vmatpush.msra.mxu0 %v42
    %190 = vmatpush.msra.mxu0 %v39
    %191 = vmatmul.f32.gmra.mxu0 %v29
    %v192 = vpop.f32.mrf.mxu0
    %v193 = vadd.f32 %v89, %v192
    %194 = vmatmul.f32.gmra.mxu0 %v30
    %v195 = vpop.f32.mrf.mxu0
    %v196 = vadd.f32 %v89, %v195
    %197 = vmatmul.f32.gmra.mxu0 %v31
    %v198 = vpop.f32.mrf.mxu0
    %v199 = vadd.f32 %v89, %v198
    %200 = vmatmul.f32.gmra.mxu0 %v32
    %v201 = vpop.f32.mrf.mxu0
    %v202 = vadd.f32 %v89, %v201
    %203 = vmatmul.f32.gmra.mxu0 %v33
    %v204 = vpop.f32.mrf.mxu0
    %v205 = vadd.f32 %v89, %v204
    %206 = vmatmul.f32.gmra.mxu0 %v34
    %v207 = vpop.f32.mrf.mxu0
    %v208 = vadd.f32 %v89, %v207
    %209 = vmatmul.f32.gmra.mxu0 %v35
    %v210 = vpop.f32.mrf.mxu0
    %v211 = vadd.f32 %v89, %v210
    %212 = vmatmul.f32.gmra.mxu0 %v36
    %v213 = vpop.f32.mrf.mxu0
    %v214 = vadd.f32 %v89, %v213
    %215 = vdwg.mxu0
    %216 = vst [vmem:[#allocation2] sm:$0xff] %v111
    %217 = vst [vmem:[#allocation2 + $0x8] sm:$0xff] %v152
    %218 = vst [vmem:[#allocation2 + $0x10] sm:$0xff] %v193
    %219 = vst [vmem:[#allocation2 + $0x18] sm:$0xff] %v114
    %220 = vst [vmem:[#allocation2 + $0x20] sm:$0xff] %v155
    %221 = vst [vmem:[#allocation2 + $0x28] sm:$0xff] %v196
    %222 = vst [vmem:[#allocation2 + $0x30] sm:$0xff] %v117
    %223 = vst [vmem:[#allocation2 + $0x38] sm:$0xff] %v158
    %224 = vst [vmem:[#allocation2 + $0x40] sm:$0xff] %v199
    %225 = vst [vmem:[#allocation2 + $0x48] sm:$0xff] %v120
    %226 = vst [vmem:[#allocation2 + $0x50] sm:$0xff] %v161
    %227 = vst [vmem:[#allocation2 + $0x58] sm:$0xff] %v202
    %228 = vst [vmem:[#allocation2 + $0x60] sm:$0xff] %v123
    %229 = vst [vmem:[#allocation2 + $0x68] sm:$0xff] %v164
    %230 = vst [vmem:[#allocation2 + $0x70] sm:$0xff] %v205
    %231 = vst [vmem:[#allocation2 + $0x78] sm:$0xff] %v126
    %232 = vst [vmem:[#allocation2 + $0x80] sm:$0xff] %v167
    %233 = vst [vmem:[#allocation2 + $0x88] sm:$0xff] %v208
    %234 = vst [vmem:[#allocation2 + $0x90] sm:$0xff] %v129
    %235 = vst [vmem:[#allocation2 + $0x98] sm:$0xff] %v170
    %236 = vst [vmem:[#allocation2 + $0xa0] sm:$0xff] %v211
    %237 = vst [vmem:[#allocation2 + $0xa8] sm:$0xff] %v132
    %238 = vst [vmem:[#allocation2 + $0xb0] sm:$0xff] %v173
    %239 = vst [vmem:[#allocation2 + $0xb8] sm:$0xff] %v214
    %v240 = vld [vmem:[%s4] sm:$0xff]
    %v241 = vld [vmem:[%s4 + $0x8] sm:$0xff]
    %v242 = vld [vmem:[%s4 + $0x10] sm:$0xff]
    %v243 = vld [vmem:[%s4 + $0x18] sm:$0xff]
    %v244 = vld [vmem:[%s4 + $0x20] sm:$0xff]
    %v245 = vld [vmem:[%s4 + $0x28] sm:$0xff]
    %v246 = vld [vmem:[%s4 + $0x30] sm:$0xff]
    %v247 = vld [vmem:[%s4 + $0x38] sm:$0xff]
    %v248 = vld [vmem:[%s4 + $0x40] sm:$0xff]
    %v249 = vld [vmem:[%s4 + $0x48] sm:$0xff]
    %v250 = vld [vmem:[%s4 + $0x50] sm:$0xff]
    %v251 = vld [vmem:[%s4 + $0x58] sm:$0xff]
    %v252 = vld [vmem:[%s4 + $0x60] sm:$0xff]
    %v253 = vld [vmem:[%s4 + $0x68] sm:$0xff]
    %v254 = vld [vmem:[%s4 + $0x70] sm:$0xff]
    %v255 = vld [vmem:[%s4 + $0x78] sm:$0xff]
    %v256 = vld [vmem:[%s4 + $0x80] sm:$0xff]
    %v257 = vld [vmem:[%s4 + $0x88] sm:$0xff]
    %v258 = vld [vmem:[%s4 + $0x90] sm:$0xff]
    %v259 = vld [vmem:[%s4 + $0x98] sm:$0xff]
    %v260 = vld [vmem:[%s4 + $0xa0] sm:$0xff]
    %v261 = vld [vmem:[%s4 + $0xa8] sm:$0xff]
    %v262 = vld [vmem:[%s4 + $0xb0] sm:$0xff]
    %v263 = vld [vmem:[%s4 + $0xb8] sm:$0xff]
    %v264 = vld [vmem:[%s4 + $0xc0] sm:$0xff]
    %v265 = vld [vmem:[%s4 + $0xc8] sm:$0xff]
    %v266 = vld [vmem:[%s4 + $0xd0] sm:$0xff]
    %v267 = vld [vmem:[%s4 + $0xd8] sm:$0xff]
    %v268 = vld [vmem:[%s4 + $0xe0] sm:$0xff]
    %v269 = vld [vmem:[%s4 + $0xe8] sm:$0xff]
    %v270 = vld [vmem:[%s4 + $0xf0] sm:$0xff]
    %v271 = vld [vmem:[%s4 + $0xf8] sm:$0xff]
    %v272 = vld [vmem:[%s4 + $0x100] sm:$0xff]
    %v273 = vld [vmem:[%s4 + $0x108] sm:$0xff]
    %v274 = vld [vmem:[%s4 + $0x110] sm:$0xff]
    %v275 = vld [vmem:[%s4 + $0x118] sm:$0xff]
    %v276 = vld [vmem:[%s4 + $0x120] sm:$0xff]
    %v277 = vld [vmem:[%s4 + $0x128] sm:$0xff]
    %v278 = vld [vmem:[%s4 + $0x130] sm:$0xff]
    %v279 = vld [vmem:[%s4 + $0x138] sm:$0xff]
    %v280 = vld [vmem:[%s4 + $0x140] sm:$0xff]
    %v281 = vld [vmem:[%s4 + $0x148] sm:$0xff]
    %v282 = vld [vmem:[%s4 + $0x150] sm:$0xff]
    %v283 = vld [vmem:[%s4 + $0x158] sm:$0xff]
    %v284 = vld [vmem:[%s4 + $0x160] sm:$0xff]
    %v285 = vld [vmem:[%s4 + $0x168] sm:$0xff]
    %v286 = vld [vmem:[%s4 + $0x170] sm:$0xff]
    %v287 = vld [vmem:[%s4 + $0x178] sm:$0xff]
    %v288 = vld [vmem:[%s6] sm:$0x7]
    %v290 = vperm.slane %v288, 0
    %v291 = vperm.slane %v288, 1
    %v292 = vperm.slane %v288, 2
    %v296 = vld [vmem:[%s1] sm:$0xff]
    %v297 = vld [vmem:[%s2] sm:$0xff]
    %v298 = vld [vmem:[#allocation2] sm:$0xff]
    %v299 = vld [vmem:[#allocation2 + $0x8] sm:$0xff]
    %v300 = vld [vmem:[#allocation2 + $0x10] sm:$0xff]
    %301 = vmatpush.msra.mxu0 %v285
    %302 = vmatpush.msra.mxu0 %v282
    %303 = vmatpush.msra.mxu0 %v279
    %304 = vmatpush.msra.mxu0 %v276
    %305 = vmatpush.msra.mxu0 %v273
    %306 = vmatpush.msra.mxu0 %v270
    %307 = vmatpush.msra.mxu0 %v267
    %308 = vmatpush.msra.mxu0 %v264
    %309 = vmatpush.msra.mxu0 %v261
    %310 = vmatpush.msra.mxu0 %v258
    %311 = vmatpush.msra.mxu0 %v255
    %312 = vmatpush.msra.mxu0 %v252
    %313 = vmatpush.msra.mxu0 %v249
    %314 = vmatpush.msra.mxu0 %v246
    %315 = vmatpush.msra.mxu0 %v243
    %316 = vmatpush.msra.mxu0 %v240
    %317 = vmatmul.f32.gmra.mxu0 %v297
    %v318 = vpop.f32.mrf.mxu0
    %v319 = vadd.f32 %v290, %v318
    %320 = vdwg.mxu0
    %321 = vmatpush.msra.mxu0 %v286
    %322 = vmatpush.msra.mxu0 %v283
    %323 = vmatpush.msra.mxu0 %v280
    %324 = vmatpush.msra.mxu0 %v277
    %325 = vmatpush.msra.mxu0 %v274
    %326 = vmatpush.msra.mxu0 %v271
    %327 = vmatpush.msra.mxu0 %v268
    %328 = vmatpush.msra.mxu0 %v265
    %329 = vmatpush.msra.mxu0 %v262
    %330 = vmatpush.msra.mxu0 %v259
    %331 = vmatpush.msra.mxu0 %v256
    %332 = vmatpush.msra.mxu0 %v253
    %333 = vmatpush.msra.mxu0 %v250
    %334 = vmatpush.msra.mxu0 %v247
    %335 = vmatpush.msra.mxu0 %v244
    %336 = vmatpush.msra.mxu0 %v241
    %337 = vmatmul.f32.gmra.mxu0 %v297
    %v338 = vpop.f32.mrf.mxu0
    %v339 = vadd.f32 %v291, %v338
    %340 = vdwg.mxu0
    %341 = vmatpush.msra.mxu0 %v287
    %342 = vmatpush.msra.mxu0 %v284
    %343 = vmatpush.msra.mxu0 %v281
    %344 = vmatpush.msra.mxu0 %v278
    %345 = vmatpush.msra.mxu0 %v275
    %346 = vmatpush.msra.mxu0 %v272
    %347 = vmatpush.msra.mxu0 %v269
    %348 = vmatpush.msra.mxu0 %v266
    %349 = vmatpush.msra.mxu0 %v263
    %350 = vmatpush.msra.mxu0 %v260
    %351 = vmatpush.msra.mxu0 %v257
    %352 = vmatpush.msra.mxu0 %v254
    %353 = vmatpush.msra.mxu0 %v251
    %354 = vmatpush.msra.mxu0 %v248
    %355 = vmatpush.msra.mxu0 %v245
    %356 = vmatpush.msra.mxu0 %v242
    %357 = vmatmul.f32.gmra.mxu0 %v297
    %v358 = vpop.f32.mrf.mxu0
    %v359 = vadd.f32 %v292, %v358
    %360 = vdwg.mxu0
    %v361 = vadd.f32 %v298, %v319
    %v362 = vxor.u32 %v361, 2147483648
    %v363 = vmul.f32 %v362, 1.442695
    %v364 = vpow.pop %v363
    %v365 = vadd.f32 %v364, 1.0
    %v366 = vrcp.pop %v365
    %v367 = vmul.f32 %v365, %v366
    %v368 = vsub.f32 1.0, %v367
    %v369 = vmul.f32 %v366, %v368
    %v370 = vadd.f32 %v366, %v369
    %vm371 = vweird.f32 %v365
    %vm372 = vweird.f32 %v366
    %vm373 = vmor %vm371, %vm372
    %v374 = vsel %vm373, %v366, %v370
    %v375 = vand.u32 2147483647, %v365
    %vm376 = vcmp.eq.f32.partialorder %v375, 8.507059e+37
    %v377 = vand.u32 %v365, 2147483648
    %v378 = vor.u32 1.1754944e-38, %v377
    %v379 = vsel %vm376, %v378, %v374
    %v380 = vmul.f32 1.0, %v379
    %v381 = vadd.f32 %v299, %v339
    %v382 = vxor.u32 %v381, 2147483648
    %v383 = vmul.f32 %v382, 1.442695
    %v384 = vpow.pop %v383
    %v385 = vadd.f32 %v384, 1.0
    %v386 = vrcp.pop %v385
    %v387 = vmul.f32 %v385, %v386
    %v388 = vsub.f32 1.0, %v387
    %v389 = vmul.f32 %v386, %v388
    %v390 = vadd.f32 %v386, %v389
    %vm391 = vweird.f32 %v385
    %vm392 = vweird.f32 %v386
    %vm393 = vmor %vm391, %vm392
    %v394 = vsel %vm393, %v386, %v390
    %v395 = vand.u32 2147483647, %v385
    %vm396 = vcmp.eq.f32.partialorder %v395, 8.507059e+37
    %v397 = vand.u32 %v385, 2147483648
    %v398 = vor.u32 1.1754944e-38, %v397
    %v399 = vsel %vm396, %v398, %v394
    %v400 = vmul.f32 1.0, %v399
    %v401 = vmul.f32 %v380, %v359
    %v402 = vadd.f32 %v300, %v401
    %v403 = vtanh.pop %v402
    %v404 = vsub.f32 1.0, %v400
    %v405 = vmul.f32 %v404, %v403
    %v406 = vmul.f32 %v400, %v297
    %v407 = vadd.f32 %v405, %v406
    %vm408 = vcmp.gt.s32.totalorder %v296, 0
    %v409 = vsel %vm408, 1, 0
    %410 = vset.pattern.permute.xlu0 0
    %411 = vperm.xlu0 %410, %v409
    %v412 = vpop.permute.xlu0 %411
    %vm413 = vcmp.eq.s32.totalorder %v412, 1
    %v414 = vsel %vm413, %v407, 0.0
    %415 = vst [vmem:[%s7] sm:$0xff] %v414
    %v416 = vsel %vm413, %v407, %v297
    %s417 = scalar_lea.vmem [#allocation2], 24
    %v418 = vld [vmem:[%s417] sm:$0xff]
    %v419 = vld [vmem:[%s417 + $0x8] sm:$0xff]
    %v420 = vld [vmem:[%s417 + $0x10] sm:$0xff]
    %421 = vmatpush.msra.mxu0 %v285
    %422 = vmatpush.msra.mxu0 %v282
    %423 = vmatpush.msra.mxu0 %v279
    %424 = vmatpush.msra.mxu0 %v276
    %425 = vmatpush.msra.mxu0 %v273
    %426 = vmatpush.msra.mxu0 %v270
    %427 = vmatpush.msra.mxu0 %v267
    %428 = vmatpush.msra.mxu0 %v264
    %429 = vmatpush.msra.mxu0 %v261
    %430 = vmatpush.msra.mxu0 %v258
    %431 = vmatpush.msra.mxu0 %v255
    %432 = vmatpush.msra.mxu0 %v252
    %433 = vmatpush.msra.mxu0 %v249
    %434 = vmatpush.msra.mxu0 %v246
    %435 = vmatpush.msra.mxu0 %v243
    %436 = vmatpush.msra.mxu0 %v240
    %437 = vmatmul.f32.gmra.mxu0 %v416
    %v438 = vpop.f32.mrf.mxu0
    %v439 = vadd.f32 %v290, %v438
    %440 = vdwg.mxu0
    %441 = vmatpush.msra.mxu0 %v286
    %442 = vmatpush.msra.mxu0 %v283
    %443 = vmatpush.msra.mxu0 %v280
    %444 = vmatpush.msra.mxu0 %v277
    %445 = vmatpush.msra.mxu0 %v274
    %446 = vmatpush.msra.mxu0 %v271
    %447 = vmatpush.msra.mxu0 %v268
    %448 = vmatpush.msra.mxu0 %v265
    %449 = vmatpush.msra.mxu0 %v262
    %450 = vmatpush.msra.mxu0 %v259
    %451 = vmatpush.msra.mxu0 %v256
    %452 = vmatpush.msra.mxu0 %v253
    %453 = vmatpush.msra.mxu0 %v250
    %454 = vmatpush.msra.mxu0 %v247
    %455 = vmatpush.msra.mxu0 %v244
    %456 = vmatpush.msra.mxu0 %v241
    %457 = vmatmul.f32.gmra.mxu0 %v416
    %v458 = vpop.f32.mrf.mxu0
    %v459 = vadd.f32 %v291, %v458
    %460 = vdwg.mxu0
    %461 = vmatpush.msra.mxu0 %v287
    %462 = vmatpush.msra.mxu0 %v284
    %463 = vmatpush.msra.mxu0 %v281
    %464 = vmatpush.msra.mxu0 %v278
    %465 = vmatpush.msra.mxu0 %v275
    %466 = vmatpush.msra.mxu0 %v272
    %467 = vmatpush.msra.mxu0 %v269
    %468 = vmatpush.msra.mxu0 %v266
    %469 = vmatpush.msra.mxu0 %v263
    %470 = vmatpush.msra.mxu0 %v260
    %471 = vmatpush.msra.mxu0 %v257
    %472 = vmatpush.msra.mxu0 %v254
    %473 = vmatpush.msra.mxu0 %v251
    %474 = vmatpush.msra.mxu0 %v248
    %475 = vmatpush.msra.mxu0 %v245
    %476 = vmatpush.msra.mxu0 %v242
    %477 = vmatmul.f32.gmra.mxu0 %v416
    %v478 = vpop.f32.mrf.mxu0
    %v479 = vadd.f32 %v292, %v478
    %480 = vdwg.mxu0
    %v481 = vadd.f32 %v418, %v439
    %v482 = vxor.u32 %v481, 2147483648
    %v483 = vmul.f32 %v482, 1.442695
    %v484 = vpow.pop %v483
    %v485 = vadd.f32 %v484, 1.0
    %v486 = vrcp.pop %v485
    %v487 = vmul.f32 %v485, %v486
    %v488 = vsub.f32 1.0, %v487
    %v489 = vmul.f32 %v486, %v488
    %v490 = vadd.f32 %v486, %v489
    %vm491 = vweird.f32 %v485
    %vm492 = vweird.f32 %v486
    %vm493 = vmor %vm491, %vm492
    %v494 = vsel %vm493, %v486, %v490
    %v495 = vand.u32 2147483647, %v485
    %vm496 = vcmp.eq.f32.partialorder %v495, 8.507059e+37
    %v497 = vand.u32 %v485, 2147483648
    %v498 = vor.u32 1.1754944e-38, %v497
    %v499 = vsel %vm496, %v498, %v494
    %v500 = vmul.f32 1.0, %v499
    %v501 = vadd.f32 %v419, %v459
    %v502 = vxor.u32 %v501, 2147483648
    %v503 = vmul.f32 %v502, 1.442695
    %v504 = vpow.pop %v503
    %v505 = vadd.f32 %v504, 1.0
    %v506 = vrcp.pop %v505
    %v507 = vmul.f32 %v505, %v506
    %v508 = vsub.f32 1.0, %v507
    %v509 = vmul.f32 %v506, %v508
    %v510 = vadd.f32 %v506, %v509
    %vm511 = vweird.f32 %v505
    %vm512 = vweird.f32 %v506
    %vm513 = vmor %vm511, %vm512
    %v514 = vsel %vm513, %v506, %v510
    %v515 = vand.u32 2147483647, %v505
    %vm516 = vcmp.eq.f32.partialorder %v515, 8.507059e+37
    %v517 = vand.u32 %v505, 2147483648
    %v518 = vor.u32 1.1754944e-38, %v517
    %v519 = vsel %vm516, %v518, %v514
    %v520 = vmul.f32 1.0, %v519
    %v521 = vmul.f32 %v500, %v479
    %v522 = vadd.f32 %v420, %v521
    %v523 = vtanh.pop %v522
    %v524 = vsub.f32 1.0, %v520
    %v525 = vmul.f32 %v524, %v523
    %v526 = vmul.f32 %v520, %v416
    %v527 = vadd.f32 %v525, %v526
    %vm528 = vcmp.gt.s32.totalorder %v296, 1
    %v529 = vsel %vm528, 1, 0
    %530 = vset.pattern.permute.xlu0 0
    %531 = vperm.xlu0 %530, %v529
    %v532 = vpop.permute.xlu0 %531
    %vm533 = vcmp.eq.s32.totalorder %v532, 1
    %v534 = vsel %vm533, %v527, 0.0
    %s535 = scalar_lea.vmem %s7, 8
    %536 = vst [vmem:[%s535] sm:$0xff] %v534
    %v537 = vsel %vm533, %v527, %v416
    %s538 = scalar_lea.vmem [#allocation2], 48
    %v539 = vld [vmem:[%s538] sm:$0xff]
    %v540 = vld [vmem:[%s538 + $0x8] sm:$0xff]
    %v541 = vld [vmem:[%s538 + $0x10] sm:$0xff]
    %542 = vmatpush.msra.mxu0 %v285
    %543 = vmatpush.msra.mxu0 %v282
    %544 = vmatpush.msra.mxu0 %v279
    %545 = vmatpush.msra.mxu0 %v276
    %546 = vmatpush.msra.mxu0 %v273
    %547 = vmatpush.msra.mxu0 %v270
    %548 = vmatpush.msra.mxu0 %v267
    %549 = vmatpush.msra.mxu0 %v264
    %550 = vmatpush.msra.mxu0 %v261
    %551 = vmatpush.msra.mxu0 %v258
    %552 = vmatpush.msra.mxu0 %v255
    %553 = vmatpush.msra.mxu0 %v252
    %554 = vmatpush.msra.mxu0 %v249
    %555 = vmatpush.msra.mxu0 %v246
    %556 = vmatpush.msra.mxu0 %v243
    %557 = vmatpush.msra.mxu0 %v240
    %558 = vmatmul.f32.gmra.mxu0 %v537
    %v559 = vpop.f32.mrf.mxu0
    %v560 = vadd.f32 %v290, %v559
    %561 = vdwg.mxu0
    %562 = vmatpush.msra.mxu0 %v286
    %563 = vmatpush.msra.mxu0 %v283
    %564 = vmatpush.msra.mxu0 %v280
    %565 = vmatpush.msra.mxu0 %v277
    %566 = vmatpush.msra.mxu0 %v274
    %567 = vmatpush.msra.mxu0 %v271
    %568 = vmatpush.msra.mxu0 %v268
    %569 = vmatpush.msra.mxu0 %v265
    %570 = vmatpush.msra.mxu0 %v262
    %571 = vmatpush.msra.mxu0 %v259
    %572 = vmatpush.msra.mxu0 %v256
    %573 = vmatpush.msra.mxu0 %v253
    %574 = vmatpush.msra.mxu0 %v250
    %575 = vmatpush.msra.mxu0 %v247
    %576 = vmatpush.msra.mxu0 %v244
    %577 = vmatpush.msra.mxu0 %v241
    %578 = vmatmul.f32.gmra.mxu0 %v537
    %v579 = vpop.f32.mrf.mxu0
    %v580 = vadd.f32 %v291, %v579
    %581 = vdwg.mxu0
    %582 = vmatpush.msra.mxu0 %v287
    %583 = vmatpush.msra.mxu0 %v284
    %584 = vmatpush.msra.mxu0 %v281
    %585 = vmatpush.msra.mxu0 %v278
    %586 = vmatpush.msra.mxu0 %v275
    %587 = vmatpush.msra.mxu0 %v272
    %588 = vmatpush.msra.mxu0 %v269
    %589 = vmatpush.msra.mxu0 %v266
    %590 = vmatpush.msra.mxu0 %v263
    %591 = vmatpush.msra.mxu0 %v260
    %592 = vmatpush.msra.mxu0 %v257
    %593 = vmatpush.msra.mxu0 %v254
    %594 = vmatpush.msra.mxu0 %v251
    %595 = vmatpush.msra.mxu0 %v248
    %596 = vmatpush.msra.mxu0 %v245
    %597 = vmatpush.msra.mxu0 %v242
    %598 = vmatmul.f32.gmra.mxu0 %v537
    %v599 = vpop.f32.mrf.mxu0
    %v600 = vadd.f32 %v292, %v599
    %601 = vdwg.mxu0
    %v602 = vadd.f32 %v539, %v560
    %v603 = vxor.u32 %v602, 2147483648
    %v604 = vmul.f32 %v603, 1.442695
    %v605 = vpow.pop %v604
    %v606 = vadd.f32 %v605, 1.0
    %v607 = vrcp.pop %v606
    %v608 = vmul.f32 %v606, %v607
    %v609 = vsub.f32 1.0, %v608
    %v610 = vmul.f32 %v607, %v609
    %v611 = vadd.f32 %v607, %v610
    %vm612 = vweird.f32 %v606
    %vm613 = vweird.f32 %v607
    %vm614 = vmor %vm612, %vm613
    %v615 = vsel %vm614, %v607, %v611
    %v616 = vand.u32 2147483647, %v606
    %vm617 = vcmp.eq.f32.partialorder %v616, 8.507059e+37
    %v618 = vand.u32 %v606, 2147483648
    %v619 = vor.u32 1.1754944e-38, %v618
    %v620 = vsel %vm617, %v619, %v615
    %v621 = vmul.f32 1.0, %v620
    %v622 = vadd.f32 %v540, %v580
    %v623 = vxor.u32 %v622, 2147483648
    %v624 = vmul.f32 %v623, 1.442695
    %v625 = vpow.pop %v624
    %v626 = vadd.f32 %v625, 1.0
    %v627 = vrcp.pop %v626
    %v628 = vmul.f32 %v626, %v627
    %v629 = vsub.f32 1.0, %v628
    %v630 = vmul.f32 %v627, %v629
    %v631 = vadd.f32 %v627, %v630
    %vm632 = vweird.f32 %v626
    %vm633 = vweird.f32 %v627
    %vm634 = vmor %vm632, %vm633
    %v635 = vsel %vm634, %v627, %v631
    %v636 = vand.u32 2147483647, %v626
    %vm637 = vcmp.eq.f32.partialorder %v636, 8.507059e+37
    %v638 = vand.u32 %v626, 2147483648
    %v639 = vor.u32 1.1754944e-38, %v638
    %v640 = vsel %vm637, %v639, %v635
    %v641 = vmul.f32 1.0, %v640
    %v642 = vmul.f32 %v621, %v600
    %v643 = vadd.f32 %v541, %v642
    %v644 = vtanh.pop %v643
    %v645 = vsub.f32 1.0, %v641
    %v646 = vmul.f32 %v645, %v644
    %v647 = vmul.f32 %v641, %v537
    %v648 = vadd.f32 %v646, %v647
    %vm649 = vcmp.gt.s32.totalorder %v296, 2
    %v650 = vsel %vm649, 1, 0
    %651 = vset.pattern.permute.xlu0 0
    %652 = vperm.xlu0 %651, %v650
    %v653 = vpop.permute.xlu0 %652
    %vm654 = vcmp.eq.s32.totalorder %v653, 1
    %v655 = vsel %vm654, %v648, 0.0
    %s656 = scalar_lea.vmem %s7, 16
    %657 = vst [vmem:[%s656] sm:$0xff] %v655
    %v658 = vsel %vm654, %v648, %v537
    %s659 = scalar_lea.vmem [#allocation2], 72
    %v660 = vld [vmem:[%s659] sm:$0xff]
    %v661 = vld [vmem:[%s659 + $0x8] sm:$0xff]
    %v662 = vld [vmem:[%s659 + $0x10] sm:$0xff]
    %663 = vmatpush.msra.mxu0 %v285
    %664 = vmatpush.msra.mxu0 %v282
    %665 = vmatpush.msra.mxu0 %v279
    %666 = vmatpush.msra.mxu0 %v276
    %667 = vmatpush.msra.mxu0 %v273
    %668 = vmatpush.msra.mxu0 %v270
    %669 = vmatpush.msra.mxu0 %v267
    %670 = vmatpush.msra.mxu0 %v264
    %671 = vmatpush.msra.mxu0 %v261
    %672 = vmatpush.msra.mxu0 %v258
    %673 = vmatpush.msra.mxu0 %v255
    %674 = vmatpush.msra.mxu0 %v252
    %675 = vmatpush.msra.mxu0 %v249
    %676 = vmatpush.msra.mxu0 %v246
    %677 = vmatpush.msra.mxu0 %v243
    %678 = vmatpush.msra.mxu0 %v240
    %679 = vmatmul.f32.gmra.mxu0 %v658
    %v680 = vpop.f32.mrf.mxu0
    %v681 = vadd.f32 %v290, %v680
    %682 = vdwg.mxu0
    %683 = vmatpush.msra.mxu0 %v286
    %684 = vmatpush.msra.mxu0 %v283
    %685 = vmatpush.msra.mxu0 %v280
    %686 = vmatpush.msra.mxu0 %v277
    %687 = vmatpush.msra.mxu0 %v274
    %688 = vmatpush.msra.mxu0 %v271
    %689 = vmatpush.msra.mxu0 %v268
    %690 = vmatpush.msra.mxu0 %v265
    %691 = vmatpush.msra.mxu0 %v262
    %692 = vmatpush.msra.mxu0 %v259
    %693 = vmatpush.msra.mxu0 %v256
    %694 = vmatpush.msra.mxu0 %v253
    %695 = vmatpush.msra.mxu0 %v250
    %696 = vmatpush.msra.mxu0 %v247
    %697 = vmatpush.msra.mxu0 %v244
    %698 = vmatpush.msra.mxu0 %v241
    %699 = vmatmul.f32.gmra.mxu0 %v658
    %v700 = vpop.f32.mrf.mxu0
    %v701 = vadd.f32 %v291, %v700
    %702 = vdwg.mxu0
    %703 = vmatpush.msra.mxu0 %v287
    %704 = vmatpush.msra.mxu0 %v284
    %705 = vmatpush.msra.mxu0 %v281
    %706 = vmatpush.msra.mxu0 %v278
    %707 = vmatpush.msra.mxu0 %v275
    %708 = vmatpush.msra.mxu0 %v272
    %709 = vmatpush.msra.mxu0 %v269
    %710 = vmatpush.msra.mxu0 %v266
    %711 = vmatpush.msra.mxu0 %v263
    %712 = vmatpush.msra.mxu0 %v260
    %713 = vmatpush.msra.mxu0 %v257
    %714 = vmatpush.msra.mxu0 %v254
    %715 = vmatpush.msra.mxu0 %v251
    %716 = vmatpush.msra.mxu0 %v248
    %717 = vmatpush.msra.mxu0 %v245
    %718 = vmatpush.msra.mxu0 %v242
    %719 = vmatmul.f32.gmra.mxu0 %v658
    %v720 = vpop.f32.mrf.mxu0
    %v721 = vadd.f32 %v292, %v720
    %722 = vdwg.mxu0
    %v723 = vadd.f32 %v660, %v681
    %v724 = vxor.u32 %v723, 2147483648
    %v725 = vmul.f32 %v724, 1.442695
    %v726 = vpow.pop %v725
    %v727 = vadd.f32 %v726, 1.0
    %v728 = vrcp.pop %v727
    %v729 = vmul.f32 %v727, %v728
    %v730 = vsub.f32 1.0, %v729
    %v731 = vmul.f32 %v728, %v730
    %v732 = vadd.f32 %v728, %v731
    %vm733 = vweird.f32 %v727
    %vm734 = vweird.f32 %v728
    %vm735 = vmor %vm733, %vm734
    %v736 = vsel %vm735, %v728, %v732
    %v737 = vand.u32 2147483647, %v727
    %vm738 = vcmp.eq.f32.partialorder %v737, 8.507059e+37
    %v739 = vand.u32 %v727, 2147483648
    %v740 = vor.u32 1.1754944e-38, %v739
    %v741 = vsel %vm738, %v740, %v736
    %v742 = vmul.f32 1.0, %v741
    %v743 = vadd.f32 %v661, %v701
    %v744 = vxor.u32 %v743, 2147483648
    %v745 = vmul.f32 %v744, 1.442695
    %v746 = vpow.pop %v745
    %v747 = vadd.f32 %v746, 1.0
    %v748 = vrcp.pop %v747
    %v749 = vmul.f32 %v747, %v748
    %v750 = vsub.f32 1.0, %v749
    %v751 = vmul.f32 %v748, %v750
    %v752 = vadd.f32 %v748, %v751
    %vm753 = vweird.f32 %v747
    %vm754 = vweird.f32 %v748
    %vm755 = vmor %vm753, %vm754
    %v756 = vsel %vm755, %v748, %v752
    %v757 = vand.u32 2147483647, %v747
    %vm758 = vcmp.eq.f32.partialorder %v757, 8.507059e+37
    %v759 = vand.u32 %v747, 2147483648
    %v760 = vor.u32 1.1754944e-38, %v759
    %v761 = vsel %vm758, %v760, %v756
    %v762 = vmul.f32 1.0, %v761
    %v763 = vmul.f32 %v742, %v721
    %v764 = vadd.f32 %v662, %v763
    %v765 = vtanh.pop %v764
    %v766 = vsub.f32 1.0, %v762
    %v767 = vmul.f32 %v766, %v765
    %v768 = vmul.f32 %v762, %v658
    %v769 = vadd.f32 %v767, %v768
    %vm770 = vcmp.gt.s32.totalorder %v296, 3
    %v771 = vsel %vm770, 1, 0
    %772 = vset.pattern.permute.xlu0 0
    %773 = vperm.xlu0 %772, %v771
    %v774 = vpop.permute.xlu0 %773
    %vm775 = vcmp.eq.s32.totalorder %v774, 1
    %v776 = vsel %vm775, %v769, 0.0
    %s777 = scalar_lea.vmem %s7, 24
    %778 = vst [vmem:[%s777] sm:$0xff] %v776
    %v779 = vsel %vm775, %v769, %v658
    %s780 = scalar_lea.vmem [#allocation2], 96
    %v781 = vld [vmem:[%s780] sm:$0xff]
    %v782 = vld [vmem:[%s780 + $0x8] sm:$0xff]
    %v783 = vld [vmem:[%s780 + $0x10] sm:$0xff]
    %784 = vmatpush.msra.mxu0 %v285
    %785 = vmatpush.msra.mxu0 %v282
    %786 = vmatpush.msra.mxu0 %v279
    %787 = vmatpush.msra.mxu0 %v276
    %788 = vmatpush.msra.mxu0 %v273
    %789 = vmatpush.msra.mxu0 %v270
    %790 = vmatpush.msra.mxu0 %v267
    %791 = vmatpush.msra.mxu0 %v264
    %792 = vmatpush.msra.mxu0 %v261
    %793 = vmatpush.msra.mxu0 %v258
    %794 = vmatpush.msra.mxu0 %v255
    %795 = vmatpush.msra.mxu0 %v252
    %796 = vmatpush.msra.mxu0 %v249
    %797 = vmatpush.msra.mxu0 %v246
    %798 = vmatpush.msra.mxu0 %v243
    %799 = vmatpush.msra.mxu0 %v240
    %800 = vmatmul.f32.gmra.mxu0 %v779
    %v801 = vpop.f32.mrf.mxu0
    %v802 = vadd.f32 %v290, %v801
    %803 = vdwg.mxu0
    %804 = vmatpush.msra.mxu0 %v286
    %805 = vmatpush.msra.mxu0 %v283
    %806 = vmatpush.msra.mxu0 %v280
    %807 = vmatpush.msra.mxu0 %v277
    %808 = vmatpush.msra.mxu0 %v274
    %809 = vmatpush.msra.mxu0 %v271
    %810 = vmatpush.msra.mxu0 %v268
    %811 = vmatpush.msra.mxu0 %v265
    %812 = vmatpush.msra.mxu0 %v262
    %813 = vmatpush.msra.mxu0 %v259
    %814 = vmatpush.msra.mxu0 %v256
    %815 = vmatpush.msra.mxu0 %v253
    %816 = vmatpush.msra.mxu0 %v250
    %817 = vmatpush.msra.mxu0 %v247
    %818 = vmatpush.msra.mxu0 %v244
    %819 = vmatpush.msra.mxu0 %v241
    %820 = vmatmul.f32.gmra.mxu0 %v779
    %v821 = vpop.f32.mrf.mxu0
    %v822 = vadd.f32 %v291, %v821
    %823 = vdwg.mxu0
    %824 = vmatpush.msra.mxu0 %v287
    %825 = vmatpush.msra.mxu0 %v284
    %826 = vmatpush.msra.mxu0 %v281
    %827 = vmatpush.msra.mxu0 %v278
    %828 = vmatpush.msra.mxu0 %v275
    %829 = vmatpush.msra.mxu0 %v272
    %830 = vmatpush.msra.mxu0 %v269
    %831 = vmatpush.msra.mxu0 %v266
    %832 = vmatpush.msra.mxu0 %v263
    %833 = vmatpush.msra.mxu0 %v260
    %834 = vmatpush.msra.mxu0 %v257
    %835 = vmatpush.msra.mxu0 %v254
    %836 = vmatpush.msra.mxu0 %v251
    %837 = vmatpush.msra.mxu0 %v248
    %838 = vmatpush.msra.mxu0 %v245
    %839 = vmatpush.msra.mxu0 %v242
    %840 = vmatmul.f32.gmra.mxu0 %v779
    %v841 = vpop.f32.mrf.mxu0
    %v842 = vadd.f32 %v292, %v841
    %843 = vdwg.mxu0
    %v844 = vadd.f32 %v781, %v802
    %v845 = vxor.u32 %v844, 2147483648
    %v846 = vmul.f32 %v845, 1.442695
    %v847 = vpow.pop %v846
    %v848 = vadd.f32 %v847, 1.0
    %v849 = vrcp.pop %v848
    %v850 = vmul.f32 %v848, %v849
    %v851 = vsub.f32 1.0, %v850
    %v852 = vmul.f32 %v849, %v851
    %v853 = vadd.f32 %v849, %v852
    %vm854 = vweird.f32 %v848
    %vm855 = vweird.f32 %v849
    %vm856 = vmor %vm854, %vm855
    %v857 = vsel %vm856, %v849, %v853
    %v858 = vand.u32 2147483647, %v848
    %vm859 = vcmp.eq.f32.partialorder %v858, 8.507059e+37
    %v860 = vand.u32 %v848, 2147483648
    %v861 = vor.u32 1.1754944e-38, %v860
    %v862 = vsel %vm859, %v861, %v857
    %v863 = vmul.f32 1.0, %v862
    %v864 = vadd.f32 %v782, %v822
    %v865 = vxor.u32 %v864, 2147483648
    %v866 = vmul.f32 %v865, 1.442695
    %v867 = vpow.pop %v866
    %v868 = vadd.f32 %v867, 1.0
    %v869 = vrcp.pop %v868
    %v870 = vmul.f32 %v868, %v869
    %v871 = vsub.f32 1.0, %v870
    %v872 = vmul.f32 %v869, %v871
    %v873 = vadd.f32 %v869, %v872
    %vm874 = vweird.f32 %v868
    %vm875 = vweird.f32 %v869
    %vm876 = vmor %vm874, %vm875
    %v877 = vsel %vm876, %v869, %v873
    %v878 = vand.u32 2147483647, %v868
    %vm879 = vcmp.eq.f32.partialorder %v878, 8.507059e+37
    %v880 = vand.u32 %v868, 2147483648
    %v881 = vor.u32 1.1754944e-38, %v880
    %v882 = vsel %vm879, %v881, %v877
    %v883 = vmul.f32 1.0, %v882
    %v884 = vmul.f32 %v863, %v842
    %v885 = vadd.f32 %v783, %v884
    %v886 = vtanh.pop %v885
    %v887 = vsub.f32 1.0, %v883
    %v888 = vmul.f32 %v887, %v886
    %v889 = vmul.f32 %v883, %v779
    %v890 = vadd.f32 %v888, %v889
    %vm891 = vcmp.gt.s32.totalorder %v296, 4
    %v892 = vsel %vm891, 1, 0
    %893 = vset.pattern.permute.xlu0 0
    %894 = vperm.xlu0 %893, %v892
    %v895 = vpop.permute.xlu0 %894
    %vm896 = vcmp.eq.s32.totalorder %v895, 1
    %v897 = vsel %vm896, %v890, 0.0
    %s898 = scalar_lea.vmem %s7, 32
    %899 = vst [vmem:[%s898] sm:$0xff] %v897
    %v900 = vsel %vm896, %v890, %v779
    %s901 = scalar_lea.vmem [#allocation2], 120
    %v902 = vld [vmem:[%s901] sm:$0xff]
    %v903 = vld [vmem:[%s901 + $0x8] sm:$0xff]
    %v904 = vld [vmem:[%s901 + $0x10] sm:$0xff]
    %905 = vmatpush.msra.mxu0 %v285
    %906 = vmatpush.msra.mxu0 %v282
    %907 = vmatpush.msra.mxu0 %v279
    %908 = vmatpush.msra.mxu0 %v276
    %909 = vmatpush.msra.mxu0 %v273
    %910 = vmatpush.msra.mxu0 %v270
    %911 = vmatpush.msra.mxu0 %v267
    %912 = vmatpush.msra.mxu0 %v264
    %913 = vmatpush.msra.mxu0 %v261
    %914 = vmatpush.msra.mxu0 %v258
    %915 = vmatpush.msra.mxu0 %v255
    %916 = vmatpush.msra.mxu0 %v252
    %917 = vmatpush.msra.mxu0 %v249
    %918 = vmatpush.msra.mxu0 %v246
    %919 = vmatpush.msra.mxu0 %v243
    %920 = vmatpush.msra.mxu0 %v240
    %921 = vmatmul.f32.gmra.mxu0 %v900
    %v922 = vpop.f32.mrf.mxu0
    %v923 = vadd.f32 %v290, %v922
    %924 = vdwg.mxu0
    %925 = vmatpush.msra.mxu0 %v286
    %926 = vmatpush.msra.mxu0 %v283
    %927 = vmatpush.msra.mxu0 %v280
    %928 = vmatpush.msra.mxu0 %v277
    %929 = vmatpush.msra.mxu0 %v274
    %930 = vmatpush.msra.mxu0 %v271
    %931 = vmatpush.msra.mxu0 %v268
    %932 = vmatpush.msra.mxu0 %v265
    %933 = vmatpush.msra.mxu0 %v262
    %934 = vmatpush.msra.mxu0 %v259
    %935 = vmatpush.msra.mxu0 %v256
    %936 = vmatpush.msra.mxu0 %v253
    %937 = vmatpush.msra.mxu0 %v250
    %938 = vmatpush.msra.mxu0 %v247
    %939 = vmatpush.msra.mxu0 %v244
    %940 = vmatpush.msra.mxu0 %v241
    %941 = vmatmul.f32.gmra.mxu0 %v900
    %v942 = vpop.f32.mrf.mxu0
    %v943 = vadd.f32 %v291, %v942
    %944 = vdwg.mxu0
    %945 = vmatpush.msra.mxu0 %v287
    %946 = vmatpush.msra.mxu0 %v284
    %947 = vmatpush.msra.mxu0 %v281
    %948 = vmatpush.msra.mxu0 %v278
    %949 = vmatpush.msra.mxu0 %v275
    %950 = vmatpush.msra.mxu0 %v272
    %951 = vmatpush.msra.mxu0 %v269
    %952 = vmatpush.msra.mxu0 %v266
    %953 = vmatpush.msra.mxu0 %v263
    %954 = vmatpush.msra.mxu0 %v260
    %955 = vmatpush.msra.mxu0 %v257
    %956 = vmatpush.msra.mxu0 %v254
    %957 = vmatpush.msra.mxu0 %v251
    %958 = vmatpush.msra.mxu0 %v248
    %959 = vmatpush.msra.mxu0 %v245
    %960 = vmatpush.msra.mxu0 %v242
    %961 = vmatmul.f32.gmra.mxu0 %v900
    %v962 = vpop.f32.mrf.mxu0
    %v963 = vadd.f32 %v292, %v962
    %964 = vdwg.mxu0
    %v965 = vadd.f32 %v902, %v923
    %v966 = vxor.u32 %v965, 2147483648
    %v967 = vmul.f32 %v966, 1.442695
    %v968 = vpow.pop %v967
    %v969 = vadd.f32 %v968, 1.0
    %v970 = vrcp.pop %v969
    %v971 = vmul.f32 %v969, %v970
    %v972 = vsub.f32 1.0, %v971
    %v973 = vmul.f32 %v970, %v972
    %v974 = vadd.f32 %v970, %v973
    %vm975 = vweird.f32 %v969
    %vm976 = vweird.f32 %v970
    %vm977 = vmor %vm975, %vm976
    %v978 = vsel %vm977, %v970, %v974
    %v979 = vand.u32 2147483647, %v969
    %vm980 = vcmp.eq.f32.partialorder %v979, 8.507059e+37
    %v981 = vand.u32 %v969, 2147483648
    %v982 = vor.u32 1.1754944e-38, %v981
    %v983 = vsel %vm980, %v982, %v978
    %v984 = vmul.f32 1.0, %v983
    %v985 = vadd.f32 %v903, %v943
    %v986 = vxor.u32 %v985, 2147483648
    %v987 = vmul.f32 %v986, 1.442695
    %v988 = vpow.pop %v987
    %v989 = vadd.f32 %v988, 1.0
    %v990 = vrcp.pop %v989
    %v991 = vmul.f32 %v989, %v990
    %v992 = vsub.f32 1.0, %v991
    %v993 = vmul.f32 %v990, %v992
    %v994 = vadd.f32 %v990, %v993
    %vm995 = vweird.f32 %v989
    %vm996 = vweird.f32 %v990
    %vm997 = vmor %vm995, %vm996
    %v998 = vsel %vm997, %v990, %v994
    %v999 = vand.u32 2147483647, %v989
    %vm1000 = vcmp.eq.f32.partialorder %v999, 8.507059e+37
    %v1001 = vand.u32 %v989, 2147483648
    %v1002 = vor.u32 1.1754944e-38, %v1001
    %v1003 = vsel %vm1000, %v1002, %v998
    %v1004 = vmul.f32 1.0, %v1003
    %v1005 = vmul.f32 %v984, %v963
    %v1006 = vadd.f32 %v904, %v1005
    %v1007 = vtanh.pop %v1006
    %v1008 = vsub.f32 1.0, %v1004
    %v1009 = vmul.f32 %v1008, %v1007
    %v1010 = vmul.f32 %v1004, %v900
    %v1011 = vadd.f32 %v1009, %v1010
    %vm1012 = vcmp.gt.s32.totalorder %v296, 5
    %v1013 = vsel %vm1012, 1, 0
    %1014 = vset.pattern.permute.xlu0 0
    %1015 = vperm.xlu0 %1014, %v1013
    %v1016 = vpop.permute.xlu0 %1015
    %vm1017 = vcmp.eq.s32.totalorder %v1016, 1
    %v1018 = vsel %vm1017, %v1011, 0.0
    %s1019 = scalar_lea.vmem %s7, 40
    %1020 = vst [vmem:[%s1019] sm:$0xff] %v1018
    %v1021 = vsel %vm1017, %v1011, %v900
    %s1022 = scalar_lea.vmem [#allocation2], 144
    %v1023 = vld [vmem:[%s1022] sm:$0xff]
    %v1024 = vld [vmem:[%s1022 + $0x8] sm:$0xff]
    %v1025 = vld [vmem:[%s1022 + $0x10] sm:$0xff]
    %1026 = vmatpush.msra.mxu0 %v285
    %1027 = vmatpush.msra.mxu0 %v282
    %1028 = vmatpush.msra.mxu0 %v279
    %1029 = vmatpush.msra.mxu0 %v276
    %1030 = vmatpush.msra.mxu0 %v273
    %1031 = vmatpush.msra.mxu0 %v270
    %1032 = vmatpush.msra.mxu0 %v267
    %1033 = vmatpush.msra.mxu0 %v264
    %1034 = vmatpush.msra.mxu0 %v261
    %1035 = vmatpush.msra.mxu0 %v258
    %1036 = vmatpush.msra.mxu0 %v255
    %1037 = vmatpush.msra.mxu0 %v252
    %1038 = vmatpush.msra.mxu0 %v249
    %1039 = vmatpush.msra.mxu0 %v246
    %1040 = vmatpush.msra.mxu0 %v243
    %1041 = vmatpush.msra.mxu0 %v240
    %1042 = vmatmul.f32.gmra.mxu0 %v1021
    %v1043 = vpop.f32.mrf.mxu0
    %v1044 = vadd.f32 %v290, %v1043
    %1045 = vdwg.mxu0
    %1046 = vmatpush.msra.mxu0 %v286
    %1047 = vmatpush.msra.mxu0 %v283
    %1048 = vmatpush.msra.mxu0 %v280
    %1049 = vmatpush.msra.mxu0 %v277
    %1050 = vmatpush.msra.mxu0 %v274
    %1051 = vmatpush.msra.mxu0 %v271
    %1052 = vmatpush.msra.mxu0 %v268
    %1053 = vmatpush.msra.mxu0 %v265
    %1054 = vmatpush.msra.mxu0 %v262
    %1055 = vmatpush.msra.mxu0 %v259
    %1056 = vmatpush.msra.mxu0 %v256
    %1057 = vmatpush.msra.mxu0 %v253
    %1058 = vmatpush.msra.mxu0 %v250
    %1059 = vmatpush.msra.mxu0 %v247
    %1060 = vmatpush.msra.mxu0 %v244
    %1061 = vmatpush.msra.mxu0 %v241
    %1062 = vmatmul.f32.gmra.mxu0 %v1021
    %v1063 = vpop.f32.mrf.mxu0
    %v1064 = vadd.f32 %v291, %v1063
    %1065 = vdwg.mxu0
    %1066 = vmatpush.msra.mxu0 %v287
    %1067 = vmatpush.msra.mxu0 %v284
    %1068 = vmatpush.msra.mxu0 %v281
    %1069 = vmatpush.msra.mxu0 %v278
    %1070 = vmatpush.msra.mxu0 %v275
    %1071 = vmatpush.msra.mxu0 %v272
    %1072 = vmatpush.msra.mxu0 %v269
    %1073 = vmatpush.msra.mxu0 %v266
    %1074 = vmatpush.msra.mxu0 %v263
    %1075 = vmatpush.msra.mxu0 %v260
    %1076 = vmatpush.msra.mxu0 %v257
    %1077 = vmatpush.msra.mxu0 %v254
    %1078 = vmatpush.msra.mxu0 %v251
    %1079 = vmatpush.msra.mxu0 %v248
    %1080 = vmatpush.msra.mxu0 %v245
    %1081 = vmatpush.msra.mxu0 %v242
    %1082 = vmatmul.f32.gmra.mxu0 %v1021
    %v1083 = vpop.f32.mrf.mxu0
    %v1084 = vadd.f32 %v292, %v1083
    %1085 = vdwg.mxu0
    %v1086 = vadd.f32 %v1023, %v1044
    %v1087 = vxor.u32 %v1086, 2147483648
    %v1088 = vmul.f32 %v1087, 1.442695
    %v1089 = vpow.pop %v1088
    %v1090 = vadd.f32 %v1089, 1.0
    %v1091 = vrcp.pop %v1090
    %v1092 = vmul.f32 %v1090, %v1091
    %v1093 = vsub.f32 1.0, %v1092
    %v1094 = vmul.f32 %v1091, %v1093
    %v1095 = vadd.f32 %v1091, %v1094
    %vm1096 = vweird.f32 %v1090
    %vm1097 = vweird.f32 %v1091
    %vm1098 = vmor %vm1096, %vm1097
    %v1099 = vsel %vm1098, %v1091, %v1095
    %v1100 = vand.u32 2147483647, %v1090
    %vm1101 = vcmp.eq.f32.partialorder %v1100, 8.507059e+37
    %v1102 = vand.u32 %v1090, 2147483648
    %v1103 = vor.u32 1.1754944e-38, %v1102
    %v1104 = vsel %vm1101, %v1103, %v1099
    %v1105 = vmul.f32 1.0, %v1104
    %v1106 = vadd.f32 %v1024, %v1064
    %v1107 = vxor.u32 %v1106, 2147483648
    %v1108 = vmul.f32 %v1107, 1.442695
    %v1109 = vpow.pop %v1108
    %v1110 = vadd.f32 %v1109, 1.0
    %v1111 = vrcp.pop %v1110
    %v1112 = vmul.f32 %v1110, %v1111
    %v1113 = vsub.f32 1.0, %v1112
    %v1114 = vmul.f32 %v1111, %v1113
    %v1115 = vadd.f32 %v1111, %v1114
    %vm1116 = vweird.f32 %v1110
    %vm1117 = vweird.f32 %v1111
    %vm1118 = vmor %vm1116, %vm1117
    %v1119 = vsel %vm1118, %v1111, %v1115
    %v1120 = vand.u32 2147483647, %v1110
    %vm1121 = vcmp.eq.f32.partialorder %v1120, 8.507059e+37
    %v1122 = vand.u32 %v1110, 2147483648
    %v1123 = vor.u32 1.1754944e-38, %v1122
    %v1124 = vsel %vm1121, %v1123, %v1119
    %v1125 = vmul.f32 1.0, %v1124
    %v1126 = vmul.f32 %v1105, %v1084
    %v1127 = vadd.f32 %v1025, %v1126
    %v1128 = vtanh.pop %v1127
    %v1129 = vsub.f32 1.0, %v1125
    %v1130 = vmul.f32 %v1129, %v1128
    %v1131 = vmul.f32 %v1125, %v1021
    %v1132 = vadd.f32 %v1130, %v1131
    %vm1133 = vcmp.gt.s32.totalorder %v296, 6
    %v1134 = vsel %vm1133, 1, 0
    %1135 = vset.pattern.permute.xlu0 0
    %1136 = vperm.xlu0 %1135, %v1134
    %v1137 = vpop.permute.xlu0 %1136
    %vm1138 = vcmp.eq.s32.totalorder %v1137, 1
    %v1139 = vsel %vm1138, %v1132, 0.0
    %s1140 = scalar_lea.vmem %s7, 48
    %1141 = vst [vmem:[%s1140] sm:$0xff] %v1139
    %v1142 = vsel %vm1138, %v1132, %v1021
    %s1143 = scalar_lea.vmem [#allocation2], 168
    %v1144 = vld [vmem:[%s1143] sm:$0xff]
    %v1145 = vld [vmem:[%s1143 + $0x8] sm:$0xff]
    %v1146 = vld [vmem:[%s1143 + $0x10] sm:$0xff]
    %1147 = vmatpush.msra.mxu0 %v285
    %1148 = vmatpush.msra.mxu0 %v282
    %1149 = vmatpush.msra.mxu0 %v279
    %1150 = vmatpush.msra.mxu0 %v276
    %1151 = vmatpush.msra.mxu0 %v273
    %1152 = vmatpush.msra.mxu0 %v270
    %1153 = vmatpush.msra.mxu0 %v267
    %1154 = vmatpush.msra.mxu0 %v264
    %1155 = vmatpush.msra.mxu0 %v261
    %1156 = vmatpush.msra.mxu0 %v258
    %1157 = vmatpush.msra.mxu0 %v255
    %1158 = vmatpush.msra.mxu0 %v252
    %1159 = vmatpush.msra.mxu0 %v249
    %1160 = vmatpush.msra.mxu0 %v246
    %1161 = vmatpush.msra.mxu0 %v243
    %1162 = vmatpush.msra.mxu0 %v240
    %1163 = vmatmul.f32.gmra.mxu0 %v1142
    %v1164 = vpop.f32.mrf.mxu0
    %v1165 = vadd.f32 %v290, %v1164
    %1166 = vdwg.mxu0
    %1167 = vmatpush.msra.mxu0 %v286
    %1168 = vmatpush.msra.mxu0 %v283
    %1169 = vmatpush.msra.mxu0 %v280
    %1170 = vmatpush.msra.mxu0 %v277
    %1171 = vmatpush.msra.mxu0 %v274
    %1172 = vmatpush.msra.mxu0 %v271
    %1173 = vmatpush.msra.mxu0 %v268
    %1174 = vmatpush.msra.mxu0 %v265
    %1175 = vmatpush.msra.mxu0 %v262
    %1176 = vmatpush.msra.mxu0 %v259
    %1177 = vmatpush.msra.mxu0 %v256
    %1178 = vmatpush.msra.mxu0 %v253
    %1179 = vmatpush.msra.mxu0 %v250
    %1180 = vmatpush.msra.mxu0 %v247
    %1181 = vmatpush.msra.mxu0 %v244
    %1182 = vmatpush.msra.mxu0 %v241
    %1183 = vmatmul.f32.gmra.mxu0 %v1142
    %v1184 = vpop.f32.mrf.mxu0
    %v1185 = vadd.f32 %v291, %v1184
    %1186 = vdwg.mxu0
    %1187 = vmatpush.msra.mxu0 %v287
    %1188 = vmatpush.msra.mxu0 %v284
    %1189 = vmatpush.msra.mxu0 %v281
    %1190 = vmatpush.msra.mxu0 %v278
    %1191 = vmatpush.msra.mxu0 %v275
    %1192 = vmatpush.msra.mxu0 %v272
    %1193 = vmatpush.msra.mxu0 %v269
    %1194 = vmatpush.msra.mxu0 %v266
    %1195 = vmatpush.msra.mxu0 %v263
    %1196 = vmatpush.msra.mxu0 %v260
    %1197 = vmatpush.msra.mxu0 %v257
    %1198 = vmatpush.msra.mxu0 %v254
    %1199 = vmatpush.msra.mxu0 %v251
    %1200 = vmatpush.msra.mxu0 %v248
    %1201 = vmatpush.msra.mxu0 %v245
    %1202 = vmatpush.msra.mxu0 %v242
    %1203 = vmatmul.f32.gmra.mxu0 %v1142
    %v1204 = vpop.f32.mrf.mxu0
    %v1205 = vadd.f32 %v292, %v1204
    %1206 = vdwg.mxu0
    %v1207 = vadd.f32 %v1144, %v1165
    %v1208 = vxor.u32 %v1207, 2147483648
    %v1209 = vmul.f32 %v1208, 1.442695
    %v1210 = vpow.pop %v1209
    %v1211 = vadd.f32 %v1210, 1.0
    %v1212 = vrcp.pop %v1211
    %v1213 = vmul.f32 %v1211, %v1212
    %v1214 = vsub.f32 1.0, %v1213
    %v1215 = vmul.f32 %v1212, %v1214
    %v1216 = vadd.f32 %v1212, %v1215
    %vm1217 = vweird.f32 %v1211
    %vm1218 = vweird.f32 %v1212
    %vm1219 = vmor %vm1217, %vm1218
    %v1220 = vsel %vm1219, %v1212, %v1216
    %v1221 = vand.u32 2147483647, %v1211
    %vm1222 = vcmp.eq.f32.partialorder %v1221, 8.507059e+37
    %v1223 = vand.u32 %v1211, 2147483648
    %v1224 = vor.u32 1.1754944e-38, %v1223
    %v1225 = vsel %vm1222, %v1224, %v1220
    %v1226 = vmul.f32 1.0, %v1225
    %v1227 = vadd.f32 %v1145, %v1185
    %v1228 = vxor.u32 %v1227, 2147483648
    %v1229 = vmul.f32 %v1228, 1.442695
    %v1230 = vpow.pop %v1229
    %v1231 = vadd.f32 %v1230, 1.0
    %v1232 = vrcp.pop %v1231
    %v1233 = vmul.f32 %v1231, %v1232
    %v1234 = vsub.f32 1.0, %v1233
    %v1235 = vmul.f32 %v1232, %v1234
    %v1236 = vadd.f32 %v1232, %v1235
    %vm1237 = vweird.f32 %v1231
    %vm1238 = vweird.f32 %v1232
    %vm1239 = vmor %vm1237, %vm1238
    %v1240 = vsel %vm1239, %v1232, %v1236
    %v1241 = vand.u32 2147483647, %v1231
    %vm1242 = vcmp.eq.f32.partialorder %v1241, 8.507059e+37
    %v1243 = vand.u32 %v1231, 2147483648
    %v1244 = vor.u32 1.1754944e-38, %v1243
    %v1245 = vsel %vm1242, %v1244, %v1240
    %v1246 = vmul.f32 1.0, %v1245
    %v1247 = vmul.f32 %v1226, %v1205
    %v1248 = vadd.f32 %v1146, %v1247
    %v1249 = vtanh.pop %v1248
    %v1250 = vsub.f32 1.0, %v1246
    %v1251 = vmul.f32 %v1250, %v1249
    %v1252 = vmul.f32 %v1246, %v1142
    %v1253 = vadd.f32 %v1251, %v1252
    %vm1254 = vcmp.gt.s32.totalorder %v296, 7
    %v1255 = vsel %vm1254, 1, 0
    %1256 = vset.pattern.permute.xlu0 0
    %1257 = vperm.xlu0 %1256, %v1255
    %v1258 = vpop.permute.xlu0 %1257
    %vm1259 = vcmp.eq.s32.totalorder %v1258, 1
    %v1260 = vsel %vm1259, %v1253, 0.0
    %s1261 = scalar_lea.vmem %s7, 56
    %1262 = vst [vmem:[%s1261] sm:$0xff] %v1260
    %v1263 = vsel %vm1259, %v1253, %v1142
    %1264 = vst [vmem:[#allocation3] sm:$0xff] %v1263
    // Predicated region
    $region30: #{seq2seq_forward.8} parent=1 // pred_check
      _
    $region31: #{seq2seq_forward.8} parent=1 // pred_check_branch
      %1266 = sbr.rel (0) target = $region33
    $region32: #{seq2seq_forward.8} parent=1 // pred_region
      _
    $region33: #{seq2seq_forward.8} parent=1 // pred_fallthru
      _
    // Predicated region
    $region34: #{seq2seq_forward.8} parent=1 // pred_check
      _
    $region35: #{seq2seq_forward.8} parent=1 // pred_check_branch
      %1268 = sbr.rel (0) target = $region37
    $region36: #{seq2seq_forward.8} parent=1 // pred_region
      %1270 = vsyncadd [#allocation4], 0
      %s1272 = sshll.u32 [#allocation3], 4
      %s1273 = int_to_ptr.vmem [resolvable:$true] %s1272
      %s1274 = sshll.u32 %s8, 4
      %s1275 = int_to_ptr.hbm [resolvable:$true] %s1274
      %1277 = dma.vmem_to_hbm [thread:$0]  %s1273, 128, %s1275, [#allocation4]
    $region37: #{seq2seq_forward.8} parent=1 // pred_fallthru
      _
    // Predicated region
    $region38: #{seq2seq_forward.8} parent=1 // pred_check
      _
    $region39: #{seq2seq_forward.8} parent=1 // pred_check_branch
      %1279 = sbr.rel (0) target = $region41
    $region40: #{seq2seq_forward.8} parent=1 // pred_region
      _
    $region41: #{seq2seq_forward.8} parent=1 // pred_fallthru
      _
    // Predicated region
    $region42: #{seq2seq_forward.8} parent=1 // pred_check
      _
    $region43: #{seq2seq_forward.8} parent=1 // pred_check_branch
      %1281 = sbr.rel (0) target = $region45
    $region44: #{seq2seq_forward.8} parent=1 // pred_region
      %1283 = dma.done [#allocation4], 128
    $region45: #{seq2seq_forward.8} parent=1 // pred_fallthru
      _
    %1284 = vsyncpa [#allocation4], 1

// kernel: seq2seq_forward.6
$region0: #{seq2seq_forward.6}
  #allocation0 [shape = 'u32[]', space=smem, size = 0x4, offset = 0x4, fixed_abs, tag = 'smem constant byte address 0x4 - core index']
  #allocation1 [shape = 'u32[72,128]{1,0:T(1,128)}', space=vmem, size = 0x9000, scoped, tag = 'internal scratch']
  #allocation2 [shape = 'f32[10,8,384]{2,1,0:T(8,128)}', space=vmem, size = 0x1e000, scoped, tag = 'scratch operand']
  %s0 = inlined_call_operand.vmem [shape: f32[10,8,128], index: 0, kind: input, shape index: {}]
  %s1 = inlined_call_operand.vmem [shape: s32[8,1], index: 1, kind: input, shape index: {}]
  %s2 = inlined_call_operand.vmem [shape: f32[8,128], index: 2, kind: input, shape index: {}]
  %s3 = inlined_call_operand.vmem [shape: f32[128,384], index: 3, kind: input, shape index: {}]
  %s4 = inlined_call_operand.vmem [shape: f32[128,384], index: 4, kind: input, shape index: {}]
  %s5 = inlined_call_operand.vmem [shape: f32[1,384], index: 5, kind: input, shape index: {}]
  %s6 = inlined_call_operand.vmem [shape: f32[1,384], index: 6, kind: input, shape index: {}]
  %s7 = inlined_call_operand.vmem [shape: f32[10,8,128], index: 7, kind: output, shape index: {0}]
  %s8 = inlined_call_operand.vmem [shape: f32[8,128], index: 8, kind: output, shape index: {1}]
  %9 = xla_tuple %s7, %s8
  %s10 = sld [smem:[#allocation0]]
  $region46: #{seq2seq_forward.6} parent=0
    _
  %s12 = ssub.s32 1, %s10
  %s13 = scalar_select 0, %s12, %s10
  // Predicated region
  $region2: #{seq2seq_forward.6} parent=0 // pred_check
    _
  $region3: #{seq2seq_forward.6} parent=0 // pred_check_branch
    %15 = sbr.rel (0) target = $region5
  $region4: #{seq2seq_forward.6} parent=0 // pred_region
    _
  $region5: #{seq2seq_forward.6} parent=0 // pred_fallthru
    _
  // Predicated region
  $region6: #{seq2seq_forward.6} parent=0 // pred_check
    _
  $region7: #{seq2seq_forward.6} parent=0 // pred_check_branch
    %17 = sbr.rel (0) target = $region9
  $region8: #{seq2seq_forward.6} parent=0 // pred_region
    _
  $region9: #{seq2seq_forward.6} parent=0 // pred_fallthru
    _
  // Predicated region
  $region10: #{seq2seq_forward.6} parent=0 // pred_check
    _
  $region11: #{seq2seq_forward.6} parent=0 // pred_check_branch
    %19 = sbr.rel (0) target = $region13
  $region12: #{seq2seq_forward.6} parent=0 // pred_region
    _
  $region13: #{seq2seq_forward.6} parent=0 // pred_fallthru
    _
  // Predicated region
  $region14: #{seq2seq_forward.6} parent=0 // pred_check
    _
  $region15: #{seq2seq_forward.6} parent=0 // pred_check_branch
    %21 = sbr.rel (0) target = $region17
  $region16: #{seq2seq_forward.6} parent=0 // pred_region
    _
  $region17: #{seq2seq_forward.6} parent=0 // pred_fallthru
    _
  // Predicated region
  $region18: #{seq2seq_forward.6} parent=0 // pred_check
    _
  $region19: #{seq2seq_forward.6} parent=0 // pred_check_branch
    %23 = sbr.rel (0) target = $region21
  $region20: #{seq2seq_forward.6} parent=0 // pred_region
    _
  $region21: #{seq2seq_forward.6} parent=0 // pred_fallthru
    _
  // Predicated region
  $region22: #{seq2seq_forward.6} parent=0 // pred_check
    _
  $region23: #{seq2seq_forward.6} parent=0 // pred_check_branch
    %25 = sbr.rel (0) target = $region25
  $region24: #{seq2seq_forward.6} parent=0 // pred_region
    _
  $region25: #{seq2seq_forward.6} parent=0 // pred_fallthru
    _
  // Predicated region
  $region26: #{seq2seq_forward.6} parent=0 // pred_check
    _
  $region27: #{seq2seq_forward.6} parent=0 // pred_check_branch
    %27 = sbr.rel (0) target = $region29
  $region28: #{seq2seq_forward.6} parent=0 // pred_region
    _
  $region29: #{seq2seq_forward.6} parent=0 // pred_fallthru
    _
  %v28 = vld [vmem:[%s0] sm:$0xff]
  %v29 = vld [vmem:[%s0 + $0x8] sm:$0xff]
  %v30 = vld [vmem:[%s0 + $0x10] sm:$0xff]
  %v31 = vld [vmem:[%s0 + $0x18] sm:$0xff]
  %v32 = vld [vmem:[%s0 + $0x20] sm:$0xff]
  %v33 = vld [vmem:[%s0 + $0x28] sm:$0xff]
  %v34 = vld [vmem:[%s0 + $0x30] sm:$0xff]
  %v35 = vld [vmem:[%s0 + $0x38] sm:$0xff]
  %v36 = vld [vmem:[%s0 + $0x40] sm:$0xff]
  %v37 = vld [vmem:[%s0 + $0x48] sm:$0xff]
  %v38 = vld [vmem:[%s3] sm:$0xff]
  %v39 = vld [vmem:[%s3 + $0x8] sm:$0xff]
  %v40 = vld [vmem:[%s3 + $0x10] sm:$0xff]
  %v41 = vld [vmem:[%s3 + $0x18] sm:$0xff]
  %v42 = vld [vmem:[%s3 + $0x20] sm:$0xff]
  %v43 = vld [vmem:[%s3 + $0x28] sm:$0xff]
  %v44 = vld [vmem:[%s3 + $0x30] sm:$0xff]
  %v45 = vld [vmem:[%s3 + $0x38] sm:$0xff]
  %v46 = vld [vmem:[%s3 + $0x40] sm:$0xff]
  %v47 = vld [vmem:[%s3 + $0x48] sm:$0xff]
  %v48 = vld [vmem:[%s3 + $0x50] sm:$0xff]
  %v49 = vld [vmem:[%s3 + $0x58] sm:$0xff]
  %v50 = vld [vmem:[%s3 + $0x60] sm:$0xff]
  %v51 = vld [vmem:[%s3 + $0x68] sm:$0xff]
  %v52 = vld [vmem:[%s3 + $0x70] sm:$0xff]
  %v53 = vld [vmem:[%s3 + $0x78] sm:$0xff]
  %v54 = vld [vmem:[%s3 + $0x80] sm:$0xff]
  %v55 = vld [vmem:[%s3 + $0x88] sm:$0xff]
  %v56 = vld [vmem:[%s3 + $0x90] sm:$0xff]
  %v57 = vld [vmem:[%s3 + $0x98] sm:$0xff]
  %v58 = vld [vmem:[%s3 + $0xa0] sm:$0xff]
  %v59 = vld [vmem:[%s3 + $0xa8] sm:$0xff]
  %v60 = vld [vmem:[%s3 + $0xb0] sm:$0xff]
  %v61 = vld [vmem:[%s3 + $0xb8] sm:$0xff]
  %v62 = vld [vmem:[%s3 + $0xc0] sm:$0xff]
  %v63 = vld [vmem:[%s3 + $0xc8] sm:$0xff]
  %v64 = vld [vmem:[%s3 + $0xd0] sm:$0xff]
  %v65 = vld [vmem:[%s3 + $0xd8] sm:$0xff]
  %v66 = vld [vmem:[%s3 + $0xe0] sm:$0xff]
  %v67 = vld [vmem:[%s3 + $0xe8] sm:$0xff]
  %v68 = vld [vmem:[%s3 + $0xf0] sm:$0xff]
  %v69 = vld [vmem:[%s3 + $0xf8] sm:$0xff]
  %v70 = vld [vmem:[%s3 + $0x100] sm:$0xff]
  %v71 = vld [vmem:[%s3 + $0x108] sm:$0xff]
  %v72 = vld [vmem:[%s3 + $0x110] sm:$0xff]
  %v73 = vld [vmem:[%s3 + $0x118] sm:$0xff]
  %v74 = vld [vmem:[%s3 + $0x120] sm:$0xff]
  %v75 = vld [vmem:[%s3 + $0x128] sm:$0xff]
  %v76 = vld [vmem:[%s3 + $0x130] sm:$0xff]
  %v77 = vld [vmem:[%s3 + $0x138] sm:$0xff]
  %v78 = vld [vmem:[%s3 + $0x140] sm:$0xff]
  %v79 = vld [vmem:[%s3 + $0x148] sm:$0xff]
  %v80 = vld [vmem:[%s3 + $0x150] sm:$0xff]
  %v81 = vld [vmem:[%s3 + $0x158] sm:$0xff]
  %v82 = vld [vmem:[%s3 + $0x160] sm:$0xff]
  %v83 = vld [vmem:[%s3 + $0x168] sm:$0xff]
  %v84 = vld [vmem:[%s3 + $0x170] sm:$0xff]
  %v85 = vld [vmem:[%s3 + $0x178] sm:$0xff]
  %v86 = vld [vmem:[%s5] sm:$0x7]
  %v88 = vperm.slane %v86, 0
  %v89 = vperm.slane %v86, 1
  %v90 = vperm.slane %v86, 2
  %94 = vmatpush.msra.mxu0 %v83
  %95 = vmatpush.msra.mxu0 %v80
  %96 = vmatpush.msra.mxu0 %v77
  %97 = vmatpush.msra.mxu0 %v74
  %98 = vmatpush.msra.mxu0 %v71
  %99 = vmatpush.msra.mxu0 %v68
  %100 = vmatpush.msra.mxu0 %v65
  %101 = vmatpush.msra.mxu0 %v62
  %102 = vmatpush.msra.mxu0 %v59
  %103 = vmatpush.msra.mxu0 %v56
  %104 = vmatpush.msra.mxu0 %v53
  %105 = vmatpush.msra.mxu0 %v50
  %106 = vmatpush.msra.mxu0 %v47
  %107 = vmatpush.msra.mxu0 %v44
  %108 = vmatpush.msra.mxu0 %v41
  %109 = vmatpush.msra.mxu0 %v38
  %110 = vmatmul.f32.gmra.mxu0 %v28
  %v111 = vpop.f32.mrf.mxu0
  %v112 = vadd.f32 %v88, %v111
  %113 = vmatmul.f32.gmra.mxu0 %v29
  %v114 = vpop.f32.mrf.mxu0
  %v115 = vadd.f32 %v88, %v114
  %116 = vmatmul.f32.gmra.mxu0 %v30
  %v117 = vpop.f32.mrf.mxu0
  %v118 = vadd.f32 %v88, %v117
  %119 = vmatmul.f32.gmra.mxu0 %v31
  %v120 = vpop.f32.mrf.mxu0
  %v121 = vadd.f32 %v88, %v120
  %122 = vmatmul.f32.gmra.mxu0 %v32
  %v123 = vpop.f32.mrf.mxu0
  %v124 = vadd.f32 %v88, %v123
  %125 = vmatmul.f32.gmra.mxu0 %v33
  %v126 = vpop.f32.mrf.mxu0
  %v127 = vadd.f32 %v88, %v126
  %128 = vmatmul.f32.gmra.mxu0 %v34
  %v129 = vpop.f32.mrf.mxu0
  %v130 = vadd.f32 %v88, %v129
  %131 = vmatmul.f32.gmra.mxu0 %v35
  %v132 = vpop.f32.mrf.mxu0
  %v133 = vadd.f32 %v88, %v132
  %134 = vmatmul.f32.gmra.mxu0 %v36
  %v135 = vpop.f32.mrf.mxu0
  %v136 = vadd.f32 %v88, %v135
  %137 = vmatmul.f32.gmra.mxu0 %v37
  %v138 = vpop.f32.mrf.mxu0
  %v139 = vadd.f32 %v88, %v138
  %140 = vdwg.mxu0
  %141 = vmatpush.msra.mxu0 %v84
  %142 = vmatpush.msra.mxu0 %v81
  %143 = vmatpush.msra.mxu0 %v78
  %144 = vmatpush.msra.mxu0 %v75
  %145 = vmatpush.msra.mxu0 %v72
  %146 = vmatpush.msra.mxu0 %v69
  %147 = vmatpush.msra.mxu0 %v66
  %148 = vmatpush.msra.mxu0 %v63
  %149 = vmatpush.msra.mxu0 %v60
  %150 = vmatpush.msra.mxu0 %v57
  %151 = vmatpush.msra.mxu0 %v54
  %152 = vmatpush.msra.mxu0 %v51
  %153 = vmatpush.msra.mxu0 %v48
  %154 = vmatpush.msra.mxu0 %v45
  %155 = vmatpush.msra.mxu0 %v42
  %156 = vmatpush.msra.mxu0 %v39
  %157 = vmatmul.f32.gmra.mxu0 %v28
  %v158 = vpop.f32.mrf.mxu0
  %v159 = vadd.f32 %v89, %v158
  %160 = vmatmul.f32.gmra.mxu0 %v29
  %v161 = vpop.f32.mrf.mxu0
  %v162 = vadd.f32 %v89, %v161
  %163 = vmatmul.f32.gmra.mxu0 %v30
  %v164 = vpop.f32.mrf.mxu0
  %v165 = vadd.f32 %v89, %v164
  %166 = vmatmul.f32.gmra.mxu0 %v31
  %v167 = vpop.f32.mrf.mxu0
  %v168 = vadd.f32 %v89, %v167
  %169 = vmatmul.f32.gmra.mxu0 %v32
  %v170 = vpop.f32.mrf.mxu0
  %v171 = vadd.f32 %v89, %v170
  %172 = vmatmul.f32.gmra.mxu0 %v33
  %v173 = vpop.f32.mrf.mxu0
  %v174 = vadd.f32 %v89, %v173
  %175 = vmatmul.f32.gmra.mxu0 %v34
  %v176 = vpop.f32.mrf.mxu0
  %v177 = vadd.f32 %v89, %v176
  %178 = vmatmul.f32.gmra.mxu0 %v35
  %v179 = vpop.f32.mrf.mxu0
  %v180 = vadd.f32 %v89, %v179
  %181 = vmatmul.f32.gmra.mxu0 %v36
  %v182 = vpop.f32.mrf.mxu0
  %v183 = vadd.f32 %v89, %v182
  %184 = vmatmul.f32.gmra.mxu0 %v37
  %v185 = vpop.f32.mrf.mxu0
  %v186 = vadd.f32 %v89, %v185
  %187 = vdwg.mxu0
  %188 = vmatpush.msra.mxu0 %v85
  %189 = vmatpush.msra.mxu0 %v82
  %190 = vmatpush.msra.mxu0 %v79
  %191 = vmatpush.msra.mxu0 %v76
  %192 = vmatpush.msra.mxu0 %v73
  %193 = vmatpush.msra.mxu0 %v70
  %194 = vmatpush.msra.mxu0 %v67
  %195 = vmatpush.msra.mxu0 %v64
  %196 = vmatpush.msra.mxu0 %v61
  %197 = vmatpush.msra.mxu0 %v58
  %198 = vmatpush.msra.mxu0 %v55
  %199 = vmatpush.msra.mxu0 %v52
  %200 = vmatpush.msra.mxu0 %v49
  %201 = vmatpush.msra.mxu0 %v46
  %202 = vmatpush.msra.mxu0 %v43
  %203 = vmatpush.msra.mxu0 %v40
  %204 = vmatmul.f32.gmra.mxu0 %v28
  %v205 = vpop.f32.mrf.mxu0
  %v206 = vadd.f32 %v90, %v205
  %207 = vmatmul.f32.gmra.mxu0 %v29
  %v208 = vpop.f32.mrf.mxu0
  %v209 = vadd.f32 %v90, %v208
  %210 = vmatmul.f32.gmra.mxu0 %v30
  %v211 = vpop.f32.mrf.mxu0
  %v212 = vadd.f32 %v90, %v211
  %213 = vmatmul.f32.gmra.mxu0 %v31
  %v214 = vpop.f32.mrf.mxu0
  %v215 = vadd.f32 %v90, %v214
  %216 = vmatmul.f32.gmra.mxu0 %v32
  %v217 = vpop.f32.mrf.mxu0
  %v218 = vadd.f32 %v90, %v217
  %219 = vmatmul.f32.gmra.mxu0 %v33
  %v220 = vpop.f32.mrf.mxu0
  %v221 = vadd.f32 %v90, %v220
  %222 = vmatmul.f32.gmra.mxu0 %v34
  %v223 = vpop.f32.mrf.mxu0
  %v224 = vadd.f32 %v90, %v223
  %225 = vmatmul.f32.gmra.mxu0 %v35
  %v226 = vpop.f32.mrf.mxu0
  %v227 = vadd.f32 %v90, %v226
  %228 = vmatmul.f32.gmra.mxu0 %v36
  %v229 = vpop.f32.mrf.mxu0
  %v230 = vadd.f32 %v90, %v229
  %231 = vmatmul.f32.gmra.mxu0 %v37
  %v232 = vpop.f32.mrf.mxu0
  %v233 = vadd.f32 %v90, %v232
  %234 = vdwg.mxu0
  %235 = vst [vmem:[#allocation2] sm:$0xff] %v112
  %236 = vst [vmem:[#allocation2 + $0x8] sm:$0xff] %v159
  %237 = vst [vmem:[#allocation2 + $0x10] sm:$0xff] %v206
  %238 = vst [vmem:[#allocation2 + $0x18] sm:$0xff] %v115
  %239 = vst [vmem:[#allocation2 + $0x20] sm:$0xff] %v162
  %240 = vst [vmem:[#allocation2 + $0x28] sm:$0xff] %v209
  %241 = vst [vmem:[#allocation2 + $0x30] sm:$0xff] %v118
  %242 = vst [vmem:[#allocation2 + $0x38] sm:$0xff] %v165
  %243 = vst [vmem:[#allocation2 + $0x40] sm:$0xff] %v212
  %244 = vst [vmem:[#allocation2 + $0x48] sm:$0xff] %v121
  %245 = vst [vmem:[#allocation2 + $0x50] sm:$0xff] %v168
  %246 = vst [vmem:[#allocation2 + $0x58] sm:$0xff] %v215
  %247 = vst [vmem:[#allocation2 + $0x60] sm:$0xff] %v124
  %248 = vst [vmem:[#allocation2 + $0x68] sm:$0xff] %v171
  %249 = vst [vmem:[#allocation2 + $0x70] sm:$0xff] %v218
  %250 = vst [vmem:[#allocation2 + $0x78] sm:$0xff] %v127
  %251 = vst [vmem:[#allocation2 + $0x80] sm:$0xff] %v174
  %252 = vst [vmem:[#allocation2 + $0x88] sm:$0xff] %v221
  %253 = vst [vmem:[#allocation2 + $0x90] sm:$0xff] %v130
  %254 = vst [vmem:[#allocation2 + $0x98] sm:$0xff] %v177
  %255 = vst [vmem:[#allocation2 + $0xa0] sm:$0xff] %v224
  %256 = vst [vmem:[#allocation2 + $0xa8] sm:$0xff] %v133
  %257 = vst [vmem:[#allocation2 + $0xb0] sm:$0xff] %v180
  %258 = vst [vmem:[#allocation2 + $0xb8] sm:$0xff] %v227
  %259 = vst [vmem:[#allocation2 + $0xc0] sm:$0xff] %v136
  %260 = vst [vmem:[#allocation2 + $0xc8] sm:$0xff] %v183
  %261 = vst [vmem:[#allocation2 + $0xd0] sm:$0xff] %v230
  %262 = vst [vmem:[#allocation2 + $0xd8] sm:$0xff] %v139
  %263 = vst [vmem:[#allocation2 + $0xe0] sm:$0xff] %v186
  %264 = vst [vmem:[#allocation2 + $0xe8] sm:$0xff] %v233
  %v265 = vld [vmem:[%s4] sm:$0xff]
  %v266 = vld [vmem:[%s4 + $0x8] sm:$0xff]
  %v267 = vld [vmem:[%s4 + $0x10] sm:$0xff]
  %v268 = vld [vmem:[%s4 + $0x18] sm:$0xff]
  %v269 = vld [vmem:[%s4 + $0x20] sm:$0xff]
  %v270 = vld [vmem:[%s4 + $0x28] sm:$0xff]
  %v271 = vld [vmem:[%s4 + $0x30] sm:$0xff]
  %v272 = vld [vmem:[%s4 + $0x38] sm:$0xff]
  %v273 = vld [vmem:[%s4 + $0x40] sm:$0xff]
  %v274 = vld [vmem:[%s4 + $0x48] sm:$0xff]
  %v275 = vld [vmem:[%s4 + $0x50] sm:$0xff]
  %v276 = vld [vmem:[%s4 + $0x58] sm:$0xff]
  %v277 = vld [vmem:[%s4 + $0x60] sm:$0xff]
  %v278 = vld [vmem:[%s4 + $0x68] sm:$0xff]
  %v279 = vld [vmem:[%s4 + $0x70] sm:$0xff]
  %v280 = vld [vmem:[%s4 + $0x78] sm:$0xff]
  %v281 = vld [vmem:[%s4 + $0x80] sm:$0xff]
  %v282 = vld [vmem:[%s4 + $0x88] sm:$0xff]
  %v283 = vld [vmem:[%s4 + $0x90] sm:$0xff]
  %v284 = vld [vmem:[%s4 + $0x98] sm:$0xff]
  %v285 = vld [vmem:[%s4 + $0xa0] sm:$0xff]
  %v286 = vld [vmem:[%s4 + $0xa8] sm:$0xff]
  %v287 = vld [vmem:[%s4 + $0xb0] sm:$0xff]
  %v288 = vld [vmem:[%s4 + $0xb8] sm:$0xff]
  %v289 = vld [vmem:[%s4 + $0xc0] sm:$0xff]
  %v290 = vld [vmem:[%s4 + $0xc8] sm:$0xff]
  %v291 = vld [vmem:[%s4 + $0xd0] sm:$0xff]
  %v292 = vld [vmem:[%s4 + $0xd8] sm:$0xff]
  %v293 = vld [vmem:[%s4 + $0xe0] sm:$0xff]
  %v294 = vld [vmem:[%s4 + $0xe8] sm:$0xff]
  %v295 = vld [vmem:[%s4 + $0xf0] sm:$0xff]
  %v296 = vld [vmem:[%s4 + $0xf8] sm:$0xff]
  %v297 = vld [vmem:[%s4 + $0x100] sm:$0xff]
  %v298 = vld [vmem:[%s4 + $0x108] sm:$0xff]
  %v299 = vld [vmem:[%s4 + $0x110] sm:$0xff]
  %v300 = vld [vmem:[%s4 + $0x118] sm:$0xff]
  %v301 = vld [vmem:[%s4 + $0x120] sm:$0xff]
  %v302 = vld [vmem:[%s4 + $0x128] sm:$0xff]
  %v303 = vld [vmem:[%s4 + $0x130] sm:$0xff]
  %v304 = vld [vmem:[%s4 + $0x138] sm:$0xff]
  %v305 = vld [vmem:[%s4 + $0x140] sm:$0xff]
  %v306 = vld [vmem:[%s4 + $0x148] sm:$0xff]
  %v307 = vld [vmem:[%s4 + $0x150] sm:$0xff]
  %v308 = vld [vmem:[%s4 + $0x158] sm:$0xff]
  %v309 = vld [vmem:[%s4 + $0x160] sm:$0xff]
  %v310 = vld [vmem:[%s4 + $0x168] sm:$0xff]
  %v311 = vld [vmem:[%s4 + $0x170] sm:$0xff]
  %v312 = vld [vmem:[%s4 + $0x178] sm:$0xff]
  %v313 = vld [vmem:[%s6] sm:$0x7]
  %v315 = vperm.slane %v313, 0
  %v316 = vperm.slane %v313, 1
  %v317 = vperm.slane %v313, 2
  %v321 = vld [vmem:[%s1] sm:$0xff]
  %v322 = vld [vmem:[%s2] sm:$0xff]
  %v323 = vld [vmem:[#allocation2] sm:$0xff]
  %v324 = vld [vmem:[#allocation2 + $0x8] sm:$0xff]
  %v325 = vld [vmem:[#allocation2 + $0x10] sm:$0xff]
  %326 = vmatpush.msra.mxu0 %v310
  %327 = vmatpush.msra.mxu0 %v307
  %328 = vmatpush.msra.mxu0 %v304
  %329 = vmatpush.msra.mxu0 %v301
  %330 = vmatpush.msra.mxu0 %v298
  %331 = vmatpush.msra.mxu0 %v295
  %332 = vmatpush.msra.mxu0 %v292
  %333 = vmatpush.msra.mxu0 %v289
  %334 = vmatpush.msra.mxu0 %v286
  %335 = vmatpush.msra.mxu0 %v283
  %336 = vmatpush.msra.mxu0 %v280
  %337 = vmatpush.msra.mxu0 %v277
  %338 = vmatpush.msra.mxu0 %v274
  %339 = vmatpush.msra.mxu0 %v271
  %340 = vmatpush.msra.mxu0 %v268
  %341 = vmatpush.msra.mxu0 %v265
  %342 = vmatmul.f32.gmra.mxu0 %v322
  %v343 = vpop.f32.mrf.mxu0
  %v344 = vadd.f32 %v315, %v343
  %345 = vdwg.mxu0
  %346 = vmatpush.msra.mxu0 %v311
  %347 = vmatpush.msra.mxu0 %v308
  %348 = vmatpush.msra.mxu0 %v305
  %349 = vmatpush.msra.mxu0 %v302
  %350 = vmatpush.msra.mxu0 %v299
  %351 = vmatpush.msra.mxu0 %v296
  %352 = vmatpush.msra.mxu0 %v293
  %353 = vmatpush.msra.mxu0 %v290
  %354 = vmatpush.msra.mxu0 %v287
  %355 = vmatpush.msra.mxu0 %v284
  %356 = vmatpush.msra.mxu0 %v281
  %357 = vmatpush.msra.mxu0 %v278
  %358 = vmatpush.msra.mxu0 %v275
  %359 = vmatpush.msra.mxu0 %v272
  %360 = vmatpush.msra.mxu0 %v269
  %361 = vmatpush.msra.mxu0 %v266
  %362 = vmatmul.f32.gmra.mxu0 %v322
  %v363 = vpop.f32.mrf.mxu0
  %v364 = vadd.f32 %v316, %v363
  %365 = vdwg.mxu0
  %366 = vmatpush.msra.mxu0 %v312
  %367 = vmatpush.msra.mxu0 %v309
  %368 = vmatpush.msra.mxu0 %v306
  %369 = vmatpush.msra.mxu0 %v303
  %370 = vmatpush.msra.mxu0 %v300
  %371 = vmatpush.msra.mxu0 %v297
  %372 = vmatpush.msra.mxu0 %v294
  %373 = vmatpush.msra.mxu0 %v291
  %374 = vmatpush.msra.mxu0 %v288
  %375 = vmatpush.msra.mxu0 %v285
  %376 = vmatpush.msra.mxu0 %v282
  %377 = vmatpush.msra.mxu0 %v279
  %378 = vmatpush.msra.mxu0 %v276
  %379 = vmatpush.msra.mxu0 %v273
  %380 = vmatpush.msra.mxu0 %v270
  %381 = vmatpush.msra.mxu0 %v267
  %382 = vmatmul.f32.gmra.mxu0 %v322
  %v383 = vpop.f32.mrf.mxu0
  %v384 = vadd.f32 %v317, %v383
  %385 = vdwg.mxu0
  %v386 = vadd.f32 %v323, %v344
  %v387 = vxor.u32 %v386, 2147483648
  %v388 = vmul.f32 %v387, 1.442695
  %v389 = vpow.pop %v388
  %v390 = vadd.f32 %v389, 1.0
  %v391 = vrcp.pop %v390
  %v392 = vmul.f32 %v390, %v391
  %v393 = vsub.f32 1.0, %v392
  %v394 = vmul.f32 %v391, %v393
  %v395 = vadd.f32 %v391, %v394
  %vm396 = vweird.f32 %v390
  %vm397 = vweird.f32 %v391
  %vm398 = vmor %vm396, %vm397
  %v399 = vsel %vm398, %v391, %v395
  %v400 = vand.u32 2147483647, %v390
  %vm401 = vcmp.eq.f32.partialorder %v400, 8.507059e+37
  %v402 = vand.u32 %v390, 2147483648
  %v403 = vor.u32 1.1754944e-38, %v402
  %v404 = vsel %vm401, %v403, %v399
  %v405 = vmul.f32 1.0, %v404
  %v406 = vadd.f32 %v324, %v364
  %v407 = vxor.u32 %v406, 2147483648
  %v408 = vmul.f32 %v407, 1.442695
  %v409 = vpow.pop %v408
  %v410 = vadd.f32 %v409, 1.0
  %v411 = vrcp.pop %v410
  %v412 = vmul.f32 %v410, %v411
  %v413 = vsub.f32 1.0, %v412
  %v414 = vmul.f32 %v411, %v413
  %v415 = vadd.f32 %v411, %v414
  %vm416 = vweird.f32 %v410
  %vm417 = vweird.f32 %v411
  %vm418 = vmor %vm416, %vm417
  %v419 = vsel %vm418, %v411, %v415
  %v420 = vand.u32 2147483647, %v410
  %vm421 = vcmp.eq.f32.partialorder %v420, 8.507059e+37
  %v422 = vand.u32 %v410, 2147483648
  %v423 = vor.u32 1.1754944e-38, %v422
  %v424 = vsel %vm421, %v423, %v419
  %v425 = vmul.f32 1.0, %v424
  %v426 = vmul.f32 %v405, %v384
  %v427 = vadd.f32 %v325, %v426
  %v428 = vtanh.pop %v427
  %v429 = vsub.f32 1.0, %v425
  %v430 = vmul.f32 %v429, %v428
  %v431 = vmul.f32 %v425, %v322
  %v432 = vadd.f32 %v430, %v431
  %vm433 = vcmp.gt.s32.totalorder %v321, 0
  %v434 = vsel %vm433, 1, 0
  %435 = vset.pattern.permute.xlu0 0
  %436 = vperm.xlu0 %435, %v434
  %v437 = vpop.permute.xlu0 %436
  %vm438 = vcmp.eq.s32.totalorder %v437, 1
  %v439 = vsel %vm438, %v432, 0.0
  %440 = vst [vmem:[%s7] sm:$0xff] %v439
  %v441 = vsel %vm438, %v432, %v322
  %s442 = scalar_lea.vmem [#allocation2], 24
  %v443 = vld [vmem:[%s442] sm:$0xff]
  %v444 = vld [vmem:[%s442 + $0x8] sm:$0xff]
  %v445 = vld [vmem:[%s442 + $0x10] sm:$0xff]
  %446 = vmatpush.msra.mxu0 %v310
  %447 = vmatpush.msra.mxu0 %v307
  %448 = vmatpush.msra.mxu0 %v304
  %449 = vmatpush.msra.mxu0 %v301
  %450 = vmatpush.msra.mxu0 %v298
  %451 = vmatpush.msra.mxu0 %v295
  %452 = vmatpush.msra.mxu0 %v292
  %453 = vmatpush.msra.mxu0 %v289
  %454 = vmatpush.msra.mxu0 %v286
  %455 = vmatpush.msra.mxu0 %v283
  %456 = vmatpush.msra.mxu0 %v280
  %457 = vmatpush.msra.mxu0 %v277
  %458 = vmatpush.msra.mxu0 %v274
  %459 = vmatpush.msra.mxu0 %v271
  %460 = vmatpush.msra.mxu0 %v268
  %461 = vmatpush.msra.mxu0 %v265
  %462 = vmatmul.f32.gmra.mxu0 %v441
  %v463 = vpop.f32.mrf.mxu0
  %v464 = vadd.f32 %v315, %v463
  %465 = vdwg.mxu0
  %466 = vmatpush.msra.mxu0 %v311
  %467 = vmatpush.msra.mxu0 %v308
  %468 = vmatpush.msra.mxu0 %v305
  %469 = vmatpush.msra.mxu0 %v302
  %470 = vmatpush.msra.mxu0 %v299
  %471 = vmatpush.msra.mxu0 %v296
  %472 = vmatpush.msra.mxu0 %v293
  %473 = vmatpush.msra.mxu0 %v290
  %474 = vmatpush.msra.mxu0 %v287
  %475 = vmatpush.msra.mxu0 %v284
  %476 = vmatpush.msra.mxu0 %v281
  %477 = vmatpush.msra.mxu0 %v278
  %478 = vmatpush.msra.mxu0 %v275
  %479 = vmatpush.msra.mxu0 %v272
  %480 = vmatpush.msra.mxu0 %v269
  %481 = vmatpush.msra.mxu0 %v266
  %482 = vmatmul.f32.gmra.mxu0 %v441
  %v483 = vpop.f32.mrf.mxu0
  %v484 = vadd.f32 %v316, %v483
  %485 = vdwg.mxu0
  %486 = vmatpush.msra.mxu0 %v312
  %487 = vmatpush.msra.mxu0 %v309
  %488 = vmatpush.msra.mxu0 %v306
  %489 = vmatpush.msra.mxu0 %v303
  %490 = vmatpush.msra.mxu0 %v300
  %491 = vmatpush.msra.mxu0 %v297
  %492 = vmatpush.msra.mxu0 %v294
  %493 = vmatpush.msra.mxu0 %v291
  %494 = vmatpush.msra.mxu0 %v288
  %495 = vmatpush.msra.mxu0 %v285
  %496 = vmatpush.msra.mxu0 %v282
  %497 = vmatpush.msra.mxu0 %v279
  %498 = vmatpush.msra.mxu0 %v276
  %499 = vmatpush.msra.mxu0 %v273
  %500 = vmatpush.msra.mxu0 %v270
  %501 = vmatpush.msra.mxu0 %v267
  %502 = vmatmul.f32.gmra.mxu0 %v441
  %v503 = vpop.f32.mrf.mxu0
  %v504 = vadd.f32 %v317, %v503
  %505 = vdwg.mxu0
  %v506 = vadd.f32 %v443, %v464
  %v507 = vxor.u32 %v506, 2147483648
  %v508 = vmul.f32 %v507, 1.442695
  %v509 = vpow.pop %v508
  %v510 = vadd.f32 %v509, 1.0
  %v511 = vrcp.pop %v510
  %v512 = vmul.f32 %v510, %v511
  %v513 = vsub.f32 1.0, %v512
  %v514 = vmul.f32 %v511, %v513
  %v515 = vadd.f32 %v511, %v514
  %vm516 = vweird.f32 %v510
  %vm517 = vweird.f32 %v511
  %vm518 = vmor %vm516, %vm517
  %v519 = vsel %vm518, %v511, %v515
  %v520 = vand.u32 2147483647, %v510
  %vm521 = vcmp.eq.f32.partialorder %v520, 8.507059e+37
  %v522 = vand.u32 %v510, 2147483648
  %v523 = vor.u32 1.1754944e-38, %v522
  %v524 = vsel %vm521, %v523, %v519
  %v525 = vmul.f32 1.0, %v524
  %v526 = vadd.f32 %v444, %v484
  %v527 = vxor.u32 %v526, 2147483648
  %v528 = vmul.f32 %v527, 1.442695
  %v529 = vpow.pop %v528
  %v530 = vadd.f32 %v529, 1.0
  %v531 = vrcp.pop %v530
  %v532 = vmul.f32 %v530, %v531
  %v533 = vsub.f32 1.0, %v532
  %v534 = vmul.f32 %v531, %v533
  %v535 = vadd.f32 %v531, %v534
  %vm536 = vweird.f32 %v530
  %vm537 = vweird.f32 %v531
  %vm538 = vmor %vm536, %vm537
  %v539 = vsel %vm538, %v531, %v535
  %v540 = vand.u32 2147483647, %v530
  %vm541 = vcmp.eq.f32.partialorder %v540, 8.507059e+37
  %v542 = vand.u32 %v530, 2147483648
  %v543 = vor.u32 1.1754944e-38, %v542
  %v544 = vsel %vm541, %v543, %v539
  %v545 = vmul.f32 1.0, %v544
  %v546 = vmul.f32 %v525, %v504
  %v547 = vadd.f32 %v445, %v546
  %v548 = vtanh.pop %v547
  %v549 = vsub.f32 1.0, %v545
  %v550 = vmul.f32 %v549, %v548
  %v551 = vmul.f32 %v545, %v441
  %v552 = vadd.f32 %v550, %v551
  %vm553 = vcmp.gt.s32.totalorder %v321, 1
  %v554 = vsel %vm553, 1, 0
  %555 = vset.pattern.permute.xlu0 0
  %556 = vperm.xlu0 %555, %v554
  %v557 = vpop.permute.xlu0 %556
  %vm558 = vcmp.eq.s32.totalorder %v557, 1
  %v559 = vsel %vm558, %v552, 0.0
  %s560 = scalar_lea.vmem %s7, 8
  %561 = vst [vmem:[%s560] sm:$0xff] %v559
  %v562 = vsel %vm558, %v552, %v441
  %s563 = scalar_lea.vmem [#allocation2], 48
  %v564 = vld [vmem:[%s563] sm:$0xff]
  %v565 = vld [vmem:[%s563 + $0x8] sm:$0xff]
  %v566 = vld [vmem:[%s563 + $0x10] sm:$0xff]
  %567 = vmatpush.msra.mxu0 %v310
  %568 = vmatpush.msra.mxu0 %v307
  %569 = vmatpush.msra.mxu0 %v304
  %570 = vmatpush.msra.mxu0 %v301
  %571 = vmatpush.msra.mxu0 %v298
  %572 = vmatpush.msra.mxu0 %v295
  %573 = vmatpush.msra.mxu0 %v292
  %574 = vmatpush.msra.mxu0 %v289
  %575 = vmatpush.msra.mxu0 %v286
  %576 = vmatpush.msra.mxu0 %v283
  %577 = vmatpush.msra.mxu0 %v280
  %578 = vmatpush.msra.mxu0 %v277
  %579 = vmatpush.msra.mxu0 %v274
  %580 = vmatpush.msra.mxu0 %v271
  %581 = vmatpush.msra.mxu0 %v268
  %582 = vmatpush.msra.mxu0 %v265
  %583 = vmatmul.f32.gmra.mxu0 %v562
  %v584 = vpop.f32.mrf.mxu0
  %v585 = vadd.f32 %v315, %v584
  %586 = vdwg.mxu0
  %587 = vmatpush.msra.mxu0 %v311
  %588 = vmatpush.msra.mxu0 %v308
  %589 = vmatpush.msra.mxu0 %v305
  %590 = vmatpush.msra.mxu0 %v302
  %591 = vmatpush.msra.mxu0 %v299
  %592 = vmatpush.msra.mxu0 %v296
  %593 = vmatpush.msra.mxu0 %v293
  %594 = vmatpush.msra.mxu0 %v290
  %595 = vmatpush.msra.mxu0 %v287
  %596 = vmatpush.msra.mxu0 %v284
  %597 = vmatpush.msra.mxu0 %v281
  %598 = vmatpush.msra.mxu0 %v278
  %599 = vmatpush.msra.mxu0 %v275
  %600 = vmatpush.msra.mxu0 %v272
  %601 = vmatpush.msra.mxu0 %v269
  %602 = vmatpush.msra.mxu0 %v266
  %603 = vmatmul.f32.gmra.mxu0 %v562
  %v604 = vpop.f32.mrf.mxu0
  %v605 = vadd.f32 %v316, %v604
  %606 = vdwg.mxu0
  %607 = vmatpush.msra.mxu0 %v312
  %608 = vmatpush.msra.mxu0 %v309
  %609 = vmatpush.msra.mxu0 %v306
  %610 = vmatpush.msra.mxu0 %v303
  %611 = vmatpush.msra.mxu0 %v300
  %612 = vmatpush.msra.mxu0 %v297
  %613 = vmatpush.msra.mxu0 %v294
  %614 = vmatpush.msra.mxu0 %v291
  %615 = vmatpush.msra.mxu0 %v288
  %616 = vmatpush.msra.mxu0 %v285
  %617 = vmatpush.msra.mxu0 %v282
  %618 = vmatpush.msra.mxu0 %v279
  %619 = vmatpush.msra.mxu0 %v276
  %620 = vmatpush.msra.mxu0 %v273
  %621 = vmatpush.msra.mxu0 %v270
  %622 = vmatpush.msra.mxu0 %v267
  %623 = vmatmul.f32.gmra.mxu0 %v562
  %v624 = vpop.f32.mrf.mxu0
  %v625 = vadd.f32 %v317, %v624
  %626 = vdwg.mxu0
  %v627 = vadd.f32 %v564, %v585
  %v628 = vxor.u32 %v627, 2147483648
  %v629 = vmul.f32 %v628, 1.442695
  %v630 = vpow.pop %v629
  %v631 = vadd.f32 %v630, 1.0
  %v632 = vrcp.pop %v631
  %v633 = vmul.f32 %v631, %v632
  %v634 = vsub.f32 1.0, %v633
  %v635 = vmul.f32 %v632, %v634
  %v636 = vadd.f32 %v632, %v635
  %vm637 = vweird.f32 %v631
  %vm638 = vweird.f32 %v632
  %vm639 = vmor %vm637, %vm638
  %v640 = vsel %vm639, %v632, %v636
  %v641 = vand.u32 2147483647, %v631
  %vm642 = vcmp.eq.f32.partialorder %v641, 8.507059e+37
  %v643 = vand.u32 %v631, 2147483648
  %v644 = vor.u32 1.1754944e-38, %v643
  %v645 = vsel %vm642, %v644, %v640
  %v646 = vmul.f32 1.0, %v645
  %v647 = vadd.f32 %v565, %v605
  %v648 = vxor.u32 %v647, 2147483648
  %v649 = vmul.f32 %v648, 1.442695
  %v650 = vpow.pop %v649
  %v651 = vadd.f32 %v650, 1.0
  %v652 = vrcp.pop %v651
  %v653 = vmul.f32 %v651, %v652
  %v654 = vsub.f32 1.0, %v653
  %v655 = vmul.f32 %v652, %v654
  %v656 = vadd.f32 %v652, %v655
  %vm657 = vweird.f32 %v651
  %vm658 = vweird.f32 %v652
  %vm659 = vmor %vm657, %vm658
  %v660 = vsel %vm659, %v652, %v656
  %v661 = vand.u32 2147483647, %v651
  %vm662 = vcmp.eq.f32.partialorder %v661, 8.507059e+37
  %v663 = vand.u32 %v651, 2147483648
  %v664 = vor.u32 1.1754944e-38, %v663
  %v665 = vsel %vm662, %v664, %v660
  %v666 = vmul.f32 1.0, %v665
  %v667 = vmul.f32 %v646, %v625
  %v668 = vadd.f32 %v566, %v667
  %v669 = vtanh.pop %v668
  %v670 = vsub.f32 1.0, %v666
  %v671 = vmul.f32 %v670, %v669
  %v672 = vmul.f32 %v666, %v562
  %v673 = vadd.f32 %v671, %v672
  %vm674 = vcmp.gt.s32.totalorder %v321, 2
  %v675 = vsel %vm674, 1, 0
  %676 = vset.pattern.permute.xlu0 0
  %677 = vperm.xlu0 %676, %v675
  %v678 = vpop.permute.xlu0 %677
  %vm679 = vcmp.eq.s32.totalorder %v678, 1
  %v680 = vsel %vm679, %v673, 0.0
  %s681 = scalar_lea.vmem %s7, 16
  %682 = vst [vmem:[%s681] sm:$0xff] %v680
  %v683 = vsel %vm679, %v673, %v562
  %s684 = scalar_lea.vmem [#allocation2], 72
  %v685 = vld [vmem:[%s684] sm:$0xff]
  %v686 = vld [vmem:[%s684 + $0x8] sm:$0xff]
  %v687 = vld [vmem:[%s684 + $0x10] sm:$0xff]
  %688 = vmatpush.msra.mxu0 %v310
  %689 = vmatpush.msra.mxu0 %v307
  %690 = vmatpush.msra.mxu0 %v304
  %691 = vmatpush.msra.mxu0 %v301
  %692 = vmatpush.msra.mxu0 %v298
  %693 = vmatpush.msra.mxu0 %v295
  %694 = vmatpush.msra.mxu0 %v292
  %695 = vmatpush.msra.mxu0 %v289
  %696 = vmatpush.msra.mxu0 %v286
  %697 = vmatpush.msra.mxu0 %v283
  %698 = vmatpush.msra.mxu0 %v280
  %699 = vmatpush.msra.mxu0 %v277
  %700 = vmatpush.msra.mxu0 %v274
  %701 = vmatpush.msra.mxu0 %v271
  %702 = vmatpush.msra.mxu0 %v268
  %703 = vmatpush.msra.mxu0 %v265
  %704 = vmatmul.f32.gmra.mxu0 %v683
  %v705 = vpop.f32.mrf.mxu0
  %v706 = vadd.f32 %v315, %v705
  %707 = vdwg.mxu0
  %708 = vmatpush.msra.mxu0 %v311
  %709 = vmatpush.msra.mxu0 %v308
  %710 = vmatpush.msra.mxu0 %v305
  %711 = vmatpush.msra.mxu0 %v302
  %712 = vmatpush.msra.mxu0 %v299
  %713 = vmatpush.msra.mxu0 %v296
  %714 = vmatpush.msra.mxu0 %v293
  %715 = vmatpush.msra.mxu0 %v290
  %716 = vmatpush.msra.mxu0 %v287
  %717 = vmatpush.msra.mxu0 %v284
  %718 = vmatpush.msra.mxu0 %v281
  %719 = vmatpush.msra.mxu0 %v278
  %720 = vmatpush.msra.mxu0 %v275
  %721 = vmatpush.msra.mxu0 %v272
  %722 = vmatpush.msra.mxu0 %v269
  %723 = vmatpush.msra.mxu0 %v266
  %724 = vmatmul.f32.gmra.mxu0 %v683
  %v725 = vpop.f32.mrf.mxu0
  %v726 = vadd.f32 %v316, %v725
  %727 = vdwg.mxu0
  %728 = vmatpush.msra.mxu0 %v312
  %729 = vmatpush.msra.mxu0 %v309
  %730 = vmatpush.msra.mxu0 %v306
  %731 = vmatpush.msra.mxu0 %v303
  %732 = vmatpush.msra.mxu0 %v300
  %733 = vmatpush.msra.mxu0 %v297
  %734 = vmatpush.msra.mxu0 %v294
  %735 = vmatpush.msra.mxu0 %v291
  %736 = vmatpush.msra.mxu0 %v288
  %737 = vmatpush.msra.mxu0 %v285
  %738 = vmatpush.msra.mxu0 %v282
  %739 = vmatpush.msra.mxu0 %v279
  %740 = vmatpush.msra.mxu0 %v276
  %741 = vmatpush.msra.mxu0 %v273
  %742 = vmatpush.msra.mxu0 %v270
  %743 = vmatpush.msra.mxu0 %v267
  %744 = vmatmul.f32.gmra.mxu0 %v683
  %v745 = vpop.f32.mrf.mxu0
  %v746 = vadd.f32 %v317, %v745
  %747 = vdwg.mxu0
  %v748 = vadd.f32 %v685, %v706
  %v749 = vxor.u32 %v748, 2147483648
  %v750 = vmul.f32 %v749, 1.442695
  %v751 = vpow.pop %v750
  %v752 = vadd.f32 %v751, 1.0
  %v753 = vrcp.pop %v752
  %v754 = vmul.f32 %v752, %v753
  %v755 = vsub.f32 1.0, %v754
  %v756 = vmul.f32 %v753, %v755
  %v757 = vadd.f32 %v753, %v756
  %vm758 = vweird.f32 %v752
  %vm759 = vweird.f32 %v753
  %vm760 = vmor %vm758, %vm759
  %v761 = vsel %vm760, %v753, %v757
  %v762 = vand.u32 2147483647, %v752
  %vm763 = vcmp.eq.f32.partialorder %v762, 8.507059e+37
  %v764 = vand.u32 %v752, 2147483648
  %v765 = vor.u32 1.1754944e-38, %v764
  %v766 = vsel %vm763, %v765, %v761
  %v767 = vmul.f32 1.0, %v766
  %v768 = vadd.f32 %v686, %v726
  %v769 = vxor.u32 %v768, 2147483648
  %v770 = vmul.f32 %v769, 1.442695
  %v771 = vpow.pop %v770
  %v772 = vadd.f32 %v771, 1.0
  %v773 = vrcp.pop %v772
  %v774 = vmul.f32 %v772, %v773
  %v775 = vsub.f32 1.0, %v774
  %v776 = vmul.f32 %v773, %v775
  %v777 = vadd.f32 %v773, %v776
  %vm778 = vweird.f32 %v772
  %vm779 = vweird.f32 %v773
  %vm780 = vmor %vm778, %vm779
  %v781 = vsel %vm780, %v773, %v777
  %v782 = vand.u32 2147483647, %v772
  %vm783 = vcmp.eq.f32.partialorder %v782, 8.507059e+37
  %v784 = vand.u32 %v772, 2147483648
  %v785 = vor.u32 1.1754944e-38, %v784
  %v786 = vsel %vm783, %v785, %v781
  %v787 = vmul.f32 1.0, %v786
  %v788 = vmul.f32 %v767, %v746
  %v789 = vadd.f32 %v687, %v788
  %v790 = vtanh.pop %v789
  %v791 = vsub.f32 1.0, %v787
  %v792 = vmul.f32 %v791, %v790
  %v793 = vmul.f32 %v787, %v683
  %v794 = vadd.f32 %v792, %v793
  %vm795 = vcmp.gt.s32.totalorder %v321, 3
  %v796 = vsel %vm795, 1, 0
  %797 = vset.pattern.permute.xlu0 0
  %798 = vperm.xlu0 %797, %v796
  %v799 = vpop.permute.xlu0 %798
  %vm800 = vcmp.eq.s32.totalorder %v799, 1
  %v801 = vsel %vm800, %v794, 0.0
  %s802 = scalar_lea.vmem %s7, 24
  %803 = vst [vmem:[%s802] sm:$0xff] %v801
  %v804 = vsel %vm800, %v794, %v683
  %s805 = scalar_lea.vmem [#allocation2], 96
  %v806 = vld [vmem:[%s805] sm:$0xff]
  %v807 = vld [vmem:[%s805 + $0x8] sm:$0xff]
  %v808 = vld [vmem:[%s805 + $0x10] sm:$0xff]
  %809 = vmatpush.msra.mxu0 %v310
  %810 = vmatpush.msra.mxu0 %v307
  %811 = vmatpush.msra.mxu0 %v304
  %812 = vmatpush.msra.mxu0 %v301
  %813 = vmatpush.msra.mxu0 %v298
  %814 = vmatpush.msra.mxu0 %v295
  %815 = vmatpush.msra.mxu0 %v292
  %816 = vmatpush.msra.mxu0 %v289
  %817 = vmatpush.msra.mxu0 %v286
  %818 = vmatpush.msra.mxu0 %v283
  %819 = vmatpush.msra.mxu0 %v280
  %820 = vmatpush.msra.mxu0 %v277
  %821 = vmatpush.msra.mxu0 %v274
  %822 = vmatpush.msra.mxu0 %v271
  %823 = vmatpush.msra.mxu0 %v268
  %824 = vmatpush.msra.mxu0 %v265
  %825 = vmatmul.f32.gmra.mxu0 %v804
  %v826 = vpop.f32.mrf.mxu0
  %v827 = vadd.f32 %v315, %v826
  %828 = vdwg.mxu0
  %829 = vmatpush.msra.mxu0 %v311
  %830 = vmatpush.msra.mxu0 %v308
  %831 = vmatpush.msra.mxu0 %v305
  %832 = vmatpush.msra.mxu0 %v302
  %833 = vmatpush.msra.mxu0 %v299
  %834 = vmatpush.msra.mxu0 %v296
  %835 = vmatpush.msra.mxu0 %v293
  %836 = vmatpush.msra.mxu0 %v290
  %837 = vmatpush.msra.mxu0 %v287
  %838 = vmatpush.msra.mxu0 %v284
  %839 = vmatpush.msra.mxu0 %v281
  %840 = vmatpush.msra.mxu0 %v278
  %841 = vmatpush.msra.mxu0 %v275
  %842 = vmatpush.msra.mxu0 %v272
  %843 = vmatpush.msra.mxu0 %v269
  %844 = vmatpush.msra.mxu0 %v266
  %845 = vmatmul.f32.gmra.mxu0 %v804
  %v846 = vpop.f32.mrf.mxu0
  %v847 = vadd.f32 %v316, %v846
  %848 = vdwg.mxu0
  %849 = vmatpush.msra.mxu0 %v312
  %850 = vmatpush.msra.mxu0 %v309
  %851 = vmatpush.msra.mxu0 %v306
  %852 = vmatpush.msra.mxu0 %v303
  %853 = vmatpush.msra.mxu0 %v300
  %854 = vmatpush.msra.mxu0 %v297
  %855 = vmatpush.msra.mxu0 %v294
  %856 = vmatpush.msra.mxu0 %v291
  %857 = vmatpush.msra.mxu0 %v288
  %858 = vmatpush.msra.mxu0 %v285
  %859 = vmatpush.msra.mxu0 %v282
  %860 = vmatpush.msra.mxu0 %v279
  %861 = vmatpush.msra.mxu0 %v276
  %862 = vmatpush.msra.mxu0 %v273
  %863 = vmatpush.msra.mxu0 %v270
  %864 = vmatpush.msra.mxu0 %v267
  %865 = vmatmul.f32.gmra.mxu0 %v804
  %v866 = vpop.f32.mrf.mxu0
  %v867 = vadd.f32 %v317, %v866
  %868 = vdwg.mxu0
  %v869 = vadd.f32 %v806, %v827
  %v870 = vxor.u32 %v869, 2147483648
  %v871 = vmul.f32 %v870, 1.442695
  %v872 = vpow.pop %v871
  %v873 = vadd.f32 %v872, 1.0
  %v874 = vrcp.pop %v873
  %v875 = vmul.f32 %v873, %v874
  %v876 = vsub.f32 1.0, %v875
  %v877 = vmul.f32 %v874, %v876
  %v878 = vadd.f32 %v874, %v877
  %vm879 = vweird.f32 %v873
  %vm880 = vweird.f32 %v874
  %vm881 = vmor %vm879, %vm880
  %v882 = vsel %vm881, %v874, %v878
  %v883 = vand.u32 2147483647, %v873
  %vm884 = vcmp.eq.f32.partialorder %v883, 8.507059e+37
  %v885 = vand.u32 %v873, 2147483648
  %v886 = vor.u32 1.1754944e-38, %v885
  %v887 = vsel %vm884, %v886, %v882
  %v888 = vmul.f32 1.0, %v887
  %v889 = vadd.f32 %v807, %v847
  %v890 = vxor.u32 %v889, 2147483648
  %v891 = vmul.f32 %v890, 1.442695
  %v892 = vpow.pop %v891
  %v893 = vadd.f32 %v892, 1.0
  %v894 = vrcp.pop %v893
  %v895 = vmul.f32 %v893, %v894
  %v896 = vsub.f32 1.0, %v895
  %v897 = vmul.f32 %v894, %v896
  %v898 = vadd.f32 %v894, %v897
  %vm899 = vweird.f32 %v893
  %vm900 = vweird.f32 %v894
  %vm901 = vmor %vm899, %vm900
  %v902 = vsel %vm901, %v894, %v898
  %v903 = vand.u32 2147483647, %v893
  %vm904 = vcmp.eq.f32.partialorder %v903, 8.507059e+37
  %v905 = vand.u32 %v893, 2147483648
  %v906 = vor.u32 1.1754944e-38, %v905
  %v907 = vsel %vm904, %v906, %v902
  %v908 = vmul.f32 1.0, %v907
  %v909 = vmul.f32 %v888, %v867
  %v910 = vadd.f32 %v808, %v909
  %v911 = vtanh.pop %v910
  %v912 = vsub.f32 1.0, %v908
  %v913 = vmul.f32 %v912, %v911
  %v914 = vmul.f32 %v908, %v804
  %v915 = vadd.f32 %v913, %v914
  %vm916 = vcmp.gt.s32.totalorder %v321, 4
  %v917 = vsel %vm916, 1, 0
  %918 = vset.pattern.permute.xlu0 0
  %919 = vperm.xlu0 %918, %v917
  %v920 = vpop.permute.xlu0 %919
  %vm921 = vcmp.eq.s32.totalorder %v920, 1
  %v922 = vsel %vm921, %v915, 0.0
  %s923 = scalar_lea.vmem %s7, 32
  %924 = vst [vmem:[%s923] sm:$0xff] %v922
  %v925 = vsel %vm921, %v915, %v804
  %s926 = scalar_lea.vmem [#allocation2], 120
  %v927 = vld [vmem:[%s926] sm:$0xff]
  %v928 = vld [vmem:[%s926 + $0x8] sm:$0xff]
  %v929 = vld [vmem:[%s926 + $0x10] sm:$0xff]
  %930 = vmatpush.msra.mxu0 %v310
  %931 = vmatpush.msra.mxu0 %v307
  %932 = vmatpush.msra.mxu0 %v304
  %933 = vmatpush.msra.mxu0 %v301
  %934 = vmatpush.msra.mxu0 %v298
  %935 = vmatpush.msra.mxu0 %v295
  %936 = vmatpush.msra.mxu0 %v292
  %937 = vmatpush.msra.mxu0 %v289
  %938 = vmatpush.msra.mxu0 %v286
  %939 = vmatpush.msra.mxu0 %v283
  %940 = vmatpush.msra.mxu0 %v280
  %941 = vmatpush.msra.mxu0 %v277
  %942 = vmatpush.msra.mxu0 %v274
  %943 = vmatpush.msra.mxu0 %v271
  %944 = vmatpush.msra.mxu0 %v268
  %945 = vmatpush.msra.mxu0 %v265
  %946 = vmatmul.f32.gmra.mxu0 %v925
  %v947 = vpop.f32.mrf.mxu0
  %v948 = vadd.f32 %v315, %v947
  %949 = vdwg.mxu0
  %950 = vmatpush.msra.mxu0 %v311
  %951 = vmatpush.msra.mxu0 %v308
  %952 = vmatpush.msra.mxu0 %v305
  %953 = vmatpush.msra.mxu0 %v302
  %954 = vmatpush.msra.mxu0 %v299
  %955 = vmatpush.msra.mxu0 %v296
  %956 = vmatpush.msra.mxu0 %v293
  %957 = vmatpush.msra.mxu0 %v290
  %958 = vmatpush.msra.mxu0 %v287
  %959 = vmatpush.msra.mxu0 %v284
  %960 = vmatpush.msra.mxu0 %v281
  %961 = vmatpush.msra.mxu0 %v278
  %962 = vmatpush.msra.mxu0 %v275
  %963 = vmatpush.msra.mxu0 %v272
  %964 = vmatpush.msra.mxu0 %v269
  %965 = vmatpush.msra.mxu0 %v266
  %966 = vmatmul.f32.gmra.mxu0 %v925
  %v967 = vpop.f32.mrf.mxu0
  %v968 = vadd.f32 %v316, %v967
  %969 = vdwg.mxu0
  %970 = vmatpush.msra.mxu0 %v312
  %971 = vmatpush.msra.mxu0 %v309
  %972 = vmatpush.msra.mxu0 %v306
  %973 = vmatpush.msra.mxu0 %v303
  %974 = vmatpush.msra.mxu0 %v300
  %975 = vmatpush.msra.mxu0 %v297
  %976 = vmatpush.msra.mxu0 %v294
  %977 = vmatpush.msra.mxu0 %v291
  %978 = vmatpush.msra.mxu0 %v288
  %979 = vmatpush.msra.mxu0 %v285
  %980 = vmatpush.msra.mxu0 %v282
  %981 = vmatpush.msra.mxu0 %v279
  %982 = vmatpush.msra.mxu0 %v276
  %983 = vmatpush.msra.mxu0 %v273
  %984 = vmatpush.msra.mxu0 %v270
  %985 = vmatpush.msra.mxu0 %v267
  %986 = vmatmul.f32.gmra.mxu0 %v925
  %v987 = vpop.f32.mrf.mxu0
  %v988 = vadd.f32 %v317, %v987
  %989 = vdwg.mxu0
  %v990 = vadd.f32 %v927, %v948
  %v991 = vxor.u32 %v990, 2147483648
  %v992 = vmul.f32 %v991, 1.442695
  %v993 = vpow.pop %v992
  %v994 = vadd.f32 %v993, 1.0
  %v995 = vrcp.pop %v994
  %v996 = vmul.f32 %v994, %v995
  %v997 = vsub.f32 1.0, %v996
  %v998 = vmul.f32 %v995, %v997
  %v999 = vadd.f32 %v995, %v998
  %vm1000 = vweird.f32 %v994
  %vm1001 = vweird.f32 %v995
  %vm1002 = vmor %vm1000, %vm1001
  %v1003 = vsel %vm1002, %v995, %v999
  %v1004 = vand.u32 2147483647, %v994
  %vm1005 = vcmp.eq.f32.partialorder %v1004, 8.507059e+37
  %v1006 = vand.u32 %v994, 2147483648
  %v1007 = vor.u32 1.1754944e-38, %v1006
  %v1008 = vsel %vm1005, %v1007, %v1003
  %v1009 = vmul.f32 1.0, %v1008
  %v1010 = vadd.f32 %v928, %v968
  %v1011 = vxor.u32 %v1010, 2147483648
  %v1012 = vmul.f32 %v1011, 1.442695
  %v1013 = vpow.pop %v1012
  %v1014 = vadd.f32 %v1013, 1.0
  %v1015 = vrcp.pop %v1014
  %v1016 = vmul.f32 %v1014, %v1015
  %v1017 = vsub.f32 1.0, %v1016
  %v1018 = vmul.f32 %v1015, %v1017
  %v1019 = vadd.f32 %v1015, %v1018
  %vm1020 = vweird.f32 %v1014
  %vm1021 = vweird.f32 %v1015
  %vm1022 = vmor %vm1020, %vm1021
  %v1023 = vsel %vm1022, %v1015, %v1019
  %v1024 = vand.u32 2147483647, %v1014
  %vm1025 = vcmp.eq.f32.partialorder %v1024, 8.507059e+37
  %v1026 = vand.u32 %v1014, 2147483648
  %v1027 = vor.u32 1.1754944e-38, %v1026
  %v1028 = vsel %vm1025, %v1027, %v1023
  %v1029 = vmul.f32 1.0, %v1028
  %v1030 = vmul.f32 %v1009, %v988
  %v1031 = vadd.f32 %v929, %v1030
  %v1032 = vtanh.pop %v1031
  %v1033 = vsub.f32 1.0, %v1029
  %v1034 = vmul.f32 %v1033, %v1032
  %v1035 = vmul.f32 %v1029, %v925
  %v1036 = vadd.f32 %v1034, %v1035
  %vm1037 = vcmp.gt.s32.totalorder %v321, 5
  %v1038 = vsel %vm1037, 1, 0
  %1039 = vset.pattern.permute.xlu0 0
  %1040 = vperm.xlu0 %1039, %v1038
  %v1041 = vpop.permute.xlu0 %1040
  %vm1042 = vcmp.eq.s32.totalorder %v1041, 1
  %v1043 = vsel %vm1042, %v1036, 0.0
  %s1044 = scalar_lea.vmem %s7, 40
  %1045 = vst [vmem:[%s1044] sm:$0xff] %v1043
  %v1046 = vsel %vm1042, %v1036, %v925
  %s1047 = scalar_lea.vmem [#allocation2], 144
  %v1048 = vld [vmem:[%s1047] sm:$0xff]
  %v1049 = vld [vmem:[%s1047 + $0x8] sm:$0xff]
  %v1050 = vld [vmem:[%s1047 + $0x10] sm:$0xff]
  %1051 = vmatpush.msra.mxu0 %v310
  %1052 = vmatpush.msra.mxu0 %v307
  %1053 = vmatpush.msra.mxu0 %v304
  %1054 = vmatpush.msra.mxu0 %v301
  %1055 = vmatpush.msra.mxu0 %v298
  %1056 = vmatpush.msra.mxu0 %v295
  %1057 = vmatpush.msra.mxu0 %v292
  %1058 = vmatpush.msra.mxu0 %v289
  %1059 = vmatpush.msra.mxu0 %v286
  %1060 = vmatpush.msra.mxu0 %v283
  %1061 = vmatpush.msra.mxu0 %v280
  %1062 = vmatpush.msra.mxu0 %v277
  %1063 = vmatpush.msra.mxu0 %v274
  %1064 = vmatpush.msra.mxu0 %v271
  %1065 = vmatpush.msra.mxu0 %v268
  %1066 = vmatpush.msra.mxu0 %v265
  %1067 = vmatmul.f32.gmra.mxu0 %v1046
  %v1068 = vpop.f32.mrf.mxu0
  %v1069 = vadd.f32 %v315, %v1068
  %1070 = vdwg.mxu0
  %1071 = vmatpush.msra.mxu0 %v311
  %1072 = vmatpush.msra.mxu0 %v308
  %1073 = vmatpush.msra.mxu0 %v305
  %1074 = vmatpush.msra.mxu0 %v302
  %1075 = vmatpush.msra.mxu0 %v299
  %1076 = vmatpush.msra.mxu0 %v296
  %1077 = vmatpush.msra.mxu0 %v293
  %1078 = vmatpush.msra.mxu0 %v290
  %1079 = vmatpush.msra.mxu0 %v287
  %1080 = vmatpush.msra.mxu0 %v284
  %1081 = vmatpush.msra.mxu0 %v281
  %1082 = vmatpush.msra.mxu0 %v278
  %1083 = vmatpush.msra.mxu0 %v275
  %1084 = vmatpush.msra.mxu0 %v272
  %1085 = vmatpush.msra.mxu0 %v269
  %1086 = vmatpush.msra.mxu0 %v266
  %1087 = vmatmul.f32.gmra.mxu0 %v1046
  %v1088 = vpop.f32.mrf.mxu0
  %v1089 = vadd.f32 %v316, %v1088
  %1090 = vdwg.mxu0
  %1091 = vmatpush.msra.mxu0 %v312
  %1092 = vmatpush.msra.mxu0 %v309
  %1093 = vmatpush.msra.mxu0 %v306
  %1094 = vmatpush.msra.mxu0 %v303
  %1095 = vmatpush.msra.mxu0 %v300
  %1096 = vmatpush.msra.mxu0 %v297
  %1097 = vmatpush.msra.mxu0 %v294
  %1098 = vmatpush.msra.mxu0 %v291
  %1099 = vmatpush.msra.mxu0 %v288
  %1100 = vmatpush.msra.mxu0 %v285
  %1101 = vmatpush.msra.mxu0 %v282
  %1102 = vmatpush.msra.mxu0 %v279
  %1103 = vmatpush.msra.mxu0 %v276
  %1104 = vmatpush.msra.mxu0 %v273
  %1105 = vmatpush.msra.mxu0 %v270
  %1106 = vmatpush.msra.mxu0 %v267
  %1107 = vmatmul.f32.gmra.mxu0 %v1046
  %v1108 = vpop.f32.mrf.mxu0
  %v1109 = vadd.f32 %v317, %v1108
  %1110 = vdwg.mxu0
  %v1111 = vadd.f32 %v1048, %v1069
  %v1112 = vxor.u32 %v1111, 2147483648
  %v1113 = vmul.f32 %v1112, 1.442695
  %v1114 = vpow.pop %v1113
  %v1115 = vadd.f32 %v1114, 1.0
  %v1116 = vrcp.pop %v1115
  %v1117 = vmul.f32 %v1115, %v1116
  %v1118 = vsub.f32 1.0, %v1117
  %v1119 = vmul.f32 %v1116, %v1118
  %v1120 = vadd.f32 %v1116, %v1119
  %vm1121 = vweird.f32 %v1115
  %vm1122 = vweird.f32 %v1116
  %vm1123 = vmor %vm1121, %vm1122
  %v1124 = vsel %vm1123, %v1116, %v1120
  %v1125 = vand.u32 2147483647, %v1115
  %vm1126 = vcmp.eq.f32.partialorder %v1125, 8.507059e+37
  %v1127 = vand.u32 %v1115, 2147483648
  %v1128 = vor.u32 1.1754944e-38, %v1127
  %v1129 = vsel %vm1126, %v1128, %v1124
  %v1130 = vmul.f32 1.0, %v1129
  %v1131 = vadd.f32 %v1049, %v1089
  %v1132 = vxor.u32 %v1131, 2147483648
  %v1133 = vmul.f32 %v1132, 1.442695
  %v1134 = vpow.pop %v1133
  %v1135 = vadd.f32 %v1134, 1.0
  %v1136 = vrcp.pop %v1135
  %v1137 = vmul.f32 %v1135, %v1136
  %v1138 = vsub.f32 1.0, %v1137
  %v1139 = vmul.f32 %v1136, %v1138
  %v1140 = vadd.f32 %v1136, %v1139
  %vm1141 = vweird.f32 %v1135
  %vm1142 = vweird.f32 %v1136
  %vm1143 = vmor %vm1141, %vm1142
  %v1144 = vsel %vm1143, %v1136, %v1140
  %v1145 = vand.u32 2147483647, %v1135
  %vm1146 = vcmp.eq.f32.partialorder %v1145, 8.507059e+37
  %v1147 = vand.u32 %v1135, 2147483648
  %v1148 = vor.u32 1.1754944e-38, %v1147
  %v1149 = vsel %vm1146, %v1148, %v1144
  %v1150 = vmul.f32 1.0, %v1149
  %v1151 = vmul.f32 %v1130, %v1109
  %v1152 = vadd.f32 %v1050, %v1151
  %v1153 = vtanh.pop %v1152
  %v1154 = vsub.f32 1.0, %v1150
  %v1155 = vmul.f32 %v1154, %v1153
  %v1156 = vmul.f32 %v1150, %v1046
  %v1157 = vadd.f32 %v1155, %v1156
  %vm1158 = vcmp.gt.s32.totalorder %v321, 6
  %v1159 = vsel %vm1158, 1, 0
  %1160 = vset.pattern.permute.xlu0 0
  %1161 = vperm.xlu0 %1160, %v1159
  %v1162 = vpop.permute.xlu0 %1161
  %vm1163 = vcmp.eq.s32.totalorder %v1162, 1
  %v1164 = vsel %vm1163, %v1157, 0.0
  %s1165 = scalar_lea.vmem %s7, 48
  %1166 = vst [vmem:[%s1165] sm:$0xff] %v1164
  %v1167 = vsel %vm1163, %v1157, %v1046
  %s1168 = scalar_lea.vmem [#allocation2], 168
  %v1169 = vld [vmem:[%s1168] sm:$0xff]
  %v1170 = vld [vmem:[%s1168 + $0x8] sm:$0xff]
  %v1171 = vld [vmem:[%s1168 + $0x10] sm:$0xff]
  %1172 = vmatpush.msra.mxu0 %v310
  %1173 = vmatpush.msra.mxu0 %v307
  %1174 = vmatpush.msra.mxu0 %v304
  %1175 = vmatpush.msra.mxu0 %v301
  %1176 = vmatpush.msra.mxu0 %v298
  %1177 = vmatpush.msra.mxu0 %v295
  %1178 = vmatpush.msra.mxu0 %v292
  %1179 = vmatpush.msra.mxu0 %v289
  %1180 = vmatpush.msra.mxu0 %v286
  %1181 = vmatpush.msra.mxu0 %v283
  %1182 = vmatpush.msra.mxu0 %v280
  %1183 = vmatpush.msra.mxu0 %v277
  %1184 = vmatpush.msra.mxu0 %v274
  %1185 = vmatpush.msra.mxu0 %v271
  %1186 = vmatpush.msra.mxu0 %v268
  %1187 = vmatpush.msra.mxu0 %v265
  %1188 = vmatmul.f32.gmra.mxu0 %v1167
  %v1189 = vpop.f32.mrf.mxu0
  %v1190 = vadd.f32 %v315, %v1189
  %1191 = vdwg.mxu0
  %1192 = vmatpush.msra.mxu0 %v311
  %1193 = vmatpush.msra.mxu0 %v308
  %1194 = vmatpush.msra.mxu0 %v305
  %1195 = vmatpush.msra.mxu0 %v302
  %1196 = vmatpush.msra.mxu0 %v299
  %1197 = vmatpush.msra.mxu0 %v296
  %1198 = vmatpush.msra.mxu0 %v293
  %1199 = vmatpush.msra.mxu0 %v290
  %1200 = vmatpush.msra.mxu0 %v287
  %1201 = vmatpush.msra.mxu0 %v284
  %1202 = vmatpush.msra.mxu0 %v281
  %1203 = vmatpush.msra.mxu0 %v278
  %1204 = vmatpush.msra.mxu0 %v275
  %1205 = vmatpush.msra.mxu0 %v272
  %1206 = vmatpush.msra.mxu0 %v269
  %1207 = vmatpush.msra.mxu0 %v266
  %1208 = vmatmul.f32.gmra.mxu0 %v1167
  %v1209 = vpop.f32.mrf.mxu0
  %v1210 = vadd.f32 %v316, %v1209
  %1211 = vdwg.mxu0
  %1212 = vmatpush.msra.mxu0 %v312
  %1213 = vmatpush.msra.mxu0 %v309
  %1214 = vmatpush.msra.mxu0 %v306
  %1215 = vmatpush.msra.mxu0 %v303
  %1216 = vmatpush.msra.mxu0 %v300
  %1217 = vmatpush.msra.mxu0 %v297
  %1218 = vmatpush.msra.mxu0 %v294
  %1219 = vmatpush.msra.mxu0 %v291
  %1220 = vmatpush.msra.mxu0 %v288
  %1221 = vmatpush.msra.mxu0 %v285
  %1222 = vmatpush.msra.mxu0 %v282
  %1223 = vmatpush.msra.mxu0 %v279
  %1224 = vmatpush.msra.mxu0 %v276
  %1225 = vmatpush.msra.mxu0 %v273
  %1226 = vmatpush.msra.mxu0 %v270
  %1227 = vmatpush.msra.mxu0 %v267
  %1228 = vmatmul.f32.gmra.mxu0 %v1167
  %v1229 = vpop.f32.mrf.mxu0
  %v1230 = vadd.f32 %v317, %v1229
  %1231 = vdwg.mxu0
  %v1232 = vadd.f32 %v1169, %v1190
  %v1233 = vxor.u32 %v1232, 2147483648
  %v1234 = vmul.f32 %v1233, 1.442695
  %v1235 = vpow.pop %v1234
  %v1236 = vadd.f32 %v1235, 1.0
  %v1237 = vrcp.pop %v1236
  %v1238 = vmul.f32 %v1236, %v1237
  %v1239 = vsub.f32 1.0, %v1238
  %v1240 = vmul.f32 %v1237, %v1239
  %v1241 = vadd.f32 %v1237, %v1240
  %vm1242 = vweird.f32 %v1236
  %vm1243 = vweird.f32 %v1237
  %vm1244 = vmor %vm1242, %vm1243
  %v1245 = vsel %vm1244, %v1237, %v1241
  %v1246 = vand.u32 2147483647, %v1236
  %vm1247 = vcmp.eq.f32.partialorder %v1246, 8.507059e+37
  %v1248 = vand.u32 %v1236, 2147483648
  %v1249 = vor.u32 1.1754944e-38, %v1248
  %v1250 = vsel %vm1247, %v1249, %v1245
  %v1251 = vmul.f32 1.0, %v1250
  %v1252 = vadd.f32 %v1170, %v1210
  %v1253 = vxor.u32 %v1252, 2147483648
  %v1254 = vmul.f32 %v1253, 1.442695
  %v1255 = vpow.pop %v1254
  %v1256 = vadd.f32 %v1255, 1.0
  %v1257 = vrcp.pop %v1256
  %v1258 = vmul.f32 %v1256, %v1257
  %v1259 = vsub.f32 1.0, %v1258
  %v1260 = vmul.f32 %v1257, %v1259
  %v1261 = vadd.f32 %v1257, %v1260
  %vm1262 = vweird.f32 %v1256
  %vm1263 = vweird.f32 %v1257
  %vm1264 = vmor %vm1262, %vm1263
  %v1265 = vsel %vm1264, %v1257, %v1261
  %v1266 = vand.u32 2147483647, %v1256
  %vm1267 = vcmp.eq.f32.partialorder %v1266, 8.507059e+37
  %v1268 = vand.u32 %v1256, 2147483648
  %v1269 = vor.u32 1.1754944e-38, %v1268
  %v1270 = vsel %vm1267, %v1269, %v1265
  %v1271 = vmul.f32 1.0, %v1270
  %v1272 = vmul.f32 %v1251, %v1230
  %v1273 = vadd.f32 %v1171, %v1272
  %v1274 = vtanh.pop %v1273
  %v1275 = vsub.f32 1.0, %v1271
  %v1276 = vmul.f32 %v1275, %v1274
  %v1277 = vmul.f32 %v1271, %v1167
  %v1278 = vadd.f32 %v1276, %v1277
  %vm1279 = vcmp.gt.s32.totalorder %v321, 7
  %v1280 = vsel %vm1279, 1, 0
  %1281 = vset.pattern.permute.xlu0 0
  %1282 = vperm.xlu0 %1281, %v1280
  %v1283 = vpop.permute.xlu0 %1282
  %vm1284 = vcmp.eq.s32.totalorder %v1283, 1
  %v1285 = vsel %vm1284, %v1278, 0.0
  %s1286 = scalar_lea.vmem %s7, 56
  %1287 = vst [vmem:[%s1286] sm:$0xff] %v1285
  %v1288 = vsel %vm1284, %v1278, %v1167
  %s1289 = scalar_lea.vmem [#allocation2], 192
  %v1290 = vld [vmem:[%s1289] sm:$0xff]
  %v1291 = vld [vmem:[%s1289 + $0x8] sm:$0xff]
  %v1292 = vld [vmem:[%s1289 + $0x10] sm:$0xff]
  %1293 = vmatpush.msra.mxu0 %v310
  %1294 = vmatpush.msra.mxu0 %v307
  %1295 = vmatpush.msra.mxu0 %v304
  %1296 = vmatpush.msra.mxu0 %v301
  %1297 = vmatpush.msra.mxu0 %v298
  %1298 = vmatpush.msra.mxu0 %v295
  %1299 = vmatpush.msra.mxu0 %v292
  %1300 = vmatpush.msra.mxu0 %v289
  %1301 = vmatpush.msra.mxu0 %v286
  %1302 = vmatpush.msra.mxu0 %v283
  %1303 = vmatpush.msra.mxu0 %v280
  %1304 = vmatpush.msra.mxu0 %v277
  %1305 = vmatpush.msra.mxu0 %v274
  %1306 = vmatpush.msra.mxu0 %v271
  %1307 = vmatpush.msra.mxu0 %v268
  %1308 = vmatpush.msra.mxu0 %v265
  %1309 = vmatmul.f32.gmra.mxu0 %v1288
  %v1310 = vpop.f32.mrf.mxu0
  %v1311 = vadd.f32 %v315, %v1310
  %1312 = vdwg.mxu0
  %1313 = vmatpush.msra.mxu0 %v311
  %1314 = vmatpush.msra.mxu0 %v308
  %1315 = vmatpush.msra.mxu0 %v305
  %1316 = vmatpush.msra.mxu0 %v302
  %1317 = vmatpush.msra.mxu0 %v299
  %1318 = vmatpush.msra.mxu0 %v296
  %1319 = vmatpush.msra.mxu0 %v293
  %1320 = vmatpush.msra.mxu0 %v290
  %1321 = vmatpush.msra.mxu0 %v287
  %1322 = vmatpush.msra.mxu0 %v284
  %1323 = vmatpush.msra.mxu0 %v281
  %1324 = vmatpush.msra.mxu0 %v278
  %1325 = vmatpush.msra.mxu0 %v275
  %1326 = vmatpush.msra.mxu0 %v272
  %1327 = vmatpush.msra.mxu0 %v269
  %1328 = vmatpush.msra.mxu0 %v266
  %1329 = vmatmul.f32.gmra.mxu0 %v1288
  %v1330 = vpop.f32.mrf.mxu0
  %v1331 = vadd.f32 %v316, %v1330
  %1332 = vdwg.mxu0
  %1333 = vmatpush.msra.mxu0 %v312
  %1334 = vmatpush.msra.mxu0 %v309
  %1335 = vmatpush.msra.mxu0 %v306
  %1336 = vmatpush.msra.mxu0 %v303
  %1337 = vmatpush.msra.mxu0 %v300
  %1338 = vmatpush.msra.mxu0 %v297
  %1339 = vmatpush.msra.mxu0 %v294
  %1340 = vmatpush.msra.mxu0 %v291
  %1341 = vmatpush.msra.mxu0 %v288
  %1342 = vmatpush.msra.mxu0 %v285
  %1343 = vmatpush.msra.mxu0 %v282
  %1344 = vmatpush.msra.mxu0 %v279
  %1345 = vmatpush.msra.mxu0 %v276
  %1346 = vmatpush.msra.mxu0 %v273
  %1347 = vmatpush.msra.mxu0 %v270
  %1348 = vmatpush.msra.mxu0 %v267
  %1349 = vmatmul.f32.gmra.mxu0 %v1288
  %v1350 = vpop.f32.mrf.mxu0
  %v1351 = vadd.f32 %v317, %v1350
  %1352 = vdwg.mxu0
  %v1353 = vadd.f32 %v1290, %v1311
  %v1354 = vxor.u32 %v1353, 2147483648
  %v1355 = vmul.f32 %v1354, 1.442695
  %v1356 = vpow.pop %v1355
  %v1357 = vadd.f32 %v1356, 1.0
  %v1358 = vrcp.pop %v1357
  %v1359 = vmul.f32 %v1357, %v1358
  %v1360 = vsub.f32 1.0, %v1359
  %v1361 = vmul.f32 %v1358, %v1360
  %v1362 = vadd.f32 %v1358, %v1361
  %vm1363 = vweird.f32 %v1357
  %vm1364 = vweird.f32 %v1358
  %vm1365 = vmor %vm1363, %vm1364
  %v1366 = vsel %vm1365, %v1358, %v1362
  %v1367 = vand.u32 2147483647, %v1357
  %vm1368 = vcmp.eq.f32.partialorder %v1367, 8.507059e+37
  %v1369 = vand.u32 %v1357, 2147483648
  %v1370 = vor.u32 1.1754944e-38, %v1369
  %v1371 = vsel %vm1368, %v1370, %v1366
  %v1372 = vmul.f32 1.0, %v1371
  %v1373 = vadd.f32 %v1291, %v1331
  %v1374 = vxor.u32 %v1373, 2147483648
  %v1375 = vmul.f32 %v1374, 1.442695
  %v1376 = vpow.pop %v1375
  %v1377 = vadd.f32 %v1376, 1.0
  %v1378 = vrcp.pop %v1377
  %v1379 = vmul.f32 %v1377, %v1378
  %v1380 = vsub.f32 1.0, %v1379
  %v1381 = vmul.f32 %v1378, %v1380
  %v1382 = vadd.f32 %v1378, %v1381
  %vm1383 = vweird.f32 %v1377
  %vm1384 = vweird.f32 %v1378
  %vm1385 = vmor %vm1383, %vm1384
  %v1386 = vsel %vm1385, %v1378, %v1382
  %v1387 = vand.u32 2147483647, %v1377
  %vm1388 = vcmp.eq.f32.partialorder %v1387, 8.507059e+37
  %v1389 = vand.u32 %v1377, 2147483648
  %v1390 = vor.u32 1.1754944e-38, %v1389
  %v1391 = vsel %vm1388, %v1390, %v1386
  %v1392 = vmul.f32 1.0, %v1391
  %v1393 = vmul.f32 %v1372, %v1351
  %v1394 = vadd.f32 %v1292, %v1393
  %v1395 = vtanh.pop %v1394
  %v1396 = vsub.f32 1.0, %v1392
  %v1397 = vmul.f32 %v1396, %v1395
  %v1398 = vmul.f32 %v1392, %v1288
  %v1399 = vadd.f32 %v1397, %v1398
  %vm1400 = vcmp.gt.s32.totalorder %v321, 8
  %v1401 = vsel %vm1400, 1, 0
  %1402 = vset.pattern.permute.xlu0 0
  %1403 = vperm.xlu0 %1402, %v1401
  %v1404 = vpop.permute.xlu0 %1403
  %vm1405 = vcmp.eq.s32.totalorder %v1404, 1
  %v1406 = vsel %vm1405, %v1399, 0.0
  %s1407 = scalar_lea.vmem %s7, 64
  %1408 = vst [vmem:[%s1407] sm:$0xff] %v1406
  %v1409 = vsel %vm1405, %v1399, %v1288
  %s1410 = scalar_lea.vmem [#allocation2], 216
  %v1411 = vld [vmem:[%s1410] sm:$0xff]
  %v1412 = vld [vmem:[%s1410 + $0x8] sm:$0xff]
  %v1413 = vld [vmem:[%s1410 + $0x10] sm:$0xff]
  %1414 = vmatpush.msra.mxu0 %v310
  %1415 = vmatpush.msra.mxu0 %v307
  %1416 = vmatpush.msra.mxu0 %v304
  %1417 = vmatpush.msra.mxu0 %v301
  %1418 = vmatpush.msra.mxu0 %v298
  %1419 = vmatpush.msra.mxu0 %v295
  %1420 = vmatpush.msra.mxu0 %v292
  %1421 = vmatpush.msra.mxu0 %v289
  %1422 = vmatpush.msra.mxu0 %v286
  %1423 = vmatpush.msra.mxu0 %v283
  %1424 = vmatpush.msra.mxu0 %v280
  %1425 = vmatpush.msra.mxu0 %v277
  %1426 = vmatpush.msra.mxu0 %v274
  %1427 = vmatpush.msra.mxu0 %v271
  %1428 = vmatpush.msra.mxu0 %v268
  %1429 = vmatpush.msra.mxu0 %v265
  %1430 = vmatmul.f32.gmra.mxu0 %v1409
  %v1431 = vpop.f32.mrf.mxu0
  %v1432 = vadd.f32 %v315, %v1431
  %1433 = vdwg.mxu0
  %1434 = vmatpush.msra.mxu0 %v311
  %1435 = vmatpush.msra.mxu0 %v308
  %1436 = vmatpush.msra.mxu0 %v305
  %1437 = vmatpush.msra.mxu0 %v302
  %1438 = vmatpush.msra.mxu0 %v299
  %1439 = vmatpush.msra.mxu0 %v296
  %1440 = vmatpush.msra.mxu0 %v293
  %1441 = vmatpush.msra.mxu0 %v290
  %1442 = vmatpush.msra.mxu0 %v287
  %1443 = vmatpush.msra.mxu0 %v284
  %1444 = vmatpush.msra.mxu0 %v281
  %1445 = vmatpush.msra.mxu0 %v278
  %1446 = vmatpush.msra.mxu0 %v275
  %1447 = vmatpush.msra.mxu0 %v272
  %1448 = vmatpush.msra.mxu0 %v269
  %1449 = vmatpush.msra.mxu0 %v266
  %1450 = vmatmul.f32.gmra.mxu0 %v1409
  %v1451 = vpop.f32.mrf.mxu0
  %v1452 = vadd.f32 %v316, %v1451
  %1453 = vdwg.mxu0
  %1454 = vmatpush.msra.mxu0 %v312
  %1455 = vmatpush.msra.mxu0 %v309
  %1456 = vmatpush.msra.mxu0 %v306
  %1457 = vmatpush.msra.mxu0 %v303
  %1458 = vmatpush.msra.mxu0 %v300
  %1459 = vmatpush.msra.mxu0 %v297
  %1460 = vmatpush.msra.mxu0 %v294
  %1461 = vmatpush.msra.mxu0 %v291
  %1462 = vmatpush.msra.mxu0 %v288
  %1463 = vmatpush.msra.mxu0 %v285
  %1464 = vmatpush.msra.mxu0 %v282
  %1465 = vmatpush.msra.mxu0 %v279
  %1466 = vmatpush.msra.mxu0 %v276
  %1467 = vmatpush.msra.mxu0 %v273
  %1468 = vmatpush.msra.mxu0 %v270
  %1469 = vmatpush.msra.mxu0 %v267
  %1470 = vmatmul.f32.gmra.mxu0 %v1409
  %v1471 = vpop.f32.mrf.mxu0
  %v1472 = vadd.f32 %v317, %v1471
  %1473 = vdwg.mxu0
  %v1474 = vadd.f32 %v1411, %v1432
  %v1475 = vxor.u32 %v1474, 2147483648
  %v1476 = vmul.f32 %v1475, 1.442695
  %v1477 = vpow.pop %v1476
  %v1478 = vadd.f32 %v1477, 1.0
  %v1479 = vrcp.pop %v1478
  %v1480 = vmul.f32 %v1478, %v1479
  %v1481 = vsub.f32 1.0, %v1480
  %v1482 = vmul.f32 %v1479, %v1481
  %v1483 = vadd.f32 %v1479, %v1482
  %vm1484 = vweird.f32 %v1478
  %vm1485 = vweird.f32 %v1479
  %vm1486 = vmor %vm1484, %vm1485
  %v1487 = vsel %vm1486, %v1479, %v1483
  %v1488 = vand.u32 2147483647, %v1478
  %vm1489 = vcmp.eq.f32.partialorder %v1488, 8.507059e+37
  %v1490 = vand.u32 %v1478, 2147483648
  %v1491 = vor.u32 1.1754944e-38, %v1490
  %v1492 = vsel %vm1489, %v1491, %v1487
  %v1493 = vmul.f32 1.0, %v1492
  %v1494 = vadd.f32 %v1412, %v1452
  %v1495 = vxor.u32 %v1494, 2147483648
  %v1496 = vmul.f32 %v1495, 1.442695
  %v1497 = vpow.pop %v1496
  %v1498 = vadd.f32 %v1497, 1.0
  %v1499 = vrcp.pop %v1498
  %v1500 = vmul.f32 %v1498, %v1499
  %v1501 = vsub.f32 1.0, %v1500
  %v1502 = vmul.f32 %v1499, %v1501
  %v1503 = vadd.f32 %v1499, %v1502
  %vm1504 = vweird.f32 %v1498
  %vm1505 = vweird.f32 %v1499
  %vm1506 = vmor %vm1504, %vm1505
  %v1507 = vsel %vm1506, %v1499, %v1503
  %v1508 = vand.u32 2147483647, %v1498
  %vm1509 = vcmp.eq.f32.partialorder %v1508, 8.507059e+37
  %v1510 = vand.u32 %v1498, 2147483648
  %v1511 = vor.u32 1.1754944e-38, %v1510
  %v1512 = vsel %vm1509, %v1511, %v1507
  %v1513 = vmul.f32 1.0, %v1512
  %v1514 = vmul.f32 %v1493, %v1472
  %v1515 = vadd.f32 %v1413, %v1514
  %v1516 = vtanh.pop %v1515
  %v1517 = vsub.f32 1.0, %v1513
  %v1518 = vmul.f32 %v1517, %v1516
  %v1519 = vmul.f32 %v1513, %v1409
  %v1520 = vadd.f32 %v1518, %v1519
  %vm1521 = vcmp.gt.s32.totalorder %v321, 9
  %v1522 = vsel %vm1521, 1, 0
  %1523 = vset.pattern.permute.xlu0 0
  %1524 = vperm.xlu0 %1523, %v1522
  %v1525 = vpop.permute.xlu0 %1524
  %vm1526 = vcmp.eq.s32.totalorder %v1525, 1
  %v1527 = vsel %vm1526, %v1520, 0.0
  %s1528 = scalar_lea.vmem %s7, 72
  %1529 = vst [vmem:[%s1528] sm:$0xff] %v1527
  %v1530 = vsel %vm1526, %v1520, %v1409
  %1531 = vst [vmem:[%s8] sm:$0xff] %v1530
  // Predicated region
  $region30: #{seq2seq_forward.6} parent=0 // pred_check
    _
  $region31: #{seq2seq_forward.6} parent=0 // pred_check_branch
    %1533 = sbr.rel (0) target = $region33
  $region32: #{seq2seq_forward.6} parent=0 // pred_region
    _
  $region33: #{seq2seq_forward.6} parent=0 // pred_fallthru
    _
  // Predicated region
  $region34: #{seq2seq_forward.6} parent=0 // pred_check
    _
  $region35: #{seq2seq_forward.6} parent=0 // pred_check_branch
    %1535 = sbr.rel (0) target = $region37
  $region36: #{seq2seq_forward.6} parent=0 // pred_region
    _
  $region37: #{seq2seq_forward.6} parent=0 // pred_fallthru
    _
  // Predicated region
  $region38: #{seq2seq_forward.6} parent=0 // pred_check
    _
  $region39: #{seq2seq_forward.6} parent=0 // pred_check_branch
    %1537 = sbr.rel (0) target = $region41
  $region40: #{seq2seq_forward.6} parent=0 // pred_region
    _
  $region41: #{seq2seq_forward.6} parent=0 // pred_fallthru
    _
  // Predicated region
  $region42: #{seq2seq_forward.6} parent=0 // pred_check
    _
  $region43: #{seq2seq_forward.6} parent=0 // pred_check_branch
    %1539 = sbr.rel (0) target = $region45
  $region44: #{seq2seq_forward.6} parent=0 // pred_region
    _
  $region45: #{seq2seq_forward.6} parent=0 // pred_fallthru
    _

// kernel: seq2seq_forward.9
$region0: #{seq2seq_forward.9}
  #allocation0 [shape = 'u32[]', space=smem, size = 0x4, offset = 0x4, fixed_abs, tag = 'smem constant byte address 0x4 - core index']
  #allocation1 [shape = 'u32[72,128]{1,0:T(1,128)}', space=vmem, size = 0x9000, scoped, tag = 'internal scratch']
  %s0 = inlined_call_operand.vmem [shape: f32[8,128,256], index: 0, kind: input, shape index: {}]
  %s1 = inlined_call_operand.vmem [shape: f32[8,8,128], index: 1, kind: input, shape index: {}]
  %s2 = inlined_call_operand.vmem [shape: f32[256,128], index: 2, kind: input, shape index: {}]
  %s3 = inlined_call_operand.vmem [shape: f32[256,128], index: 3, kind: input, shape index: {}]
  %s4 = inlined_call_operand.vmem [shape: f32[128,128], index: 4, kind: input, shape index: {}]
  %s5 = inlined_call_operand.vmem [shape: f32[1,128], index: 5, kind: input, shape index: {}]
  %s6 = inlined_call_operand.vmem [shape: f32[128,128], index: 6, kind: input, shape index: {}]
  %s7 = inlined_call_operand.vmem [shape: f32[1,128], index: 7, kind: input, shape index: {}]
  %s8 = inlined_call_operand.vmem [shape: f32[8,8,128], index: 8, kind: output, shape index: {0}]
  %s9 = inlined_call_operand.vmem [shape: f32[8,8,128], index: 9, kind: output, shape index: {1}]
  %10 = xla_tuple %s8, %s9
  %s11 = sld [smem:[#allocation0]]
  $region50: #{seq2seq_forward.9} parent=0
    _
  %s13 = ssub.s32 1, %s11
  %s14 = scalar_select 0, %s13, %s11
  // Predicated region
  $region2: #{seq2seq_forward.9} parent=0 // pred_check
    _
  $region3: #{seq2seq_forward.9} parent=0 // pred_check_branch
    %16 = sbr.rel (0) target = $region5
  $region4: #{seq2seq_forward.9} parent=0 // pred_region
    _
  $region5: #{seq2seq_forward.9} parent=0 // pred_fallthru
    _
  // Predicated region
  $region6: #{seq2seq_forward.9} parent=0 // pred_check
    _
  $region7: #{seq2seq_forward.9} parent=0 // pred_check_branch
    %18 = sbr.rel (0) target = $region9
  $region8: #{seq2seq_forward.9} parent=0 // pred_region
    _
  $region9: #{seq2seq_forward.9} parent=0 // pred_fallthru
    _
  // Predicated region
  $region10: #{seq2seq_forward.9} parent=0 // pred_check
    _
  $region11: #{seq2seq_forward.9} parent=0 // pred_check_branch
    %20 = sbr.rel (0) target = $region13
  $region12: #{seq2seq_forward.9} parent=0 // pred_region
    _
  $region13: #{seq2seq_forward.9} parent=0 // pred_fallthru
    _
  // Predicated region
  $region14: #{seq2seq_forward.9} parent=0 // pred_check
    _
  $region15: #{seq2seq_forward.9} parent=0 // pred_check_branch
    %22 = sbr.rel (0) target = $region17
  $region16: #{seq2seq_forward.9} parent=0 // pred_region
    _
  $region17: #{seq2seq_forward.9} parent=0 // pred_fallthru
    _
  // Predicated region
  $region18: #{seq2seq_forward.9} parent=0 // pred_check
    _
  $region19: #{seq2seq_forward.9} parent=0 // pred_check_branch
    %24 = sbr.rel (0) target = $region21
  $region20: #{seq2seq_forward.9} parent=0 // pred_region
    _
  $region21: #{seq2seq_forward.9} parent=0 // pred_fallthru
    _
  // Predicated region
  $region22: #{seq2seq_forward.9} parent=0 // pred_check
    _
  $region23: #{seq2seq_forward.9} parent=0 // pred_check_branch
    %26 = sbr.rel (0) target = $region25
  $region24: #{seq2seq_forward.9} parent=0 // pred_region
    _
  $region25: #{seq2seq_forward.9} parent=0 // pred_fallthru
    _
  // Predicated region
  $region26: #{seq2seq_forward.9} parent=0 // pred_check
    _
  $region27: #{seq2seq_forward.9} parent=0 // pred_check_branch
    %28 = sbr.rel (0) target = $region29
  $region28: #{seq2seq_forward.9} parent=0 // pred_region
    _
  $region29: #{seq2seq_forward.9} parent=0 // pred_fallthru
    _
  // Predicated region
  $region30: #{seq2seq_forward.9} parent=0 // pred_check
    _
  $region31: #{seq2seq_forward.9} parent=0 // pred_check_branch
    %30 = sbr.rel (0) target = $region33
  $region32: #{seq2seq_forward.9} parent=0 // pred_region
    _
  $region33: #{seq2seq_forward.9} parent=0 // pred_fallthru
    _
  %v31 = vld [vmem:[%s0] sm:$0xff]
  %v32 = vld [vmem:[%s0 + $0x8] sm:$0xff]
  %v33 = vld [vmem:[%s0 + $0x10] sm:$0xff]
  %v34 = vld [vmem:[%s0 + $0x18] sm:$0xff]
  %v35 = vld [vmem:[%s0 + $0x20] sm:$0xff]
  %v36 = vld [vmem:[%s0 + $0x28] sm:$0xff]
  %v37 = vld [vmem:[%s0 + $0x30] sm:$0xff]
  %v38 = vld [vmem:[%s0 + $0x38] sm:$0xff]
  %v39 = vld [vmem:[%s0 + $0x40] sm:$0xff]
  %v40 = vld [vmem:[%s0 + $0x48] sm:$0xff]
  %v41 = vld [vmem:[%s0 + $0x50] sm:$0xff]
  %v42 = vld [vmem:[%s0 + $0x58] sm:$0xff]
  %v43 = vld [vmem:[%s0 + $0x60] sm:$0xff]
  %v44 = vld [vmem:[%s0 + $0x68] sm:$0xff]
  %v45 = vld [vmem:[%s0 + $0x70] sm:$0xff]
  %v46 = vld [vmem:[%s0 + $0x78] sm:$0xff]
  %v47 = vld [vmem:[%s0 + $0x80] sm:$0xff]
  %v48 = vld [vmem:[%s0 + $0x88] sm:$0xff]
  %v49 = vld [vmem:[%s0 + $0x90] sm:$0xff]
  %v50 = vld [vmem:[%s0 + $0x98] sm:$0xff]
  %v51 = vld [vmem:[%s0 + $0xa0] sm:$0xff]
  %v52 = vld [vmem:[%s0 + $0xa8] sm:$0xff]
  %v53 = vld [vmem:[%s0 + $0xb0] sm:$0xff]
  %v54 = vld [vmem:[%s0 + $0xb8] sm:$0xff]
  %v55 = vld [vmem:[%s0 + $0xc0] sm:$0xff]
  %v56 = vld [vmem:[%s0 + $0xc8] sm:$0xff]
  %v57 = vld [vmem:[%s0 + $0xd0] sm:$0xff]
  %v58 = vld [vmem:[%s0 + $0xd8] sm:$0xff]
  %v59 = vld [vmem:[%s0 + $0xe0] sm:$0xff]
  %v60 = vld [vmem:[%s0 + $0xe8] sm:$0xff]
  %v61 = vld [vmem:[%s0 + $0xf0] sm:$0xff]
  %v62 = vld [vmem:[%s0 + $0xf8] sm:$0xff]
  %v63 = vld [vmem:[%s0 + $0x100] sm:$0xff]
  %v64 = vld [vmem:[%s0 + $0x108] sm:$0xff]
  %v65 = vld [vmem:[%s0 + $0x110] sm:$0xff]
  %v66 = vld [vmem:[%s0 + $0x118] sm:$0xff]
  %v67 = vld [vmem:[%s0 + $0x120] sm:$0xff]
  %v68 = vld [vmem:[%s0 + $0x128] sm:$0xff]
  %v69 = vld [vmem:[%s0 + $0x130] sm:$0xff]
  %v70 = vld [vmem:[%s0 + $0x138] sm:$0xff]
  %v71 = vld [vmem:[%s0 + $0x140] sm:$0xff]
  %v72 = vld [vmem:[%s0 + $0x148] sm:$0xff]
  %v73 = vld [vmem:[%s0 + $0x150] sm:$0xff]
  %v74 = vld [vmem:[%s0 + $0x158] sm:$0xff]
  %v75 = vld [vmem:[%s0 + $0x160] sm:$0xff]
  %v76 = vld [vmem:[%s0 + $0x168] sm:$0xff]
  %v77 = vld [vmem:[%s0 + $0x170] sm:$0xff]
  %v78 = vld [vmem:[%s0 + $0x178] sm:$0xff]
  %v79 = vld [vmem:[%s0 + $0x180] sm:$0xff]
  %v80 = vld [vmem:[%s0 + $0x188] sm:$0xff]
  %v81 = vld [vmem:[%s0 + $0x190] sm:$0xff]
  %v82 = vld [vmem:[%s0 + $0x198] sm:$0xff]
  %v83 = vld [vmem:[%s0 + $0x1a0] sm:$0xff]
  %v84 = vld [vmem:[%s0 + $0x1a8] sm:$0xff]
  %v85 = vld [vmem:[%s0 + $0x1b0] sm:$0xff]
  %v86 = vld [vmem:[%s0 + $0x1b8] sm:$0xff]
  %v87 = vld [vmem:[%s0 + $0x1c0] sm:$0xff]
  %v88 = vld [vmem:[%s0 + $0x1c8] sm:$0xff]
  %v89 = vld [vmem:[%s0 + $0x1d0] sm:$0xff]
  %v90 = vld [vmem:[%s0 + $0x1d8] sm:$0xff]
  %v91 = vld [vmem:[%s0 + $0x1e0] sm:$0xff]
  %v92 = vld [vmem:[%s0 + $0x1e8] sm:$0xff]
  %v93 = vld [vmem:[%s0 + $0x1f0] sm:$0xff]
  %v94 = vld [vmem:[%s0 + $0x1f8] sm:$0xff]
  %v95 = vld [vmem:[%s0 + $0x200] sm:$0xff]
  %v96 = vld [vmem:[%s0 + $0x208] sm:$0xff]
  %v97 = vld [vmem:[%s0 + $0x210] sm:$0xff]
  %v98 = vld [vmem:[%s0 + $0x218] sm:$0xff]
  %v99 = vld [vmem:[%s0 + $0x220] sm:$0xff]
  %v100 = vld [vmem:[%s0 + $0x228] sm:$0xff]
  %v101 = vld [vmem:[%s0 + $0x230] sm:$0xff]
  %v102 = vld [vmem:[%s0 + $0x238] sm:$0xff]
  %v103 = vld [vmem:[%s0 + $0x240] sm:$0xff]
  %v104 = vld [vmem:[%s0 + $0x248] sm:$0xff]
  %v105 = vld [vmem:[%s0 + $0x250] sm:$0xff]
  %v106 = vld [vmem:[%s0 + $0x258] sm:$0xff]
  %v107 = vld [vmem:[%s0 + $0x260] sm:$0xff]
  %v108 = vld [vmem:[%s0 + $0x268] sm:$0xff]
  %v109 = vld [vmem:[%s0 + $0x270] sm:$0xff]
  %v110 = vld [vmem:[%s0 + $0x278] sm:$0xff]
  %v111 = vld [vmem:[%s0 + $0x280] sm:$0xff]
  %v112 = vld [vmem:[%s0 + $0x288] sm:$0xff]
  %v113 = vld [vmem:[%s0 + $0x290] sm:$0xff]
  %v114 = vld [vmem:[%s0 + $0x298] sm:$0xff]
  %v115 = vld [vmem:[%s0 + $0x2a0] sm:$0xff]
  %v116 = vld [vmem:[%s0 + $0x2a8] sm:$0xff]
  %v117 = vld [vmem:[%s0 + $0x2b0] sm:$0xff]
  %v118 = vld [vmem:[%s0 + $0x2b8] sm:$0xff]
  %v119 = vld [vmem:[%s0 + $0x2c0] sm:$0xff]
  %v120 = vld [vmem:[%s0 + $0x2c8] sm:$0xff]
  %v121 = vld [vmem:[%s0 + $0x2d0] sm:$0xff]
  %v122 = vld [vmem:[%s0 + $0x2d8] sm:$0xff]
  %v123 = vld [vmem:[%s0 + $0x2e0] sm:$0xff]
  %v124 = vld [vmem:[%s0 + $0x2e8] sm:$0xff]
  %v125 = vld [vmem:[%s0 + $0x2f0] sm:$0xff]
  %v126 = vld [vmem:[%s0 + $0x2f8] sm:$0xff]
  %v127 = vld [vmem:[%s0 + $0x300] sm:$0xff]
  %v128 = vld [vmem:[%s0 + $0x308] sm:$0xff]
  %v129 = vld [vmem:[%s0 + $0x310] sm:$0xff]
  %v130 = vld [vmem:[%s0 + $0x318] sm:$0xff]
  %v131 = vld [vmem:[%s0 + $0x320] sm:$0xff]
  %v132 = vld [vmem:[%s0 + $0x328] sm:$0xff]
  %v133 = vld [vmem:[%s0 + $0x330] sm:$0xff]
  %v134 = vld [vmem:[%s0 + $0x338] sm:$0xff]
  %v135 = vld [vmem:[%s0 + $0x340] sm:$0xff]
  %v136 = vld [vmem:[%s0 + $0x348] sm:$0xff]
  %v137 = vld [vmem:[%s0 + $0x350] sm:$0xff]
  %v138 = vld [vmem:[%s0 + $0x358] sm:$0xff]
  %v139 = vld [vmem:[%s0 + $0x360] sm:$0xff]
  %v140 = vld [vmem:[%s0 + $0x368] sm:$0xff]
  %v141 = vld [vmem:[%s0 + $0x370] sm:$0xff]
  %v142 = vld [vmem:[%s0 + $0x378] sm:$0xff]
  %v143 = vld [vmem:[%s0 + $0x380] sm:$0xff]
  %v144 = vld [vmem:[%s0 + $0x388] sm:$0xff]
  %v145 = vld [vmem:[%s0 + $0x390] sm:$0xff]
  %v146 = vld [vmem:[%s0 + $0x398] sm:$0xff]
  %v147 = vld [vmem:[%s0 + $0x3a0] sm:$0xff]
  %v148 = vld [vmem:[%s0 + $0x3a8] sm:$0xff]
  %v149 = vld [vmem:[%s0 + $0x3b0] sm:$0xff]
  %v150 = vld [vmem:[%s0 + $0x3b8] sm:$0xff]
  %v151 = vld [vmem:[%s0 + $0x3c0] sm:$0xff]
  %v152 = vld [vmem:[%s0 + $0x3c8] sm:$0xff]
  %v153 = vld [vmem:[%s0 + $0x3d0] sm:$0xff]
  %v154 = vld [vmem:[%s0 + $0x3d8] sm:$0xff]
  %v155 = vld [vmem:[%s0 + $0x3e0] sm:$0xff]
  %v156 = vld [vmem:[%s0 + $0x3e8] sm:$0xff]
  %v157 = vld [vmem:[%s0 + $0x3f0] sm:$0xff]
  %v158 = vld [vmem:[%s0 + $0x3f8] sm:$0xff]
  %v159 = vld [vmem:[%s0 + $0x400] sm:$0xff]
  %v160 = vld [vmem:[%s0 + $0x408] sm:$0xff]
  %v161 = vld [vmem:[%s0 + $0x410] sm:$0xff]
  %v162 = vld [vmem:[%s0 + $0x418] sm:$0xff]
  %v163 = vld [vmem:[%s0 + $0x420] sm:$0xff]
  %v164 = vld [vmem:[%s0 + $0x428] sm:$0xff]
  %v165 = vld [vmem:[%s0 + $0x430] sm:$0xff]
  %v166 = vld [vmem:[%s0 + $0x438] sm:$0xff]
  %v167 = vld [vmem:[%s0 + $0x440] sm:$0xff]
  %v168 = vld [vmem:[%s0 + $0x448] sm:$0xff]
  %v169 = vld [vmem:[%s0 + $0x450] sm:$0xff]
  %v170 = vld [vmem:[%s0 + $0x458] sm:$0xff]
  %v171 = vld [vmem:[%s0 + $0x460] sm:$0xff]
  %v172 = vld [vmem:[%s0 + $0x468] sm:$0xff]
  %v173 = vld [vmem:[%s0 + $0x470] sm:$0xff]
  %v174 = vld [vmem:[%s0 + $0x478] sm:$0xff]
  %v175 = vld [vmem:[%s0 + $0x480] sm:$0xff]
  %v176 = vld [vmem:[%s0 + $0x488] sm:$0xff]
  %v177 = vld [vmem:[%s0 + $0x490] sm:$0xff]
  %v178 = vld [vmem:[%s0 + $0x498] sm:$0xff]
  %v179 = vld [vmem:[%s0 + $0x4a0] sm:$0xff]
  %v180 = vld [vmem:[%s0 + $0x4a8] sm:$0xff]
  %v181 = vld [vmem:[%s0 + $0x4b0] sm:$0xff]
  %v182 = vld [vmem:[%s0 + $0x4b8] sm:$0xff]
  %v183 = vld [vmem:[%s0 + $0x4c0] sm:$0xff]
  %v184 = vld [vmem:[%s0 + $0x4c8] sm:$0xff]
  %v185 = vld [vmem:[%s0 + $0x4d0] sm:$0xff]
  %v186 = vld [vmem:[%s0 + $0x4d8] sm:$0xff]
  %v187 = vld [vmem:[%s0 + $0x4e0] sm:$0xff]
  %v188 = vld [vmem:[%s0 + $0x4e8] sm:$0xff]
  %v189 = vld [vmem:[%s0 + $0x4f0] sm:$0xff]
  %v190 = vld [vmem:[%s0 + $0x4f8] sm:$0xff]
  %v191 = vld [vmem:[%s0 + $0x500] sm:$0xff]
  %v192 = vld [vmem:[%s0 + $0x508] sm:$0xff]
  %v193 = vld [vmem:[%s0 + $0x510] sm:$0xff]
  %v194 = vld [vmem:[%s0 + $0x518] sm:$0xff]
  %v195 = vld [vmem:[%s0 + $0x520] sm:$0xff]
  %v196 = vld [vmem:[%s0 + $0x528] sm:$0xff]
  %v197 = vld [vmem:[%s0 + $0x530] sm:$0xff]
  %v198 = vld [vmem:[%s0 + $0x538] sm:$0xff]
  %v199 = vld [vmem:[%s0 + $0x540] sm:$0xff]
  %v200 = vld [vmem:[%s0 + $0x548] sm:$0xff]
  %v201 = vld [vmem:[%s0 + $0x550] sm:$0xff]
  %v202 = vld [vmem:[%s0 + $0x558] sm:$0xff]
  %v203 = vld [vmem:[%s0 + $0x560] sm:$0xff]
  %v204 = vld [vmem:[%s0 + $0x568] sm:$0xff]
  %v205 = vld [vmem:[%s0 + $0x570] sm:$0xff]
  %v206 = vld [vmem:[%s0 + $0x578] sm:$0xff]
  %v207 = vld [vmem:[%s0 + $0x580] sm:$0xff]
  %v208 = vld [vmem:[%s0 + $0x588] sm:$0xff]
  %v209 = vld [vmem:[%s0 + $0x590] sm:$0xff]
  %v210 = vld [vmem:[%s0 + $0x598] sm:$0xff]
  %v211 = vld [vmem:[%s0 + $0x5a0] sm:$0xff]
  %v212 = vld [vmem:[%s0 + $0x5a8] sm:$0xff]
  %v213 = vld [vmem:[%s0 + $0x5b0] sm:$0xff]
  %v214 = vld [vmem:[%s0 + $0x5b8] sm:$0xff]
  %v215 = vld [vmem:[%s0 + $0x5c0] sm:$0xff]
  %v216 = vld [vmem:[%s0 + $0x5c8] sm:$0xff]
  %v217 = vld [vmem:[%s0 + $0x5d0] sm:$0xff]
  %v218 = vld [vmem:[%s0 + $0x5d8] sm:$0xff]
  %v219 = vld [vmem:[%s0 + $0x5e0] sm:$0xff]
  %v220 = vld [vmem:[%s0 + $0x5e8] sm:$0xff]
  %v221 = vld [vmem:[%s0 + $0x5f0] sm:$0xff]
  %v222 = vld [vmem:[%s0 + $0x5f8] sm:$0xff]
  %v223 = vld [vmem:[%s0 + $0x600] sm:$0xff]
  %v224 = vld [vmem:[%s0 + $0x608] sm:$0xff]
  %v225 = vld [vmem:[%s0 + $0x610] sm:$0xff]
  %v226 = vld [vmem:[%s0 + $0x618] sm:$0xff]
  %v227 = vld [vmem:[%s0 + $0x620] sm:$0xff]
  %v228 = vld [vmem:[%s0 + $0x628] sm:$0xff]
  %v229 = vld [vmem:[%s0 + $0x630] sm:$0xff]
  %v230 = vld [vmem:[%s0 + $0x638] sm:$0xff]
  %v231 = vld [vmem:[%s0 + $0x640] sm:$0xff]
  %v232 = vld [vmem:[%s0 + $0x648] sm:$0xff]
  %v233 = vld [vmem:[%s0 + $0x650] sm:$0xff]
  %v234 = vld [vmem:[%s0 + $0x658] sm:$0xff]
  %v235 = vld [vmem:[%s0 + $0x660] sm:$0xff]
  %v236 = vld [vmem:[%s0 + $0x668] sm:$0xff]
  %v237 = vld [vmem:[%s0 + $0x670] sm:$0xff]
  %v238 = vld [vmem:[%s0 + $0x678] sm:$0xff]
  %v239 = vld [vmem:[%s0 + $0x680] sm:$0xff]
  %v240 = vld [vmem:[%s0 + $0x688] sm:$0xff]
  %v241 = vld [vmem:[%s0 + $0x690] sm:$0xff]
  %v242 = vld [vmem:[%s0 + $0x698] sm:$0xff]
  %v243 = vld [vmem:[%s0 + $0x6a0] sm:$0xff]
  %v244 = vld [vmem:[%s0 + $0x6a8] sm:$0xff]
  %v245 = vld [vmem:[%s0 + $0x6b0] sm:$0xff]
  %v246 = vld [vmem:[%s0 + $0x6b8] sm:$0xff]
  %v247 = vld [vmem:[%s0 + $0x6c0] sm:$0xff]
  %v248 = vld [vmem:[%s0 + $0x6c8] sm:$0xff]
  %v249 = vld [vmem:[%s0 + $0x6d0] sm:$0xff]
  %v250 = vld [vmem:[%s0 + $0x6d8] sm:$0xff]
  %v251 = vld [vmem:[%s0 + $0x6e0] sm:$0xff]
  %v252 = vld [vmem:[%s0 + $0x6e8] sm:$0xff]
  %v253 = vld [vmem:[%s0 + $0x6f0] sm:$0xff]
  %v254 = vld [vmem:[%s0 + $0x6f8] sm:$0xff]
  %v255 = vld [vmem:[%s0 + $0x700] sm:$0xff]
  %v256 = vld [vmem:[%s0 + $0x708] sm:$0xff]
  %v257 = vld [vmem:[%s0 + $0x710] sm:$0xff]
  %v258 = vld [vmem:[%s0 + $0x718] sm:$0xff]
  %v259 = vld [vmem:[%s0 + $0x720] sm:$0xff]
  %v260 = vld [vmem:[%s0 + $0x728] sm:$0xff]
  %v261 = vld [vmem:[%s0 + $0x730] sm:$0xff]
  %v262 = vld [vmem:[%s0 + $0x738] sm:$0xff]
  %v263 = vld [vmem:[%s0 + $0x740] sm:$0xff]
  %v264 = vld [vmem:[%s0 + $0x748] sm:$0xff]
  %v265 = vld [vmem:[%s0 + $0x750] sm:$0xff]
  %v266 = vld [vmem:[%s0 + $0x758] sm:$0xff]
  %v267 = vld [vmem:[%s0 + $0x760] sm:$0xff]
  %v268 = vld [vmem:[%s0 + $0x768] sm:$0xff]
  %v269 = vld [vmem:[%s0 + $0x770] sm:$0xff]
  %v270 = vld [vmem:[%s0 + $0x778] sm:$0xff]
  %v271 = vld [vmem:[%s0 + $0x780] sm:$0xff]
  %v272 = vld [vmem:[%s0 + $0x788] sm:$0xff]
  %v273 = vld [vmem:[%s0 + $0x790] sm:$0xff]
  %v274 = vld [vmem:[%s0 + $0x798] sm:$0xff]
  %v275 = vld [vmem:[%s0 + $0x7a0] sm:$0xff]
  %v276 = vld [vmem:[%s0 + $0x7a8] sm:$0xff]
  %v277 = vld [vmem:[%s0 + $0x7b0] sm:$0xff]
  %v278 = vld [vmem:[%s0 + $0x7b8] sm:$0xff]
  %v279 = vld [vmem:[%s0 + $0x7c0] sm:$0xff]
  %v280 = vld [vmem:[%s0 + $0x7c8] sm:$0xff]
  %v281 = vld [vmem:[%s0 + $0x7d0] sm:$0xff]
  %v282 = vld [vmem:[%s0 + $0x7d8] sm:$0xff]
  %v283 = vld [vmem:[%s0 + $0x7e0] sm:$0xff]
  %v284 = vld [vmem:[%s0 + $0x7e8] sm:$0xff]
  %v285 = vld [vmem:[%s0 + $0x7f0] sm:$0xff]
  %v286 = vld [vmem:[%s0 + $0x7f8] sm:$0xff]
  %v287 = vld [vmem:[%s1] sm:$0xff]
  %v288 = vld [vmem:[%s1 + $0x8] sm:$0xff]
  %v289 = vld [vmem:[%s1 + $0x10] sm:$0xff]
  %v290 = vld [vmem:[%s1 + $0x18] sm:$0xff]
  %v291 = vld [vmem:[%s1 + $0x20] sm:$0xff]
  %v292 = vld [vmem:[%s1 + $0x28] sm:$0xff]
  %v293 = vld [vmem:[%s1 + $0x30] sm:$0xff]
  %v294 = vld [vmem:[%s1 + $0x38] sm:$0xff]
  %v295 = vld [vmem:[%s2] sm:$0xff]
  %v296 = vld [vmem:[%s2 + $0x8] sm:$0xff]
  %v297 = vld [vmem:[%s2 + $0x10] sm:$0xff]
  %v298 = vld [vmem:[%s2 + $0x18] sm:$0xff]
  %v299 = vld [vmem:[%s2 + $0x20] sm:$0xff]
  %v300 = vld [vmem:[%s2 + $0x28] sm:$0xff]
  %v301 = vld [vmem:[%s2 + $0x30] sm:$0xff]
  %v302 = vld [vmem:[%s2 + $0x38] sm:$0xff]
  %v303 = vld [vmem:[%s2 + $0x40] sm:$0xff]
  %v304 = vld [vmem:[%s2 + $0x48] sm:$0xff]
  %v305 = vld [vmem:[%s2 + $0x50] sm:$0xff]
  %v306 = vld [vmem:[%s2 + $0x58] sm:$0xff]
  %v307 = vld [vmem:[%s2 + $0x60] sm:$0xff]
  %v308 = vld [vmem:[%s2 + $0x68] sm:$0xff]
  %v309 = vld [vmem:[%s2 + $0x70] sm:$0xff]
  %v310 = vld [vmem:[%s2 + $0x78] sm:$0xff]
  %v311 = vld [vmem:[%s2 + $0x80] sm:$0xff]
  %v312 = vld [vmem:[%s2 + $0x88] sm:$0xff]
  %v313 = vld [vmem:[%s2 + $0x90] sm:$0xff]
  %v314 = vld [vmem:[%s2 + $0x98] sm:$0xff]
  %v315 = vld [vmem:[%s2 + $0xa0] sm:$0xff]
  %v316 = vld [vmem:[%s2 + $0xa8] sm:$0xff]
  %v317 = vld [vmem:[%s2 + $0xb0] sm:$0xff]
  %v318 = vld [vmem:[%s2 + $0xb8] sm:$0xff]
  %v319 = vld [vmem:[%s2 + $0xc0] sm:$0xff]
  %v320 = vld [vmem:[%s2 + $0xc8] sm:$0xff]
  %v321 = vld [vmem:[%s2 + $0xd0] sm:$0xff]
  %v322 = vld [vmem:[%s2 + $0xd8] sm:$0xff]
  %v323 = vld [vmem:[%s2 + $0xe0] sm:$0xff]
  %v324 = vld [vmem:[%s2 + $0xe8] sm:$0xff]
  %v325 = vld [vmem:[%s2 + $0xf0] sm:$0xff]
  %v326 = vld [vmem:[%s2 + $0xf8] sm:$0xff]
  %327 = vmatpush.msra.mxu0 %v310
  %328 = vmatpush.msra.mxu0 %v309
  %329 = vmatpush.msra.mxu0 %v308
  %330 = vmatpush.msra.mxu0 %v307
  %331 = vmatpush.msra.mxu0 %v306
  %332 = vmatpush.msra.mxu0 %v305
  %333 = vmatpush.msra.mxu0 %v304
  %334 = vmatpush.msra.mxu0 %v303
  %335 = vmatpush.msra.mxu0 %v302
  %336 = vmatpush.msra.mxu0 %v301
  %337 = vmatpush.msra.mxu0 %v300
  %338 = vmatpush.msra.mxu0 %v299
  %339 = vmatpush.msra.mxu0 %v298
  %340 = vmatpush.msra.mxu0 %v297
  %341 = vmatpush.msra.mxu0 %v296
  %342 = vmatpush.msra.mxu0 %v295
  %343 = vmatmul.f32.gmra.mxu0 %v31
  %v344 = vpop.f32.mrf.mxu0
  %v345 = vadd.f32 0.0, %v344
  %346 = vmatmul.f32.gmra.mxu0 %v33
  %v347 = vpop.f32.mrf.mxu0
  %v348 = vadd.f32 0.0, %v347
  %349 = vmatmul.f32.gmra.mxu0 %v35
  %v350 = vpop.f32.mrf.mxu0
  %v351 = vadd.f32 0.0, %v350
  %352 = vmatmul.f32.gmra.mxu0 %v37
  %v353 = vpop.f32.mrf.mxu0
  %v354 = vadd.f32 0.0, %v353
  %355 = vmatmul.f32.gmra.mxu0 %v39
  %v356 = vpop.f32.mrf.mxu0
  %v357 = vadd.f32 0.0, %v356
  %358 = vmatmul.f32.gmra.mxu0 %v41
  %v359 = vpop.f32.mrf.mxu0
  %v360 = vadd.f32 0.0, %v359
  %361 = vmatmul.f32.gmra.mxu0 %v43
  %v362 = vpop.f32.mrf.mxu0
  %v363 = vadd.f32 0.0, %v362
  %364 = vmatmul.f32.gmra.mxu0 %v45
  %v365 = vpop.f32.mrf.mxu0
  %v366 = vadd.f32 0.0, %v365
  %367 = vmatmul.f32.gmra.mxu0 %v47
  %v368 = vpop.f32.mrf.mxu0
  %v369 = vadd.f32 0.0, %v368
  %370 = vmatmul.f32.gmra.mxu0 %v49
  %v371 = vpop.f32.mrf.mxu0
  %v372 = vadd.f32 0.0, %v371
  %373 = vmatmul.f32.gmra.mxu0 %v51
  %v374 = vpop.f32.mrf.mxu0
  %v375 = vadd.f32 0.0, %v374
  %376 = vmatmul.f32.gmra.mxu0 %v53
  %v377 = vpop.f32.mrf.mxu0
  %v378 = vadd.f32 0.0, %v377
  %379 = vmatmul.f32.gmra.mxu0 %v55
  %v380 = vpop.f32.mrf.mxu0
  %v381 = vadd.f32 0.0, %v380
  %382 = vmatmul.f32.gmra.mxu0 %v57
  %v383 = vpop.f32.mrf.mxu0
  %v384 = vadd.f32 0.0, %v383
  %385 = vmatmul.f32.gmra.mxu0 %v59
  %v386 = vpop.f32.mrf.mxu0
  %v387 = vadd.f32 0.0, %v386
  %388 = vmatmul.f32.gmra.mxu0 %v61
  %v389 = vpop.f32.mrf.mxu0
  %v390 = vadd.f32 0.0, %v389
  %391 = vmatmul.f32.gmra.mxu0 %v63
  %v392 = vpop.f32.mrf.mxu0
  %v393 = vadd.f32 0.0, %v392
  %394 = vmatmul.f32.gmra.mxu0 %v65
  %v395 = vpop.f32.mrf.mxu0
  %v396 = vadd.f32 0.0, %v395
  %397 = vmatmul.f32.gmra.mxu0 %v67
  %v398 = vpop.f32.mrf.mxu0
  %v399 = vadd.f32 0.0, %v398
  %400 = vmatmul.f32.gmra.mxu0 %v69
  %v401 = vpop.f32.mrf.mxu0
  %v402 = vadd.f32 0.0, %v401
  %403 = vmatmul.f32.gmra.mxu0 %v71
  %v404 = vpop.f32.mrf.mxu0
  %v405 = vadd.f32 0.0, %v404
  %406 = vmatmul.f32.gmra.mxu0 %v73
  %v407 = vpop.f32.mrf.mxu0
  %v408 = vadd.f32 0.0, %v407
  %409 = vmatmul.f32.gmra.mxu0 %v75
  %v410 = vpop.f32.mrf.mxu0
  %v411 = vadd.f32 0.0, %v410
  %412 = vmatmul.f32.gmra.mxu0 %v77
  %v413 = vpop.f32.mrf.mxu0
  %v414 = vadd.f32 0.0, %v413
  %415 = vmatmul.f32.gmra.mxu0 %v79
  %v416 = vpop.f32.mrf.mxu0
  %v417 = vadd.f32 0.0, %v416
  %418 = vmatmul.f32.gmra.mxu0 %v81
  %v419 = vpop.f32.mrf.mxu0
  %v420 = vadd.f32 0.0, %v419
  %421 = vmatmul.f32.gmra.mxu0 %v83
  %v422 = vpop.f32.mrf.mxu0
  %v423 = vadd.f32 0.0, %v422
  %424 = vmatmul.f32.gmra.mxu0 %v85
  %v425 = vpop.f32.mrf.mxu0
  %v426 = vadd.f32 0.0, %v425
  %427 = vmatmul.f32.gmra.mxu0 %v87
  %v428 = vpop.f32.mrf.mxu0
  %v429 = vadd.f32 0.0, %v428
  %430 = vmatmul.f32.gmra.mxu0 %v89
  %v431 = vpop.f32.mrf.mxu0
  %v432 = vadd.f32 0.0, %v431
  %433 = vmatmul.f32.gmra.mxu0 %v91
  %v434 = vpop.f32.mrf.mxu0
  %v435 = vadd.f32 0.0, %v434
  %436 = vmatmul.f32.gmra.mxu0 %v93
  %v437 = vpop.f32.mrf.mxu0
  %v438 = vadd.f32 0.0, %v437
  %439 = vmatmul.f32.gmra.mxu0 %v95
  %v440 = vpop.f32.mrf.mxu0
  %v441 = vadd.f32 0.0, %v440
  %442 = vmatmul.f32.gmra.mxu0 %v97
  %v443 = vpop.f32.mrf.mxu0
  %v444 = vadd.f32 0.0, %v443
  %445 = vmatmul.f32.gmra.mxu0 %v99
  %v446 = vpop.f32.mrf.mxu0
  %v447 = vadd.f32 0.0, %v446
  %448 = vmatmul.f32.gmra.mxu0 %v101
  %v449 = vpop.f32.mrf.mxu0
  %v450 = vadd.f32 0.0, %v449
  %451 = vmatmul.f32.gmra.mxu0 %v103
  %v452 = vpop.f32.mrf.mxu0
  %v453 = vadd.f32 0.0, %v452
  %454 = vmatmul.f32.gmra.mxu0 %v105
  %v455 = vpop.f32.mrf.mxu0
  %v456 = vadd.f32 0.0, %v455
  %457 = vmatmul.f32.gmra.mxu0 %v107
  %v458 = vpop.f32.mrf.mxu0
  %v459 = vadd.f32 0.0, %v458
  %460 = vmatmul.f32.gmra.mxu0 %v109
  %v461 = vpop.f32.mrf.mxu0
  %v462 = vadd.f32 0.0, %v461
  %463 = vmatmul.f32.gmra.mxu0 %v111
  %v464 = vpop.f32.mrf.mxu0
  %v465 = vadd.f32 0.0, %v464
  %466 = vmatmul.f32.gmra.mxu0 %v113
  %v467 = vpop.f32.mrf.mxu0
  %v468 = vadd.f32 0.0, %v467
  %469 = vmatmul.f32.gmra.mxu0 %v115
  %v470 = vpop.f32.mrf.mxu0
  %v471 = vadd.f32 0.0, %v470
  %472 = vmatmul.f32.gmra.mxu0 %v117
  %v473 = vpop.f32.mrf.mxu0
  %v474 = vadd.f32 0.0, %v473
  %475 = vmatmul.f32.gmra.mxu0 %v119
  %v476 = vpop.f32.mrf.mxu0
  %v477 = vadd.f32 0.0, %v476
  %478 = vmatmul.f32.gmra.mxu0 %v121
  %v479 = vpop.f32.mrf.mxu0
  %v480 = vadd.f32 0.0, %v479
  %481 = vmatmul.f32.gmra.mxu0 %v123
  %v482 = vpop.f32.mrf.mxu0
  %v483 = vadd.f32 0.0, %v482
  %484 = vmatmul.f32.gmra.mxu0 %v125
  %v485 = vpop.f32.mrf.mxu0
  %v486 = vadd.f32 0.0, %v485
  %487 = vmatmul.f32.gmra.mxu0 %v127
  %v488 = vpop.f32.mrf.mxu0
  %v489 = vadd.f32 0.0, %v488
  %490 = vmatmul.f32.gmra.mxu0 %v129
  %v491 = vpop.f32.mrf.mxu0
  %v492 = vadd.f32 0.0, %v491
  %493 = vmatmul.f32.gmra.mxu0 %v131
  %v494 = vpop.f32.mrf.mxu0
  %v495 = vadd.f32 0.0, %v494
  %496 = vmatmul.f32.gmra.mxu0 %v133
  %v497 = vpop.f32.mrf.mxu0
  %v498 = vadd.f32 0.0, %v497
  %499 = vmatmul.f32.gmra.mxu0 %v135
  %v500 = vpop.f32.mrf.mxu0
  %v501 = vadd.f32 0.0, %v500
  %502 = vmatmul.f32.gmra.mxu0 %v137
  %v503 = vpop.f32.mrf.mxu0
  %v504 = vadd.f32 0.0, %v503
  %505 = vmatmul.f32.gmra.mxu0 %v139
  %v506 = vpop.f32.mrf.mxu0
  %v507 = vadd.f32 0.0, %v506
  %508 = vmatmul.f32.gmra.mxu0 %v141
  %v509 = vpop.f32.mrf.mxu0
  %v510 = vadd.f32 0.0, %v509
  %511 = vmatmul.f32.gmra.mxu0 %v143
  %v512 = vpop.f32.mrf.mxu0
  %v513 = vadd.f32 0.0, %v512
  %514 = vmatmul.f32.gmra.mxu0 %v145
  %v515 = vpop.f32.mrf.mxu0
  %v516 = vadd.f32 0.0, %v515
  %517 = vmatmul.f32.gmra.mxu0 %v147
  %v518 = vpop.f32.mrf.mxu0
  %v519 = vadd.f32 0.0, %v518
  %520 = vmatmul.f32.gmra.mxu0 %v149
  %v521 = vpop.f32.mrf.mxu0
  %v522 = vadd.f32 0.0, %v521
  %523 = vmatmul.f32.gmra.mxu0 %v151
  %v524 = vpop.f32.mrf.mxu0
  %v525 = vadd.f32 0.0, %v524
  %526 = vmatmul.f32.gmra.mxu0 %v153
  %v527 = vpop.f32.mrf.mxu0
  %v528 = vadd.f32 0.0, %v527
  %529 = vmatmul.f32.gmra.mxu0 %v155
  %v530 = vpop.f32.mrf.mxu0
  %v531 = vadd.f32 0.0, %v530
  %532 = vmatmul.f32.gmra.mxu0 %v157
  %v533 = vpop.f32.mrf.mxu0
  %v534 = vadd.f32 0.0, %v533
  %535 = vmatmul.f32.gmra.mxu0 %v159
  %v536 = vpop.f32.mrf.mxu0
  %v537 = vadd.f32 0.0, %v536
  %538 = vmatmul.f32.gmra.mxu0 %v161
  %v539 = vpop.f32.mrf.mxu0
  %v540 = vadd.f32 0.0, %v539
  %541 = vmatmul.f32.gmra.mxu0 %v163
  %v542 = vpop.f32.mrf.mxu0
  %v543 = vadd.f32 0.0, %v542
  %544 = vmatmul.f32.gmra.mxu0 %v165
  %v545 = vpop.f32.mrf.mxu0
  %v546 = vadd.f32 0.0, %v545
  %547 = vmatmul.f32.gmra.mxu0 %v167
  %v548 = vpop.f32.mrf.mxu0
  %v549 = vadd.f32 0.0, %v548
  %550 = vmatmul.f32.gmra.mxu0 %v169
  %v551 = vpop.f32.mrf.mxu0
  %v552 = vadd.f32 0.0, %v551
  %553 = vmatmul.f32.gmra.mxu0 %v171
  %v554 = vpop.f32.mrf.mxu0
  %v555 = vadd.f32 0.0, %v554
  %556 = vmatmul.f32.gmra.mxu0 %v173
  %v557 = vpop.f32.mrf.mxu0
  %v558 = vadd.f32 0.0, %v557
  %559 = vmatmul.f32.gmra.mxu0 %v175
  %v560 = vpop.f32.mrf.mxu0
  %v561 = vadd.f32 0.0, %v560
  %562 = vmatmul.f32.gmra.mxu0 %v177
  %v563 = vpop.f32.mrf.mxu0
  %v564 = vadd.f32 0.0, %v563
  %565 = vmatmul.f32.gmra.mxu0 %v179
  %v566 = vpop.f32.mrf.mxu0
  %v567 = vadd.f32 0.0, %v566
  %568 = vmatmul.f32.gmra.mxu0 %v181
  %v569 = vpop.f32.mrf.mxu0
  %v570 = vadd.f32 0.0, %v569
  %571 = vmatmul.f32.gmra.mxu0 %v183
  %v572 = vpop.f32.mrf.mxu0
  %v573 = vadd.f32 0.0, %v572
  %574 = vmatmul.f32.gmra.mxu0 %v185
  %v575 = vpop.f32.mrf.mxu0
  %v576 = vadd.f32 0.0, %v575
  %577 = vmatmul.f32.gmra.mxu0 %v187
  %v578 = vpop.f32.mrf.mxu0
  %v579 = vadd.f32 0.0, %v578
  %580 = vmatmul.f32.gmra.mxu0 %v189
  %v581 = vpop.f32.mrf.mxu0
  %v582 = vadd.f32 0.0, %v581
  %583 = vmatmul.f32.gmra.mxu0 %v191
  %v584 = vpop.f32.mrf.mxu0
  %v585 = vadd.f32 0.0, %v584
  %586 = vmatmul.f32.gmra.mxu0 %v193
  %v587 = vpop.f32.mrf.mxu0
  %v588 = vadd.f32 0.0, %v587
  %589 = vmatmul.f32.gmra.mxu0 %v195
  %v590 = vpop.f32.mrf.mxu0
  %v591 = vadd.f32 0.0, %v590
  %592 = vmatmul.f32.gmra.mxu0 %v197
  %v593 = vpop.f32.mrf.mxu0
  %v594 = vadd.f32 0.0, %v593
  %595 = vmatmul.f32.gmra.mxu0 %v199
  %v596 = vpop.f32.mrf.mxu0
  %v597 = vadd.f32 0.0, %v596
  %598 = vmatmul.f32.gmra.mxu0 %v201
  %v599 = vpop.f32.mrf.mxu0
  %v600 = vadd.f32 0.0, %v599
  %601 = vmatmul.f32.gmra.mxu0 %v203
  %v602 = vpop.f32.mrf.mxu0
  %v603 = vadd.f32 0.0, %v602
  %604 = vmatmul.f32.gmra.mxu0 %v205
  %v605 = vpop.f32.mrf.mxu0
  %v606 = vadd.f32 0.0, %v605
  %607 = vmatmul.f32.gmra.mxu0 %v207
  %v608 = vpop.f32.mrf.mxu0
  %v609 = vadd.f32 0.0, %v608
  %610 = vmatmul.f32.gmra.mxu0 %v209
  %v611 = vpop.f32.mrf.mxu0
  %v612 = vadd.f32 0.0, %v611
  %613 = vmatmul.f32.gmra.mxu0 %v211
  %v614 = vpop.f32.mrf.mxu0
  %v615 = vadd.f32 0.0, %v614
  %616 = vmatmul.f32.gmra.mxu0 %v213
  %v617 = vpop.f32.mrf.mxu0
  %v618 = vadd.f32 0.0, %v617
  %619 = vmatmul.f32.gmra.mxu0 %v215
  %v620 = vpop.f32.mrf.mxu0
  %v621 = vadd.f32 0.0, %v620
  %622 = vmatmul.f32.gmra.mxu0 %v217
  %v623 = vpop.f32.mrf.mxu0
  %v624 = vadd.f32 0.0, %v623
  %625 = vmatmul.f32.gmra.mxu0 %v219
  %v626 = vpop.f32.mrf.mxu0
  %v627 = vadd.f32 0.0, %v626
  %628 = vmatmul.f32.gmra.mxu0 %v221
  %v629 = vpop.f32.mrf.mxu0
  %v630 = vadd.f32 0.0, %v629
  %631 = vmatmul.f32.gmra.mxu0 %v223
  %v632 = vpop.f32.mrf.mxu0
  %v633 = vadd.f32 0.0, %v632
  %634 = vmatmul.f32.gmra.mxu0 %v225
  %v635 = vpop.f32.mrf.mxu0
  %v636 = vadd.f32 0.0, %v635
  %637 = vmatmul.f32.gmra.mxu0 %v227
  %v638 = vpop.f32.mrf.mxu0
  %v639 = vadd.f32 0.0, %v638
  %640 = vmatmul.f32.gmra.mxu0 %v229
  %v641 = vpop.f32.mrf.mxu0
  %v642 = vadd.f32 0.0, %v641
  %643 = vmatmul.f32.gmra.mxu0 %v231
  %v644 = vpop.f32.mrf.mxu0
  %v645 = vadd.f32 0.0, %v644
  %646 = vmatmul.f32.gmra.mxu0 %v233
  %v647 = vpop.f32.mrf.mxu0
  %v648 = vadd.f32 0.0, %v647
  %649 = vmatmul.f32.gmra.mxu0 %v235
  %v650 = vpop.f32.mrf.mxu0
  %v651 = vadd.f32 0.0, %v650
  %652 = vmatmul.f32.gmra.mxu0 %v237
  %v653 = vpop.f32.mrf.mxu0
  %v654 = vadd.f32 0.0, %v653
  %655 = vmatmul.f32.gmra.mxu0 %v239
  %v656 = vpop.f32.mrf.mxu0
  %v657 = vadd.f32 0.0, %v656
  %658 = vmatmul.f32.gmra.mxu0 %v241
  %v659 = vpop.f32.mrf.mxu0
  %v660 = vadd.f32 0.0, %v659
  %661 = vmatmul.f32.gmra.mxu0 %v243
  %v662 = vpop.f32.mrf.mxu0
  %v663 = vadd.f32 0.0, %v662
  %664 = vmatmul.f32.gmra.mxu0 %v245
  %v665 = vpop.f32.mrf.mxu0
  %v666 = vadd.f32 0.0, %v665
  %667 = vmatmul.f32.gmra.mxu0 %v247
  %v668 = vpop.f32.mrf.mxu0
  %v669 = vadd.f32 0.0, %v668
  %670 = vmatmul.f32.gmra.mxu0 %v249
  %v671 = vpop.f32.mrf.mxu0
  %v672 = vadd.f32 0.0, %v671
  %673 = vmatmul.f32.gmra.mxu0 %v251
  %v674 = vpop.f32.mrf.mxu0
  %v675 = vadd.f32 0.0, %v674
  %676 = vmatmul.f32.gmra.mxu0 %v253
  %v677 = vpop.f32.mrf.mxu0
  %v678 = vadd.f32 0.0, %v677
  %679 = vmatmul.f32.gmra.mxu0 %v255
  %v680 = vpop.f32.mrf.mxu0
  %v681 = vadd.f32 0.0, %v680
  %682 = vmatmul.f32.gmra.mxu0 %v257
  %v683 = vpop.f32.mrf.mxu0
  %v684 = vadd.f32 0.0, %v683
  %685 = vmatmul.f32.gmra.mxu0 %v259
  %v686 = vpop.f32.mrf.mxu0
  %v687 = vadd.f32 0.0, %v686
  %688 = vmatmul.f32.gmra.mxu0 %v261
  %v689 = vpop.f32.mrf.mxu0
  %v690 = vadd.f32 0.0, %v689
  %691 = vmatmul.f32.gmra.mxu0 %v263
  %v692 = vpop.f32.mrf.mxu0
  %v693 = vadd.f32 0.0, %v692
  %694 = vmatmul.f32.gmra.mxu0 %v265
  %v695 = vpop.f32.mrf.mxu0
  %v696 = vadd.f32 0.0, %v695
  %697 = vmatmul.f32.gmra.mxu0 %v267
  %v698 = vpop.f32.mrf.mxu0
  %v699 = vadd.f32 0.0, %v698
  %700 = vmatmul.f32.gmra.mxu0 %v269
  %v701 = vpop.f32.mrf.mxu0
  %v702 = vadd.f32 0.0, %v701
  %703 = vmatmul.f32.gmra.mxu0 %v271
  %v704 = vpop.f32.mrf.mxu0
  %v705 = vadd.f32 0.0, %v704
  %706 = vmatmul.f32.gmra.mxu0 %v273
  %v707 = vpop.f32.mrf.mxu0
  %v708 = vadd.f32 0.0, %v707
  %709 = vmatmul.f32.gmra.mxu0 %v275
  %v710 = vpop.f32.mrf.mxu0
  %v711 = vadd.f32 0.0, %v710
  %712 = vmatmul.f32.gmra.mxu0 %v277
  %v713 = vpop.f32.mrf.mxu0
  %v714 = vadd.f32 0.0, %v713
  %715 = vmatmul.f32.gmra.mxu0 %v279
  %v716 = vpop.f32.mrf.mxu0
  %v717 = vadd.f32 0.0, %v716
  %718 = vmatmul.f32.gmra.mxu0 %v281
  %v719 = vpop.f32.mrf.mxu0
  %v720 = vadd.f32 0.0, %v719
  %721 = vmatmul.f32.gmra.mxu0 %v283
  %v722 = vpop.f32.mrf.mxu0
  %v723 = vadd.f32 0.0, %v722
  %724 = vmatmul.f32.gmra.mxu0 %v285
  %v725 = vpop.f32.mrf.mxu0
  %v726 = vadd.f32 0.0, %v725
  %727 = vdwg.mxu0
  %728 = vmatpush.msra.mxu0 %v326
  %729 = vmatpush.msra.mxu0 %v325
  %730 = vmatpush.msra.mxu0 %v324
  %731 = vmatpush.msra.mxu0 %v323
  %732 = vmatpush.msra.mxu0 %v322
  %733 = vmatpush.msra.mxu0 %v321
  %734 = vmatpush.msra.mxu0 %v320
  %735 = vmatpush.msra.mxu0 %v319
  %736 = vmatpush.msra.mxu0 %v318
  %737 = vmatpush.msra.mxu0 %v317
  %738 = vmatpush.msra.mxu0 %v316
  %739 = vmatpush.msra.mxu0 %v315
  %740 = vmatpush.msra.mxu0 %v314
  %741 = vmatpush.msra.mxu0 %v313
  %742 = vmatpush.msra.mxu0 %v312
  %743 = vmatpush.msra.mxu0 %v311
  %744 = vmatmul.f32.gmra.mxu0 %v32
  %v745 = vpop.f32.mrf.mxu0
  %v746 = vadd.f32 %v345, %v745
  %747 = vmatmul.f32.gmra.mxu0 %v34
  %v748 = vpop.f32.mrf.mxu0
  %v749 = vadd.f32 %v348, %v748
  %750 = vmatmul.f32.gmra.mxu0 %v36
  %v751 = vpop.f32.mrf.mxu0
  %v752 = vadd.f32 %v351, %v751
  %753 = vmatmul.f32.gmra.mxu0 %v38
  %v754 = vpop.f32.mrf.mxu0
  %v755 = vadd.f32 %v354, %v754
  %756 = vmatmul.f32.gmra.mxu0 %v40
  %v757 = vpop.f32.mrf.mxu0
  %v758 = vadd.f32 %v357, %v757
  %759 = vmatmul.f32.gmra.mxu0 %v42
  %v760 = vpop.f32.mrf.mxu0
  %v761 = vadd.f32 %v360, %v760
  %762 = vmatmul.f32.gmra.mxu0 %v44
  %v763 = vpop.f32.mrf.mxu0
  %v764 = vadd.f32 %v363, %v763
  %765 = vmatmul.f32.gmra.mxu0 %v46
  %v766 = vpop.f32.mrf.mxu0
  %v767 = vadd.f32 %v366, %v766
  %768 = vmatmul.f32.gmra.mxu0 %v48
  %v769 = vpop.f32.mrf.mxu0
  %v770 = vadd.f32 %v369, %v769
  %771 = vmatmul.f32.gmra.mxu0 %v50
  %v772 = vpop.f32.mrf.mxu0
  %v773 = vadd.f32 %v372, %v772
  %774 = vmatmul.f32.gmra.mxu0 %v52
  %v775 = vpop.f32.mrf.mxu0
  %v776 = vadd.f32 %v375, %v775
  %777 = vmatmul.f32.gmra.mxu0 %v54
  %v778 = vpop.f32.mrf.mxu0
  %v779 = vadd.f32 %v378, %v778
  %780 = vmatmul.f32.gmra.mxu0 %v56
  %v781 = vpop.f32.mrf.mxu0
  %v782 = vadd.f32 %v381, %v781
  %783 = vmatmul.f32.gmra.mxu0 %v58
  %v784 = vpop.f32.mrf.mxu0
  %v785 = vadd.f32 %v384, %v784
  %786 = vmatmul.f32.gmra.mxu0 %v60
  %v787 = vpop.f32.mrf.mxu0
  %v788 = vadd.f32 %v387, %v787
  %789 = vmatmul.f32.gmra.mxu0 %v62
  %v790 = vpop.f32.mrf.mxu0
  %v791 = vadd.f32 %v390, %v790
  %792 = vmatmul.f32.gmra.mxu0 %v64
  %v793 = vpop.f32.mrf.mxu0
  %v794 = vadd.f32 %v393, %v793
  %795 = vmatmul.f32.gmra.mxu0 %v66
  %v796 = vpop.f32.mrf.mxu0
  %v797 = vadd.f32 %v396, %v796
  %798 = vmatmul.f32.gmra.mxu0 %v68
  %v799 = vpop.f32.mrf.mxu0
  %v800 = vadd.f32 %v399, %v799
  %801 = vmatmul.f32.gmra.mxu0 %v70
  %v802 = vpop.f32.mrf.mxu0
  %v803 = vadd.f32 %v402, %v802
  %804 = vmatmul.f32.gmra.mxu0 %v72
  %v805 = vpop.f32.mrf.mxu0
  %v806 = vadd.f32 %v405, %v805
  %807 = vmatmul.f32.gmra.mxu0 %v74
  %v808 = vpop.f32.mrf.mxu0
  %v809 = vadd.f32 %v408, %v808
  %810 = vmatmul.f32.gmra.mxu0 %v76
  %v811 = vpop.f32.mrf.mxu0
  %v812 = vadd.f32 %v411, %v811
  %813 = vmatmul.f32.gmra.mxu0 %v78
  %v814 = vpop.f32.mrf.mxu0
  %v815 = vadd.f32 %v414, %v814
  %816 = vmatmul.f32.gmra.mxu0 %v80
  %v817 = vpop.f32.mrf.mxu0
  %v818 = vadd.f32 %v417, %v817
  %819 = vmatmul.f32.gmra.mxu0 %v82
  %v820 = vpop.f32.mrf.mxu0
  %v821 = vadd.f32 %v420, %v820
  %822 = vmatmul.f32.gmra.mxu0 %v84
  %v823 = vpop.f32.mrf.mxu0
  %v824 = vadd.f32 %v423, %v823
  %825 = vmatmul.f32.gmra.mxu0 %v86
  %v826 = vpop.f32.mrf.mxu0
  %v827 = vadd.f32 %v426, %v826
  %828 = vmatmul.f32.gmra.mxu0 %v88
  %v829 = vpop.f32.mrf.mxu0
  %v830 = vadd.f32 %v429, %v829
  %831 = vmatmul.f32.gmra.mxu0 %v90
  %v832 = vpop.f32.mrf.mxu0
  %v833 = vadd.f32 %v432, %v832
  %834 = vmatmul.f32.gmra.mxu0 %v92
  %v835 = vpop.f32.mrf.mxu0
  %v836 = vadd.f32 %v435, %v835
  %837 = vmatmul.f32.gmra.mxu0 %v94
  %v838 = vpop.f32.mrf.mxu0
  %v839 = vadd.f32 %v438, %v838
  %840 = vmatmul.f32.gmra.mxu0 %v96
  %v841 = vpop.f32.mrf.mxu0
  %v842 = vadd.f32 %v441, %v841
  %843 = vmatmul.f32.gmra.mxu0 %v98
  %v844 = vpop.f32.mrf.mxu0
  %v845 = vadd.f32 %v444, %v844
  %846 = vmatmul.f32.gmra.mxu0 %v100
  %v847 = vpop.f32.mrf.mxu0
  %v848 = vadd.f32 %v447, %v847
  %849 = vmatmul.f32.gmra.mxu0 %v102
  %v850 = vpop.f32.mrf.mxu0
  %v851 = vadd.f32 %v450, %v850
  %852 = vmatmul.f32.gmra.mxu0 %v104
  %v853 = vpop.f32.mrf.mxu0
  %v854 = vadd.f32 %v453, %v853
  %855 = vmatmul.f32.gmra.mxu0 %v106
  %v856 = vpop.f32.mrf.mxu0
  %v857 = vadd.f32 %v456, %v856
  %858 = vmatmul.f32.gmra.mxu0 %v108
  %v859 = vpop.f32.mrf.mxu0
  %v860 = vadd.f32 %v459, %v859
  %861 = vmatmul.f32.gmra.mxu0 %v110
  %v862 = vpop.f32.mrf.mxu0
  %v863 = vadd.f32 %v462, %v862
  %864 = vmatmul.f32.gmra.mxu0 %v112
  %v865 = vpop.f32.mrf.mxu0
  %v866 = vadd.f32 %v465, %v865
  %867 = vmatmul.f32.gmra.mxu0 %v114
  %v868 = vpop.f32.mrf.mxu0
  %v869 = vadd.f32 %v468, %v868
  %870 = vmatmul.f32.gmra.mxu0 %v116
  %v871 = vpop.f32.mrf.mxu0
  %v872 = vadd.f32 %v471, %v871
  %873 = vmatmul.f32.gmra.mxu0 %v118
  %v874 = vpop.f32.mrf.mxu0
  %v875 = vadd.f32 %v474, %v874
  %876 = vmatmul.f32.gmra.mxu0 %v120
  %v877 = vpop.f32.mrf.mxu0
  %v878 = vadd.f32 %v477, %v877
  %879 = vmatmul.f32.gmra.mxu0 %v122
  %v880 = vpop.f32.mrf.mxu0
  %v881 = vadd.f32 %v480, %v880
  %882 = vmatmul.f32.gmra.mxu0 %v124
  %v883 = vpop.f32.mrf.mxu0
  %v884 = vadd.f32 %v483, %v883
  %885 = vmatmul.f32.gmra.mxu0 %v126
  %v886 = vpop.f32.mrf.mxu0
  %v887 = vadd.f32 %v486, %v886
  %888 = vmatmul.f32.gmra.mxu0 %v128
  %v889 = vpop.f32.mrf.mxu0
  %v890 = vadd.f32 %v489, %v889
  %891 = vmatmul.f32.gmra.mxu0 %v130
  %v892 = vpop.f32.mrf.mxu0
  %v893 = vadd.f32 %v492, %v892
  %894 = vmatmul.f32.gmra.mxu0 %v132
  %v895 = vpop.f32.mrf.mxu0
  %v896 = vadd.f32 %v495, %v895
  %897 = vmatmul.f32.gmra.mxu0 %v134
  %v898 = vpop.f32.mrf.mxu0
  %v899 = vadd.f32 %v498, %v898
  %900 = vmatmul.f32.gmra.mxu0 %v136
  %v901 = vpop.f32.mrf.mxu0
  %v902 = vadd.f32 %v501, %v901
  %903 = vmatmul.f32.gmra.mxu0 %v138
  %v904 = vpop.f32.mrf.mxu0
  %v905 = vadd.f32 %v504, %v904
  %906 = vmatmul.f32.gmra.mxu0 %v140
  %v907 = vpop.f32.mrf.mxu0
  %v908 = vadd.f32 %v507, %v907
  %909 = vmatmul.f32.gmra.mxu0 %v142
  %v910 = vpop.f32.mrf.mxu0
  %v911 = vadd.f32 %v510, %v910
  %912 = vmatmul.f32.gmra.mxu0 %v144
  %v913 = vpop.f32.mrf.mxu0
  %v914 = vadd.f32 %v513, %v913
  %915 = vmatmul.f32.gmra.mxu0 %v146
  %v916 = vpop.f32.mrf.mxu0
  %v917 = vadd.f32 %v516, %v916
  %918 = vmatmul.f32.gmra.mxu0 %v148
  %v919 = vpop.f32.mrf.mxu0
  %v920 = vadd.f32 %v519, %v919
  %921 = vmatmul.f32.gmra.mxu0 %v150
  %v922 = vpop.f32.mrf.mxu0
  %v923 = vadd.f32 %v522, %v922
  %924 = vmatmul.f32.gmra.mxu0 %v152
  %v925 = vpop.f32.mrf.mxu0
  %v926 = vadd.f32 %v525, %v925
  %927 = vmatmul.f32.gmra.mxu0 %v154
  %v928 = vpop.f32.mrf.mxu0
  %v929 = vadd.f32 %v528, %v928
  %930 = vmatmul.f32.gmra.mxu0 %v156
  %v931 = vpop.f32.mrf.mxu0
  %v932 = vadd.f32 %v531, %v931
  %933 = vmatmul.f32.gmra.mxu0 %v158
  %v934 = vpop.f32.mrf.mxu0
  %v935 = vadd.f32 %v534, %v934
  %936 = vmatmul.f32.gmra.mxu0 %v160
  %v937 = vpop.f32.mrf.mxu0
  %v938 = vadd.f32 %v537, %v937
  %939 = vmatmul.f32.gmra.mxu0 %v162
  %v940 = vpop.f32.mrf.mxu0
  %v941 = vadd.f32 %v540, %v940
  %942 = vmatmul.f32.gmra.mxu0 %v164
  %v943 = vpop.f32.mrf.mxu0
  %v944 = vadd.f32 %v543, %v943
  %945 = vmatmul.f32.gmra.mxu0 %v166
  %v946 = vpop.f32.mrf.mxu0
  %v947 = vadd.f32 %v546, %v946
  %948 = vmatmul.f32.gmra.mxu0 %v168
  %v949 = vpop.f32.mrf.mxu0
  %v950 = vadd.f32 %v549, %v949
  %951 = vmatmul.f32.gmra.mxu0 %v170
  %v952 = vpop.f32.mrf.mxu0
  %v953 = vadd.f32 %v552, %v952
  %954 = vmatmul.f32.gmra.mxu0 %v172
  %v955 = vpop.f32.mrf.mxu0
  %v956 = vadd.f32 %v555, %v955
  %957 = vmatmul.f32.gmra.mxu0 %v174
  %v958 = vpop.f32.mrf.mxu0
  %v959 = vadd.f32 %v558, %v958
  %960 = vmatmul.f32.gmra.mxu0 %v176
  %v961 = vpop.f32.mrf.mxu0
  %v962 = vadd.f32 %v561, %v961
  %963 = vmatmul.f32.gmra.mxu0 %v178
  %v964 = vpop.f32.mrf.mxu0
  %v965 = vadd.f32 %v564, %v964
  %966 = vmatmul.f32.gmra.mxu0 %v180
  %v967 = vpop.f32.mrf.mxu0
  %v968 = vadd.f32 %v567, %v967
  %969 = vmatmul.f32.gmra.mxu0 %v182
  %v970 = vpop.f32.mrf.mxu0
  %v971 = vadd.f32 %v570, %v970
  %972 = vmatmul.f32.gmra.mxu0 %v184
  %v973 = vpop.f32.mrf.mxu0
  %v974 = vadd.f32 %v573, %v973
  %975 = vmatmul.f32.gmra.mxu0 %v186
  %v976 = vpop.f32.mrf.mxu0
  %v977 = vadd.f32 %v576, %v976
  %978 = vmatmul.f32.gmra.mxu0 %v188
  %v979 = vpop.f32.mrf.mxu0
  %v980 = vadd.f32 %v579, %v979
  %981 = vmatmul.f32.gmra.mxu0 %v190
  %v982 = vpop.f32.mrf.mxu0
  %v983 = vadd.f32 %v582, %v982
  %984 = vmatmul.f32.gmra.mxu0 %v192
  %v985 = vpop.f32.mrf.mxu0
  %v986 = vadd.f32 %v585, %v985
  %987 = vmatmul.f32.gmra.mxu0 %v194
  %v988 = vpop.f32.mrf.mxu0
  %v989 = vadd.f32 %v588, %v988
  %990 = vmatmul.f32.gmra.mxu0 %v196
  %v991 = vpop.f32.mrf.mxu0
  %v992 = vadd.f32 %v591, %v991
  %993 = vmatmul.f32.gmra.mxu0 %v198
  %v994 = vpop.f32.mrf.mxu0
  %v995 = vadd.f32 %v594, %v994
  %996 = vmatmul.f32.gmra.mxu0 %v200
  %v997 = vpop.f32.mrf.mxu0
  %v998 = vadd.f32 %v597, %v997
  %999 = vmatmul.f32.gmra.mxu0 %v202
  %v1000 = vpop.f32.mrf.mxu0
  %v1001 = vadd.f32 %v600, %v1000
  %1002 = vmatmul.f32.gmra.mxu0 %v204
  %v1003 = vpop.f32.mrf.mxu0
  %v1004 = vadd.f32 %v603, %v1003
  %1005 = vmatmul.f32.gmra.mxu0 %v206
  %v1006 = vpop.f32.mrf.mxu0
  %v1007 = vadd.f32 %v606, %v1006
  %1008 = vmatmul.f32.gmra.mxu0 %v208
  %v1009 = vpop.f32.mrf.mxu0
  %v1010 = vadd.f32 %v609, %v1009
  %1011 = vmatmul.f32.gmra.mxu0 %v210
  %v1012 = vpop.f32.mrf.mxu0
  %v1013 = vadd.f32 %v612, %v1012
  %1014 = vmatmul.f32.gmra.mxu0 %v212
  %v1015 = vpop.f32.mrf.mxu0
  %v1016 = vadd.f32 %v615, %v1015
  %1017 = vmatmul.f32.gmra.mxu0 %v214
  %v1018 = vpop.f32.mrf.mxu0
  %v1019 = vadd.f32 %v618, %v1018
  %1020 = vmatmul.f32.gmra.mxu0 %v216
  %v1021 = vpop.f32.mrf.mxu0
  %v1022 = vadd.f32 %v621, %v1021
  %1023 = vmatmul.f32.gmra.mxu0 %v218
  %v1024 = vpop.f32.mrf.mxu0
  %v1025 = vadd.f32 %v624, %v1024
  %1026 = vmatmul.f32.gmra.mxu0 %v220
  %v1027 = vpop.f32.mrf.mxu0
  %v1028 = vadd.f32 %v627, %v1027
  %1029 = vmatmul.f32.gmra.mxu0 %v222
  %v1030 = vpop.f32.mrf.mxu0
  %v1031 = vadd.f32 %v630, %v1030
  %1032 = vmatmul.f32.gmra.mxu0 %v224
  %v1033 = vpop.f32.mrf.mxu0
  %v1034 = vadd.f32 %v633, %v1033
  %1035 = vmatmul.f32.gmra.mxu0 %v226
  %v1036 = vpop.f32.mrf.mxu0
  %v1037 = vadd.f32 %v636, %v1036
  %1038 = vmatmul.f32.gmra.mxu0 %v228
  %v1039 = vpop.f32.mrf.mxu0
  %v1040 = vadd.f32 %v639, %v1039
  %1041 = vmatmul.f32.gmra.mxu0 %v230
  %v1042 = vpop.f32.mrf.mxu0
  %v1043 = vadd.f32 %v642, %v1042
  %1044 = vmatmul.f32.gmra.mxu0 %v232
  %v1045 = vpop.f32.mrf.mxu0
  %v1046 = vadd.f32 %v645, %v1045
  %1047 = vmatmul.f32.gmra.mxu0 %v234
  %v1048 = vpop.f32.mrf.mxu0
  %v1049 = vadd.f32 %v648, %v1048
  %1050 = vmatmul.f32.gmra.mxu0 %v236
  %v1051 = vpop.f32.mrf.mxu0
  %v1052 = vadd.f32 %v651, %v1051
  %1053 = vmatmul.f32.gmra.mxu0 %v238
  %v1054 = vpop.f32.mrf.mxu0
  %v1055 = vadd.f32 %v654, %v1054
  %1056 = vmatmul.f32.gmra.mxu0 %v240
  %v1057 = vpop.f32.mrf.mxu0
  %v1058 = vadd.f32 %v657, %v1057
  %1059 = vmatmul.f32.gmra.mxu0 %v242
  %v1060 = vpop.f32.mrf.mxu0
  %v1061 = vadd.f32 %v660, %v1060
  %1062 = vmatmul.f32.gmra.mxu0 %v244
  %v1063 = vpop.f32.mrf.mxu0
  %v1064 = vadd.f32 %v663, %v1063
  %1065 = vmatmul.f32.gmra.mxu0 %v246
  %v1066 = vpop.f32.mrf.mxu0
  %v1067 = vadd.f32 %v666, %v1066
  %1068 = vmatmul.f32.gmra.mxu0 %v248
  %v1069 = vpop.f32.mrf.mxu0
  %v1070 = vadd.f32 %v669, %v1069
  %1071 = vmatmul.f32.gmra.mxu0 %v250
  %v1072 = vpop.f32.mrf.mxu0
  %v1073 = vadd.f32 %v672, %v1072
  %1074 = vmatmul.f32.gmra.mxu0 %v252
  %v1075 = vpop.f32.mrf.mxu0
  %v1076 = vadd.f32 %v675, %v1075
  %1077 = vmatmul.f32.gmra.mxu0 %v254
  %v1078 = vpop.f32.mrf.mxu0
  %v1079 = vadd.f32 %v678, %v1078
  %1080 = vmatmul.f32.gmra.mxu0 %v256
  %v1081 = vpop.f32.mrf.mxu0
  %v1082 = vadd.f32 %v681, %v1081
  %1083 = vmatmul.f32.gmra.mxu0 %v258
  %v1084 = vpop.f32.mrf.mxu0
  %v1085 = vadd.f32 %v684, %v1084
  %1086 = vmatmul.f32.gmra.mxu0 %v260
  %v1087 = vpop.f32.mrf.mxu0
  %v1088 = vadd.f32 %v687, %v1087
  %1089 = vmatmul.f32.gmra.mxu0 %v262
  %v1090 = vpop.f32.mrf.mxu0
  %v1091 = vadd.f32 %v690, %v1090
  %1092 = vmatmul.f32.gmra.mxu0 %v264
  %v1093 = vpop.f32.mrf.mxu0
  %v1094 = vadd.f32 %v693, %v1093
  %1095 = vmatmul.f32.gmra.mxu0 %v266
  %v1096 = vpop.f32.mrf.mxu0
  %v1097 = vadd.f32 %v696, %v1096
  %1098 = vmatmul.f32.gmra.mxu0 %v268
  %v1099 = vpop.f32.mrf.mxu0
  %v1100 = vadd.f32 %v699, %v1099
  %1101 = vmatmul.f32.gmra.mxu0 %v270
  %v1102 = vpop.f32.mrf.mxu0
  %v1103 = vadd.f32 %v702, %v1102
  %1104 = vmatmul.f32.gmra.mxu0 %v272
  %v1105 = vpop.f32.mrf.mxu0
  %v1106 = vadd.f32 %v705, %v1105
  %1107 = vmatmul.f32.gmra.mxu0 %v274
  %v1108 = vpop.f32.mrf.mxu0
  %v1109 = vadd.f32 %v708, %v1108
  %1110 = vmatmul.f32.gmra.mxu0 %v276
  %v1111 = vpop.f32.mrf.mxu0
  %v1112 = vadd.f32 %v711, %v1111
  %1113 = vmatmul.f32.gmra.mxu0 %v278
  %v1114 = vpop.f32.mrf.mxu0
  %v1115 = vadd.f32 %v714, %v1114
  %1116 = vmatmul.f32.gmra.mxu0 %v280
  %v1117 = vpop.f32.mrf.mxu0
  %v1118 = vadd.f32 %v717, %v1117
  %1119 = vmatmul.f32.gmra.mxu0 %v282
  %v1120 = vpop.f32.mrf.mxu0
  %v1121 = vadd.f32 %v720, %v1120
  %1122 = vmatmul.f32.gmra.mxu0 %v284
  %v1123 = vpop.f32.mrf.mxu0
  %v1124 = vadd.f32 %v723, %v1123
  %1125 = vmatmul.f32.gmra.mxu0 %v286
  %v1126 = vpop.f32.mrf.mxu0
  %v1127 = vadd.f32 %v726, %v1126
  %1128 = vdwg.mxu0
  %1129 = vmatpush.xpose.msra.mxu0 %v791
  %1130 = vmatpush.xpose.msra.mxu0 %v788
  %1131 = vmatpush.xpose.msra.mxu0 %v785
  %1132 = vmatpush.xpose.msra.mxu0 %v782
  %1133 = vmatpush.xpose.msra.mxu0 %v779
  %1134 = vmatpush.xpose.msra.mxu0 %v776
  %1135 = vmatpush.xpose.msra.mxu0 %v773
  %1136 = vmatpush.xpose.msra.mxu0 %v770
  %1137 = vmatpush.xpose.msra.mxu0 %v767
  %1138 = vmatpush.xpose.msra.mxu0 %v764
  %1139 = vmatpush.xpose.msra.mxu0 %v761
  %1140 = vmatpush.xpose.msra.mxu0 %v758
  %1141 = vmatpush.xpose.msra.mxu0 %v755
  %1142 = vmatpush.xpose.msra.mxu0 %v752
  %1143 = vmatpush.xpose.msra.mxu0 %v749
  %1144 = vmatpush.xpose.msra.mxu0 %v746
  %1145 = vmatmul.f32.gmra.mxu0 %v287
  %v1146 = vpop.f32.mrf.mxu0
  %v1147 = vadd.f32 0.0, %v1146
  %1148 = vdwg.mxu0
  %1149 = vmatpush.xpose.msra.mxu0 %v839
  %1150 = vmatpush.xpose.msra.mxu0 %v836
  %1151 = vmatpush.xpose.msra.mxu0 %v833
  %1152 = vmatpush.xpose.msra.mxu0 %v830
  %1153 = vmatpush.xpose.msra.mxu0 %v827
  %1154 = vmatpush.xpose.msra.mxu0 %v824
  %1155 = vmatpush.xpose.msra.mxu0 %v821
  %1156 = vmatpush.xpose.msra.mxu0 %v818
  %1157 = vmatpush.xpose.msra.mxu0 %v815
  %1158 = vmatpush.xpose.msra.mxu0 %v812
  %1159 = vmatpush.xpose.msra.mxu0 %v809
  %1160 = vmatpush.xpose.msra.mxu0 %v806
  %1161 = vmatpush.xpose.msra.mxu0 %v803
  %1162 = vmatpush.xpose.msra.mxu0 %v800
  %1163 = vmatpush.xpose.msra.mxu0 %v797
  %1164 = vmatpush.xpose.msra.mxu0 %v794
  %1165 = vmatmul.f32.gmra.mxu0 %v288
  %v1166 = vpop.f32.mrf.mxu0
  %v1167 = vadd.f32 0.0, %v1166
  %1168 = vdwg.mxu0
  %1169 = vmatpush.xpose.msra.mxu0 %v887
  %1170 = vmatpush.xpose.msra.mxu0 %v884
  %1171 = vmatpush.xpose.msra.mxu0 %v881
  %1172 = vmatpush.xpose.msra.mxu0 %v878
  %1173 = vmatpush.xpose.msra.mxu0 %v875
  %1174 = vmatpush.xpose.msra.mxu0 %v872
  %1175 = vmatpush.xpose.msra.mxu0 %v869
  %1176 = vmatpush.xpose.msra.mxu0 %v866
  %1177 = vmatpush.xpose.msra.mxu0 %v863
  %1178 = vmatpush.xpose.msra.mxu0 %v860
  %1179 = vmatpush.xpose.msra.mxu0 %v857
  %1180 = vmatpush.xpose.msra.mxu0 %v854
  %1181 = vmatpush.xpose.msra.mxu0 %v851
  %1182 = vmatpush.xpose.msra.mxu0 %v848
  %1183 = vmatpush.xpose.msra.mxu0 %v845
  %1184 = vmatpush.xpose.msra.mxu0 %v842
  %1185 = vmatmul.f32.gmra.mxu0 %v289
  %v1186 = vpop.f32.mrf.mxu0
  %v1187 = vadd.f32 0.0, %v1186
  %1188 = vdwg.mxu0
  %1189 = vmatpush.xpose.msra.mxu0 %v935
  %1190 = vmatpush.xpose.msra.mxu0 %v932
  %1191 = vmatpush.xpose.msra.mxu0 %v929
  %1192 = vmatpush.xpose.msra.mxu0 %v926
  %1193 = vmatpush.xpose.msra.mxu0 %v923
  %1194 = vmatpush.xpose.msra.mxu0 %v920
  %1195 = vmatpush.xpose.msra.mxu0 %v917
  %1196 = vmatpush.xpose.msra.mxu0 %v914
  %1197 = vmatpush.xpose.msra.mxu0 %v911
  %1198 = vmatpush.xpose.msra.mxu0 %v908
  %1199 = vmatpush.xpose.msra.mxu0 %v905
  %1200 = vmatpush.xpose.msra.mxu0 %v902
  %1201 = vmatpush.xpose.msra.mxu0 %v899
  %1202 = vmatpush.xpose.msra.mxu0 %v896
  %1203 = vmatpush.xpose.msra.mxu0 %v893
  %1204 = vmatpush.xpose.msra.mxu0 %v890
  %1205 = vmatmul.f32.gmra.mxu0 %v290
  %v1206 = vpop.f32.mrf.mxu0
  %v1207 = vadd.f32 0.0, %v1206
  %1208 = vdwg.mxu0
  %1209 = vmatpush.xpose.msra.mxu0 %v983
  %1210 = vmatpush.xpose.msra.mxu0 %v980
  %1211 = vmatpush.xpose.msra.mxu0 %v977
  %1212 = vmatpush.xpose.msra.mxu0 %v974
  %1213 = vmatpush.xpose.msra.mxu0 %v971
  %1214 = vmatpush.xpose.msra.mxu0 %v968
  %1215 = vmatpush.xpose.msra.mxu0 %v965
  %1216 = vmatpush.xpose.msra.mxu0 %v962
  %1217 = vmatpush.xpose.msra.mxu0 %v959
  %1218 = vmatpush.xpose.msra.mxu0 %v956
  %1219 = vmatpush.xpose.msra.mxu0 %v953
  %1220 = vmatpush.xpose.msra.mxu0 %v950
  %1221 = vmatpush.xpose.msra.mxu0 %v947
  %1222 = vmatpush.xpose.msra.mxu0 %v944
  %1223 = vmatpush.xpose.msra.mxu0 %v941
  %1224 = vmatpush.xpose.msra.mxu0 %v938
  %1225 = vmatmul.f32.gmra.mxu0 %v291
  %v1226 = vpop.f32.mrf.mxu0
  %v1227 = vadd.f32 0.0, %v1226
  %1228 = vdwg.mxu0
  %1229 = vmatpush.xpose.msra.mxu0 %v1031
  %1230 = vmatpush.xpose.msra.mxu0 %v1028
  %1231 = vmatpush.xpose.msra.mxu0 %v1025
  %1232 = vmatpush.xpose.msra.mxu0 %v1022
  %1233 = vmatpush.xpose.msra.mxu0 %v1019
  %1234 = vmatpush.xpose.msra.mxu0 %v1016
  %1235 = vmatpush.xpose.msra.mxu0 %v1013
  %1236 = vmatpush.xpose.msra.mxu0 %v1010
  %1237 = vmatpush.xpose.msra.mxu0 %v1007
  %1238 = vmatpush.xpose.msra.mxu0 %v1004
  %1239 = vmatpush.xpose.msra.mxu0 %v1001
  %1240 = vmatpush.xpose.msra.mxu0 %v998
  %1241 = vmatpush.xpose.msra.mxu0 %v995
  %1242 = vmatpush.xpose.msra.mxu0 %v992
  %1243 = vmatpush.xpose.msra.mxu0 %v989
  %1244 = vmatpush.xpose.msra.mxu0 %v986
  %1245 = vmatmul.f32.gmra.mxu0 %v292
  %v1246 = vpop.f32.mrf.mxu0
  %v1247 = vadd.f32 0.0, %v1246
  %1248 = vdwg.mxu0
  %1249 = vmatpush.xpose.msra.mxu0 %v1079
  %1250 = vmatpush.xpose.msra.mxu0 %v1076
  %1251 = vmatpush.xpose.msra.mxu0 %v1073
  %1252 = vmatpush.xpose.msra.mxu0 %v1070
  %1253 = vmatpush.xpose.msra.mxu0 %v1067
  %1254 = vmatpush.xpose.msra.mxu0 %v1064
  %1255 = vmatpush.xpose.msra.mxu0 %v1061
  %1256 = vmatpush.xpose.msra.mxu0 %v1058
  %1257 = vmatpush.xpose.msra.mxu0 %v1055
  %1258 = vmatpush.xpose.msra.mxu0 %v1052
  %1259 = vmatpush.xpose.msra.mxu0 %v1049
  %1260 = vmatpush.xpose.msra.mxu0 %v1046
  %1261 = vmatpush.xpose.msra.mxu0 %v1043
  %1262 = vmatpush.xpose.msra.mxu0 %v1040
  %1263 = vmatpush.xpose.msra.mxu0 %v1037
  %1264 = vmatpush.xpose.msra.mxu0 %v1034
  %1265 = vmatmul.f32.gmra.mxu0 %v293
  %v1266 = vpop.f32.mrf.mxu0
  %v1267 = vadd.f32 0.0, %v1266
  %1268 = vdwg.mxu0
  %1269 = vmatpush.xpose.msra.mxu0 %v1127
  %1270 = vmatpush.xpose.msra.mxu0 %v1124
  %1271 = vmatpush.xpose.msra.mxu0 %v1121
  %1272 = vmatpush.xpose.msra.mxu0 %v1118
  %1273 = vmatpush.xpose.msra.mxu0 %v1115
  %1274 = vmatpush.xpose.msra.mxu0 %v1112
  %1275 = vmatpush.xpose.msra.mxu0 %v1109
  %1276 = vmatpush.xpose.msra.mxu0 %v1106
  %1277 = vmatpush.xpose.msra.mxu0 %v1103
  %1278 = vmatpush.xpose.msra.mxu0 %v1100
  %1279 = vmatpush.xpose.msra.mxu0 %v1097
  %1280 = vmatpush.xpose.msra.mxu0 %v1094
  %1281 = vmatpush.xpose.msra.mxu0 %v1091
  %1282 = vmatpush.xpose.msra.mxu0 %v1088
  %1283 = vmatpush.xpose.msra.mxu0 %v1085
  %1284 = vmatpush.xpose.msra.mxu0 %v1082
  %1285 = vmatmul.f32.gmra.mxu0 %v294
  %v1286 = vpop.f32.mrf.mxu0
  %v1287 = vadd.f32 0.0, %v1286
  %1288 = vdwg.mxu0
  %v1289 = vlaneseq
  %v1290 = vand.u32 %v1289, 127
  %vm1291 = vcmp.lt.s32.totalorder %v1290, 10
  %v1292 = vsel %vm1291, 1, 0
  %vm1293 = vcmp.eq.s32.totalorder %v1292, 1
  %v1294 = vsel %vm1293, %v1147, -1e+30
  %v1295 = vsel %vm1293, %v1167, -1e+30
  %v1296 = vsel %vm1293, %v1187, -1e+30
  %v1297 = vsel %vm1293, %v1207, -1e+30
  %v1298 = vsel %vm1293, %v1227, -1e+30
  %v1299 = vsel %vm1293, %v1247, -1e+30
  %v1300 = vsel %vm1293, %v1267, -1e+30
  %v1301 = vsel %vm1293, %v1287, -1e+30
  %1302 = vmax.xlane.f32.xlu0 %v1294
  %v1303 = vpop.xlane.xlu0 %1302
  %1304 = vmax.xlane.f32.xlu0 %v1295
  %v1305 = vpop.xlane.xlu0 %1304
  %1306 = vmax.xlane.f32.xlu0 %v1296
  %v1307 = vpop.xlane.xlu0 %1306
  %1308 = vmax.xlane.f32.xlu0 %v1297
  %v1309 = vpop.xlane.xlu0 %1308
  %1310 = vmax.xlane.f32.xlu0 %v1298
  %v1311 = vpop.xlane.xlu0 %1310
  %1312 = vmax.xlane.f32.xlu0 %v1299
  %v1313 = vpop.xlane.xlu0 %1312
  %1314 = vmax.xlane.f32.xlu0 %v1300
  %v1315 = vpop.xlane.xlu0 %1314
  %1316 = vmax.xlane.f32.xlu0 %v1301
  %v1317 = vpop.xlane.xlu0 %1316
  %v1318 = vsub.f32 %v1294, %v1303
  %v1319 = vsub.f32 %v1295, %v1305
  %v1320 = vsub.f32 %v1296, %v1307
  %v1321 = vsub.f32 %v1297, %v1309
  %v1322 = vsub.f32 %v1298, %v1311
  %v1323 = vsub.f32 %v1299, %v1313
  %v1324 = vsub.f32 %v1300, %v1315
  %v1325 = vsub.f32 %v1301, %v1317
  %v1326 = vmul.f32 %v1318, 1.442695
  %v1327 = vpow.pop %v1326
  %v1328 = vmul.f32 %v1319, 1.442695
  %v1329 = vpow.pop %v1328
  %v1330 = vmul.f32 %v1320, 1.442695
  %v1331 = vpow.pop %v1330
  %v1332 = vmul.f32 %v1321, 1.442695
  %v1333 = vpow.pop %v1332
  %v1334 = vmul.f32 %v1322, 1.442695
  %v1335 = vpow.pop %v1334
  %v1336 = vmul.f32 %v1323, 1.442695
  %v1337 = vpow.pop %v1336
  %v1338 = vmul.f32 %v1324, 1.442695
  %v1339 = vpow.pop %v1338
  %v1340 = vmul.f32 %v1325, 1.442695
  %v1341 = vpow.pop %v1340
  %1342 = vadd.xlane.f32.xlu0 %v1327
  %v1343 = vpop.xlane.xlu0 %1342
  %1344 = vadd.xlane.f32.xlu0 %v1329
  %v1345 = vpop.xlane.xlu0 %1344
  %1346 = vadd.xlane.f32.xlu0 %v1331
  %v1347 = vpop.xlane.xlu0 %1346
  %1348 = vadd.xlane.f32.xlu0 %v1333
  %v1349 = vpop.xlane.xlu0 %1348
  %1350 = vadd.xlane.f32.xlu0 %v1335
  %v1351 = vpop.xlane.xlu0 %1350
  %1352 = vadd.xlane.f32.xlu0 %v1337
  %v1353 = vpop.xlane.xlu0 %1352
  %1354 = vadd.xlane.f32.xlu0 %v1339
  %v1355 = vpop.xlane.xlu0 %1354
  %1356 = vadd.xlane.f32.xlu0 %v1341
  %v1357 = vpop.xlane.xlu0 %1356
  %v1358 = vrcp.pop %v1343
  %v1359 = vrcp.pop %v1345
  %v1360 = vrcp.pop %v1347
  %v1361 = vrcp.pop %v1349
  %v1362 = vrcp.pop %v1351
  %v1363 = vrcp.pop %v1353
  %v1364 = vrcp.pop %v1355
  %v1365 = vrcp.pop %v1357
  %v1366 = vmul.f32 %v1327, %v1358
  %v1367 = vmul.f32 %v1329, %v1359
  %v1368 = vmul.f32 %v1331, %v1360
  %v1369 = vmul.f32 %v1333, %v1361
  %v1370 = vmul.f32 %v1335, %v1362
  %v1371 = vmul.f32 %v1337, %v1363
  %v1372 = vmul.f32 %v1339, %v1364
  %v1373 = vmul.f32 %v1341, %v1365
  %1374 = vst [vmem:[%s9] sm:$0xff] %v1366
  %1375 = vst [vmem:[%s9 + $0x8] sm:$0xff] %v1367
  %1376 = vst [vmem:[%s9 + $0x10] sm:$0xff] %v1368
  %1377 = vst [vmem:[%s9 + $0x18] sm:$0xff] %v1369
  %1378 = vst [vmem:[%s9 + $0x20] sm:$0xff] %v1370
  %1379 = vst [vmem:[%s9 + $0x28] sm:$0xff] %v1371
  %1380 = vst [vmem:[%s9 + $0x30] sm:$0xff] %v1372
  %1381 = vst [vmem:[%s9 + $0x38] sm:$0xff] %v1373
  %1382 = vmatpush.msra.mxu0 %v61
  %1383 = vmatpush.msra.mxu0 %v59
  %1384 = vmatpush.msra.mxu0 %v57
  %1385 = vmatpush.msra.mxu0 %v55
  %1386 = vmatpush.msra.mxu0 %v53
  %1387 = vmatpush.msra.mxu0 %v51
  %1388 = vmatpush.msra.mxu0 %v49
  %1389 = vmatpush.msra.mxu0 %v47
  %1390 = vmatpush.msra.mxu0 %v45
  %1391 = vmatpush.msra.mxu0 %v43
  %1392 = vmatpush.msra.mxu0 %v41
  %1393 = vmatpush.msra.mxu0 %v39
  %1394 = vmatpush.msra.mxu0 %v37
  %1395 = vmatpush.msra.mxu0 %v35
  %1396 = vmatpush.msra.mxu0 %v33
  %1397 = vmatpush.msra.mxu0 %v31
  %1398 = vmatmul.f32.gmra.mxu0 %v1366
  %v1399 = vpop.f32.mrf.mxu0
  %v1400 = vadd.f32 0.0, %v1399
  %1401 = vdwg.mxu0
  %1402 = vmatpush.msra.mxu0 %v62
  %1403 = vmatpush.msra.mxu0 %v60
  %1404 = vmatpush.msra.mxu0 %v58
  %1405 = vmatpush.msra.mxu0 %v56
  %1406 = vmatpush.msra.mxu0 %v54
  %1407 = vmatpush.msra.mxu0 %v52
  %1408 = vmatpush.msra.mxu0 %v50
  %1409 = vmatpush.msra.mxu0 %v48
  %1410 = vmatpush.msra.mxu0 %v46
  %1411 = vmatpush.msra.mxu0 %v44
  %1412 = vmatpush.msra.mxu0 %v42
  %1413 = vmatpush.msra.mxu0 %v40
  %1414 = vmatpush.msra.mxu0 %v38
  %1415 = vmatpush.msra.mxu0 %v36
  %1416 = vmatpush.msra.mxu0 %v34
  %1417 = vmatpush.msra.mxu0 %v32
  %1418 = vmatmul.f32.gmra.mxu0 %v1366
  %v1419 = vpop.f32.mrf.mxu0
  %v1420 = vadd.f32 0.0, %v1419
  %1421 = vdwg.mxu0
  %1422 = vmatpush.msra.mxu0 %v93
  %1423 = vmatpush.msra.mxu0 %v91
  %1424 = vmatpush.msra.mxu0 %v89
  %1425 = vmatpush.msra.mxu0 %v87
  %1426 = vmatpush.msra.mxu0 %v85
  %1427 = vmatpush.msra.mxu0 %v83
  %1428 = vmatpush.msra.mxu0 %v81
  %1429 = vmatpush.msra.mxu0 %v79
  %1430 = vmatpush.msra.mxu0 %v77
  %1431 = vmatpush.msra.mxu0 %v75
  %1432 = vmatpush.msra.mxu0 %v73
  %1433 = vmatpush.msra.mxu0 %v71
  %1434 = vmatpush.msra.mxu0 %v69
  %1435 = vmatpush.msra.mxu0 %v67
  %1436 = vmatpush.msra.mxu0 %v65
  %1437 = vmatpush.msra.mxu0 %v63
  %1438 = vmatmul.f32.gmra.mxu0 %v1367
  %v1439 = vpop.f32.mrf.mxu0
  %v1440 = vadd.f32 0.0, %v1439
  %1441 = vdwg.mxu0
  %1442 = vmatpush.msra.mxu0 %v94
  %1443 = vmatpush.msra.mxu0 %v92
  %1444 = vmatpush.msra.mxu0 %v90
  %1445 = vmatpush.msra.mxu0 %v88
  %1446 = vmatpush.msra.mxu0 %v86
  %1447 = vmatpush.msra.mxu0 %v84
  %1448 = vmatpush.msra.mxu0 %v82
  %1449 = vmatpush.msra.mxu0 %v80
  %1450 = vmatpush.msra.mxu0 %v78
  %1451 = vmatpush.msra.mxu0 %v76
  %1452 = vmatpush.msra.mxu0 %v74
  %1453 = vmatpush.msra.mxu0 %v72
  %1454 = vmatpush.msra.mxu0 %v70
  %1455 = vmatpush.msra.mxu0 %v68
  %1456 = vmatpush.msra.mxu0 %v66
  %1457 = vmatpush.msra.mxu0 %v64
  %1458 = vmatmul.f32.gmra.mxu0 %v1367
  %v1459 = vpop.f32.mrf.mxu0
  %v1460 = vadd.f32 0.0, %v1459
  %1461 = vdwg.mxu0
  %1462 = vmatpush.msra.mxu0 %v125
  %1463 = vmatpush.msra.mxu0 %v123
  %1464 = vmatpush.msra.mxu0 %v121
  %1465 = vmatpush.msra.mxu0 %v119
  %1466 = vmatpush.msra.mxu0 %v117
  %1467 = vmatpush.msra.mxu0 %v115
  %1468 = vmatpush.msra.mxu0 %v113
  %1469 = vmatpush.msra.mxu0 %v111
  %1470 = vmatpush.msra.mxu0 %v109
  %1471 = vmatpush.msra.mxu0 %v107
  %1472 = vmatpush.msra.mxu0 %v105
  %1473 = vmatpush.msra.mxu0 %v103
  %1474 = vmatpush.msra.mxu0 %v101
  %1475 = vmatpush.msra.mxu0 %v99
  %1476 = vmatpush.msra.mxu0 %v97
  %1477 = vmatpush.msra.mxu0 %v95
  %1478 = vmatmul.f32.gmra.mxu0 %v1368
  %v1479 = vpop.f32.mrf.mxu0
  %v1480 = vadd.f32 0.0, %v1479
  %1481 = vdwg.mxu0
  %1482 = vmatpush.msra.mxu0 %v126
  %1483 = vmatpush.msra.mxu0 %v124
  %1484 = vmatpush.msra.mxu0 %v122
  %1485 = vmatpush.msra.mxu0 %v120
  %1486 = vmatpush.msra.mxu0 %v118
  %1487 = vmatpush.msra.mxu0 %v116
  %1488 = vmatpush.msra.mxu0 %v114
  %1489 = vmatpush.msra.mxu0 %v112
  %1490 = vmatpush.msra.mxu0 %v110
  %1491 = vmatpush.msra.mxu0 %v108
  %1492 = vmatpush.msra.mxu0 %v106
  %1493 = vmatpush.msra.mxu0 %v104
  %1494 = vmatpush.msra.mxu0 %v102
  %1495 = vmatpush.msra.mxu0 %v100
  %1496 = vmatpush.msra.mxu0 %v98
  %1497 = vmatpush.msra.mxu0 %v96
  %1498 = vmatmul.f32.gmra.mxu0 %v1368
  %v1499 = vpop.f32.mrf.mxu0
  %v1500 = vadd.f32 0.0, %v1499
  %1501 = vdwg.mxu0
  %1502 = vmatpush.msra.mxu0 %v157
  %1503 = vmatpush.msra.mxu0 %v155
  %1504 = vmatpush.msra.mxu0 %v153
  %1505 = vmatpush.msra.mxu0 %v151
  %1506 = vmatpush.msra.mxu0 %v149
  %1507 = vmatpush.msra.mxu0 %v147
  %1508 = vmatpush.msra.mxu0 %v145
  %1509 = vmatpush.msra.mxu0 %v143
  %1510 = vmatpush.msra.mxu0 %v141
  %1511 = vmatpush.msra.mxu0 %v139
  %1512 = vmatpush.msra.mxu0 %v137
  %1513 = vmatpush.msra.mxu0 %v135
  %1514 = vmatpush.msra.mxu0 %v133
  %1515 = vmatpush.msra.mxu0 %v131
  %1516 = vmatpush.msra.mxu0 %v129
  %1517 = vmatpush.msra.mxu0 %v127
  %1518 = vmatmul.f32.gmra.mxu0 %v1369
  %v1519 = vpop.f32.mrf.mxu0
  %v1520 = vadd.f32 0.0, %v1519
  %1521 = vdwg.mxu0
  %1522 = vmatpush.msra.mxu0 %v158
  %1523 = vmatpush.msra.mxu0 %v156
  %1524 = vmatpush.msra.mxu0 %v154
  %1525 = vmatpush.msra.mxu0 %v152
  %1526 = vmatpush.msra.mxu0 %v150
  %1527 = vmatpush.msra.mxu0 %v148
  %1528 = vmatpush.msra.mxu0 %v146
  %1529 = vmatpush.msra.mxu0 %v144
  %1530 = vmatpush.msra.mxu0 %v142
  %1531 = vmatpush.msra.mxu0 %v140
  %1532 = vmatpush.msra.mxu0 %v138
  %1533 = vmatpush.msra.mxu0 %v136
  %1534 = vmatpush.msra.mxu0 %v134
  %1535 = vmatpush.msra.mxu0 %v132
  %1536 = vmatpush.msra.mxu0 %v130
  %1537 = vmatpush.msra.mxu0 %v128
  %1538 = vmatmul.f32.gmra.mxu0 %v1369
  %v1539 = vpop.f32.mrf.mxu0
  %v1540 = vadd.f32 0.0, %v1539
  %1541 = vdwg.mxu0
  %1542 = vmatpush.msra.mxu0 %v189
  %1543 = vmatpush.msra.mxu0 %v187
  %1544 = vmatpush.msra.mxu0 %v185
  %1545 = vmatpush.msra.mxu0 %v183
  %1546 = vmatpush.msra.mxu0 %v181
  %1547 = vmatpush.msra.mxu0 %v179
  %1548 = vmatpush.msra.mxu0 %v177
  %1549 = vmatpush.msra.mxu0 %v175
  %1550 = vmatpush.msra.mxu0 %v173
  %1551 = vmatpush.msra.mxu0 %v171
  %1552 = vmatpush.msra.mxu0 %v169
  %1553 = vmatpush.msra.mxu0 %v167
  %1554 = vmatpush.msra.mxu0 %v165
  %1555 = vmatpush.msra.mxu0 %v163
  %1556 = vmatpush.msra.mxu0 %v161
  %1557 = vmatpush.msra.mxu0 %v159
  %1558 = vmatmul.f32.gmra.mxu0 %v1370
  %v1559 = vpop.f32.mrf.mxu0
  %v1560 = vadd.f32 0.0, %v1559
  %1561 = vdwg.mxu0
  %1562 = vmatpush.msra.mxu0 %v190
  %1563 = vmatpush.msra.mxu0 %v188
  %1564 = vmatpush.msra.mxu0 %v186
  %1565 = vmatpush.msra.mxu0 %v184
  %1566 = vmatpush.msra.mxu0 %v182
  %1567 = vmatpush.msra.mxu0 %v180
  %1568 = vmatpush.msra.mxu0 %v178
  %1569 = vmatpush.msra.mxu0 %v176
  %1570 = vmatpush.msra.mxu0 %v174
  %1571 = vmatpush.msra.mxu0 %v172
  %1572 = vmatpush.msra.mxu0 %v170
  %1573 = vmatpush.msra.mxu0 %v168
  %1574 = vmatpush.msra.mxu0 %v166
  %1575 = vmatpush.msra.mxu0 %v164
  %1576 = vmatpush.msra.mxu0 %v162
  %1577 = vmatpush.msra.mxu0 %v160
  %1578 = vmatmul.f32.gmra.mxu0 %v1370
  %v1579 = vpop.f32.mrf.mxu0
  %v1580 = vadd.f32 0.0, %v1579
  %1581 = vdwg.mxu0
  %1582 = vmatpush.msra.mxu0 %v221
  %1583 = vmatpush.msra.mxu0 %v219
  %1584 = vmatpush.msra.mxu0 %v217
  %1585 = vmatpush.msra.mxu0 %v215
  %1586 = vmatpush.msra.mxu0 %v213
  %1587 = vmatpush.msra.mxu0 %v211
  %1588 = vmatpush.msra.mxu0 %v209
  %1589 = vmatpush.msra.mxu0 %v207
  %1590 = vmatpush.msra.mxu0 %v205
  %1591 = vmatpush.msra.mxu0 %v203
  %1592 = vmatpush.msra.mxu0 %v201
  %1593 = vmatpush.msra.mxu0 %v199
  %1594 = vmatpush.msra.mxu0 %v197
  %1595 = vmatpush.msra.mxu0 %v195
  %1596 = vmatpush.msra.mxu0 %v193
  %1597 = vmatpush.msra.mxu0 %v191
  %1598 = vmatmul.f32.gmra.mxu0 %v1371
  %v1599 = vpop.f32.mrf.mxu0
  %v1600 = vadd.f32 0.0, %v1599
  %1601 = vdwg.mxu0
  %1602 = vmatpush.msra.mxu0 %v222
  %1603 = vmatpush.msra.mxu0 %v220
  %1604 = vmatpush.msra.mxu0 %v218
  %1605 = vmatpush.msra.mxu0 %v216
  %1606 = vmatpush.msra.mxu0 %v214
  %1607 = vmatpush.msra.mxu0 %v212
  %1608 = vmatpush.msra.mxu0 %v210
  %1609 = vmatpush.msra.mxu0 %v208
  %1610 = vmatpush.msra.mxu0 %v206
  %1611 = vmatpush.msra.mxu0 %v204
  %1612 = vmatpush.msra.mxu0 %v202
  %1613 = vmatpush.msra.mxu0 %v200
  %1614 = vmatpush.msra.mxu0 %v198
  %1615 = vmatpush.msra.mxu0 %v196
  %1616 = vmatpush.msra.mxu0 %v194
  %1617 = vmatpush.msra.mxu0 %v192
  %1618 = vmatmul.f32.gmra.mxu0 %v1371
  %v1619 = vpop.f32.mrf.mxu0
  %v1620 = vadd.f32 0.0, %v1619
  %1621 = vdwg.mxu0
  %1622 = vmatpush.msra.mxu0 %v253
  %1623 = vmatpush.msra.mxu0 %v251
  %1624 = vmatpush.msra.mxu0 %v249
  %1625 = vmatpush.msra.mxu0 %v247
  %1626 = vmatpush.msra.mxu0 %v245
  %1627 = vmatpush.msra.mxu0 %v243
  %1628 = vmatpush.msra.mxu0 %v241
  %1629 = vmatpush.msra.mxu0 %v239
  %1630 = vmatpush.msra.mxu0 %v237
  %1631 = vmatpush.msra.mxu0 %v235
  %1632 = vmatpush.msra.mxu0 %v233
  %1633 = vmatpush.msra.mxu0 %v231
  %1634 = vmatpush.msra.mxu0 %v229
  %1635 = vmatpush.msra.mxu0 %v227
  %1636 = vmatpush.msra.mxu0 %v225
  %1637 = vmatpush.msra.mxu0 %v223
  %1638 = vmatmul.f32.gmra.mxu0 %v1372
  %v1639 = vpop.f32.mrf.mxu0
  %v1640 = vadd.f32 0.0, %v1639
  %1641 = vdwg.mxu0
  %1642 = vmatpush.msra.mxu0 %v254
  %1643 = vmatpush.msra.mxu0 %v252
  %1644 = vmatpush.msra.mxu0 %v250
  %1645 = vmatpush.msra.mxu0 %v248
  %1646 = vmatpush.msra.mxu0 %v246
  %1647 = vmatpush.msra.mxu0 %v244
  %1648 = vmatpush.msra.mxu0 %v242
  %1649 = vmatpush.msra.mxu0 %v240
  %1650 = vmatpush.msra.mxu0 %v238
  %1651 = vmatpush.msra.mxu0 %v236
  %1652 = vmatpush.msra.mxu0 %v234
  %1653 = vmatpush.msra.mxu0 %v232
  %1654 = vmatpush.msra.mxu0 %v230
  %1655 = vmatpush.msra.mxu0 %v228
  %1656 = vmatpush.msra.mxu0 %v226
  %1657 = vmatpush.msra.mxu0 %v224
  %1658 = vmatmul.f32.gmra.mxu0 %v1372
  %v1659 = vpop.f32.mrf.mxu0
  %v1660 = vadd.f32 0.0, %v1659
  %1661 = vdwg.mxu0
  %1662 = vmatpush.msra.mxu0 %v285
  %1663 = vmatpush.msra.mxu0 %v283
  %1664 = vmatpush.msra.mxu0 %v281
  %1665 = vmatpush.msra.mxu0 %v279
  %1666 = vmatpush.msra.mxu0 %v277
  %1667 = vmatpush.msra.mxu0 %v275
  %1668 = vmatpush.msra.mxu0 %v273
  %1669 = vmatpush.msra.mxu0 %v271
  %1670 = vmatpush.msra.mxu0 %v269
  %1671 = vmatpush.msra.mxu0 %v267
  %1672 = vmatpush.msra.mxu0 %v265
  %1673 = vmatpush.msra.mxu0 %v263
  %1674 = vmatpush.msra.mxu0 %v261
  %1675 = vmatpush.msra.mxu0 %v259
  %1676 = vmatpush.msra.mxu0 %v257
  %1677 = vmatpush.msra.mxu0 %v255
  %1678 = vmatmul.f32.gmra.mxu0 %v1373
  %v1679 = vpop.f32.mrf.mxu0
  %v1680 = vadd.f32 0.0, %v1679
  %1681 = vdwg.mxu0
  %1682 = vmatpush.msra.mxu0 %v286
  %1683 = vmatpush.msra.mxu0 %v284
  %1684 = vmatpush.msra.mxu0 %v282
  %1685 = vmatpush.msra.mxu0 %v280
  %1686 = vmatpush.msra.mxu0 %v278
  %1687 = vmatpush.msra.mxu0 %v276
  %1688 = vmatpush.msra.mxu0 %v274
  %1689 = vmatpush.msra.mxu0 %v272
  %1690 = vmatpush.msra.mxu0 %v270
  %1691 = vmatpush.msra.mxu0 %v268
  %1692 = vmatpush.msra.mxu0 %v266
  %1693 = vmatpush.msra.mxu0 %v264
  %1694 = vmatpush.msra.mxu0 %v262
  %1695 = vmatpush.msra.mxu0 %v260
  %1696 = vmatpush.msra.mxu0 %v258
  %1697 = vmatpush.msra.mxu0 %v256
  %1698 = vmatmul.f32.gmra.mxu0 %v1373
  %v1699 = vpop.f32.mrf.mxu0
  %v1700 = vadd.f32 0.0, %v1699
  %1701 = vdwg.mxu0
  %v1702 = vld [vmem:[%s3] sm:$0xff]
  %v1703 = vld [vmem:[%s3 + $0x8] sm:$0xff]
  %v1704 = vld [vmem:[%s3 + $0x10] sm:$0xff]
  %v1705 = vld [vmem:[%s3 + $0x18] sm:$0xff]
  %v1706 = vld [vmem:[%s3 + $0x20] sm:$0xff]
  %v1707 = vld [vmem:[%s3 + $0x28] sm:$0xff]
  %v1708 = vld [vmem:[%s3 + $0x30] sm:$0xff]
  %v1709 = vld [vmem:[%s3 + $0x38] sm:$0xff]
  %v1710 = vld [vmem:[%s3 + $0x40] sm:$0xff]
  %v1711 = vld [vmem:[%s3 + $0x48] sm:$0xff]
  %v1712 = vld [vmem:[%s3 + $0x50] sm:$0xff]
  %v1713 = vld [vmem:[%s3 + $0x58] sm:$0xff]
  %v1714 = vld [vmem:[%s3 + $0x60] sm:$0xff]
  %v1715 = vld [vmem:[%s3 + $0x68] sm:$0xff]
  %v1716 = vld [vmem:[%s3 + $0x70] sm:$0xff]
  %v1717 = vld [vmem:[%s3 + $0x78] sm:$0xff]
  %v1718 = vld [vmem:[%s3 + $0x80] sm:$0xff]
  %v1719 = vld [vmem:[%s3 + $0x88] sm:$0xff]
  %v1720 = vld [vmem:[%s3 + $0x90] sm:$0xff]
  %v1721 = vld [vmem:[%s3 + $0x98] sm:$0xff]
  %v1722 = vld [vmem:[%s3 + $0xa0] sm:$0xff]
  %v1723 = vld [vmem:[%s3 + $0xa8] sm:$0xff]
  %v1724 = vld [vmem:[%s3 + $0xb0] sm:$0xff]
  %v1725 = vld [vmem:[%s3 + $0xb8] sm:$0xff]
  %v1726 = vld [vmem:[%s3 + $0xc0] sm:$0xff]
  %v1727 = vld [vmem:[%s3 + $0xc8] sm:$0xff]
  %v1728 = vld [vmem:[%s3 + $0xd0] sm:$0xff]
  %v1729 = vld [vmem:[%s3 + $0xd8] sm:$0xff]
  %v1730 = vld [vmem:[%s3 + $0xe0] sm:$0xff]
  %v1731 = vld [vmem:[%s3 + $0xe8] sm:$0xff]
  %v1732 = vld [vmem:[%s3 + $0xf0] sm:$0xff]
  %v1733 = vld [vmem:[%s3 + $0xf8] sm:$0xff]
  %v1734 = vld [vmem:[%s4] sm:$0xff]
  %v1735 = vld [vmem:[%s4 + $0x8] sm:$0xff]
  %v1736 = vld [vmem:[%s4 + $0x10] sm:$0xff]
  %v1737 = vld [vmem:[%s4 + $0x18] sm:$0xff]
  %v1738 = vld [vmem:[%s4 + $0x20] sm:$0xff]
  %v1739 = vld [vmem:[%s4 + $0x28] sm:$0xff]
  %v1740 = vld [vmem:[%s4 + $0x30] sm:$0xff]
  %v1741 = vld [vmem:[%s4 + $0x38] sm:$0xff]
  %v1742 = vld [vmem:[%s4 + $0x40] sm:$0xff]
  %v1743 = vld [vmem:[%s4 + $0x48] sm:$0xff]
  %v1744 = vld [vmem:[%s4 + $0x50] sm:$0xff]
  %v1745 = vld [vmem:[%s4 + $0x58] sm:$0xff]
  %v1746 = vld [vmem:[%s4 + $0x60] sm:$0xff]
  %v1747 = vld [vmem:[%s4 + $0x68] sm:$0xff]
  %v1748 = vld [vmem:[%s4 + $0x70] sm:$0xff]
  %v1749 = vld [vmem:[%s4 + $0x78] sm:$0xff]
  %1750 = vmatpush.msra.mxu0 %v1749
  %1751 = vmatpush.msra.mxu0 %v1748
  %1752 = vmatpush.msra.mxu0 %v1747
  %1753 = vmatpush.msra.mxu0 %v1746
  %1754 = vmatpush.msra.mxu0 %v1745
  %1755 = vmatpush.msra.mxu0 %v1744
  %1756 = vmatpush.msra.mxu0 %v1743
  %1757 = vmatpush.msra.mxu0 %v1742
  %1758 = vmatpush.msra.mxu0 %v1741
  %1759 = vmatpush.msra.mxu0 %v1740
  %1760 = vmatpush.msra.mxu0 %v1739
  %1761 = vmatpush.msra.mxu0 %v1738
  %1762 = vmatpush.msra.mxu0 %v1737
  %1763 = vmatpush.msra.mxu0 %v1736
  %1764 = vmatpush.msra.mxu0 %v1735
  %1765 = vmatpush.msra.mxu0 %v1734
  %1766 = vmatmul.f32.gmra.mxu0 %v287
  %v1767 = vpop.f32.mrf.mxu0
  %v1768 = vadd.f32 0.0, %v1767
  %1769 = vmatmul.f32.gmra.mxu0 %v288
  %v1770 = vpop.f32.mrf.mxu0
  %v1771 = vadd.f32 0.0, %v1770
  %1772 = vmatmul.f32.gmra.mxu0 %v289
  %v1773 = vpop.f32.mrf.mxu0
  %v1774 = vadd.f32 0.0, %v1773
  %1775 = vmatmul.f32.gmra.mxu0 %v290
  %v1776 = vpop.f32.mrf.mxu0
  %v1777 = vadd.f32 0.0, %v1776
  %1778 = vmatmul.f32.gmra.mxu0 %v291
  %v1779 = vpop.f32.mrf.mxu0
  %v1780 = vadd.f32 0.0, %v1779
  %1781 = vmatmul.f32.gmra.mxu0 %v292
  %v1782 = vpop.f32.mrf.mxu0
  %v1783 = vadd.f32 0.0, %v1782
  %1784 = vmatmul.f32.gmra.mxu0 %v293
  %v1785 = vpop.f32.mrf.mxu0
  %v1786 = vadd.f32 0.0, %v1785
  %1787 = vmatmul.f32.gmra.mxu0 %v294
  %v1788 = vpop.f32.mrf.mxu0
  %v1789 = vadd.f32 0.0, %v1788
  %1790 = vdwg.mxu0
  %1791 = vmatpush.msra.mxu0 %v1717
  %1792 = vmatpush.msra.mxu0 %v1716
  %1793 = vmatpush.msra.mxu0 %v1715
  %1794 = vmatpush.msra.mxu0 %v1714
  %1795 = vmatpush.msra.mxu0 %v1713
  %1796 = vmatpush.msra.mxu0 %v1712
  %1797 = vmatpush.msra.mxu0 %v1711
  %1798 = vmatpush.msra.mxu0 %v1710
  %1799 = vmatpush.msra.mxu0 %v1709
  %1800 = vmatpush.msra.mxu0 %v1708
  %1801 = vmatpush.msra.mxu0 %v1707
  %1802 = vmatpush.msra.mxu0 %v1706
  %1803 = vmatpush.msra.mxu0 %v1705
  %1804 = vmatpush.msra.mxu0 %v1704
  %1805 = vmatpush.msra.mxu0 %v1703
  %1806 = vmatpush.msra.mxu0 %v1702
  %1807 = vmatmul.f32.gmra.mxu0 %v1400
  %v1808 = vpop.f32.mrf.mxu0
  %v1809 = vadd.f32 %v1768, %v1808
  %1810 = vmatmul.f32.gmra.mxu0 %v1440
  %v1811 = vpop.f32.mrf.mxu0
  %v1812 = vadd.f32 %v1771, %v1811
  %1813 = vmatmul.f32.gmra.mxu0 %v1480
  %v1814 = vpop.f32.mrf.mxu0
  %v1815 = vadd.f32 %v1774, %v1814
  %1816 = vmatmul.f32.gmra.mxu0 %v1520
  %v1817 = vpop.f32.mrf.mxu0
  %v1818 = vadd.f32 %v1777, %v1817
  %1819 = vmatmul.f32.gmra.mxu0 %v1560
  %v1820 = vpop.f32.mrf.mxu0
  %v1821 = vadd.f32 %v1780, %v1820
  %1822 = vmatmul.f32.gmra.mxu0 %v1600
  %v1823 = vpop.f32.mrf.mxu0
  %v1824 = vadd.f32 %v1783, %v1823
  %1825 = vmatmul.f32.gmra.mxu0 %v1640
  %v1826 = vpop.f32.mrf.mxu0
  %v1827 = vadd.f32 %v1786, %v1826
  %1828 = vmatmul.f32.gmra.mxu0 %v1680
  %v1829 = vpop.f32.mrf.mxu0
  %v1830 = vadd.f32 %v1789, %v1829
  %1831 = vdwg.mxu0
  %1832 = vmatpush.msra.mxu0 %v1733
  %1833 = vmatpush.msra.mxu0 %v1732
  %1834 = vmatpush.msra.mxu0 %v1731
  %1835 = vmatpush.msra.mxu0 %v1730
  %1836 = vmatpush.msra.mxu0 %v1729
  %1837 = vmatpush.msra.mxu0 %v1728
  %1838 = vmatpush.msra.mxu0 %v1727
  %1839 = vmatpush.msra.mxu0 %v1726
  %1840 = vmatpush.msra.mxu0 %v1725
  %1841 = vmatpush.msra.mxu0 %v1724
  %1842 = vmatpush.msra.mxu0 %v1723
  %1843 = vmatpush.msra.mxu0 %v1722
  %1844 = vmatpush.msra.mxu0 %v1721
  %1845 = vmatpush.msra.mxu0 %v1720
  %1846 = vmatpush.msra.mxu0 %v1719
  %1847 = vmatpush.msra.mxu0 %v1718
  %1848 = vmatmul.f32.gmra.mxu0 %v1420
  %v1849 = vpop.f32.mrf.mxu0
  %v1850 = vadd.f32 %v1809, %v1849
  %1851 = vmatmul.f32.gmra.mxu0 %v1460
  %v1852 = vpop.f32.mrf.mxu0
  %v1853 = vadd.f32 %v1812, %v1852
  %1854 = vmatmul.f32.gmra.mxu0 %v1500
  %v1855 = vpop.f32.mrf.mxu0
  %v1856 = vadd.f32 %v1815, %v1855
  %1857 = vmatmul.f32.gmra.mxu0 %v1540
  %v1858 = vpop.f32.mrf.mxu0
  %v1859 = vadd.f32 %v1818, %v1858
  %1860 = vmatmul.f32.gmra.mxu0 %v1580
  %v1861 = vpop.f32.mrf.mxu0
  %v1862 = vadd.f32 %v1821, %v1861
  %1863 = vmatmul.f32.gmra.mxu0 %v1620
  %v1864 = vpop.f32.mrf.mxu0
  %v1865 = vadd.f32 %v1824, %v1864
  %1866 = vmatmul.f32.gmra.mxu0 %v1660
  %v1867 = vpop.f32.mrf.mxu0
  %v1868 = vadd.f32 %v1827, %v1867
  %1869 = vmatmul.f32.gmra.mxu0 %v1700
  %v1870 = vpop.f32.mrf.mxu0
  %v1871 = vadd.f32 %v1830, %v1870
  %1872 = vdwg.mxu0
  %v1873 = vld [vmem:[%s5] sm:$0x1]
  %v1875 = vperm.slane %v1873, 0
  %v1877 = vadd.f32 %v1850, %v1875
  %v1878 = vadd.f32 %v1853, %v1875
  %v1879 = vadd.f32 %v1856, %v1875
  %v1880 = vadd.f32 %v1859, %v1875
  %v1881 = vadd.f32 %v1862, %v1875
  %v1882 = vadd.f32 %v1865, %v1875
  %v1883 = vadd.f32 %v1868, %v1875
  %v1884 = vadd.f32 %v1871, %v1875
  %v1885 = vtanh.pop %v1877
  %v1886 = vtanh.pop %v1878
  %v1887 = vtanh.pop %v1879
  %v1888 = vtanh.pop %v1880
  %v1889 = vtanh.pop %v1881
  %v1890 = vtanh.pop %v1882
  %v1891 = vtanh.pop %v1883
  %v1892 = vtanh.pop %v1884
  %v1893 = vld [vmem:[%s6] sm:$0xff]
  %v1894 = vld [vmem:[%s6 + $0x8] sm:$0xff]
  %v1895 = vld [vmem:[%s6 + $0x10] sm:$0xff]
  %v1896 = vld [vmem:[%s6 + $0x18] sm:$0xff]
  %v1897 = vld [vmem:[%s6 + $0x20] sm:$0xff]
  %v1898 = vld [vmem:[%s6 + $0x28] sm:$0xff]
  %v1899 = vld [vmem:[%s6 + $0x30] sm:$0xff]
  %v1900 = vld [vmem:[%s6 + $0x38] sm:$0xff]
  %v1901 = vld [vmem:[%s6 + $0x40] sm:$0xff]
  %v1902 = vld [vmem:[%s6 + $0x48] sm:$0xff]
  %v1903 = vld [vmem:[%s6 + $0x50] sm:$0xff]
  %v1904 = vld [vmem:[%s6 + $0x58] sm:$0xff]
  %v1905 = vld [vmem:[%s6 + $0x60] sm:$0xff]
  %v1906 = vld [vmem:[%s6 + $0x68] sm:$0xff]
  %v1907 = vld [vmem:[%s6 + $0x70] sm:$0xff]
  %v1908 = vld [vmem:[%s6 + $0x78] sm:$0xff]
  %v1909 = vld [vmem:[%s7] sm:$0x1]
  %v1911 = vperm.slane %v1909, 0
  %1913 = vmatpush.msra.mxu0 %v1908
  %1914 = vmatpush.msra.mxu0 %v1907
  %1915 = vmatpush.msra.mxu0 %v1906
  %1916 = vmatpush.msra.mxu0 %v1905
  %1917 = vmatpush.msra.mxu0 %v1904
  %1918 = vmatpush.msra.mxu0 %v1903
  %1919 = vmatpush.msra.mxu0 %v1902
  %1920 = vmatpush.msra.mxu0 %v1901
  %1921 = vmatpush.msra.mxu0 %v1900
  %1922 = vmatpush.msra.mxu0 %v1899
  %1923 = vmatpush.msra.mxu0 %v1898
  %1924 = vmatpush.msra.mxu0 %v1897
  %1925 = vmatpush.msra.mxu0 %v1896
  %1926 = vmatpush.msra.mxu0 %v1895
  %1927 = vmatpush.msra.mxu0 %v1894
  %1928 = vmatpush.msra.mxu0 %v1893
  %1929 = vmatmul.f32.gmra.mxu0 %v1885
  %v1930 = vpop.f32.mrf.mxu0
  %v1931 = vadd.f32 %v1911, %v1930
  %1932 = vmatmul.f32.gmra.mxu0 %v1886
  %v1933 = vpop.f32.mrf.mxu0
  %v1934 = vadd.f32 %v1911, %v1933
  %1935 = vmatmul.f32.gmra.mxu0 %v1887
  %v1936 = vpop.f32.mrf.mxu0
  %v1937 = vadd.f32 %v1911, %v1936
  %1938 = vmatmul.f32.gmra.mxu0 %v1888
  %v1939 = vpop.f32.mrf.mxu0
  %v1940 = vadd.f32 %v1911, %v1939
  %1941 = vmatmul.f32.gmra.mxu0 %v1889
  %v1942 = vpop.f32.mrf.mxu0
  %v1943 = vadd.f32 %v1911, %v1942
  %1944 = vmatmul.f32.gmra.mxu0 %v1890
  %v1945 = vpop.f32.mrf.mxu0
  %v1946 = vadd.f32 %v1911, %v1945
  %1947 = vmatmul.f32.gmra.mxu0 %v1891
  %v1948 = vpop.f32.mrf.mxu0
  %v1949 = vadd.f32 %v1911, %v1948
  %1950 = vmatmul.f32.gmra.mxu0 %v1892
  %v1951 = vpop.f32.mrf.mxu0
  %v1952 = vadd.f32 %v1911, %v1951
  %1953 = vdwg.mxu0
  %vm1954 = vcmp.lt.s32.totalorder %v1290, 64
  %v1955 = vsel %vm1954, 1, 0
  %vm1956 = vcmp.eq.s32.totalorder %v1955, 1
  %v1957 = vsel %vm1956, %v1931, -1e+30
  %v1958 = vsel %vm1956, %v1934, -1e+30
  %v1959 = vsel %vm1956, %v1937, -1e+30
  %v1960 = vsel %vm1956, %v1940, -1e+30
  %v1961 = vsel %vm1956, %v1943, -1e+30
  %v1962 = vsel %vm1956, %v1946, -1e+30
  %v1963 = vsel %vm1956, %v1949, -1e+30
  %v1964 = vsel %vm1956, %v1952, -1e+30
  %1965 = vmax.xlane.f32.xlu0 %v1957
  %v1966 = vpop.xlane.xlu0 %1965
  %1967 = vmax.xlane.f32.xlu0 %v1958
  %v1968 = vpop.xlane.xlu0 %1967
  %1969 = vmax.xlane.f32.xlu0 %v1959
  %v1970 = vpop.xlane.xlu0 %1969
  %1971 = vmax.xlane.f32.xlu0 %v1960
  %v1972 = vpop.xlane.xlu0 %1971
  %1973 = vmax.xlane.f32.xlu0 %v1961
  %v1974 = vpop.xlane.xlu0 %1973
  %1975 = vmax.xlane.f32.xlu0 %v1962
  %v1976 = vpop.xlane.xlu0 %1975
  %1977 = vmax.xlane.f32.xlu0 %v1963
  %v1978 = vpop.xlane.xlu0 %1977
  %1979 = vmax.xlane.f32.xlu0 %v1964
  %v1980 = vpop.xlane.xlu0 %1979
  %v1981 = vsub.f32 %v1957, %v1966
  %v1982 = vsub.f32 %v1958, %v1968
  %v1983 = vsub.f32 %v1959, %v1970
  %v1984 = vsub.f32 %v1960, %v1972
  %v1985 = vsub.f32 %v1961, %v1974
  %v1986 = vsub.f32 %v1962, %v1976
  %v1987 = vsub.f32 %v1963, %v1978
  %v1988 = vsub.f32 %v1964, %v1980
  %v1989 = vmul.f32 %v1981, 1.442695
  %v1990 = vpow.pop %v1989
  %v1991 = vmul.f32 %v1982, 1.442695
  %v1992 = vpow.pop %v1991
  %v1993 = vmul.f32 %v1983, 1.442695
  %v1994 = vpow.pop %v1993
  %v1995 = vmul.f32 %v1984, 1.442695
  %v1996 = vpow.pop %v1995
  %v1997 = vmul.f32 %v1985, 1.442695
  %v1998 = vpow.pop %v1997
  %v1999 = vmul.f32 %v1986, 1.442695
  %v2000 = vpow.pop %v1999
  %v2001 = vmul.f32 %v1987, 1.442695
  %v2002 = vpow.pop %v2001
  %v2003 = vmul.f32 %v1988, 1.442695
  %v2004 = vpow.pop %v2003
  %2005 = vadd.xlane.f32.xlu0 %v1990
  %v2006 = vpop.xlane.xlu0 %2005
  %2007 = vadd.xlane.f32.xlu0 %v1992
  %v2008 = vpop.xlane.xlu0 %2007
  %2009 = vadd.xlane.f32.xlu0 %v1994
  %v2010 = vpop.xlane.xlu0 %2009
  %2011 = vadd.xlane.f32.xlu0 %v1996
  %v2012 = vpop.xlane.xlu0 %2011
  %2013 = vadd.xlane.f32.xlu0 %v1998
  %v2014 = vpop.xlane.xlu0 %2013
  %2015 = vadd.xlane.f32.xlu0 %v2000
  %v2016 = vpop.xlane.xlu0 %2015
  %2017 = vadd.xlane.f32.xlu0 %v2002
  %v2018 = vpop.xlane.xlu0 %2017
  %2019 = vadd.xlane.f32.xlu0 %v2004
  %v2020 = vpop.xlane.xlu0 %2019
  %v2021 = vlog2.pop %v2006
  %v2022 = vmul.f32 %v2021, 0.6931472
  %v2023 = vlog2.pop %v2008
  %v2024 = vmul.f32 %v2023, 0.6931472
  %v2025 = vlog2.pop %v2010
  %v2026 = vmul.f32 %v2025, 0.6931472
  %v2027 = vlog2.pop %v2012
  %v2028 = vmul.f32 %v2027, 0.6931472
  %v2029 = vlog2.pop %v2014
  %v2030 = vmul.f32 %v2029, 0.6931472
  %v2031 = vlog2.pop %v2016
  %v2032 = vmul.f32 %v2031, 0.6931472
  %v2033 = vlog2.pop %v2018
  %v2034 = vmul.f32 %v2033, 0.6931472
  %v2035 = vlog2.pop %v2020
  %v2036 = vmul.f32 %v2035, 0.6931472
  %v2037 = vsub.f32 %v1981, %v2022
  %v2038 = vsub.f32 %v1982, %v2024
  %v2039 = vsub.f32 %v1983, %v2026
  %v2040 = vsub.f32 %v1984, %v2028
  %v2041 = vsub.f32 %v1985, %v2030
  %v2042 = vsub.f32 %v1986, %v2032
  %v2043 = vsub.f32 %v1987, %v2034
  %v2044 = vsub.f32 %v1988, %v2036
  %2045 = vst [vmem:[%s8] sm:$0xff] %v2037
  %2046 = vst [vmem:[%s8 + $0x8] sm:$0xff] %v2038
  %2047 = vst [vmem:[%s8 + $0x10] sm:$0xff] %v2039
  %2048 = vst [vmem:[%s8 + $0x18] sm:$0xff] %v2040
  %2049 = vst [vmem:[%s8 + $0x20] sm:$0xff] %v2041
  %2050 = vst [vmem:[%s8 + $0x28] sm:$0xff] %v2042
  %2051 = vst [vmem:[%s8 + $0x30] sm:$0xff] %v2043
  %2052 = vst [vmem:[%s8 + $0x38] sm:$0xff] %v2044
  // Predicated region
  $region34: #{seq2seq_forward.9} parent=0 // pred_check
    _
  $region35: #{seq2seq_forward.9} parent=0 // pred_check_branch
    %2054 = sbr.rel (0) target = $region37
  $region36: #{seq2seq_forward.9} parent=0 // pred_region
    _
  $region37: #{seq2seq_forward.9} parent=0 // pred_fallthru
    _
  // Predicated region
  $region38: #{seq2seq_forward.9} parent=0 // pred_check
    _
  $region39: #{seq2seq_forward.9} parent=0 // pred_check_branch
    %2056 = sbr.rel (0) target = $region41
  $region40: #{seq2seq_forward.9} parent=0 // pred_region
    _
  $region41: #{seq2seq_forward.9} parent=0 // pred_fallthru
    _
  // Predicated region
  $region42: #{seq2seq_forward.9} parent=0 // pred_check
    _
  $region43: #{seq2seq_forward.9} parent=0 // pred_check_branch
    %2058 = sbr.rel (0) target = $region45
  $region44: #{seq2seq_forward.9} parent=0 // pred_region
    _
  $region45: #{seq2seq_forward.9} parent=0 // pred_fallthru
    _
  // Predicated region
  $region46: #{seq2seq_forward.9} parent=0 // pred_check
    _
  $region47: #{seq2seq_forward.9} parent=0 // pred_check_branch
    %2060 = sbr.rel (0) target = $region49
  $region48: #{seq2seq_forward.9} parent=0 // pred_region
    _
  $region49: #{seq2seq_forward.9} parent=0 // pred_fallthru
    _

</llo_original>
